<compile_context>
chip_gen: v7x
topology: tpu7x:2x2x1
jax: 0.10.0
libtpu: 0.0.40
codegen_flags: <defaults>
</compile_context>

<pallas_src>
import functools
import numpy as np
import jax
import jax.numpy as jnp
from jax.experimental import pallas as pl
from jax.experimental.pallas import tpu as pltpu


# ----------------------------------------------------------------------------
# Fused kernel: conv1/2/3 (+bias, ReLU, MaxPool) + fc_1 + fc_2 + fc_out + sigmoid.
# ----------------------------------------------------------------------------
def _fused_disc_kernel(x_ref, cw_ref, cb_ref, w1_ref, b1_ref, w2_ref, b2_ref,
                       w3_ref, b3_ref, feat_ref, out_ref, *, B, P):
    f32 = jnp.float32
    dot = lambda a, b: jnp.dot(a, b, preferred_element_type=f32)

    M = B * P                                 # 50 rows: (pool position p, batch b)
    x_lo = x_ref[pl.ds(0, M), :]              # super-step q   of batch b  -> row p*B+b
    x_hi = x_ref[pl.ds(B, M), :]              # super-step q+1 of batch b

    bias = cb_ref[...]                        # (1, 3H)
    # Even / odd pooling phases of the K=5, stride=2 packed conv.
    acc_e = dot(x_lo, cw_ref[0]) + dot(x_hi, cw_ref[1]) + bias    # conv[2p]
    acc_o = dot(x_lo, cw_ref[2]) + dot(x_hi, cw_ref[3]) + bias    # conv[2p+1]
    # ReLU then MaxPool1d(2); dropout between them is inference identity.
    pooled = jnp.maximum(jnp.maximum(acc_e, 0.0), jnp.maximum(acc_o, 0.0))  # (M, 3H)

    # fc_1: torch's channel-major flatten is baked into w1_ref's row order
    # (P, 3H, 512); rows p*B..p*B+B of `pooled` are pool position p, all batches.
    h1 = dot(pooled[0:B, :], w1_ref[0])
    for p in range(1, P):
        h1 = h1 + dot(pooled[p * B:p * B + B, :], w1_ref[p])
    h1 = jnp.maximum(h1 + b1_ref[...], 0.0)

    h2 = jnp.maximum(dot(h1, w2_ref[...]) + b2_ref[...], 0.0)
    feat_ref[...] = h2.astype(feat_ref.dtype)

    logit = dot(h2, w3_ref[...]) + b3_ref[...]
    out_ref[...] = jax.nn.sigmoid(logit).astype(out_ref.dtype)


# ----------------------------------------------------------------------------
# One-time (outside jit) weight packing.
# ----------------------------------------------------------------------------
def pack_params(params):
    H = params["emb"].shape[1]

    def pad5(w):                               # (K, H, H) -> (5, H, H), zero-padded taps
        K = w.shape[0]
        if K == 5:
            return w
        return jnp.concatenate([w, jnp.zeros((5 - K,) + w.shape[1:], w.dtype)], axis=0)

    # Concatenate the three branches along out-channels: W[k] is (H, 3H).
    W = jnp.concatenate([pad5(params["conv1_w"]), pad5(params["conv2_w"]),
                         pad5(params["conv3_w"])], axis=-1)
    Z = jnp.zeros_like(W[0])
    # Super-timestep (4 tokens) regrouping of the K=5 / stride=2 conv:
    #   conv[2p]   = X4[p] @ A  + X4[p+1] @ B
    #   conv[2p+1] = X4[p] @ A' + X4[p+1] @ B'
    cw = jnp.stack([
        jnp.concatenate([W[0], W[1], W[2], W[3]], axis=0),   # A
        jnp.concatenate([W[4], Z,    Z,    Z   ], axis=0),   # B
        jnp.concatenate([Z,    Z,    W[0], W[1]], axis=0),   # A'
        jnp.concatenate([W[2], W[3], W[4], Z   ], axis=0),   # B'
    ], axis=0)                                               # (4, 4H, 3H)
    cb = jnp.concatenate([params["conv1_b"], params["conv2_b"],
                          params["conv3_b"]], axis=-1)       # (1, 3H)

    # fc_1 row permutation: torch flat index = c*(3P) + branch*P + p;
    # kernel layout is [pool position p, branch*H + c].
    n1 = params["fc1_w"].shape[1]
    P = params["fc1_w"].shape[0] // (3 * H)
    w1p = (params["fc1_w"].reshape(H, 3, P, n1)
           .transpose(2, 1, 0, 3).reshape(P, 3 * H, n1))     # (P, 3H, 512)

    return {"emb": params["emb"], "cw": cw, "cb": cb,
            "w1": w1p, "b1": params["fc1_b"],
            "w2": params["fc2_w"], "b2": params["fc2_b"],
            "w3": params["fcout_w"], "b3": params["fcout_b"]}


# ----------------------------------------------------------------------------
# Forward: embedding gather (XLA) + one fused Pallas kernel.
# ----------------------------------------------------------------------------
def discriminator_forward(pparams, input_sent):
    if input_sent.ndim == 3:                   # torch topk(1) indices path
        input_sent = jnp.argmax(input_sent, axis=-1)
    B, L = input_sent.shape
    H = pparams["emb"].shape[1]
    P = pparams["w1"].shape[0]
    assert L % 4 == 0 and ((L - 5) // 2 + 1) // 2 == P, \
        "sequence length inconsistent with the hard-coded fc_1 input size"
    L4 = L // 4

    # Gather embeddings directly into the super-timestep-interleaved layout:
    # row q*B + b of x holds tokens 4q..4q+3 of batch b (channels last).
    ids4 = jnp.transpose(input_sent.reshape(B, L4, 4), (1, 0, 2))        # (L4, B, 4)
    x = jnp.take(pparams["emb"], ids4, axis=0).reshape(L4 * B, 4 * H)    # (52, 192)
    # Dropout on embeddings: inference identity.

    kernel = functools.partial(_fused_disc_kernel, B=B, P=P)
    vmem = lambda: pl.BlockSpec(memory_space=pltpu.MemorySpace.VMEM)
    feat, out = pl.pallas_call(
        kernel,
        out_shape=(jax.ShapeDtypeStruct((B, pparams["w2"].shape[1]), x.dtype),
                   jax.ShapeDtypeStruct((B, 1), x.dtype)),
        in_specs=[vmem() for _ in range(9)],
        out_specs=(vmem(), vmem()),
        compiler_params=pltpu.CompilerParams(vmem_limit_bytes=32 * 1024 * 1024),
    )(x, pparams["cw"], pparams["cb"], pparams["w1"], pparams["b1"],
      pparams["w2"], pparams["b2"], pparams["w3"], pparams["b3"])
    return feat, out


# ----------------------------------------------------------------------------
# Deterministic parameter init (shapes as in DiscriminatorV2.__init__).
# Conv weights stored as (K, C_in, C_out); fc weights stored as (in, out).
# ----------------------------------------------------------------------------
def init_params(key, vocab, hidden):
    ks = jax.random.split(key, 12)

    def u(k, shape, fan_in):
        bound = 1.0 / np.sqrt(fan_in)
        return jax.random.uniform(k, shape, jnp.float32, -bound, bound)

    p = {}
    p["emb"] = jax.random.normal(ks[0], (vocab, hidden), jnp.float32)
    p["conv1_w"] = u(ks[1], (3, hidden, hidden), hidden * 3)
    p["conv1_b"] = u(ks[2], (1, hidden), hidden * 3)
    p["conv2_w"] = u(ks[3], (4, hidden, hidden), hidden * 4)
    p["conv2_b"] = u(ks[4], (1, hidden), hidden * 4)
    p["conv3_w"] = u(ks[5], (5, hidden, hidden), hidden * 5)
    p["conv3_b"] = u(ks[6], (1, hidden), hidden * 5)
    p["fc1_w"] = u(ks[7], (3600, 512), 3600)
    p["fc1_b"] = u(ks[8], (1, 512), 3600)
    p["fc2_w"] = u(ks[9], (512, 128), 512)
    p["fc2_b"] = u(ks[10], (1, 128), 512)
    p["fcout_w"] = u(ks[11], (128, 1), 128)
    p["fcout_b"] = jnp.zeros((1, 1), jnp.float32)
    return p


# Pure-jnp reference (same math, XLA ops) for a silent correctness check.
def reference_forward(params, ids):
    emb = jnp.take(params["emb"], ids, axis=0)
    B, L, C = emb.shape
    branches = []
    for name, K in (("conv1", 3), ("conv2", 4), ("conv3", 5)):
        w, b = params[name + "_w"], params[name + "_b"]
        L_out = (L - K) // 2 + 1
        conv = sum(
            jnp.einsum("blc,co->blo",
                       emb[:, k:k + 2 * (L_out - 1) + 1:2, :], w[k])
            for k in range(K)) + b
        conv = jnp.maximum(conv, 0.0)
        L_pool = L_out // 2
        pooled = conv[:, :2 * L_pool, :].reshape(B, L_pool, 2, C).max(axis=2)
        branches.append(jnp.transpose(pooled, (0, 2, 1)))       # NCL order
    flat = jnp.concatenate(branches, axis=-1).reshape(B, -1)
    h1 = jnp.maximum(flat @ params["fc1_w"] + params["fc1_b"], 0.0)
    h2 = jnp.maximum(h1 @ params["fc2_w"] + params["fc2_b"], 0.0)
    out = jax.nn.sigmoid(h2 @ params["fcout_w"] + params["fcout_b"])
    return h2, out


if __name__ == "__main__":
    BATCH, VOCAB, SEQ, HIDDEN = 2, 50, 104, 48   # 48 * (25+25+25) = 3600 = fc_1 in-dim
    key = jax.random.PRNGKey(0)
    pkey, ikey = jax.random.split(key)
    params = init_params(pkey, VOCAB, HIDDEN)
    pparams = pack_params(params)                 # one-time weight packing (outside jit)
    input_sent = jax.random.randint(ikey, (BATCH, SEQ), 0, VOCAB, dtype=jnp.int32)

    feat, out = jax.jit(discriminator_forward)(pparams, input_sent)
    jax.block_until_ready((feat, out))

    ref_feat, ref_out = reference_forward(params, input_sent)
    np.testing.assert_allclose(np.asarray(feat), np.asarray(ref_feat), rtol=1e-2, atol=1e-2)
    np.testing.assert_allclose(np.asarray(out), np.asarray(ref_out), rtol=1e-2, atol=1e-2)
    assert feat.shape == (BATCH, 128) and out.shape == (BATCH, 1)
    print("KERNEL_OK")
</pallas_src>

<mosaic_0001>
module attributes {stable_mosaic.version = 11 : i64} {
  func.func @_fused_disc_kernel(%arg0: memref<52x192xf32, #tpu.memory_space<vmem>>, %arg1: memref<4x192x144xf32, #tpu.memory_space<vmem>>, %arg2: memref<1x144xf32, #tpu.memory_space<vmem>>, %arg3: memref<25x144x512xf32, #tpu.memory_space<vmem>>, %arg4: memref<1x512xf32, #tpu.memory_space<vmem>>, %arg5: memref<512x128xf32, #tpu.memory_space<vmem>>, %arg6: memref<1x128xf32, #tpu.memory_space<vmem>>, %arg7: memref<128x1xf32, #tpu.memory_space<vmem>>, %arg8: memref<1x1xf32, #tpu.memory_space<vmem>>, %arg9: memref<2x128xf32, #tpu.memory_space<vmem>>, %arg10: memref<2x1xf32, #tpu.memory_space<vmem>>) attributes {dimension_semantics = [], scalar_prefetch = 0 : i64, scratch_operands = 0 : i64, tpu.core_type = #tpu.core_type<tc>} {
    %c0 = arith.constant 0 : index
    %c0_0 = arith.constant 0 : index
    %0 = vector.load %arg0[%c0, %c0_0] : memref<52x192xf32, #tpu.memory_space<vmem>>, vector<50x192xf32>
    %c2 = arith.constant 2 : index
    %c0_1 = arith.constant 0 : index
    %1 = vector.load %arg0[%c2, %c0_1] : memref<52x192xf32, #tpu.memory_space<vmem>>, vector<50x192xf32>
    %c0_2 = arith.constant 0 : index
    %c0_3 = arith.constant 0 : index
    %2 = vector.load %arg2[%c0_2, %c0_3] : memref<1x144xf32, #tpu.memory_space<vmem>>, vector<1x144xf32>
    %c0_4 = arith.constant 0 : index
    %c0_5 = arith.constant 0 : index
    %c0_6 = arith.constant 0 : index
    %3 = vector.load %arg1[%c0_4, %c0_5, %c0_6] : memref<4x192x144xf32, #tpu.memory_space<vmem>>, vector<1x192x144xf32>
    %4 = vector.shape_cast %3 : vector<1x192x144xf32> to vector<192x144xf32>
    %cst = arith.constant dense<0.000000e+00> : vector<50x144xf32>
    %5 = tpu.matmul %0, %4, %cst {dimension_numbers = #tpu.dot_dimension_numbers<[1], [0], [0], [1], [0, 0, 1, 1], [], []>} : vector<50x192xf32>, vector<192x144xf32>, vector<50x144xf32> -> vector<50x144xf32>
    %c1 = arith.constant 1 : index
    %c0_7 = arith.constant 0 : index
    %c0_8 = arith.constant 0 : index
    %6 = vector.load %arg1[%c1, %c0_7, %c0_8] : memref<4x192x144xf32, #tpu.memory_space<vmem>>, vector<1x192x144xf32>
    %7 = vector.shape_cast %6 : vector<1x192x144xf32> to vector<192x144xf32>
    %cst_9 = arith.constant dense<0.000000e+00> : vector<50x144xf32>
    %8 = tpu.matmul %1, %7, %cst_9 {dimension_numbers = #tpu.dot_dimension_numbers<[1], [0], [0], [1], [0, 0, 1, 1], [], []>} : vector<50x192xf32>, vector<192x144xf32>, vector<50x144xf32> -> vector<50x144xf32>
    %9 = arith.addf %5, %8 : vector<50x144xf32>
    %10 = vector.broadcast %2 : vector<1x144xf32> to vector<50x144xf32>
    %11 = arith.addf %9, %10 : vector<50x144xf32>
    %c2_10 = arith.constant 2 : index
    %c0_11 = arith.constant 0 : index
    %c0_12 = arith.constant 0 : index
    %12 = vector.load %arg1[%c2_10, %c0_11, %c0_12] : memref<4x192x144xf32, #tpu.memory_space<vmem>>, vector<1x192x144xf32>
    %13 = vector.shape_cast %12 : vector<1x192x144xf32> to vector<192x144xf32>
    %cst_13 = arith.constant dense<0.000000e+00> : vector<50x144xf32>
    %14 = tpu.matmul %0, %13, %cst_13 {dimension_numbers = #tpu.dot_dimension_numbers<[1], [0], [0], [1], [0, 0, 1, 1], [], []>} : vector<50x192xf32>, vector<192x144xf32>, vector<50x144xf32> -> vector<50x144xf32>
    %c3 = arith.constant 3 : index
    %c0_14 = arith.constant 0 : index
    %c0_15 = arith.constant 0 : index
    %15 = vector.load %arg1[%c3, %c0_14, %c0_15] : memref<4x192x144xf32, #tpu.memory_space<vmem>>, vector<1x192x144xf32>
    %16 = vector.shape_cast %15 : vector<1x192x144xf32> to vector<192x144xf32>
    %cst_16 = arith.constant dense<0.000000e+00> : vector<50x144xf32>
    %17 = tpu.matmul %1, %16, %cst_16 {dimension_numbers = #tpu.dot_dimension_numbers<[1], [0], [0], [1], [0, 0, 1, 1], [], []>} : vector<50x192xf32>, vector<192x144xf32>, vector<50x144xf32> -> vector<50x144xf32>
    %18 = arith.addf %14, %17 : vector<50x144xf32>
    %19 = vector.broadcast %2 : vector<1x144xf32> to vector<50x144xf32>
    %20 = arith.addf %18, %19 : vector<50x144xf32>
    %cst_17 = arith.constant 0.000000e+00 : f32
    %21 = vector.broadcast %cst_17 : f32 to vector<50x144xf32>
    %22 = arith.maximumf %11, %21 : vector<50x144xf32>
    %cst_18 = arith.constant 0.000000e+00 : f32
    %23 = vector.broadcast %cst_18 : f32 to vector<50x144xf32>
    %24 = arith.maximumf %20, %23 : vector<50x144xf32>
    %25 = arith.maximumf %22, %24 : vector<50x144xf32>
    %26 = vector.extract_strided_slice %25 {offsets = [0, 0], sizes = [2, 144], strides = [1, 1]} : vector<50x144xf32> to vector<2x144xf32>
    %c0_19 = arith.constant 0 : index
    %c0_20 = arith.constant 0 : index
    %c0_21 = arith.constant 0 : index
    %27 = vector.load %arg3[%c0_19, %c0_20, %c0_21] : memref<25x144x512xf32, #tpu.memory_space<vmem>>, vector<1x144x512xf32>
    %28 = vector.shape_cast %27 : vector<1x144x512xf32> to vector<144x512xf32>
    %cst_22 = arith.constant dense<0.000000e+00> : vector<2x512xf32>
    %29 = tpu.matmul %26, %28, %cst_22 {dimension_numbers = #tpu.dot_dimension_numbers<[1], [0], [0], [1], [0, 0, 1, 1], [], []>} : vector<2x144xf32>, vector<144x512xf32>, vector<2x512xf32> -> vector<2x512xf32>
    %30 = vector.extract_strided_slice %25 {offsets = [2, 0], sizes = [2, 144], strides = [1, 1]} : vector<50x144xf32> to vector<2x144xf32>
    %c1_23 = arith.constant 1 : index
    %c0_24 = arith.constant 0 : index
    %c0_25 = arith.constant 0 : index
    %31 = vector.load %arg3[%c1_23, %c0_24, %c0_25] : memref<25x144x512xf32, #tpu.memory_space<vmem>>, vector<1x144x512xf32>
    %32 = vector.shape_cast %31 : vector<1x144x512xf32> to vector<144x512xf32>
    %cst_26 = arith.constant dense<0.000000e+00> : vector<2x512xf32>
    %33 = tpu.matmul %30, %32, %cst_26 {dimension_numbers = #tpu.dot_dimension_numbers<[1], [0], [0], [1], [0, 0, 1, 1], [], []>} : vector<2x144xf32>, vector<144x512xf32>, vector<2x512xf32> -> vector<2x512xf32>
    %34 = arith.addf %29, %33 : vector<2x512xf32>
    %35 = vector.extract_strided_slice %25 {offsets = [4, 0], sizes = [2, 144], strides = [1, 1]} : vector<50x144xf32> to vector<2x144xf32>
    %c2_27 = arith.constant 2 : index
    %c0_28 = arith.constant 0 : index
    %c0_29 = arith.constant 0 : index
    %36 = vector.load %arg3[%c2_27, %c0_28, %c0_29] : memref<25x144x512xf32, #tpu.memory_space<vmem>>, vector<1x144x512xf32>
    %37 = vector.shape_cast %36 : vector<1x144x512xf32> to vector<144x512xf32>
    %cst_30 = arith.constant dense<0.000000e+00> : vector<2x512xf32>
    %38 = tpu.matmul %35, %37, %cst_30 {dimension_numbers = #tpu.dot_dimension_numbers<[1], [0], [0], [1], [0, 0, 1, 1], [], []>} : vector<2x144xf32>, vector<144x512xf32>, vector<2x512xf32> -> vector<2x512xf32>
    %39 = arith.addf %34, %38 : vector<2x512xf32>
    %40 = vector.extract_strided_slice %25 {offsets = [6, 0], sizes = [2, 144], strides = [1, 1]} : vector<50x144xf32> to vector<2x144xf32>
    %c3_31 = arith.constant 3 : index
    %c0_32 = arith.constant 0 : index
    %c0_33 = arith.constant 0 : index
    %41 = vector.load %arg3[%c3_31, %c0_32, %c0_33] : memref<25x144x512xf32, #tpu.memory_space<vmem>>, vector<1x144x512xf32>
    %42 = vector.shape_cast %41 : vector<1x144x512xf32> to vector<144x512xf32>
    %cst_34 = arith.constant dense<0.000000e+00> : vector<2x512xf32>
    %43 = tpu.matmul %40, %42, %cst_34 {dimension_numbers = #tpu.dot_dimension_numbers<[1], [0], [0], [1], [0, 0, 1, 1], [], []>} : vector<2x144xf32>, vector<144x512xf32>, vector<2x512xf32> -> vector<2x512xf32>
    %44 = arith.addf %39, %43 : vector<2x512xf32>
    %45 = vector.extract_strided_slice %25 {offsets = [8, 0], sizes = [2, 144], strides = [1, 1]} : vector<50x144xf32> to vector<2x144xf32>
    %c4 = arith.constant 4 : index
    %c0_35 = arith.constant 0 : index
    %c0_36 = arith.constant 0 : index
    %46 = vector.load %arg3[%c4, %c0_35, %c0_36] : memref<25x144x512xf32, #tpu.memory_space<vmem>>, vector<1x144x512xf32>
    %47 = vector.shape_cast %46 : vector<1x144x512xf32> to vector<144x512xf32>
    %cst_37 = arith.constant dense<0.000000e+00> : vector<2x512xf32>
    %48 = tpu.matmul %45, %47, %cst_37 {dimension_numbers = #tpu.dot_dimension_numbers<[1], [0], [0], [1], [0, 0, 1, 1], [], []>} : vector<2x144xf32>, vector<144x512xf32>, vector<2x512xf32> -> vector<2x512xf32>
    %49 = arith.addf %44, %48 : vector<2x512xf32>
    %50 = vector.extract_strided_slice %25 {offsets = [10, 0], sizes = [2, 144], strides = [1, 1]} : vector<50x144xf32> to vector<2x144xf32>
    %c5 = arith.constant 5 : index
    %c0_38 = arith.constant 0 : index
    %c0_39 = arith.constant 0 : index
    %51 = vector.load %arg3[%c5, %c0_38, %c0_39] : memref<25x144x512xf32, #tpu.memory_space<vmem>>, vector<1x144x512xf32>
    %52 = vector.shape_cast %51 : vector<1x144x512xf32> to vector<144x512xf32>
    %cst_40 = arith.constant dense<0.000000e+00> : vector<2x512xf32>
    %53 = tpu.matmul %50, %52, %cst_40 {dimension_numbers = #tpu.dot_dimension_numbers<[1], [0], [0], [1], [0, 0, 1, 1], [], []>} : vector<2x144xf32>, vector<144x512xf32>, vector<2x512xf32> -> vector<2x512xf32>
    %54 = arith.addf %49, %53 : vector<2x512xf32>
    %55 = vector.extract_strided_slice %25 {offsets = [12, 0], sizes = [2, 144], strides = [1, 1]} : vector<50x144xf32> to vector<2x144xf32>
    %c6 = arith.constant 6 : index
    %c0_41 = arith.constant 0 : index
    %c0_42 = arith.constant 0 : index
    %56 = vector.load %arg3[%c6, %c0_41, %c0_42] : memref<25x144x512xf32, #tpu.memory_space<vmem>>, vector<1x144x512xf32>
    %57 = vector.shape_cast %56 : vector<1x144x512xf32> to vector<144x512xf32>
    %cst_43 = arith.constant dense<0.000000e+00> : vector<2x512xf32>
    %58 = tpu.matmul %55, %57, %cst_43 {dimension_numbers = #tpu.dot_dimension_numbers<[1], [0], [0], [1], [0, 0, 1, 1], [], []>} : vector<2x144xf32>, vector<144x512xf32>, vector<2x512xf32> -> vector<2x512xf32>
    %59 = arith.addf %54, %58 : vector<2x512xf32>
    %60 = vector.extract_strided_slice %25 {offsets = [14, 0], sizes = [2, 144], strides = [1, 1]} : vector<50x144xf32> to vector<2x144xf32>
    %c7 = arith.constant 7 : index
    %c0_44 = arith.constant 0 : index
    %c0_45 = arith.constant 0 : index
    %61 = vector.load %arg3[%c7, %c0_44, %c0_45] : memref<25x144x512xf32, #tpu.memory_space<vmem>>, vector<1x144x512xf32>
    %62 = vector.shape_cast %61 : vector<1x144x512xf32> to vector<144x512xf32>
    %cst_46 = arith.constant dense<0.000000e+00> : vector<2x512xf32>
    %63 = tpu.matmul %60, %62, %cst_46 {dimension_numbers = #tpu.dot_dimension_numbers<[1], [0], [0], [1], [0, 0, 1, 1], [], []>} : vector<2x144xf32>, vector<144x512xf32>, vector<2x512xf32> -> vector<2x512xf32>
    %64 = arith.addf %59, %63 : vector<2x512xf32>
    %65 = vector.extract_strided_slice %25 {offsets = [16, 0], sizes = [2, 144], strides = [1, 1]} : vector<50x144xf32> to vector<2x144xf32>
    %c8 = arith.constant 8 : index
    %c0_47 = arith.constant 0 : index
    %c0_48 = arith.constant 0 : index
    %66 = vector.load %arg3[%c8, %c0_47, %c0_48] : memref<25x144x512xf32, #tpu.memory_space<vmem>>, vector<1x144x512xf32>
    %67 = vector.shape_cast %66 : vector<1x144x512xf32> to vector<144x512xf32>
    %cst_49 = arith.constant dense<0.000000e+00> : vector<2x512xf32>
    %68 = tpu.matmul %65, %67, %cst_49 {dimension_numbers = #tpu.dot_dimension_numbers<[1], [0], [0], [1], [0, 0, 1, 1], [], []>} : vector<2x144xf32>, vector<144x512xf32>, vector<2x512xf32> -> vector<2x512xf32>
    %69 = arith.addf %64, %68 : vector<2x512xf32>
    %70 = vector.extract_strided_slice %25 {offsets = [18, 0], sizes = [2, 144], strides = [1, 1]} : vector<50x144xf32> to vector<2x144xf32>
    %c9 = arith.constant 9 : index
    %c0_50 = arith.constant 0 : index
    %c0_51 = arith.constant 0 : index
    %71 = vector.load %arg3[%c9, %c0_50, %c0_51] : memref<25x144x512xf32, #tpu.memory_space<vmem>>, vector<1x144x512xf32>
    %72 = vector.shape_cast %71 : vector<1x144x512xf32> to vector<144x512xf32>
    %cst_52 = arith.constant dense<0.000000e+00> : vector<2x512xf32>
    %73 = tpu.matmul %70, %72, %cst_52 {dimension_numbers = #tpu.dot_dimension_numbers<[1], [0], [0], [1], [0, 0, 1, 1], [], []>} : vector<2x144xf32>, vector<144x512xf32>, vector<2x512xf32> -> vector<2x512xf32>
    %74 = arith.addf %69, %73 : vector<2x512xf32>
    %75 = vector.extract_strided_slice %25 {offsets = [20, 0], sizes = [2, 144], strides = [1, 1]} : vector<50x144xf32> to vector<2x144xf32>
    %c10 = arith.constant 10 : index
    %c0_53 = arith.constant 0 : index
    %c0_54 = arith.constant 0 : index
    %76 = vector.load %arg3[%c10, %c0_53, %c0_54] : memref<25x144x512xf32, #tpu.memory_space<vmem>>, vector<1x144x512xf32>
    %77 = vector.shape_cast %76 : vector<1x144x512xf32> to vector<144x512xf32>
    %cst_55 = arith.constant dense<0.000000e+00> : vector<2x512xf32>
    %78 = tpu.matmul %75, %77, %cst_55 {dimension_numbers = #tpu.dot_dimension_numbers<[1], [0], [0], [1], [0, 0, 1, 1], [], []>} : vector<2x144xf32>, vector<144x512xf32>, vector<2x512xf32> -> vector<2x512xf32>
    %79 = arith.addf %74, %78 : vector<2x512xf32>
    %80 = vector.extract_strided_slice %25 {offsets = [22, 0], sizes = [2, 144], strides = [1, 1]} : vector<50x144xf32> to vector<2x144xf32>
    %c11 = arith.constant 11 : index
    %c0_56 = arith.constant 0 : index
    %c0_57 = arith.constant 0 : index
    %81 = vector.load %arg3[%c11, %c0_56, %c0_57] : memref<25x144x512xf32, #tpu.memory_space<vmem>>, vector<1x144x512xf32>
    %82 = vector.shape_cast %81 : vector<1x144x512xf32> to vector<144x512xf32>
    %cst_58 = arith.constant dense<0.000000e+00> : vector<2x512xf32>
    %83 = tpu.matmul %80, %82, %cst_58 {dimension_numbers = #tpu.dot_dimension_numbers<[1], [0], [0], [1], [0, 0, 1, 1], [], []>} : vector<2x144xf32>, vector<144x512xf32>, vector<2x512xf32> -> vector<2x512xf32>
    %84 = arith.addf %79, %83 : vector<2x512xf32>
    %85 = vector.extract_strided_slice %25 {offsets = [24, 0], sizes = [2, 144], strides = [1, 1]} : vector<50x144xf32> to vector<2x144xf32>
    %c12 = arith.constant 12 : index
    %c0_59 = arith.constant 0 : index
    %c0_60 = arith.constant 0 : index
    %86 = vector.load %arg3[%c12, %c0_59, %c0_60] : memref<25x144x512xf32, #tpu.memory_space<vmem>>, vector<1x144x512xf32>
    %87 = vector.shape_cast %86 : vector<1x144x512xf32> to vector<144x512xf32>
    %cst_61 = arith.constant dense<0.000000e+00> : vector<2x512xf32>
    %88 = tpu.matmul %85, %87, %cst_61 {dimension_numbers = #tpu.dot_dimension_numbers<[1], [0], [0], [1], [0, 0, 1, 1], [], []>} : vector<2x144xf32>, vector<144x512xf32>, vector<2x512xf32> -> vector<2x512xf32>
    %89 = arith.addf %84, %88 : vector<2x512xf32>
    %90 = vector.extract_strided_slice %25 {offsets = [26, 0], sizes = [2, 144], strides = [1, 1]} : vector<50x144xf32> to vector<2x144xf32>
    %c13 = arith.constant 13 : index
    %c0_62 = arith.constant 0 : index
    %c0_63 = arith.constant 0 : index
    %91 = vector.load %arg3[%c13, %c0_62, %c0_63] : memref<25x144x512xf32, #tpu.memory_space<vmem>>, vector<1x144x512xf32>
    %92 = vector.shape_cast %91 : vector<1x144x512xf32> to vector<144x512xf32>
    %cst_64 = arith.constant dense<0.000000e+00> : vector<2x512xf32>
    %93 = tpu.matmul %90, %92, %cst_64 {dimension_numbers = #tpu.dot_dimension_numbers<[1], [0], [0], [1], [0, 0, 1, 1], [], []>} : vector<2x144xf32>, vector<144x512xf32>, vector<2x512xf32> -> vector<2x512xf32>
    %94 = arith.addf %89, %93 : vector<2x512xf32>
    %95 = vector.extract_strided_slice %25 {offsets = [28, 0], sizes = [2, 144], strides = [1, 1]} : vector<50x144xf32> to vector<2x144xf32>
    %c14 = arith.constant 14 : index
    %c0_65 = arith.constant 0 : index
    %c0_66 = arith.constant 0 : index
    %96 = vector.load %arg3[%c14, %c0_65, %c0_66] : memref<25x144x512xf32, #tpu.memory_space<vmem>>, vector<1x144x512xf32>
    %97 = vector.shape_cast %96 : vector<1x144x512xf32> to vector<144x512xf32>
    %cst_67 = arith.constant dense<0.000000e+00> : vector<2x512xf32>
    %98 = tpu.matmul %95, %97, %cst_67 {dimension_numbers = #tpu.dot_dimension_numbers<[1], [0], [0], [1], [0, 0, 1, 1], [], []>} : vector<2x144xf32>, vector<144x512xf32>, vector<2x512xf32> -> vector<2x512xf32>
    %99 = arith.addf %94, %98 : vector<2x512xf32>
    %100 = vector.extract_strided_slice %25 {offsets = [30, 0], sizes = [2, 144], strides = [1, 1]} : vector<50x144xf32> to vector<2x144xf32>
    %c15 = arith.constant 15 : index
    %c0_68 = arith.constant 0 : index
    %c0_69 = arith.constant 0 : index
    %101 = vector.load %arg3[%c15, %c0_68, %c0_69] : memref<25x144x512xf32, #tpu.memory_space<vmem>>, vector<1x144x512xf32>
    %102 = vector.shape_cast %101 : vector<1x144x512xf32> to vector<144x512xf32>
    %cst_70 = arith.constant dense<0.000000e+00> : vector<2x512xf32>
    %103 = tpu.matmul %100, %102, %cst_70 {dimension_numbers = #tpu.dot_dimension_numbers<[1], [0], [0], [1], [0, 0, 1, 1], [], []>} : vector<2x144xf32>, vector<144x512xf32>, vector<2x512xf32> -> vector<2x512xf32>
    %104 = arith.addf %99, %103 : vector<2x512xf32>
    %105 = vector.extract_strided_slice %25 {offsets = [32, 0], sizes = [2, 144], strides = [1, 1]} : vector<50x144xf32> to vector<2x144xf32>
    %c16 = arith.constant 16 : index
    %c0_71 = arith.constant 0 : index
    %c0_72 = arith.constant 0 : index
    %106 = vector.load %arg3[%c16, %c0_71, %c0_72] : memref<25x144x512xf32, #tpu.memory_space<vmem>>, vector<1x144x512xf32>
    %107 = vector.shape_cast %106 : vector<1x144x512xf32> to vector<144x512xf32>
    %cst_73 = arith.constant dense<0.000000e+00> : vector<2x512xf32>
    %108 = tpu.matmul %105, %107, %cst_73 {dimension_numbers = #tpu.dot_dimension_numbers<[1], [0], [0], [1], [0, 0, 1, 1], [], []>} : vector<2x144xf32>, vector<144x512xf32>, vector<2x512xf32> -> vector<2x512xf32>
    %109 = arith.addf %104, %108 : vector<2x512xf32>
    %110 = vector.extract_strided_slice %25 {offsets = [34, 0], sizes = [2, 144], strides = [1, 1]} : vector<50x144xf32> to vector<2x144xf32>
    %c17 = arith.constant 17 : index
    %c0_74 = arith.constant 0 : index
    %c0_75 = arith.constant 0 : index
    %111 = vector.load %arg3[%c17, %c0_74, %c0_75] : memref<25x144x512xf32, #tpu.memory_space<vmem>>, vector<1x144x512xf32>
    %112 = vector.shape_cast %111 : vector<1x144x512xf32> to vector<144x512xf32>
    %cst_76 = arith.constant dense<0.000000e+00> : vector<2x512xf32>
    %113 = tpu.matmul %110, %112, %cst_76 {dimension_numbers = #tpu.dot_dimension_numbers<[1], [0], [0], [1], [0, 0, 1, 1], [], []>} : vector<2x144xf32>, vector<144x512xf32>, vector<2x512xf32> -> vector<2x512xf32>
    %114 = arith.addf %109, %113 : vector<2x512xf32>
    %115 = vector.extract_strided_slice %25 {offsets = [36, 0], sizes = [2, 144], strides = [1, 1]} : vector<50x144xf32> to vector<2x144xf32>
    %c18 = arith.constant 18 : index
    %c0_77 = arith.constant 0 : index
    %c0_78 = arith.constant 0 : index
    %116 = vector.load %arg3[%c18, %c0_77, %c0_78] : memref<25x144x512xf32, #tpu.memory_space<vmem>>, vector<1x144x512xf32>
    %117 = vector.shape_cast %116 : vector<1x144x512xf32> to vector<144x512xf32>
    %cst_79 = arith.constant dense<0.000000e+00> : vector<2x512xf32>
    %118 = tpu.matmul %115, %117, %cst_79 {dimension_numbers = #tpu.dot_dimension_numbers<[1], [0], [0], [1], [0, 0, 1, 1], [], []>} : vector<2x144xf32>, vector<144x512xf32>, vector<2x512xf32> -> vector<2x512xf32>
    %119 = arith.addf %114, %118 : vector<2x512xf32>
    %120 = vector.extract_strided_slice %25 {offsets = [38, 0], sizes = [2, 144], strides = [1, 1]} : vector<50x144xf32> to vector<2x144xf32>
    %c19 = arith.constant 19 : index
    %c0_80 = arith.constant 0 : index
    %c0_81 = arith.constant 0 : index
    %121 = vector.load %arg3[%c19, %c0_80, %c0_81] : memref<25x144x512xf32, #tpu.memory_space<vmem>>, vector<1x144x512xf32>
    %122 = vector.shape_cast %121 : vector<1x144x512xf32> to vector<144x512xf32>
    %cst_82 = arith.constant dense<0.000000e+00> : vector<2x512xf32>
    %123 = tpu.matmul %120, %122, %cst_82 {dimension_numbers = #tpu.dot_dimension_numbers<[1], [0], [0], [1], [0, 0, 1, 1], [], []>} : vector<2x144xf32>, vector<144x512xf32>, vector<2x512xf32> -> vector<2x512xf32>
    %124 = arith.addf %119, %123 : vector<2x512xf32>
    %125 = vector.extract_strided_slice %25 {offsets = [40, 0], sizes = [2, 144], strides = [1, 1]} : vector<50x144xf32> to vector<2x144xf32>
    %c20 = arith.constant 20 : index
    %c0_83 = arith.constant 0 : index
    %c0_84 = arith.constant 0 : index
    %126 = vector.load %arg3[%c20, %c0_83, %c0_84] : memref<25x144x512xf32, #tpu.memory_space<vmem>>, vector<1x144x512xf32>
    %127 = vector.shape_cast %126 : vector<1x144x512xf32> to vector<144x512xf32>
    %cst_85 = arith.constant dense<0.000000e+00> : vector<2x512xf32>
    %128 = tpu.matmul %125, %127, %cst_85 {dimension_numbers = #tpu.dot_dimension_numbers<[1], [0], [0], [1], [0, 0, 1, 1], [], []>} : vector<2x144xf32>, vector<144x512xf32>, vector<2x512xf32> -> vector<2x512xf32>
    %129 = arith.addf %124, %128 : vector<2x512xf32>
    %130 = vector.extract_strided_slice %25 {offsets = [42, 0], sizes = [2, 144], strides = [1, 1]} : vector<50x144xf32> to vector<2x144xf32>
    %c21 = arith.constant 21 : index
    %c0_86 = arith.constant 0 : index
    %c0_87 = arith.constant 0 : index
    %131 = vector.load %arg3[%c21, %c0_86, %c0_87] : memref<25x144x512xf32, #tpu.memory_space<vmem>>, vector<1x144x512xf32>
    %132 = vector.shape_cast %131 : vector<1x144x512xf32> to vector<144x512xf32>
    %cst_88 = arith.constant dense<0.000000e+00> : vector<2x512xf32>
    %133 = tpu.matmul %130, %132, %cst_88 {dimension_numbers = #tpu.dot_dimension_numbers<[1], [0], [0], [1], [0, 0, 1, 1], [], []>} : vector<2x144xf32>, vector<144x512xf32>, vector<2x512xf32> -> vector<2x512xf32>
    %134 = arith.addf %129, %133 : vector<2x512xf32>
    %135 = vector.extract_strided_slice %25 {offsets = [44, 0], sizes = [2, 144], strides = [1, 1]} : vector<50x144xf32> to vector<2x144xf32>
    %c22 = arith.constant 22 : index
    %c0_89 = arith.constant 0 : index
    %c0_90 = arith.constant 0 : index
    %136 = vector.load %arg3[%c22, %c0_89, %c0_90] : memref<25x144x512xf32, #tpu.memory_space<vmem>>, vector<1x144x512xf32>
    %137 = vector.shape_cast %136 : vector<1x144x512xf32> to vector<144x512xf32>
    %cst_91 = arith.constant dense<0.000000e+00> : vector<2x512xf32>
    %138 = tpu.matmul %135, %137, %cst_91 {dimension_numbers = #tpu.dot_dimension_numbers<[1], [0], [0], [1], [0, 0, 1, 1], [], []>} : vector<2x144xf32>, vector<144x512xf32>, vector<2x512xf32> -> vector<2x512xf32>
    %139 = arith.addf %134, %138 : vector<2x512xf32>
    %140 = vector.extract_strided_slice %25 {offsets = [46, 0], sizes = [2, 144], strides = [1, 1]} : vector<50x144xf32> to vector<2x144xf32>
    %c23 = arith.constant 23 : index
    %c0_92 = arith.constant 0 : index
    %c0_93 = arith.constant 0 : index
    %141 = vector.load %arg3[%c23, %c0_92, %c0_93] : memref<25x144x512xf32, #tpu.memory_space<vmem>>, vector<1x144x512xf32>
    %142 = vector.shape_cast %141 : vector<1x144x512xf32> to vector<144x512xf32>
    %cst_94 = arith.constant dense<0.000000e+00> : vector<2x512xf32>
    %143 = tpu.matmul %140, %142, %cst_94 {dimension_numbers = #tpu.dot_dimension_numbers<[1], [0], [0], [1], [0, 0, 1, 1], [], []>} : vector<2x144xf32>, vector<144x512xf32>, vector<2x512xf32> -> vector<2x512xf32>
    %144 = arith.addf %139, %143 : vector<2x512xf32>
    %145 = vector.extract_strided_slice %25 {offsets = [48, 0], sizes = [2, 144], strides = [1, 1]} : vector<50x144xf32> to vector<2x144xf32>
    %c24 = arith.constant 24 : index
    %c0_95 = arith.constant 0 : index
    %c0_96 = arith.constant 0 : index
    %146 = vector.load %arg3[%c24, %c0_95, %c0_96] : memref<25x144x512xf32, #tpu.memory_space<vmem>>, vector<1x144x512xf32>
    %147 = vector.shape_cast %146 : vector<1x144x512xf32> to vector<144x512xf32>
    %cst_97 = arith.constant dense<0.000000e+00> : vector<2x512xf32>
    %148 = tpu.matmul %145, %147, %cst_97 {dimension_numbers = #tpu.dot_dimension_numbers<[1], [0], [0], [1], [0, 0, 1, 1], [], []>} : vector<2x144xf32>, vector<144x512xf32>, vector<2x512xf32> -> vector<2x512xf32>
    %149 = arith.addf %144, %148 : vector<2x512xf32>
    %c0_98 = arith.constant 0 : index
    %c0_99 = arith.constant 0 : index
    %150 = vector.load %arg4[%c0_98, %c0_99] : memref<1x512xf32, #tpu.memory_space<vmem>>, vector<1x512xf32>
    %151 = vector.broadcast %150 : vector<1x512xf32> to vector<2x512xf32>
    %152 = arith.addf %149, %151 : vector<2x512xf32>
    %cst_100 = arith.constant 0.000000e+00 : f32
    %153 = vector.broadcast %cst_100 : f32 to vector<2x512xf32>
    %154 = arith.maximumf %152, %153 : vector<2x512xf32>
    %c0_101 = arith.constant 0 : index
    %c0_102 = arith.constant 0 : index
    %155 = vector.load %arg5[%c0_101, %c0_102] : memref<512x128xf32, #tpu.memory_space<vmem>>, vector<512x128xf32>
    %cst_103 = arith.constant dense<0.000000e+00> : vector<2x128xf32>
    %156 = tpu.matmul %154, %155, %cst_103 {dimension_numbers = #tpu.dot_dimension_numbers<[1], [0], [0], [1], [0, 0, 1, 1], [], []>} : vector<2x512xf32>, vector<512x128xf32>, vector<2x128xf32> -> vector<2x128xf32>
    %c0_104 = arith.constant 0 : index
    %c0_105 = arith.constant 0 : index
    %157 = vector.load %arg6[%c0_104, %c0_105] : memref<1x128xf32, #tpu.memory_space<vmem>>, vector<1x128xf32>
    %158 = vector.broadcast %157 : vector<1x128xf32> to vector<2x128xf32>
    %159 = arith.addf %156, %158 : vector<2x128xf32>
    %cst_106 = arith.constant 0.000000e+00 : f32
    %160 = vector.broadcast %cst_106 : f32 to vector<2x128xf32>
    %161 = arith.maximumf %159, %160 : vector<2x128xf32>
    %c0_107 = arith.constant 0 : index
    %c0_108 = arith.constant 0 : index
    %162 = vector.load %arg9[%c0_107, %c0_108] : memref<2x128xf32, #tpu.memory_space<vmem>>, vector<2x128xf32>
    tpu.vector_store %arg9[%c0_107, %c0_108], %161 {strides = array<i32>} : memref<2x128xf32, #tpu.memory_space<vmem>>, vector<2x128xf32>,
    %c0_109 = arith.constant 0 : index
    %c0_110 = arith.constant 0 : index
    %163 = vector.load %arg7[%c0_109, %c0_110] : memref<128x1xf32, #tpu.memory_space<vmem>>, vector<128x1xf32>
    %cst_111 = arith.constant dense<0.000000e+00> : vector<2x1xf32>
    %164 = tpu.matmul %161, %163, %cst_111 {dimension_numbers = #tpu.dot_dimension_numbers<[1], [0], [0], [1], [0, 0, 1, 1], [], []>} : vector<2x128xf32>, vector<128x1xf32>, vector<2x1xf32> -> vector<2x1xf32>
    %c0_112 = arith.constant 0 : index
    %c0_113 = arith.constant 0 : index
    %165 = vector.load %arg8[%c0_112, %c0_113] : memref<1x1xf32, #tpu.memory_space<vmem>>, vector<1x1xf32>
    %166 = vector.broadcast %165 : vector<1x1xf32> to vector<2x1xf32>
    %167 = arith.addf %164, %166 : vector<2x1xf32>
    %168 = arith.negf %167 : vector<2x1xf32>
    %169 = math.exp %168 : vector<2x1xf32>
    %cst_114 = arith.constant 1.000000e+00 : f32
    %170 = vector.broadcast %cst_114 : f32 to vector<2x1xf32>
    %171 = arith.addf %170, %169 : vector<2x1xf32>
    %172 = arith.divf %170, %171 : vector<2x1xf32>
    %c0_115 = arith.constant 0 : index
    %c0_116 = arith.constant 0 : index
    %173 = vector.load %arg10[%c0_115, %c0_116] : memref<2x1xf32, #tpu.memory_space<vmem>>, vector<2x1xf32>
    tpu.vector_store %arg10[%c0_115, %c0_116], %172 {strides = array<i32>} : memref<2x1xf32, #tpu.memory_space<vmem>>, vector<2x1xf32>,
    return
  }
}

</mosaic_0001>

<llo_original>
// kernel: discriminator_forward.1
$region0: #{discriminator_forward.1}
  #allocation0 [shape = 'u32[]', space=smem, size = 0x4, offset = 0x4, fixed_abs, tag = 'smem constant byte address 0x4 - core index']
  #allocation1 [shape = 'u32[144,128]{1,0:T(1,128)}', space=vmem, size = 0x12000, scoped, tag = 'internal scratch']
  #allocation2 [shape = 'f32[1,1]{1,0:T(1,128)S(1)}', space=vmem, size = 0x200, scoped, tag = 'scoped memory for discriminator_forward.1']
  %s0 = inlined_call_operand.vmem [shape: f32[52,192], index: 0, kind: input, shape index: {}]
  %s1 = inlined_call_operand.vmem [shape: f32[4,192,144], index: 1, kind: input, shape index: {}]
  %s2 = inlined_call_operand.hbm [shape: f32[1,144], index: 2, kind: input, shape index: {}]
  %s3 = inlined_call_operand.hbm [shape: f32[25,144,512], index: 3, kind: input, shape index: {}]
  %s4 = inlined_call_operand.hbm [shape: f32[1,512], index: 4, kind: input, shape index: {}]
  %s5 = inlined_call_operand.hbm [shape: f32[512,128], index: 5, kind: input, shape index: {}]
  %s6 = inlined_call_operand.hbm [shape: f32[1,128], index: 6, kind: input, shape index: {}]
  %s7 = inlined_call_operand.vmem [shape: f32[128,1], index: 7, kind: input, shape index: {}]
  %s8 = inlined_call_operand.<no memory space> [shape: f32[1,1], index: 8, kind: input, shape index: {}]
  %s9 = inlined_call_operand.hbm [shape: f32[2,128], index: 9, kind: output, shape index: {0}]
  %s10 = inlined_call_operand.vmem [shape: f32[2,1], index: 10, kind: output, shape index: {1}]
  %11 = xla_tuple %s9, %s10
  %s12 = sld [smem:[#allocation0]]
  $region74: #{discriminator_forward.1} parent=0
    _
  %s14 = ssub.s32 1, %s12
  %s15 = scalar_select 0, %s14, %s12
  %v16 = vstv %s8
  %17 = vst [vmem:[#allocation2] sm:$0x1] %v16
  $region1: #{discriminator_forward.1} parent=0
    #allocation3 [shape = 'u8[1024]{0}', space=vmem, size = 0x400, scoped, tag = 'input window, operand 2, single buffered']
    #allocation4 [shape = 's32[1]{0}', space=sflag, size = 0x4, scoped, tag = 'scoped memory for discriminator_forward.1']
    #allocation5 [shape = 's32[1]{0}', space=sflag, size = 0x4, scoped, tag = 'scoped memory for discriminator_forward.1']
    #allocation6 [shape = 'u8[7372800]{0}', space=vmem, size = 0x708000, scoped, tag = 'input window, operand 3, single buffered']
    #allocation7 [shape = 's32[1]{0}', space=sflag, size = 0x4, scoped, tag = 'scoped memory for discriminator_forward.1']
    #allocation8 [shape = 'u8[2048]{0}', space=vmem, size = 0x800, scoped, tag = 'input window, operand 4, single buffered']
    #allocation9 [shape = 'u8[262144]{0}', space=vmem, size = 0x40000, scoped, tag = 'input window, operand 5, single buffered']
    #allocation10 [shape = 's32[1]{0}', space=sflag, size = 0x4, scoped, tag = 'scoped memory for discriminator_forward.1']
    #allocation11 [shape = 'u8[512]{0}', space=vmem, size = 0x400, scoped, tag = 'input window, operand 6, single buffered']
    #allocation12 [shape = 'u8[1024]{0}', space=vmem, size = 0x400, scoped, tag = 'output window, operand 0, single buffered']
    %18 = vsyncpa [#allocation4], 0
    %19 = vsyncpa [#allocation7], 0
    %20 = vsyncpa [#allocation10], 0
    %21 = vsyncpa [#allocation5], 0
    // Predicated region
    $region2: #{discriminator_forward.1} parent=1 // pred_check
      _
    $region3: #{discriminator_forward.1} parent=1 // pred_check_branch
      %23 = sbr.rel (0) target = $region5
    $region4: #{discriminator_forward.1} parent=1 // pred_region
      _
    $region5: #{discriminator_forward.1} parent=1 // pred_fallthru
      _
    // Predicated region
    $region6: #{discriminator_forward.1} parent=1 // pred_check
      _
    $region7: #{discriminator_forward.1} parent=1 // pred_check_branch
      %25 = sbr.rel (0) target = $region9
    $region8: #{discriminator_forward.1} parent=1 // pred_region
      _
    $region9: #{discriminator_forward.1} parent=1 // pred_fallthru
      _
    // Predicated region
    $region10: #{discriminator_forward.1} parent=1 // pred_check
      _
    $region11: #{discriminator_forward.1} parent=1 // pred_check_branch
      %27 = sbr.rel (0) target = $region13
    $region12: #{discriminator_forward.1} parent=1 // pred_region
      %s29 = ssub.s32 32, 32
      %30 = vsyncadd [#allocation4], %s29
      %s32 = sshll.u32 [#allocation3], 4
      %s33 = int_to_ptr.vmem [resolvable:$true] %s32
      %35 = dma.hbm_to_vmem [thread:$0]  %s2, 32, %s33, [#allocation4]
    $region13: #{discriminator_forward.1} parent=1 // pred_fallthru
      _
    // Predicated region
    $region14: #{discriminator_forward.1} parent=1 // pred_check
      _
    $region15: #{discriminator_forward.1} parent=1 // pred_check_branch
      %37 = sbr.rel (0) target = $region17
    $region16: #{discriminator_forward.1} parent=1 // pred_region
      %s39 = ssub.s32 230400, 230400
      %40 = vsyncadd [#allocation7], %s39
      %s41 = sshll.u32 [#allocation6], 4
      %s42 = int_to_ptr.vmem [resolvable:$true] %s41
      %47 = dma.hbm_to_vmem [thread:$0]  %s3, 230400, %s42, [#allocation7], 512, 512, 32
    $region17: #{discriminator_forward.1} parent=1 // pred_fallthru
      _
    // Predicated region
    $region18: #{discriminator_forward.1} parent=1 // pred_check
      _
    $region19: #{discriminator_forward.1} parent=1 // pred_check_branch
      %49 = sbr.rel (0) target = $region21
    $region20: #{discriminator_forward.1} parent=1 // pred_region
      %s51 = ssub.s32 64, 64
      %52 = vsyncadd [#allocation7], %s51
      %s54 = sshll.u32 [#allocation8], 4
      %s55 = int_to_ptr.vmem [resolvable:$true] %s54
      %57 = dma.hbm_to_vmem [thread:$0]  %s4, 64, %s55, [#allocation7]
    $region21: #{discriminator_forward.1} parent=1 // pred_fallthru
      _
    // Predicated region
    $region22: #{discriminator_forward.1} parent=1 // pred_check
      _
    $region23: #{discriminator_forward.1} parent=1 // pred_check_branch
      %59 = sbr.rel (0) target = $region25
    $region24: #{discriminator_forward.1} parent=1 // pred_region
      %s61 = ssub.s32 8192, 8192
      %62 = vsyncadd [#allocation10], %s61
      %s63 = sshll.u32 [#allocation9], 4
      %s64 = int_to_ptr.vmem [resolvable:$true] %s63
      %69 = dma.hbm_to_vmem [thread:$0]  %s5, 8192, %s64, [#allocation10], 128, 128, 8
    $region25: #{discriminator_forward.1} parent=1 // pred_fallthru
      _
    // Predicated region
    $region26: #{discriminator_forward.1} parent=1 // pred_check
      _
    $region27: #{discriminator_forward.1} parent=1 // pred_check_branch
      %71 = sbr.rel (0) target = $region29
    $region28: #{discriminator_forward.1} parent=1 // pred_region
      %s73 = ssub.s32 16, 16
      %74 = vsyncadd [#allocation10], %s73
      %s76 = sshll.u32 [#allocation11], 4
      %s77 = int_to_ptr.vmem [resolvable:$true] %s76
      %79 = dma.hbm_to_vmem [thread:$0]  %s6, 16, %s77, [#allocation10]
    $region29: #{discriminator_forward.1} parent=1 // pred_fallthru
      _
    // Predicated region
    $region30: #{discriminator_forward.1} parent=1 // pred_check
      _
    $region31: #{discriminator_forward.1} parent=1 // pred_check_branch
      %81 = sbr.rel (0) target = $region33
    $region32: #{discriminator_forward.1} parent=1 // pred_region
      _
    $region33: #{discriminator_forward.1} parent=1 // pred_fallthru
      _
    // Predicated region
    $region34: #{discriminator_forward.1} parent=1 // pred_check
      _
    $region35: #{discriminator_forward.1} parent=1 // pred_check_branch
      %83 = sbr.rel (0) target = $region37
    $region36: #{discriminator_forward.1} parent=1 // pred_region
      _
    $region37: #{discriminator_forward.1} parent=1 // pred_fallthru
      _
    // Predicated region
    $region38: #{discriminator_forward.1} parent=1 // pred_check
      _
    $region39: #{discriminator_forward.1} parent=1 // pred_check_branch
      %85 = sbr.rel (0) target = $region41
    $region40: #{discriminator_forward.1} parent=1 // pred_region
      %86 = dma.done [#allocation4], 32
    $region41: #{discriminator_forward.1} parent=1 // pred_fallthru
      _
    // Predicated region
    $region42: #{discriminator_forward.1} parent=1 // pred_check
      _
    $region43: #{discriminator_forward.1} parent=1 // pred_check_branch
      %88 = sbr.rel (0) target = $region45
    $region44: #{discriminator_forward.1} parent=1 // pred_region
      %89 = dma.done [#allocation7], 230400
    $region45: #{discriminator_forward.1} parent=1 // pred_fallthru
      _
    // Predicated region
    $region46: #{discriminator_forward.1} parent=1 // pred_check
      _
    $region47: #{discriminator_forward.1} parent=1 // pred_check_branch
      %91 = sbr.rel (0) target = $region49
    $region48: #{discriminator_forward.1} parent=1 // pred_region
      %92 = dma.done [#allocation7], 64
    $region49: #{discriminator_forward.1} parent=1 // pred_fallthru
      _
    // Predicated region
    $region50: #{discriminator_forward.1} parent=1 // pred_check
      _
    $region51: #{discriminator_forward.1} parent=1 // pred_check_branch
      %94 = sbr.rel (0) target = $region53
    $region52: #{discriminator_forward.1} parent=1 // pred_region
      %95 = dma.done [#allocation10], 8192
    $region53: #{discriminator_forward.1} parent=1 // pred_fallthru
      _
    // Predicated region
    $region54: #{discriminator_forward.1} parent=1 // pred_check
      _
    $region55: #{discriminator_forward.1} parent=1 // pred_check_branch
      %97 = sbr.rel (0) target = $region57
    $region56: #{discriminator_forward.1} parent=1 // pred_region
      %98 = dma.done [#allocation10], 16
    $region57: #{discriminator_forward.1} parent=1 // pred_fallthru
      _
    %v99 = vld [vmem:[%s0] sm:$0xff]
    %v100 = vld [vmem:[%s0 + $0x8] sm:$0xff]
    %v101 = vld [vmem:[%s0 + $0x10] sm:$0xff]
    %v102 = vld [vmem:[%s0 + $0x18] sm:$0xff]
    %v103 = vld [vmem:[%s0 + $0x20] sm:$0xff]
    %v104 = vld [vmem:[%s0 + $0x28] sm:$0xff]
    %v105 = vld [vmem:[%s0 + $0x30] sm:$0xff]
    %v106 = vld [vmem:[%s0 + $0x38] sm:$0xff]
    %v107 = vld [vmem:[%s0 + $0x40] sm:$0xff]
    %v108 = vld [vmem:[%s0 + $0x48] sm:$0xff]
    %v109 = vld [vmem:[%s0 + $0x50] sm:$0xff]
    %v110 = vld [vmem:[%s0 + $0x58] sm:$0xff]
    %v111 = vld [vmem:[%s0 + $0x60] sm:$0x3]
    %v112 = vld [vmem:[%s0 + $0x68] sm:$0x3]
    %v113 = vld [vmem:[%s0] sm:$0xfc]
    %v114 = vld [vmem:[%s0 + $0x8] sm:$0xfc]
    %v115 = vld [vmem:[%s0 + $0x60] sm:$0xf]
    %v116 = vld [vmem:[%s0 + $0x68] sm:$0xf]
    %v117 = vld [vmem:[#allocation3] sm:$0x3]
    %v118 = vld [vmem:[%s1] sm:$0xff]
    %v119 = vld [vmem:[%s1 + $0x8] sm:$0xff]
    %v120 = vld [vmem:[%s1 + $0x10] sm:$0xff]
    %v121 = vld [vmem:[%s1 + $0x18] sm:$0xff]
    %v122 = vld [vmem:[%s1 + $0x20] sm:$0xff]
    %v123 = vld [vmem:[%s1 + $0x28] sm:$0xff]
    %v124 = vld [vmem:[%s1 + $0x30] sm:$0xff]
    %v125 = vld [vmem:[%s1 + $0x38] sm:$0xff]
    %v126 = vld [vmem:[%s1 + $0x40] sm:$0xff]
    %v127 = vld [vmem:[%s1 + $0x48] sm:$0xff]
    %v128 = vld [vmem:[%s1 + $0x50] sm:$0xff]
    %v129 = vld [vmem:[%s1 + $0x58] sm:$0xff]
    %v130 = vld [vmem:[%s1 + $0x60] sm:$0xff]
    %v131 = vld [vmem:[%s1 + $0x68] sm:$0xff]
    %v132 = vld [vmem:[%s1 + $0x70] sm:$0xff]
    %v133 = vld [vmem:[%s1 + $0x78] sm:$0xff]
    %v134 = vld [vmem:[%s1 + $0x80] sm:$0xff]
    %v135 = vld [vmem:[%s1 + $0x88] sm:$0xff]
    %v136 = vld [vmem:[%s1 + $0x90] sm:$0xff]
    %v137 = vld [vmem:[%s1 + $0x98] sm:$0xff]
    %v138 = vld [vmem:[%s1 + $0xa0] sm:$0xff]
    %v139 = vld [vmem:[%s1 + $0xa8] sm:$0xff]
    %v140 = vld [vmem:[%s1 + $0xb0] sm:$0xff]
    %v141 = vld [vmem:[%s1 + $0xb8] sm:$0xff]
    %v142 = vld [vmem:[%s1 + $0xc0] sm:$0xff]
    %v143 = vld [vmem:[%s1 + $0xc8] sm:$0xff]
    %v144 = vld [vmem:[%s1 + $0xd0] sm:$0xff]
    %v145 = vld [vmem:[%s1 + $0xd8] sm:$0xff]
    %v146 = vld [vmem:[%s1 + $0xe0] sm:$0xff]
    %v147 = vld [vmem:[%s1 + $0xe8] sm:$0xff]
    %v148 = vld [vmem:[%s1 + $0xf0] sm:$0xff]
    %v149 = vld [vmem:[%s1 + $0xf8] sm:$0xff]
    %v150 = vld [vmem:[%s1 + $0x100] sm:$0xff]
    %v151 = vld [vmem:[%s1 + $0x108] sm:$0xff]
    %v152 = vld [vmem:[%s1 + $0x110] sm:$0xff]
    %v153 = vld [vmem:[%s1 + $0x118] sm:$0xff]
    %v154 = vld [vmem:[%s1 + $0x120] sm:$0xff]
    %v155 = vld [vmem:[%s1 + $0x128] sm:$0xff]
    %v156 = vld [vmem:[%s1 + $0x130] sm:$0xff]
    %v157 = vld [vmem:[%s1 + $0x138] sm:$0xff]
    %v158 = vld [vmem:[%s1 + $0x140] sm:$0xff]
    %v159 = vld [vmem:[%s1 + $0x148] sm:$0xff]
    %v160 = vld [vmem:[%s1 + $0x150] sm:$0xff]
    %v161 = vld [vmem:[%s1 + $0x158] sm:$0xff]
    %v162 = vld [vmem:[%s1 + $0x160] sm:$0xff]
    %v163 = vld [vmem:[%s1 + $0x168] sm:$0xff]
    %v164 = vld [vmem:[%s1 + $0x170] sm:$0xff]
    %v165 = vld [vmem:[%s1 + $0x178] sm:$0xff]
    %s166 = scalar_lea.vmem %s1, 384
    %v167 = vld [vmem:[%s166] sm:$0xff]
    %v168 = vld [vmem:[%s166 + $0x8] sm:$0xff]
    %v169 = vld [vmem:[%s166 + $0x10] sm:$0xff]
    %v170 = vld [vmem:[%s166 + $0x18] sm:$0xff]
    %v171 = vld [vmem:[%s166 + $0x20] sm:$0xff]
    %v172 = vld [vmem:[%s166 + $0x28] sm:$0xff]
    %v173 = vld [vmem:[%s166 + $0x30] sm:$0xff]
    %v174 = vld [vmem:[%s166 + $0x38] sm:$0xff]
    %v175 = vld [vmem:[%s166 + $0x40] sm:$0xff]
    %v176 = vld [vmem:[%s166 + $0x48] sm:$0xff]
    %v177 = vld [vmem:[%s166 + $0x50] sm:$0xff]
    %v178 = vld [vmem:[%s166 + $0x58] sm:$0xff]
    %v179 = vld [vmem:[%s166 + $0x60] sm:$0xff]
    %v180 = vld [vmem:[%s166 + $0x68] sm:$0xff]
    %v181 = vld [vmem:[%s166 + $0x70] sm:$0xff]
    %v182 = vld [vmem:[%s166 + $0x78] sm:$0xff]
    %v183 = vld [vmem:[%s166 + $0x80] sm:$0xff]
    %v184 = vld [vmem:[%s166 + $0x88] sm:$0xff]
    %v185 = vld [vmem:[%s166 + $0x90] sm:$0xff]
    %v186 = vld [vmem:[%s166 + $0x98] sm:$0xff]
    %v187 = vld [vmem:[%s166 + $0xa0] sm:$0xff]
    %v188 = vld [vmem:[%s166 + $0xa8] sm:$0xff]
    %v189 = vld [vmem:[%s166 + $0xb0] sm:$0xff]
    %v190 = vld [vmem:[%s166 + $0xb8] sm:$0xff]
    %v191 = vld [vmem:[%s166 + $0xc0] sm:$0xff]
    %v192 = vld [vmem:[%s166 + $0xc8] sm:$0xff]
    %v193 = vld [vmem:[%s166 + $0xd0] sm:$0xff]
    %v194 = vld [vmem:[%s166 + $0xd8] sm:$0xff]
    %v195 = vld [vmem:[%s166 + $0xe0] sm:$0xff]
    %v196 = vld [vmem:[%s166 + $0xe8] sm:$0xff]
    %v197 = vld [vmem:[%s166 + $0xf0] sm:$0xff]
    %v198 = vld [vmem:[%s166 + $0xf8] sm:$0xff]
    %v199 = vld [vmem:[%s166 + $0x100] sm:$0xff]
    %v200 = vld [vmem:[%s166 + $0x108] sm:$0xff]
    %v201 = vld [vmem:[%s166 + $0x110] sm:$0xff]
    %v202 = vld [vmem:[%s166 + $0x118] sm:$0xff]
    %v203 = vld [vmem:[%s166 + $0x120] sm:$0xff]
    %v204 = vld [vmem:[%s166 + $0x128] sm:$0xff]
    %v205 = vld [vmem:[%s166 + $0x130] sm:$0xff]
    %v206 = vld [vmem:[%s166 + $0x138] sm:$0xff]
    %v207 = vld [vmem:[%s166 + $0x140] sm:$0xff]
    %v208 = vld [vmem:[%s166 + $0x148] sm:$0xff]
    %v209 = vld [vmem:[%s166 + $0x150] sm:$0xff]
    %v210 = vld [vmem:[%s166 + $0x158] sm:$0xff]
    %v211 = vld [vmem:[%s166 + $0x160] sm:$0xff]
    %v212 = vld [vmem:[%s166 + $0x168] sm:$0xff]
    %v213 = vld [vmem:[%s166 + $0x170] sm:$0xff]
    %v214 = vld [vmem:[%s166 + $0x178] sm:$0xff]
    %vm229 = vcmask 1045504
    %v230 = vrot.slane %v113, 2
    %v231 = vrot.slane %v101, 2
    %v232 = vsel %vm229, %v230, %v231
    %v233 = vrot.slane %v114, 2
    %v234 = vrot.slane %v102, 2
    %v235 = vsel %vm229, %v233, %v234
    %v236 = vrot.slane %v103, 2
    %v237 = vsel %vm229, %v231, %v236
    %v238 = vrot.slane %v104, 2
    %v239 = vsel %vm229, %v234, %v238
    %v240 = vrot.slane %v105, 2
    %v241 = vsel %vm229, %v236, %v240
    %v242 = vrot.slane %v106, 2
    %v243 = vsel %vm229, %v238, %v242
    %v244 = vrot.slane %v107, 2
    %v245 = vsel %vm229, %v240, %v244
    %v246 = vrot.slane %v108, 2
    %v247 = vsel %vm229, %v242, %v246
    %v248 = vrot.slane %v109, 2
    %v249 = vsel %vm229, %v244, %v248
    %v250 = vrot.slane %v110, 2
    %v251 = vsel %vm229, %v246, %v250
    %v252 = vrot.slane %v115, 2
    %v253 = vsel %vm229, %v248, %v252
    %v254 = vrot.slane %v116, 2
    %v255 = vsel %vm229, %v250, %v254
    %vm263 = vcmask 523264
    %v264 = vsel %vm263, %v235, 0
    %v266 = vsel %vm263, %v239, 0
    %v268 = vsel %vm263, %v243, 0
    %v270 = vsel %vm263, %v247, 0
    %v272 = vsel %vm263, %v251, 0
    %v274 = vsel %vm263, %v255, 0
    %v276 = vsel %vm263, %v254, 0
    %278 = vmatprep.subr.mxu0 %v168
    %279 = vmatpush1.msra.mxu0 %v167
    %280 = vmatprep.subr.mxu0 %v170
    %281 = vmatpush1.msra.mxu0 %v169
    %282 = vmatprep.subr.mxu0 %v172
    %283 = vmatpush1.msra.mxu0 %v171
    %284 = vmatprep.subr.mxu0 %v174
    %285 = vmatpush1.msra.mxu0 %v173
    %286 = vmatprep.subr.mxu0 %v176
    %287 = vmatpush1.msra.mxu0 %v175
    %288 = vmatprep.subr.mxu0 %v178
    %289 = vmatpush1.msra.mxu0 %v177
    %290 = vmatprep.subr.mxu0 %v180
    %291 = vmatpush1.msra.mxu0 %v179
    %292 = vmatprep.subr.mxu0 %v182
    %293 = vmatpush1.msra.mxu0 %v181
    %294 = vmatprep.subr.mxu0 %v184
    %295 = vmatpush1.msra.mxu0 %v183
    %296 = vmatprep.subr.mxu0 %v186
    %297 = vmatpush1.msra.mxu0 %v185
    %298 = vmatprep.subr.mxu0 %v188
    %299 = vmatpush1.msra.mxu0 %v187
    %300 = vmatprep.subr.mxu0 %v190
    %301 = vmatpush1.msra.mxu0 %v189
    %302 = vmatprep.subr.mxu0 %v192
    %303 = vmatpush1.msra.mxu0 %v191
    %304 = vmatprep.subr.mxu0 %v194
    %305 = vmatpush1.msra.mxu0 %v193
    %306 = vmatprep.subr.mxu0 %v196
    %307 = vmatpush1.msra.mxu0 %v195
    %308 = vmatprep.subr.mxu0 %v198
    %309 = vmatpush1.msra.mxu0 %v197
    %310 = vmatprep.subr.mxu0 %v200
    %311 = vmatpush1.msra.mxu0 %v199
    %312 = vmatprep.subr.mxu0 %v202
    %313 = vmatpush1.msra.mxu0 %v201
    %314 = vmatprep.subr.mxu0 %v204
    %315 = vmatpush1.msra.mxu0 %v203
    %316 = vmatprep.subr.mxu0 %v206
    %317 = vmatpush1.msra.mxu0 %v205
    %318 = vmatprep.subr.mxu0 %v208
    %319 = vmatpush1.msra.mxu0 %v207
    %320 = vmatprep.subr.mxu0 %v210
    %321 = vmatpush1.msra.mxu0 %v209
    %322 = vmatprep.subr.mxu0 %v212
    %323 = vmatpush1.msra.mxu0 %v211
    %324 = vmatprep.subr.mxu0 %v214
    %325 = vmatpush1.msra.mxu0 %v213
    %326 = vmatprep.subr.mxu0 0.0
    %327 = vmatpush1.msra.mxu0 0.0
    %328 = vmatprep.subr.mxu0 0.0
    %329 = vmatpush1.msra.mxu0 0.0
    %330 = vmatprep.subr.mxu0 0.0
    %331 = vmatpush1.msra.mxu0 0.0
    %332 = vmatprep.subr.mxu0 0.0
    %333 = vmatpush1.msra.mxu0 0.0
    %334 = vmatprep.subr.mxu0 0.0
    %335 = vmatpush1.msra.mxu0 0.0
    %336 = vmatprep.subr.mxu0 0.0
    %337 = vmatpush1.msra.mxu0 0.0
    %338 = vmatprep.subr.mxu0 0.0
    %339 = vmatpush1.msra.mxu0 0.0
    %340 = vmatprep.subr.mxu0 0.0
    %341 = vmatpush1.msra.mxu0 0.0
    %342 = vmatprep.mubr.f32.mxu0 %v264
    %343 = vmatmul.mubr.f32.gmra.mrb[0].mxu0 %v232
    %v344 = vpop.f32.mrb[0].mxu0
    %v345 = vadd.f32 0.0, %v344
    %v346 = vpop.f32.mrb[0].mxu0
    %v347 = vadd.f32 0.0, %v346
    %348 = vmatprep.mubr.f32.mxu0 %v266
    %349 = vmatmul.mubr.f32.gmra.mrb[0].mxu0 %v237
    %v350 = vpop.f32.mrb[0].mxu0
    %v351 = vadd.f32 0.0, %v350
    %v352 = vpop.f32.mrb[0].mxu0
    %v353 = vadd.f32 0.0, %v352
    %354 = vmatprep.mubr.f32.mxu0 %v268
    %355 = vmatmul.mubr.f32.gmra.mrb[0].mxu0 %v241
    %v356 = vpop.f32.mrb[0].mxu0
    %v357 = vadd.f32 0.0, %v356
    %v358 = vpop.f32.mrb[0].mxu0
    %v359 = vadd.f32 0.0, %v358
    %360 = vmatprep.mubr.f32.mxu0 %v270
    %361 = vmatmul.mubr.f32.gmra.mrb[0].mxu0 %v245
    %v362 = vpop.f32.mrb[0].mxu0
    %v363 = vadd.f32 0.0, %v362
    %v364 = vpop.f32.mrb[0].mxu0
    %v365 = vadd.f32 0.0, %v364
    %366 = vmatprep.mubr.f32.mxu0 %v272
    %367 = vmatmul.mubr.f32.gmra.mrb[0].mxu0 %v249
    %v368 = vpop.f32.mrb[0].mxu0
    %v369 = vadd.f32 0.0, %v368
    %v370 = vpop.f32.mrb[0].mxu0
    %v371 = vadd.f32 0.0, %v370
    %372 = vmatprep.mubr.f32.mxu0 %v274
    %373 = vmatmul.mubr.f32.gmra.mrb[0].mxu0 %v253
    %v374 = vpop.f32.mrb[0].mxu0
    %v375 = vadd.f32 0.0, %v374
    %v376 = vpop.f32.mrb[0].mxu0
    %v377 = vadd.f32 0.0, %v376
    %378 = vmatprep.mubr.f32.mxu0 %v276
    %379 = vmatmul.mubr.f32.gmra.mrb[0].mxu0 %v252
    %v380 = vpop.f32.mrb[0].mxu0
    %v381 = vadd.f32 0.0, %v380
    %v382 = vpop.f32.mrb[0].mxu0
    %v383 = vadd.f32 0.0, %v382
    %384 = vdwg.mxu0
    %v386 = vsel %vm263, %v100, 0
    %v388 = vsel %vm263, %v102, 0
    %v390 = vsel %vm263, %v104, 0
    %v392 = vsel %vm263, %v106, 0
    %v394 = vsel %vm263, %v108, 0
    %v396 = vsel %vm263, %v110, 0
    %v399 = vsel %vm263, %v112, 0
    %401 = vmatprep.subr.mxu0 %v119
    %402 = vmatpush1.msra.mxu0 %v118
    %403 = vmatprep.subr.mxu0 %v121
    %404 = vmatpush1.msra.mxu0 %v120
    %405 = vmatprep.subr.mxu0 %v123
    %406 = vmatpush1.msra.mxu0 %v122
    %407 = vmatprep.subr.mxu0 %v125
    %408 = vmatpush1.msra.mxu0 %v124
    %409 = vmatprep.subr.mxu0 %v127
    %410 = vmatpush1.msra.mxu0 %v126
    %411 = vmatprep.subr.mxu0 %v129
    %412 = vmatpush1.msra.mxu0 %v128
    %413 = vmatprep.subr.mxu0 %v131
    %414 = vmatpush1.msra.mxu0 %v130
    %415 = vmatprep.subr.mxu0 %v133
    %416 = vmatpush1.msra.mxu0 %v132
    %417 = vmatprep.subr.mxu0 %v135
    %418 = vmatpush1.msra.mxu0 %v134
    %419 = vmatprep.subr.mxu0 %v137
    %420 = vmatpush1.msra.mxu0 %v136
    %421 = vmatprep.subr.mxu0 %v139
    %422 = vmatpush1.msra.mxu0 %v138
    %423 = vmatprep.subr.mxu0 %v141
    %424 = vmatpush1.msra.mxu0 %v140
    %425 = vmatprep.subr.mxu0 %v143
    %426 = vmatpush1.msra.mxu0 %v142
    %427 = vmatprep.subr.mxu0 %v145
    %428 = vmatpush1.msra.mxu0 %v144
    %429 = vmatprep.subr.mxu0 %v147
    %430 = vmatpush1.msra.mxu0 %v146
    %431 = vmatprep.subr.mxu0 %v149
    %432 = vmatpush1.msra.mxu0 %v148
    %433 = vmatprep.subr.mxu0 %v151
    %434 = vmatpush1.msra.mxu0 %v150
    %435 = vmatprep.subr.mxu0 %v153
    %436 = vmatpush1.msra.mxu0 %v152
    %437 = vmatprep.subr.mxu0 %v155
    %438 = vmatpush1.msra.mxu0 %v154
    %439 = vmatprep.subr.mxu0 %v157
    %440 = vmatpush1.msra.mxu0 %v156
    %441 = vmatprep.subr.mxu0 %v159
    %442 = vmatpush1.msra.mxu0 %v158
    %443 = vmatprep.subr.mxu0 %v161
    %444 = vmatpush1.msra.mxu0 %v160
    %445 = vmatprep.subr.mxu0 %v163
    %446 = vmatpush1.msra.mxu0 %v162
    %447 = vmatprep.subr.mxu0 %v165
    %448 = vmatpush1.msra.mxu0 %v164
    %449 = vmatprep.subr.mxu0 0.0
    %450 = vmatpush1.msra.mxu0 0.0
    %451 = vmatprep.subr.mxu0 0.0
    %452 = vmatpush1.msra.mxu0 0.0
    %453 = vmatprep.subr.mxu0 0.0
    %454 = vmatpush1.msra.mxu0 0.0
    %455 = vmatprep.subr.mxu0 0.0
    %456 = vmatpush1.msra.mxu0 0.0
    %457 = vmatprep.subr.mxu0 0.0
    %458 = vmatpush1.msra.mxu0 0.0
    %459 = vmatprep.subr.mxu0 0.0
    %460 = vmatpush1.msra.mxu0 0.0
    %461 = vmatprep.subr.mxu0 0.0
    %462 = vmatpush1.msra.mxu0 0.0
    %463 = vmatprep.subr.mxu0 0.0
    %464 = vmatpush1.msra.mxu0 0.0
    %465 = vmatprep.mubr.f32.mxu0 %v386
    %466 = vmatmul.mubr.f32.gmra.mrb[0].mxu0 %v99
    %v467 = vpop.f32.mrb[0].mxu0
    %v468 = vadd.f32 %v345, %v467
    %v469 = vpop.f32.mrb[0].mxu0
    %v470 = vadd.f32 %v347, %v469
    %471 = vmatprep.mubr.f32.mxu0 %v388
    %472 = vmatmul.mubr.f32.gmra.mrb[0].mxu0 %v101
    %v473 = vpop.f32.mrb[0].mxu0
    %v474 = vadd.f32 %v351, %v473
    %v475 = vpop.f32.mrb[0].mxu0
    %v476 = vadd.f32 %v353, %v475
    %477 = vmatprep.mubr.f32.mxu0 %v390
    %478 = vmatmul.mubr.f32.gmra.mrb[0].mxu0 %v103
    %v479 = vpop.f32.mrb[0].mxu0
    %v480 = vadd.f32 %v357, %v479
    %v481 = vpop.f32.mrb[0].mxu0
    %v482 = vadd.f32 %v359, %v481
    %483 = vmatprep.mubr.f32.mxu0 %v392
    %484 = vmatmul.mubr.f32.gmra.mrb[0].mxu0 %v105
    %v485 = vpop.f32.mrb[0].mxu0
    %v486 = vadd.f32 %v363, %v485
    %v487 = vpop.f32.mrb[0].mxu0
    %v488 = vadd.f32 %v365, %v487
    %489 = vmatprep.mubr.f32.mxu0 %v394
    %490 = vmatmul.mubr.f32.gmra.mrb[0].mxu0 %v107
    %v491 = vpop.f32.mrb[0].mxu0
    %v492 = vadd.f32 %v369, %v491
    %v493 = vpop.f32.mrb[0].mxu0
    %v494 = vadd.f32 %v371, %v493
    %495 = vmatprep.mubr.f32.mxu0 %v396
    %496 = vmatmul.mubr.f32.gmra.mrb[0].mxu0 %v109
    %v497 = vpop.f32.mrb[0].mxu0
    %v498 = vadd.f32 %v375, %v497
    %v499 = vpop.f32.mrb[0].mxu0
    %v500 = vadd.f32 %v377, %v499
    %501 = vmatprep.mubr.f32.mxu0 %v399
    %502 = vmatmul.mubr.f32.gmra.mrb[0].mxu0 %v111
    %v503 = vpop.f32.mrb[0].mxu0
    %v504 = vadd.f32 %v381, %v503
    %v505 = vpop.f32.mrb[0].mxu0
    %v506 = vadd.f32 %v383, %v505
    %507 = vdwg.mxu0
    %v509 = vlaneseq
    %v510 = vshrl.u32 %v509, 7
    %v511 = vsub.s32 0, %v510
    %v512 = vrot.slane %v117, %v511
    %v513 = vlaneseq
    %v514 = vshrl.u32 %v513, 7
    %v515 = vsub.s32 1, %v514
    %v516 = vrot.slane %v117, %v515
    %v519 = vadd.f32 %v468, %v512
    %v520 = vadd.f32 %v470, %v516
    %v521 = vadd.f32 %v474, %v512
    %v522 = vadd.f32 %v476, %v516
    %v523 = vadd.f32 %v480, %v512
    %v524 = vadd.f32 %v482, %v516
    %v525 = vadd.f32 %v486, %v512
    %v526 = vadd.f32 %v488, %v516
    %v527 = vadd.f32 %v492, %v512
    %v528 = vadd.f32 %v494, %v516
    %v529 = vadd.f32 %v498, %v512
    %v530 = vadd.f32 %v500, %v516
    %v531 = vadd.f32 %v504, %v512
    %v532 = vadd.f32 %v506, %v516
    %s533 = scalar_lea.vmem %s1, 768
    %v534 = vld [vmem:[%s533] sm:$0xff]
    %v535 = vld [vmem:[%s533 + $0x8] sm:$0xff]
    %v536 = vld [vmem:[%s533 + $0x10] sm:$0xff]
    %v537 = vld [vmem:[%s533 + $0x18] sm:$0xff]
    %v538 = vld [vmem:[%s533 + $0x20] sm:$0xff]
    %v539 = vld [vmem:[%s533 + $0x28] sm:$0xff]
    %v540 = vld [vmem:[%s533 + $0x30] sm:$0xff]
    %v541 = vld [vmem:[%s533 + $0x38] sm:$0xff]
    %v542 = vld [vmem:[%s533 + $0x40] sm:$0xff]
    %v543 = vld [vmem:[%s533 + $0x48] sm:$0xff]
    %v544 = vld [vmem:[%s533 + $0x50] sm:$0xff]
    %v545 = vld [vmem:[%s533 + $0x58] sm:$0xff]
    %v546 = vld [vmem:[%s533 + $0x60] sm:$0xff]
    %v547 = vld [vmem:[%s533 + $0x68] sm:$0xff]
    %v548 = vld [vmem:[%s533 + $0x70] sm:$0xff]
    %v549 = vld [vmem:[%s533 + $0x78] sm:$0xff]
    %v550 = vld [vmem:[%s533 + $0x80] sm:$0xff]
    %v551 = vld [vmem:[%s533 + $0x88] sm:$0xff]
    %v552 = vld [vmem:[%s533 + $0x90] sm:$0xff]
    %v553 = vld [vmem:[%s533 + $0x98] sm:$0xff]
    %v554 = vld [vmem:[%s533 + $0xa0] sm:$0xff]
    %v555 = vld [vmem:[%s533 + $0xa8] sm:$0xff]
    %v556 = vld [vmem:[%s533 + $0xb0] sm:$0xff]
    %v557 = vld [vmem:[%s533 + $0xb8] sm:$0xff]
    %v558 = vld [vmem:[%s533 + $0xc0] sm:$0xff]
    %v559 = vld [vmem:[%s533 + $0xc8] sm:$0xff]
    %v560 = vld [vmem:[%s533 + $0xd0] sm:$0xff]
    %v561 = vld [vmem:[%s533 + $0xd8] sm:$0xff]
    %v562 = vld [vmem:[%s533 + $0xe0] sm:$0xff]
    %v563 = vld [vmem:[%s533 + $0xe8] sm:$0xff]
    %v564 = vld [vmem:[%s533 + $0xf0] sm:$0xff]
    %v565 = vld [vmem:[%s533 + $0xf8] sm:$0xff]
    %v566 = vld [vmem:[%s533 + $0x100] sm:$0xff]
    %v567 = vld [vmem:[%s533 + $0x108] sm:$0xff]
    %v568 = vld [vmem:[%s533 + $0x110] sm:$0xff]
    %v569 = vld [vmem:[%s533 + $0x118] sm:$0xff]
    %v570 = vld [vmem:[%s533 + $0x120] sm:$0xff]
    %v571 = vld [vmem:[%s533 + $0x128] sm:$0xff]
    %v572 = vld [vmem:[%s533 + $0x130] sm:$0xff]
    %v573 = vld [vmem:[%s533 + $0x138] sm:$0xff]
    %v574 = vld [vmem:[%s533 + $0x140] sm:$0xff]
    %v575 = vld [vmem:[%s533 + $0x148] sm:$0xff]
    %v576 = vld [vmem:[%s533 + $0x150] sm:$0xff]
    %v577 = vld [vmem:[%s533 + $0x158] sm:$0xff]
    %v578 = vld [vmem:[%s533 + $0x160] sm:$0xff]
    %v579 = vld [vmem:[%s533 + $0x168] sm:$0xff]
    %v580 = vld [vmem:[%s533 + $0x170] sm:$0xff]
    %v581 = vld [vmem:[%s533 + $0x178] sm:$0xff]
    %s582 = scalar_lea.vmem %s1, 1152
    %v583 = vld [vmem:[%s582] sm:$0xff]
    %v584 = vld [vmem:[%s582 + $0x8] sm:$0xff]
    %v585 = vld [vmem:[%s582 + $0x10] sm:$0xff]
    %v586 = vld [vmem:[%s582 + $0x18] sm:$0xff]
    %v587 = vld [vmem:[%s582 + $0x20] sm:$0xff]
    %v588 = vld [vmem:[%s582 + $0x28] sm:$0xff]
    %v589 = vld [vmem:[%s582 + $0x30] sm:$0xff]
    %v590 = vld [vmem:[%s582 + $0x38] sm:$0xff]
    %v591 = vld [vmem:[%s582 + $0x40] sm:$0xff]
    %v592 = vld [vmem:[%s582 + $0x48] sm:$0xff]
    %v593 = vld [vmem:[%s582 + $0x50] sm:$0xff]
    %v594 = vld [vmem:[%s582 + $0x58] sm:$0xff]
    %v595 = vld [vmem:[%s582 + $0x60] sm:$0xff]
    %v596 = vld [vmem:[%s582 + $0x68] sm:$0xff]
    %v597 = vld [vmem:[%s582 + $0x70] sm:$0xff]
    %v598 = vld [vmem:[%s582 + $0x78] sm:$0xff]
    %v599 = vld [vmem:[%s582 + $0x80] sm:$0xff]
    %v600 = vld [vmem:[%s582 + $0x88] sm:$0xff]
    %v601 = vld [vmem:[%s582 + $0x90] sm:$0xff]
    %v602 = vld [vmem:[%s582 + $0x98] sm:$0xff]
    %v603 = vld [vmem:[%s582 + $0xa0] sm:$0xff]
    %v604 = vld [vmem:[%s582 + $0xa8] sm:$0xff]
    %v605 = vld [vmem:[%s582 + $0xb0] sm:$0xff]
    %v606 = vld [vmem:[%s582 + $0xb8] sm:$0xff]
    %v607 = vld [vmem:[%s582 + $0xc0] sm:$0xff]
    %v608 = vld [vmem:[%s582 + $0xc8] sm:$0xff]
    %v609 = vld [vmem:[%s582 + $0xd0] sm:$0xff]
    %v610 = vld [vmem:[%s582 + $0xd8] sm:$0xff]
    %v611 = vld [vmem:[%s582 + $0xe0] sm:$0xff]
    %v612 = vld [vmem:[%s582 + $0xe8] sm:$0xff]
    %v613 = vld [vmem:[%s582 + $0xf0] sm:$0xff]
    %v614 = vld [vmem:[%s582 + $0xf8] sm:$0xff]
    %v615 = vld [vmem:[%s582 + $0x100] sm:$0xff]
    %v616 = vld [vmem:[%s582 + $0x108] sm:$0xff]
    %v617 = vld [vmem:[%s582 + $0x110] sm:$0xff]
    %v618 = vld [vmem:[%s582 + $0x118] sm:$0xff]
    %v619 = vld [vmem:[%s582 + $0x120] sm:$0xff]
    %v620 = vld [vmem:[%s582 + $0x128] sm:$0xff]
    %v621 = vld [vmem:[%s582 + $0x130] sm:$0xff]
    %v622 = vld [vmem:[%s582 + $0x138] sm:$0xff]
    %v623 = vld [vmem:[%s582 + $0x140] sm:$0xff]
    %v624 = vld [vmem:[%s582 + $0x148] sm:$0xff]
    %v625 = vld [vmem:[%s582 + $0x150] sm:$0xff]
    %v626 = vld [vmem:[%s582 + $0x158] sm:$0xff]
    %v627 = vld [vmem:[%s582 + $0x160] sm:$0xff]
    %v628 = vld [vmem:[%s582 + $0x168] sm:$0xff]
    %v629 = vld [vmem:[%s582 + $0x170] sm:$0xff]
    %v630 = vld [vmem:[%s582 + $0x178] sm:$0xff]
    %631 = vmatprep.subr.mxu0 %v584
    %632 = vmatpush1.msra.mxu0 %v583
    %633 = vmatprep.subr.mxu0 %v586
    %634 = vmatpush1.msra.mxu0 %v585
    %635 = vmatprep.subr.mxu0 %v588
    %636 = vmatpush1.msra.mxu0 %v587
    %637 = vmatprep.subr.mxu0 %v590
    %638 = vmatpush1.msra.mxu0 %v589
    %639 = vmatprep.subr.mxu0 %v592
    %640 = vmatpush1.msra.mxu0 %v591
    %641 = vmatprep.subr.mxu0 %v594
    %642 = vmatpush1.msra.mxu0 %v593
    %643 = vmatprep.subr.mxu0 %v596
    %644 = vmatpush1.msra.mxu0 %v595
    %645 = vmatprep.subr.mxu0 %v598
    %646 = vmatpush1.msra.mxu0 %v597
    %647 = vmatprep.subr.mxu0 %v600
    %648 = vmatpush1.msra.mxu0 %v599
    %649 = vmatprep.subr.mxu0 %v602
    %650 = vmatpush1.msra.mxu0 %v601
    %651 = vmatprep.subr.mxu0 %v604
    %652 = vmatpush1.msra.mxu0 %v603
    %653 = vmatprep.subr.mxu0 %v606
    %654 = vmatpush1.msra.mxu0 %v605
    %655 = vmatprep.subr.mxu0 %v608
    %656 = vmatpush1.msra.mxu0 %v607
    %657 = vmatprep.subr.mxu0 %v610
    %658 = vmatpush1.msra.mxu0 %v609
    %659 = vmatprep.subr.mxu0 %v612
    %660 = vmatpush1.msra.mxu0 %v611
    %661 = vmatprep.subr.mxu0 %v614
    %662 = vmatpush1.msra.mxu0 %v613
    %663 = vmatprep.subr.mxu0 %v616
    %664 = vmatpush1.msra.mxu0 %v615
    %665 = vmatprep.subr.mxu0 %v618
    %666 = vmatpush1.msra.mxu0 %v617
    %667 = vmatprep.subr.mxu0 %v620
    %668 = vmatpush1.msra.mxu0 %v619
    %669 = vmatprep.subr.mxu0 %v622
    %670 = vmatpush1.msra.mxu0 %v621
    %671 = vmatprep.subr.mxu0 %v624
    %672 = vmatpush1.msra.mxu0 %v623
    %673 = vmatprep.subr.mxu0 %v626
    %674 = vmatpush1.msra.mxu0 %v625
    %675 = vmatprep.subr.mxu0 %v628
    %676 = vmatpush1.msra.mxu0 %v627
    %677 = vmatprep.subr.mxu0 %v630
    %678 = vmatpush1.msra.mxu0 %v629
    %679 = vmatprep.subr.mxu0 0.0
    %680 = vmatpush1.msra.mxu0 0.0
    %681 = vmatprep.subr.mxu0 0.0
    %682 = vmatpush1.msra.mxu0 0.0
    %683 = vmatprep.subr.mxu0 0.0
    %684 = vmatpush1.msra.mxu0 0.0
    %685 = vmatprep.subr.mxu0 0.0
    %686 = vmatpush1.msra.mxu0 0.0
    %687 = vmatprep.subr.mxu0 0.0
    %688 = vmatpush1.msra.mxu0 0.0
    %689 = vmatprep.subr.mxu0 0.0
    %690 = vmatpush1.msra.mxu0 0.0
    %691 = vmatprep.subr.mxu0 0.0
    %692 = vmatpush1.msra.mxu0 0.0
    %693 = vmatprep.subr.mxu0 0.0
    %694 = vmatpush1.msra.mxu0 0.0
    %695 = vmatprep.mubr.f32.mxu0 %v264
    %696 = vmatmul.mubr.f32.gmra.mrb[0].mxu0 %v232
    %v697 = vpop.f32.mrb[0].mxu0
    %v698 = vadd.f32 0.0, %v697
    %v699 = vpop.f32.mrb[0].mxu0
    %v700 = vadd.f32 0.0, %v699
    %701 = vmatprep.mubr.f32.mxu0 %v266
    %702 = vmatmul.mubr.f32.gmra.mrb[0].mxu0 %v237
    %v703 = vpop.f32.mrb[0].mxu0
    %v704 = vadd.f32 0.0, %v703
    %v705 = vpop.f32.mrb[0].mxu0
    %v706 = vadd.f32 0.0, %v705
    %707 = vmatprep.mubr.f32.mxu0 %v268
    %708 = vmatmul.mubr.f32.gmra.mrb[0].mxu0 %v241
    %v709 = vpop.f32.mrb[0].mxu0
    %v710 = vadd.f32 0.0, %v709
    %v711 = vpop.f32.mrb[0].mxu0
    %v712 = vadd.f32 0.0, %v711
    %713 = vmatprep.mubr.f32.mxu0 %v270
    %714 = vmatmul.mubr.f32.gmra.mrb[0].mxu0 %v245
    %v715 = vpop.f32.mrb[0].mxu0
    %v716 = vadd.f32 0.0, %v715
    %v717 = vpop.f32.mrb[0].mxu0
    %v718 = vadd.f32 0.0, %v717
    %719 = vmatprep.mubr.f32.mxu0 %v272
    %720 = vmatmul.mubr.f32.gmra.mrb[0].mxu0 %v249
    %v721 = vpop.f32.mrb[0].mxu0
    %v722 = vadd.f32 0.0, %v721
    %v723 = vpop.f32.mrb[0].mxu0
    %v724 = vadd.f32 0.0, %v723
    %725 = vmatprep.mubr.f32.mxu0 %v274
    %726 = vmatmul.mubr.f32.gmra.mrb[0].mxu0 %v253
    %v727 = vpop.f32.mrb[0].mxu0
    %v728 = vadd.f32 0.0, %v727
    %v729 = vpop.f32.mrb[0].mxu0
    %v730 = vadd.f32 0.0, %v729
    %731 = vmatprep.mubr.f32.mxu0 %v276
    %732 = vmatmul.mubr.f32.gmra.mrb[0].mxu0 %v252
    %v733 = vpop.f32.mrb[0].mxu0
    %v734 = vadd.f32 0.0, %v733
    %v735 = vpop.f32.mrb[0].mxu0
    %v736 = vadd.f32 0.0, %v735
    %737 = vdwg.mxu0
    %738 = vmatprep.subr.mxu0 %v535
    %739 = vmatpush1.msra.mxu0 %v534
    %740 = vmatprep.subr.mxu0 %v537
    %741 = vmatpush1.msra.mxu0 %v536
    %742 = vmatprep.subr.mxu0 %v539
    %743 = vmatpush1.msra.mxu0 %v538
    %744 = vmatprep.subr.mxu0 %v541
    %745 = vmatpush1.msra.mxu0 %v540
    %746 = vmatprep.subr.mxu0 %v543
    %747 = vmatpush1.msra.mxu0 %v542
    %748 = vmatprep.subr.mxu0 %v545
    %749 = vmatpush1.msra.mxu0 %v544
    %750 = vmatprep.subr.mxu0 %v547
    %751 = vmatpush1.msra.mxu0 %v546
    %752 = vmatprep.subr.mxu0 %v549
    %753 = vmatpush1.msra.mxu0 %v548
    %754 = vmatprep.subr.mxu0 %v551
    %755 = vmatpush1.msra.mxu0 %v550
    %756 = vmatprep.subr.mxu0 %v553
    %757 = vmatpush1.msra.mxu0 %v552
    %758 = vmatprep.subr.mxu0 %v555
    %759 = vmatpush1.msra.mxu0 %v554
    %760 = vmatprep.subr.mxu0 %v557
    %761 = vmatpush1.msra.mxu0 %v556
    %762 = vmatprep.subr.mxu0 %v559
    %763 = vmatpush1.msra.mxu0 %v558
    %764 = vmatprep.subr.mxu0 %v561
    %765 = vmatpush1.msra.mxu0 %v560
    %766 = vmatprep.subr.mxu0 %v563
    %767 = vmatpush1.msra.mxu0 %v562
    %768 = vmatprep.subr.mxu0 %v565
    %769 = vmatpush1.msra.mxu0 %v564
    %770 = vmatprep.subr.mxu0 %v567
    %771 = vmatpush1.msra.mxu0 %v566
    %772 = vmatprep.subr.mxu0 %v569
    %773 = vmatpush1.msra.mxu0 %v568
    %774 = vmatprep.subr.mxu0 %v571
    %775 = vmatpush1.msra.mxu0 %v570
    %776 = vmatprep.subr.mxu0 %v573
    %777 = vmatpush1.msra.mxu0 %v572
    %778 = vmatprep.subr.mxu0 %v575
    %779 = vmatpush1.msra.mxu0 %v574
    %780 = vmatprep.subr.mxu0 %v577
    %781 = vmatpush1.msra.mxu0 %v576
    %782 = vmatprep.subr.mxu0 %v579
    %783 = vmatpush1.msra.mxu0 %v578
    %784 = vmatprep.subr.mxu0 %v581
    %785 = vmatpush1.msra.mxu0 %v580
    %786 = vmatprep.subr.mxu0 0.0
    %787 = vmatpush1.msra.mxu0 0.0
    %788 = vmatprep.subr.mxu0 0.0
    %789 = vmatpush1.msra.mxu0 0.0
    %790 = vmatprep.subr.mxu0 0.0
    %791 = vmatpush1.msra.mxu0 0.0
    %792 = vmatprep.subr.mxu0 0.0
    %793 = vmatpush1.msra.mxu0 0.0
    %794 = vmatprep.subr.mxu0 0.0
    %795 = vmatpush1.msra.mxu0 0.0
    %796 = vmatprep.subr.mxu0 0.0
    %797 = vmatpush1.msra.mxu0 0.0
    %798 = vmatprep.subr.mxu0 0.0
    %799 = vmatpush1.msra.mxu0 0.0
    %800 = vmatprep.subr.mxu0 0.0
    %801 = vmatpush1.msra.mxu0 0.0
    %802 = vmatprep.mubr.f32.mxu0 %v386
    %803 = vmatmul.mubr.f32.gmra.mrb[0].mxu0 %v99
    %v804 = vpop.f32.mrb[0].mxu0
    %v805 = vadd.f32 %v698, %v804
    %v806 = vpop.f32.mrb[0].mxu0
    %v807 = vadd.f32 %v700, %v806
    %808 = vmatprep.mubr.f32.mxu0 %v388
    %809 = vmatmul.mubr.f32.gmra.mrb[0].mxu0 %v101
    %v810 = vpop.f32.mrb[0].mxu0
    %v811 = vadd.f32 %v704, %v810
    %v812 = vpop.f32.mrb[0].mxu0
    %v813 = vadd.f32 %v706, %v812
    %814 = vmatprep.mubr.f32.mxu0 %v390
    %815 = vmatmul.mubr.f32.gmra.mrb[0].mxu0 %v103
    %v816 = vpop.f32.mrb[0].mxu0
    %v817 = vadd.f32 %v710, %v816
    %v818 = vpop.f32.mrb[0].mxu0
    %v819 = vadd.f32 %v712, %v818
    %820 = vmatprep.mubr.f32.mxu0 %v392
    %821 = vmatmul.mubr.f32.gmra.mrb[0].mxu0 %v105
    %v822 = vpop.f32.mrb[0].mxu0
    %v823 = vadd.f32 %v716, %v822
    %v824 = vpop.f32.mrb[0].mxu0
    %v825 = vadd.f32 %v718, %v824
    %826 = vmatprep.mubr.f32.mxu0 %v394
    %827 = vmatmul.mubr.f32.gmra.mrb[0].mxu0 %v107
    %v828 = vpop.f32.mrb[0].mxu0
    %v829 = vadd.f32 %v722, %v828
    %v830 = vpop.f32.mrb[0].mxu0
    %v831 = vadd.f32 %v724, %v830
    %832 = vmatprep.mubr.f32.mxu0 %v396
    %833 = vmatmul.mubr.f32.gmra.mrb[0].mxu0 %v109
    %v834 = vpop.f32.mrb[0].mxu0
    %v835 = vadd.f32 %v728, %v834
    %v836 = vpop.f32.mrb[0].mxu0
    %v837 = vadd.f32 %v730, %v836
    %838 = vmatprep.mubr.f32.mxu0 %v399
    %839 = vmatmul.mubr.f32.gmra.mrb[0].mxu0 %v111
    %v840 = vpop.f32.mrb[0].mxu0
    %v841 = vadd.f32 %v734, %v840
    %v842 = vpop.f32.mrb[0].mxu0
    %v843 = vadd.f32 %v736, %v842
    %844 = vdwg.mxu0
    %v845 = vadd.f32 %v805, %v512
    %v846 = vadd.f32 %v807, %v516
    %v847 = vadd.f32 %v811, %v512
    %v848 = vadd.f32 %v813, %v516
    %v849 = vadd.f32 %v817, %v512
    %v850 = vadd.f32 %v819, %v516
    %v851 = vadd.f32 %v823, %v512
    %v852 = vadd.f32 %v825, %v516
    %v853 = vadd.f32 %v829, %v512
    %v854 = vadd.f32 %v831, %v516
    %v855 = vadd.f32 %v835, %v512
    %v856 = vadd.f32 %v837, %v516
    %v857 = vadd.f32 %v841, %v512
    %v858 = vadd.f32 %v843, %v516
    %v859 = vmax.f32 %v519, 0.0
    %v860 = vmax.f32 %v520, 0.0
    %v861 = vmax.f32 %v521, 0.0
    %v862 = vmax.f32 %v522, 0.0
    %v863 = vmax.f32 %v523, 0.0
    %v864 = vmax.f32 %v524, 0.0
    %v865 = vmax.f32 %v525, 0.0
    %v866 = vmax.f32 %v526, 0.0
    %v867 = vmax.f32 %v527, 0.0
    %v868 = vmax.f32 %v528, 0.0
    %v869 = vmax.f32 %v529, 0.0
    %v870 = vmax.f32 %v530, 0.0
    %v871 = vmax.f32 %v531, 0.0
    %v872 = vmax.f32 %v532, 0.0
    %v873 = vmax.f32 %v845, 0.0
    %v874 = vmax.f32 %v846, 0.0
    %v875 = vmax.f32 %v847, 0.0
    %v876 = vmax.f32 %v848, 0.0
    %v877 = vmax.f32 %v849, 0.0
    %v878 = vmax.f32 %v850, 0.0
    %v879 = vmax.f32 %v851, 0.0
    %v880 = vmax.f32 %v852, 0.0
    %v881 = vmax.f32 %v853, 0.0
    %v882 = vmax.f32 %v854, 0.0
    %v883 = vmax.f32 %v855, 0.0
    %v884 = vmax.f32 %v856, 0.0
    %v885 = vmax.f32 %v857, 0.0
    %v886 = vmax.f32 %v858, 0.0
    %v887 = vmax.f32 %v859, %v873
    %v888 = vmax.f32 %v860, %v874
    %v889 = vmax.f32 %v861, %v875
    %v890 = vmax.f32 %v862, %v876
    %v891 = vmax.f32 %v863, %v877
    %v892 = vmax.f32 %v864, %v878
    %v893 = vmax.f32 %v865, %v879
    %v894 = vmax.f32 %v866, %v880
    %v895 = vmax.f32 %v867, %v881
    %v896 = vmax.f32 %v868, %v882
    %v897 = vmax.f32 %v869, %v883
    %v898 = vmax.f32 %v870, %v884
    %v899 = vmax.f32 %v871, %v885
    %v900 = vmax.f32 %v872, %v886
    %v901 = vld [vmem:[#allocation6] sm:$0xff]
    %v902 = vld [vmem:[#allocation6 + $0x8] sm:$0xff]
    %v903 = vld [vmem:[#allocation6 + $0x10] sm:$0xff]
    %v904 = vld [vmem:[#allocation6 + $0x18] sm:$0xff]
    %v905 = vld [vmem:[#allocation6 + $0x20] sm:$0xff]
    %v906 = vld [vmem:[#allocation6 + $0x28] sm:$0xff]
    %v907 = vld [vmem:[#allocation6 + $0x30] sm:$0xff]
    %v908 = vld [vmem:[#allocation6 + $0x38] sm:$0xff]
    %v909 = vld [vmem:[#allocation6 + $0x40] sm:$0xff]
    %v910 = vld [vmem:[#allocation6 + $0x48] sm:$0xff]
    %v911 = vld [vmem:[#allocation6 + $0x50] sm:$0xff]
    %v912 = vld [vmem:[#allocation6 + $0x58] sm:$0xff]
    %v913 = vld [vmem:[#allocation6 + $0x60] sm:$0xff]
    %v914 = vld [vmem:[#allocation6 + $0x68] sm:$0xff]
    %v915 = vld [vmem:[#allocation6 + $0x70] sm:$0xff]
    %v916 = vld [vmem:[#allocation6 + $0x78] sm:$0xff]
    %v917 = vld [vmem:[#allocation6 + $0x80] sm:$0xff]
    %v918 = vld [vmem:[#allocation6 + $0x88] sm:$0xff]
    %v919 = vld [vmem:[#allocation6 + $0x90] sm:$0xff]
    %v920 = vld [vmem:[#allocation6 + $0x98] sm:$0xff]
    %v921 = vld [vmem:[#allocation6 + $0xa0] sm:$0xff]
    %v922 = vld [vmem:[#allocation6 + $0xa8] sm:$0xff]
    %v923 = vld [vmem:[#allocation6 + $0xb0] sm:$0xff]
    %v924 = vld [vmem:[#allocation6 + $0xb8] sm:$0xff]
    %v925 = vld [vmem:[#allocation6 + $0xc0] sm:$0xff]
    %v926 = vld [vmem:[#allocation6 + $0xc8] sm:$0xff]
    %v927 = vld [vmem:[#allocation6 + $0xd0] sm:$0xff]
    %v928 = vld [vmem:[#allocation6 + $0xd8] sm:$0xff]
    %v929 = vld [vmem:[#allocation6 + $0xe0] sm:$0xff]
    %v930 = vld [vmem:[#allocation6 + $0xe8] sm:$0xff]
    %v931 = vld [vmem:[#allocation6 + $0xf0] sm:$0xff]
    %v932 = vld [vmem:[#allocation6 + $0xf8] sm:$0xff]
    %v933 = vld [vmem:[#allocation6 + $0x100] sm:$0xff]
    %v934 = vld [vmem:[#allocation6 + $0x108] sm:$0xff]
    %v935 = vld [vmem:[#allocation6 + $0x110] sm:$0xff]
    %v936 = vld [vmem:[#allocation6 + $0x118] sm:$0xff]
    %v937 = vld [vmem:[#allocation6 + $0x120] sm:$0xff]
    %v938 = vld [vmem:[#allocation6 + $0x128] sm:$0xff]
    %v939 = vld [vmem:[#allocation6 + $0x130] sm:$0xff]
    %v940 = vld [vmem:[#allocation6 + $0x138] sm:$0xff]
    %v941 = vld [vmem:[#allocation6 + $0x140] sm:$0xff]
    %v942 = vld [vmem:[#allocation6 + $0x148] sm:$0xff]
    %v943 = vld [vmem:[#allocation6 + $0x150] sm:$0xff]
    %v944 = vld [vmem:[#allocation6 + $0x158] sm:$0xff]
    %v945 = vld [vmem:[#allocation6 + $0x160] sm:$0xff]
    %v946 = vld [vmem:[#allocation6 + $0x168] sm:$0xff]
    %v947 = vld [vmem:[#allocation6 + $0x170] sm:$0xff]
    %v948 = vld [vmem:[#allocation6 + $0x178] sm:$0xff]
    %v949 = vld [vmem:[#allocation6 + $0x180] sm:$0xff]
    %v950 = vld [vmem:[#allocation6 + $0x188] sm:$0xff]
    %v951 = vld [vmem:[#allocation6 + $0x190] sm:$0xff]
    %v952 = vld [vmem:[#allocation6 + $0x198] sm:$0xff]
    %v953 = vld [vmem:[#allocation6 + $0x1a0] sm:$0xff]
    %v954 = vld [vmem:[#allocation6 + $0x1a8] sm:$0xff]
    %v955 = vld [vmem:[#allocation6 + $0x1b0] sm:$0xff]
    %v956 = vld [vmem:[#allocation6 + $0x1b8] sm:$0xff]
    %v957 = vld [vmem:[#allocation6 + $0x1c0] sm:$0xff]
    %v958 = vld [vmem:[#allocation6 + $0x1c8] sm:$0xff]
    %v959 = vld [vmem:[#allocation6 + $0x1d0] sm:$0xff]
    %v960 = vld [vmem:[#allocation6 + $0x1d8] sm:$0xff]
    %v961 = vld [vmem:[#allocation6 + $0x1e0] sm:$0xff]
    %v962 = vld [vmem:[#allocation6 + $0x1e8] sm:$0xff]
    %v963 = vld [vmem:[#allocation6 + $0x1f0] sm:$0xff]
    %v964 = vld [vmem:[#allocation6 + $0x1f8] sm:$0xff]
    %v965 = vld [vmem:[#allocation6 + $0x200] sm:$0xff]
    %v966 = vld [vmem:[#allocation6 + $0x208] sm:$0xff]
    %v967 = vld [vmem:[#allocation6 + $0x210] sm:$0xff]
    %v968 = vld [vmem:[#allocation6 + $0x218] sm:$0xff]
    %v969 = vld [vmem:[#allocation6 + $0x220] sm:$0xff]
    %v970 = vld [vmem:[#allocation6 + $0x228] sm:$0xff]
    %v971 = vld [vmem:[#allocation6 + $0x230] sm:$0xff]
    %v972 = vld [vmem:[#allocation6 + $0x238] sm:$0xff]
    %s973 = scalar_lea.vmem [#allocation6], 576
    %v974 = vld [vmem:[%s973] sm:$0xff]
    %v975 = vld [vmem:[%s973 + $0x8] sm:$0xff]
    %v976 = vld [vmem:[%s973 + $0x10] sm:$0xff]
    %v977 = vld [vmem:[%s973 + $0x18] sm:$0xff]
    %v978 = vld [vmem:[%s973 + $0x20] sm:$0xff]
    %v979 = vld [vmem:[%s973 + $0x28] sm:$0xff]
    %v980 = vld [vmem:[%s973 + $0x30] sm:$0xff]
    %v981 = vld [vmem:[%s973 + $0x38] sm:$0xff]
    %v982 = vld [vmem:[%s973 + $0x40] sm:$0xff]
    %v983 = vld [vmem:[%s973 + $0x48] sm:$0xff]
    %v984 = vld [vmem:[%s973 + $0x50] sm:$0xff]
    %v985 = vld [vmem:[%s973 + $0x58] sm:$0xff]
    %v986 = vld [vmem:[%s973 + $0x60] sm:$0xff]
    %v987 = vld [vmem:[%s973 + $0x68] sm:$0xff]
    %v988 = vld [vmem:[%s973 + $0x70] sm:$0xff]
    %v989 = vld [vmem:[%s973 + $0x78] sm:$0xff]
    %v990 = vld [vmem:[%s973 + $0x80] sm:$0xff]
    %v991 = vld [vmem:[%s973 + $0x88] sm:$0xff]
    %v992 = vld [vmem:[%s973 + $0x90] sm:$0xff]
    %v993 = vld [vmem:[%s973 + $0x98] sm:$0xff]
    %v994 = vld [vmem:[%s973 + $0xa0] sm:$0xff]
    %v995 = vld [vmem:[%s973 + $0xa8] sm:$0xff]
    %v996 = vld [vmem:[%s973 + $0xb0] sm:$0xff]
    %v997 = vld [vmem:[%s973 + $0xb8] sm:$0xff]
    %v998 = vld [vmem:[%s973 + $0xc0] sm:$0xff]
    %v999 = vld [vmem:[%s973 + $0xc8] sm:$0xff]
    %v1000 = vld [vmem:[%s973 + $0xd0] sm:$0xff]
    %v1001 = vld [vmem:[%s973 + $0xd8] sm:$0xff]
    %v1002 = vld [vmem:[%s973 + $0xe0] sm:$0xff]
    %v1003 = vld [vmem:[%s973 + $0xe8] sm:$0xff]
    %v1004 = vld [vmem:[%s973 + $0xf0] sm:$0xff]
    %v1005 = vld [vmem:[%s973 + $0xf8] sm:$0xff]
    %v1006 = vld [vmem:[%s973 + $0x100] sm:$0xff]
    %v1007 = vld [vmem:[%s973 + $0x108] sm:$0xff]
    %v1008 = vld [vmem:[%s973 + $0x110] sm:$0xff]
    %v1009 = vld [vmem:[%s973 + $0x118] sm:$0xff]
    %v1010 = vld [vmem:[%s973 + $0x120] sm:$0xff]
    %v1011 = vld [vmem:[%s973 + $0x128] sm:$0xff]
    %v1012 = vld [vmem:[%s973 + $0x130] sm:$0xff]
    %v1013 = vld [vmem:[%s973 + $0x138] sm:$0xff]
    %v1014 = vld [vmem:[%s973 + $0x140] sm:$0xff]
    %v1015 = vld [vmem:[%s973 + $0x148] sm:$0xff]
    %v1016 = vld [vmem:[%s973 + $0x150] sm:$0xff]
    %v1017 = vld [vmem:[%s973 + $0x158] sm:$0xff]
    %v1018 = vld [vmem:[%s973 + $0x160] sm:$0xff]
    %v1019 = vld [vmem:[%s973 + $0x168] sm:$0xff]
    %v1020 = vld [vmem:[%s973 + $0x170] sm:$0xff]
    %v1021 = vld [vmem:[%s973 + $0x178] sm:$0xff]
    %v1022 = vld [vmem:[%s973 + $0x180] sm:$0xff]
    %v1023 = vld [vmem:[%s973 + $0x188] sm:$0xff]
    %v1024 = vld [vmem:[%s973 + $0x190] sm:$0xff]
    %v1025 = vld [vmem:[%s973 + $0x198] sm:$0xff]
    %v1026 = vld [vmem:[%s973 + $0x1a0] sm:$0xff]
    %v1027 = vld [vmem:[%s973 + $0x1a8] sm:$0xff]
    %v1028 = vld [vmem:[%s973 + $0x1b0] sm:$0xff]
    %v1029 = vld [vmem:[%s973 + $0x1b8] sm:$0xff]
    %v1030 = vld [vmem:[%s973 + $0x1c0] sm:$0xff]
    %v1031 = vld [vmem:[%s973 + $0x1c8] sm:$0xff]
    %v1032 = vld [vmem:[%s973 + $0x1d0] sm:$0xff]
    %v1033 = vld [vmem:[%s973 + $0x1d8] sm:$0xff]
    %v1034 = vld [vmem:[%s973 + $0x1e0] sm:$0xff]
    %v1035 = vld [vmem:[%s973 + $0x1e8] sm:$0xff]
    %v1036 = vld [vmem:[%s973 + $0x1f0] sm:$0xff]
    %v1037 = vld [vmem:[%s973 + $0x1f8] sm:$0xff]
    %v1038 = vld [vmem:[%s973 + $0x200] sm:$0xff]
    %v1039 = vld [vmem:[%s973 + $0x208] sm:$0xff]
    %v1040 = vld [vmem:[%s973 + $0x210] sm:$0xff]
    %v1041 = vld [vmem:[%s973 + $0x218] sm:$0xff]
    %v1042 = vld [vmem:[%s973 + $0x220] sm:$0xff]
    %v1043 = vld [vmem:[%s973 + $0x228] sm:$0xff]
    %v1044 = vld [vmem:[%s973 + $0x230] sm:$0xff]
    %v1045 = vld [vmem:[%s973 + $0x238] sm:$0xff]
    %v1048 = vrot.slane %v887, 2
    %v1049 = vrot.slane %v888, 2
    %vm1051 = vcmask 130048
    %v1052 = vsel %vm1051, %v1049, 0
    %1054 = vmatprep.subr.mxu0 %v975
    %1055 = vmatpush1.msra.mxu0 %v974
    %1056 = vmatprep.subr.mxu0 %v979
    %1057 = vmatpush1.msra.mxu0 %v978
    %1058 = vmatprep.subr.mxu0 %v983
    %1059 = vmatpush1.msra.mxu0 %v982
    %1060 = vmatprep.subr.mxu0 %v987
    %1061 = vmatpush1.msra.mxu0 %v986
    %1062 = vmatprep.subr.mxu0 %v991
    %1063 = vmatpush1.msra.mxu0 %v990
    %1064 = vmatprep.subr.mxu0 %v995
    %1065 = vmatpush1.msra.mxu0 %v994
    %1066 = vmatprep.subr.mxu0 %v999
    %1067 = vmatpush1.msra.mxu0 %v998
    %1068 = vmatprep.subr.mxu0 %v1003
    %1069 = vmatpush1.msra.mxu0 %v1002
    %1070 = vmatprep.subr.mxu0 %v1007
    %1071 = vmatpush1.msra.mxu0 %v1006
    %1072 = vmatprep.subr.mxu0 %v1011
    %1073 = vmatpush1.msra.mxu0 %v1010
    %1074 = vmatprep.subr.mxu0 %v1015
    %1075 = vmatpush1.msra.mxu0 %v1014
    %1076 = vmatprep.subr.mxu0 %v1019
    %1077 = vmatpush1.msra.mxu0 %v1018
    %1078 = vmatprep.subr.mxu0 %v1023
    %1079 = vmatpush1.msra.mxu0 %v1022
    %1080 = vmatprep.subr.mxu0 %v1027
    %1081 = vmatpush1.msra.mxu0 %v1026
    %1082 = vmatprep.subr.mxu0 %v1031
    %1083 = vmatpush1.msra.mxu0 %v1030
    %1084 = vmatprep.subr.mxu0 %v1035
    %1085 = vmatpush1.msra.mxu0 %v1034
    %1086 = vmatprep.subr.mxu0 %v1039
    %1087 = vmatpush1.msra.mxu0 %v1038
    %1088 = vmatprep.subr.mxu0 %v1043
    %1089 = vmatpush1.msra.mxu0 %v1042
    %1090 = vmatprep.subr.mxu0 0.0
    %1091 = vmatpush1.msra.mxu0 0.0
    %1092 = vmatprep.subr.mxu0 0.0
    %1093 = vmatpush1.msra.mxu0 0.0
    %1094 = vmatprep.subr.mxu0 0.0
    %1095 = vmatpush1.msra.mxu0 0.0
    %1096 = vmatprep.subr.mxu0 0.0
    %1097 = vmatpush1.msra.mxu0 0.0
    %1098 = vmatprep.subr.mxu0 0.0
    %1099 = vmatpush1.msra.mxu0 0.0
    %1100 = vmatprep.subr.mxu0 0.0
    %1101 = vmatpush1.msra.mxu0 0.0
    %1102 = vmatprep.subr.mxu0 0.0
    %1103 = vmatpush1.msra.mxu0 0.0
    %1104 = vmatprep.subr.mxu0 0.0
    %1105 = vmatpush1.msra.mxu0 0.0
    %1106 = vmatprep.subr.mxu0 0.0
    %1107 = vmatpush1.msra.mxu0 0.0
    %1108 = vmatprep.subr.mxu0 0.0
    %1109 = vmatpush1.msra.mxu0 0.0
    %1110 = vmatprep.subr.mxu0 0.0
    %1111 = vmatpush1.msra.mxu0 0.0
    %1112 = vmatprep.subr.mxu0 0.0
    %1113 = vmatpush1.msra.mxu0 0.0
    %1114 = vmatprep.subr.mxu0 0.0
    %1115 = vmatpush1.msra.mxu0 0.0
    %1116 = vmatprep.subr.mxu0 0.0
    %1117 = vmatpush1.msra.mxu0 0.0
    %1118 = vmatprep.mubr.f32.mxu0 %v1052
    %1119 = vmatmul.mubr.f32.gmra.mrb[0].mxu0 %v1048
    %v1120 = vpop.f32.mrb[0].mxu0
    %v1121 = vadd.f32 0.0, %v1120
    %v1122 = vpop.f32.mrb[0].mxu0
    %v1123 = vadd.f32 0.0, %v1122
    %1124 = vdwg.mxu0
    %1125 = vmatprep.subr.mxu0 %v977
    %1126 = vmatpush1.msra.mxu0 %v976
    %1127 = vmatprep.subr.mxu0 %v981
    %1128 = vmatpush1.msra.mxu0 %v980
    %1129 = vmatprep.subr.mxu0 %v985
    %1130 = vmatpush1.msra.mxu0 %v984
    %1131 = vmatprep.subr.mxu0 %v989
    %1132 = vmatpush1.msra.mxu0 %v988
    %1133 = vmatprep.subr.mxu0 %v993
    %1134 = vmatpush1.msra.mxu0 %v992
    %1135 = vmatprep.subr.mxu0 %v997
    %1136 = vmatpush1.msra.mxu0 %v996
    %1137 = vmatprep.subr.mxu0 %v1001
    %1138 = vmatpush1.msra.mxu0 %v1000
    %1139 = vmatprep.subr.mxu0 %v1005
    %1140 = vmatpush1.msra.mxu0 %v1004
    %1141 = vmatprep.subr.mxu0 %v1009
    %1142 = vmatpush1.msra.mxu0 %v1008
    %1143 = vmatprep.subr.mxu0 %v1013
    %1144 = vmatpush1.msra.mxu0 %v1012
    %1145 = vmatprep.subr.mxu0 %v1017
    %1146 = vmatpush1.msra.mxu0 %v1016
    %1147 = vmatprep.subr.mxu0 %v1021
    %1148 = vmatpush1.msra.mxu0 %v1020
    %1149 = vmatprep.subr.mxu0 %v1025
    %1150 = vmatpush1.msra.mxu0 %v1024
    %1151 = vmatprep.subr.mxu0 %v1029
    %1152 = vmatpush1.msra.mxu0 %v1028
    %1153 = vmatprep.subr.mxu0 %v1033
    %1154 = vmatpush1.msra.mxu0 %v1032
    %1155 = vmatprep.subr.mxu0 %v1037
    %1156 = vmatpush1.msra.mxu0 %v1036
    %1157 = vmatprep.subr.mxu0 %v1041
    %1158 = vmatpush1.msra.mxu0 %v1040
    %1159 = vmatprep.subr.mxu0 %v1045
    %1160 = vmatpush1.msra.mxu0 %v1044
    %1161 = vmatprep.subr.mxu0 0.0
    %1162 = vmatpush1.msra.mxu0 0.0
    %1163 = vmatprep.subr.mxu0 0.0
    %1164 = vmatpush1.msra.mxu0 0.0
    %1165 = vmatprep.subr.mxu0 0.0
    %1166 = vmatpush1.msra.mxu0 0.0
    %1167 = vmatprep.subr.mxu0 0.0
    %1168 = vmatpush1.msra.mxu0 0.0
    %1169 = vmatprep.subr.mxu0 0.0
    %1170 = vmatpush1.msra.mxu0 0.0
    %1171 = vmatprep.subr.mxu0 0.0
    %1172 = vmatpush1.msra.mxu0 0.0
    %1173 = vmatprep.subr.mxu0 0.0
    %1174 = vmatpush1.msra.mxu0 0.0
    %1175 = vmatprep.subr.mxu0 0.0
    %1176 = vmatpush1.msra.mxu0 0.0
    %1177 = vmatprep.subr.mxu0 0.0
    %1178 = vmatpush1.msra.mxu0 0.0
    %1179 = vmatprep.subr.mxu0 0.0
    %1180 = vmatpush1.msra.mxu0 0.0
    %1181 = vmatprep.subr.mxu0 0.0
    %1182 = vmatpush1.msra.mxu0 0.0
    %1183 = vmatprep.subr.mxu0 0.0
    %1184 = vmatpush1.msra.mxu0 0.0
    %1185 = vmatprep.subr.mxu0 0.0
    %1186 = vmatpush1.msra.mxu0 0.0
    %1187 = vmatprep.subr.mxu0 0.0
    %1188 = vmatpush1.msra.mxu0 0.0
    %1189 = vmatprep.mubr.f32.mxu0 %v1052
    %1190 = vmatmul.mubr.f32.gmra.mrb[0].mxu0 %v1048
    %v1191 = vpop.f32.mrb[0].mxu0
    %v1192 = vadd.f32 0.0, %v1191
    %v1193 = vpop.f32.mrb[0].mxu0
    %v1194 = vadd.f32 0.0, %v1193
    %1195 = vdwg.mxu0
    %v1196 = vsel %vm1051, %v888, 0
    %1198 = vmatprep.subr.mxu0 %v902
    %1199 = vmatpush1.msra.mxu0 %v901
    %1200 = vmatprep.subr.mxu0 %v906
    %1201 = vmatpush1.msra.mxu0 %v905
    %1202 = vmatprep.subr.mxu0 %v910
    %1203 = vmatpush1.msra.mxu0 %v909
    %1204 = vmatprep.subr.mxu0 %v914
    %1205 = vmatpush1.msra.mxu0 %v913
    %1206 = vmatprep.subr.mxu0 %v918
    %1207 = vmatpush1.msra.mxu0 %v917
    %1208 = vmatprep.subr.mxu0 %v922
    %1209 = vmatpush1.msra.mxu0 %v921
    %1210 = vmatprep.subr.mxu0 %v926
    %1211 = vmatpush1.msra.mxu0 %v925
    %1212 = vmatprep.subr.mxu0 %v930
    %1213 = vmatpush1.msra.mxu0 %v929
    %1214 = vmatprep.subr.mxu0 %v934
    %1215 = vmatpush1.msra.mxu0 %v933
    %1216 = vmatprep.subr.mxu0 %v938
    %1217 = vmatpush1.msra.mxu0 %v937
    %1218 = vmatprep.subr.mxu0 %v942
    %1219 = vmatpush1.msra.mxu0 %v941
    %1220 = vmatprep.subr.mxu0 %v946
    %1221 = vmatpush1.msra.mxu0 %v945
    %1222 = vmatprep.subr.mxu0 %v950
    %1223 = vmatpush1.msra.mxu0 %v949
    %1224 = vmatprep.subr.mxu0 %v954
    %1225 = vmatpush1.msra.mxu0 %v953
    %1226 = vmatprep.subr.mxu0 %v958
    %1227 = vmatpush1.msra.mxu0 %v957
    %1228 = vmatprep.subr.mxu0 %v962
    %1229 = vmatpush1.msra.mxu0 %v961
    %1230 = vmatprep.subr.mxu0 %v966
    %1231 = vmatpush1.msra.mxu0 %v965
    %1232 = vmatprep.subr.mxu0 %v970
    %1233 = vmatpush1.msra.mxu0 %v969
    %1234 = vmatprep.subr.mxu0 0.0
    %1235 = vmatpush1.msra.mxu0 0.0
    %1236 = vmatprep.subr.mxu0 0.0
    %1237 = vmatpush1.msra.mxu0 0.0
    %1238 = vmatprep.subr.mxu0 0.0
    %1239 = vmatpush1.msra.mxu0 0.0
    %1240 = vmatprep.subr.mxu0 0.0
    %1241 = vmatpush1.msra.mxu0 0.0
    %1242 = vmatprep.subr.mxu0 0.0
    %1243 = vmatpush1.msra.mxu0 0.0
    %1244 = vmatprep.subr.mxu0 0.0
    %1245 = vmatpush1.msra.mxu0 0.0
    %1246 = vmatprep.subr.mxu0 0.0
    %1247 = vmatpush1.msra.mxu0 0.0
    %1248 = vmatprep.subr.mxu0 0.0
    %1249 = vmatpush1.msra.mxu0 0.0
    %1250 = vmatprep.subr.mxu0 0.0
    %1251 = vmatpush1.msra.mxu0 0.0
    %1252 = vmatprep.subr.mxu0 0.0
    %1253 = vmatpush1.msra.mxu0 0.0
    %1254 = vmatprep.subr.mxu0 0.0
    %1255 = vmatpush1.msra.mxu0 0.0
    %1256 = vmatprep.subr.mxu0 0.0
    %1257 = vmatpush1.msra.mxu0 0.0
    %1258 = vmatprep.subr.mxu0 0.0
    %1259 = vmatpush1.msra.mxu0 0.0
    %1260 = vmatprep.subr.mxu0 0.0
    %1261 = vmatpush1.msra.mxu0 0.0
    %1262 = vmatprep.mubr.f32.mxu0 %v1196
    %1263 = vmatmul.mubr.f32.gmra.mrb[0].mxu0 %v887
    %v1264 = vpop.f32.mrb[0].mxu0
    %v1265 = vadd.f32 %v1121, %v1264
    %v1266 = vpop.f32.mrb[0].mxu0
    %v1267 = vadd.f32 %v1123, %v1266
    %1268 = vdwg.mxu0
    %1269 = vmatprep.subr.mxu0 %v904
    %1270 = vmatpush1.msra.mxu0 %v903
    %1271 = vmatprep.subr.mxu0 %v908
    %1272 = vmatpush1.msra.mxu0 %v907
    %1273 = vmatprep.subr.mxu0 %v912
    %1274 = vmatpush1.msra.mxu0 %v911
    %1275 = vmatprep.subr.mxu0 %v916
    %1276 = vmatpush1.msra.mxu0 %v915
    %1277 = vmatprep.subr.mxu0 %v920
    %1278 = vmatpush1.msra.mxu0 %v919
    %1279 = vmatprep.subr.mxu0 %v924
    %1280 = vmatpush1.msra.mxu0 %v923
    %1281 = vmatprep.subr.mxu0 %v928
    %1282 = vmatpush1.msra.mxu0 %v927
    %1283 = vmatprep.subr.mxu0 %v932
    %1284 = vmatpush1.msra.mxu0 %v931
    %1285 = vmatprep.subr.mxu0 %v936
    %1286 = vmatpush1.msra.mxu0 %v935
    %1287 = vmatprep.subr.mxu0 %v940
    %1288 = vmatpush1.msra.mxu0 %v939
    %1289 = vmatprep.subr.mxu0 %v944
    %1290 = vmatpush1.msra.mxu0 %v943
    %1291 = vmatprep.subr.mxu0 %v948
    %1292 = vmatpush1.msra.mxu0 %v947
    %1293 = vmatprep.subr.mxu0 %v952
    %1294 = vmatpush1.msra.mxu0 %v951
    %1295 = vmatprep.subr.mxu0 %v956
    %1296 = vmatpush1.msra.mxu0 %v955
    %1297 = vmatprep.subr.mxu0 %v960
    %1298 = vmatpush1.msra.mxu0 %v959
    %1299 = vmatprep.subr.mxu0 %v964
    %1300 = vmatpush1.msra.mxu0 %v963
    %1301 = vmatprep.subr.mxu0 %v968
    %1302 = vmatpush1.msra.mxu0 %v967
    %1303 = vmatprep.subr.mxu0 %v972
    %1304 = vmatpush1.msra.mxu0 %v971
    %1305 = vmatprep.subr.mxu0 0.0
    %1306 = vmatpush1.msra.mxu0 0.0
    %1307 = vmatprep.subr.mxu0 0.0
    %1308 = vmatpush1.msra.mxu0 0.0
    %1309 = vmatprep.subr.mxu0 0.0
    %1310 = vmatpush1.msra.mxu0 0.0
    %1311 = vmatprep.subr.mxu0 0.0
    %1312 = vmatpush1.msra.mxu0 0.0
    %1313 = vmatprep.subr.mxu0 0.0
    %1314 = vmatpush1.msra.mxu0 0.0
    %1315 = vmatprep.subr.mxu0 0.0
    %1316 = vmatpush1.msra.mxu0 0.0
    %1317 = vmatprep.subr.mxu0 0.0
    %1318 = vmatpush1.msra.mxu0 0.0
    %1319 = vmatprep.subr.mxu0 0.0
    %1320 = vmatpush1.msra.mxu0 0.0
    %1321 = vmatprep.subr.mxu0 0.0
    %1322 = vmatpush1.msra.mxu0 0.0
    %1323 = vmatprep.subr.mxu0 0.0
    %1324 = vmatpush1.msra.mxu0 0.0
    %1325 = vmatprep.subr.mxu0 0.0
    %1326 = vmatpush1.msra.mxu0 0.0
    %1327 = vmatprep.subr.mxu0 0.0
    %1328 = vmatpush1.msra.mxu0 0.0
    %1329 = vmatprep.subr.mxu0 0.0
    %1330 = vmatpush1.msra.mxu0 0.0
    %1331 = vmatprep.subr.mxu0 0.0
    %1332 = vmatpush1.msra.mxu0 0.0
    %1333 = vmatprep.mubr.f32.mxu0 %v1196
    %1334 = vmatmul.mubr.f32.gmra.mrb[0].mxu0 %v887
    %v1335 = vpop.f32.mrb[0].mxu0
    %v1336 = vadd.f32 %v1192, %v1335
    %v1337 = vpop.f32.mrb[0].mxu0
    %v1338 = vadd.f32 %v1194, %v1337
    %1339 = vdwg.mxu0
    %s1340 = scalar_lea.vmem [#allocation6], 1152
    %v1341 = vld [vmem:[%s1340] sm:$0xff]
    %v1342 = vld [vmem:[%s1340 + $0x8] sm:$0xff]
    %v1343 = vld [vmem:[%s1340 + $0x10] sm:$0xff]
    %v1344 = vld [vmem:[%s1340 + $0x18] sm:$0xff]
    %v1345 = vld [vmem:[%s1340 + $0x20] sm:$0xff]
    %v1346 = vld [vmem:[%s1340 + $0x28] sm:$0xff]
    %v1347 = vld [vmem:[%s1340 + $0x30] sm:$0xff]
    %v1348 = vld [vmem:[%s1340 + $0x38] sm:$0xff]
    %v1349 = vld [vmem:[%s1340 + $0x40] sm:$0xff]
    %v1350 = vld [vmem:[%s1340 + $0x48] sm:$0xff]
    %v1351 = vld [vmem:[%s1340 + $0x50] sm:$0xff]
    %v1352 = vld [vmem:[%s1340 + $0x58] sm:$0xff]
    %v1353 = vld [vmem:[%s1340 + $0x60] sm:$0xff]
    %v1354 = vld [vmem:[%s1340 + $0x68] sm:$0xff]
    %v1355 = vld [vmem:[%s1340 + $0x70] sm:$0xff]
    %v1356 = vld [vmem:[%s1340 + $0x78] sm:$0xff]
    %v1357 = vld [vmem:[%s1340 + $0x80] sm:$0xff]
    %v1358 = vld [vmem:[%s1340 + $0x88] sm:$0xff]
    %v1359 = vld [vmem:[%s1340 + $0x90] sm:$0xff]
    %v1360 = vld [vmem:[%s1340 + $0x98] sm:$0xff]
    %v1361 = vld [vmem:[%s1340 + $0xa0] sm:$0xff]
    %v1362 = vld [vmem:[%s1340 + $0xa8] sm:$0xff]
    %v1363 = vld [vmem:[%s1340 + $0xb0] sm:$0xff]
    %v1364 = vld [vmem:[%s1340 + $0xb8] sm:$0xff]
    %v1365 = vld [vmem:[%s1340 + $0xc0] sm:$0xff]
    %v1366 = vld [vmem:[%s1340 + $0xc8] sm:$0xff]
    %v1367 = vld [vmem:[%s1340 + $0xd0] sm:$0xff]
    %v1368 = vld [vmem:[%s1340 + $0xd8] sm:$0xff]
    %v1369 = vld [vmem:[%s1340 + $0xe0] sm:$0xff]
    %v1370 = vld [vmem:[%s1340 + $0xe8] sm:$0xff]
    %v1371 = vld [vmem:[%s1340 + $0xf0] sm:$0xff]
    %v1372 = vld [vmem:[%s1340 + $0xf8] sm:$0xff]
    %v1373 = vld [vmem:[%s1340 + $0x100] sm:$0xff]
    %v1374 = vld [vmem:[%s1340 + $0x108] sm:$0xff]
    %v1375 = vld [vmem:[%s1340 + $0x110] sm:$0xff]
    %v1376 = vld [vmem:[%s1340 + $0x118] sm:$0xff]
    %v1377 = vld [vmem:[%s1340 + $0x120] sm:$0xff]
    %v1378 = vld [vmem:[%s1340 + $0x128] sm:$0xff]
    %v1379 = vld [vmem:[%s1340 + $0x130] sm:$0xff]
    %v1380 = vld [vmem:[%s1340 + $0x138] sm:$0xff]
    %v1381 = vld [vmem:[%s1340 + $0x140] sm:$0xff]
    %v1382 = vld [vmem:[%s1340 + $0x148] sm:$0xff]
    %v1383 = vld [vmem:[%s1340 + $0x150] sm:$0xff]
    %v1384 = vld [vmem:[%s1340 + $0x158] sm:$0xff]
    %v1385 = vld [vmem:[%s1340 + $0x160] sm:$0xff]
    %v1386 = vld [vmem:[%s1340 + $0x168] sm:$0xff]
    %v1387 = vld [vmem:[%s1340 + $0x170] sm:$0xff]
    %v1388 = vld [vmem:[%s1340 + $0x178] sm:$0xff]
    %v1389 = vld [vmem:[%s1340 + $0x180] sm:$0xff]
    %v1390 = vld [vmem:[%s1340 + $0x188] sm:$0xff]
    %v1391 = vld [vmem:[%s1340 + $0x190] sm:$0xff]
    %v1392 = vld [vmem:[%s1340 + $0x198] sm:$0xff]
    %v1393 = vld [vmem:[%s1340 + $0x1a0] sm:$0xff]
    %v1394 = vld [vmem:[%s1340 + $0x1a8] sm:$0xff]
    %v1395 = vld [vmem:[%s1340 + $0x1b0] sm:$0xff]
    %v1396 = vld [vmem:[%s1340 + $0x1b8] sm:$0xff]
    %v1397 = vld [vmem:[%s1340 + $0x1c0] sm:$0xff]
    %v1398 = vld [vmem:[%s1340 + $0x1c8] sm:$0xff]
    %v1399 = vld [vmem:[%s1340 + $0x1d0] sm:$0xff]
    %v1400 = vld [vmem:[%s1340 + $0x1d8] sm:$0xff]
    %v1401 = vld [vmem:[%s1340 + $0x1e0] sm:$0xff]
    %v1402 = vld [vmem:[%s1340 + $0x1e8] sm:$0xff]
    %v1403 = vld [vmem:[%s1340 + $0x1f0] sm:$0xff]
    %v1404 = vld [vmem:[%s1340 + $0x1f8] sm:$0xff]
    %v1405 = vld [vmem:[%s1340 + $0x200] sm:$0xff]
    %v1406 = vld [vmem:[%s1340 + $0x208] sm:$0xff]
    %v1407 = vld [vmem:[%s1340 + $0x210] sm:$0xff]
    %v1408 = vld [vmem:[%s1340 + $0x218] sm:$0xff]
    %v1409 = vld [vmem:[%s1340 + $0x220] sm:$0xff]
    %v1410 = vld [vmem:[%s1340 + $0x228] sm:$0xff]
    %v1411 = vld [vmem:[%s1340 + $0x230] sm:$0xff]
    %v1412 = vld [vmem:[%s1340 + $0x238] sm:$0xff]
    %v1413 = vrot.slane %v887, 4
    %v1414 = vrot.slane %v888, 4
    %v1416 = vsel %vm1051, %v1414, 0
    %1418 = vmatprep.subr.mxu0 %v1342
    %1419 = vmatpush1.msra.mxu0 %v1341
    %1420 = vmatprep.subr.mxu0 %v1346
    %1421 = vmatpush1.msra.mxu0 %v1345
    %1422 = vmatprep.subr.mxu0 %v1350
    %1423 = vmatpush1.msra.mxu0 %v1349
    %1424 = vmatprep.subr.mxu0 %v1354
    %1425 = vmatpush1.msra.mxu0 %v1353
    %1426 = vmatprep.subr.mxu0 %v1358
    %1427 = vmatpush1.msra.mxu0 %v1357
    %1428 = vmatprep.subr.mxu0 %v1362
    %1429 = vmatpush1.msra.mxu0 %v1361
    %1430 = vmatprep.subr.mxu0 %v1366
    %1431 = vmatpush1.msra.mxu0 %v1365
    %1432 = vmatprep.subr.mxu0 %v1370
    %1433 = vmatpush1.msra.mxu0 %v1369
    %1434 = vmatprep.subr.mxu0 %v1374
    %1435 = vmatpush1.msra.mxu0 %v1373
    %1436 = vmatprep.subr.mxu0 %v1378
    %1437 = vmatpush1.msra.mxu0 %v1377
    %1438 = vmatprep.subr.mxu0 %v1382
    %1439 = vmatpush1.msra.mxu0 %v1381
    %1440 = vmatprep.subr.mxu0 %v1386
    %1441 = vmatpush1.msra.mxu0 %v1385
    %1442 = vmatprep.subr.mxu0 %v1390
    %1443 = vmatpush1.msra.mxu0 %v1389
    %1444 = vmatprep.subr.mxu0 %v1394
    %1445 = vmatpush1.msra.mxu0 %v1393
    %1446 = vmatprep.subr.mxu0 %v1398
    %1447 = vmatpush1.msra.mxu0 %v1397
    %1448 = vmatprep.subr.mxu0 %v1402
    %1449 = vmatpush1.msra.mxu0 %v1401
    %1450 = vmatprep.subr.mxu0 %v1406
    %1451 = vmatpush1.msra.mxu0 %v1405
    %1452 = vmatprep.subr.mxu0 %v1410
    %1453 = vmatpush1.msra.mxu0 %v1409
    %1454 = vmatprep.subr.mxu0 0.0
    %1455 = vmatpush1.msra.mxu0 0.0
    %1456 = vmatprep.subr.mxu0 0.0
    %1457 = vmatpush1.msra.mxu0 0.0
    %1458 = vmatprep.subr.mxu0 0.0
    %1459 = vmatpush1.msra.mxu0 0.0
    %1460 = vmatprep.subr.mxu0 0.0
    %1461 = vmatpush1.msra.mxu0 0.0
    %1462 = vmatprep.subr.mxu0 0.0
    %1463 = vmatpush1.msra.mxu0 0.0
    %1464 = vmatprep.subr.mxu0 0.0
    %1465 = vmatpush1.msra.mxu0 0.0
    %1466 = vmatprep.subr.mxu0 0.0
    %1467 = vmatpush1.msra.mxu0 0.0
    %1468 = vmatprep.subr.mxu0 0.0
    %1469 = vmatpush1.msra.mxu0 0.0
    %1470 = vmatprep.subr.mxu0 0.0
    %1471 = vmatpush1.msra.mxu0 0.0
    %1472 = vmatprep.subr.mxu0 0.0
    %1473 = vmatpush1.msra.mxu0 0.0
    %1474 = vmatprep.subr.mxu0 0.0
    %1475 = vmatpush1.msra.mxu0 0.0
    %1476 = vmatprep.subr.mxu0 0.0
    %1477 = vmatpush1.msra.mxu0 0.0
    %1478 = vmatprep.subr.mxu0 0.0
    %1479 = vmatpush1.msra.mxu0 0.0
    %1480 = vmatprep.subr.mxu0 0.0
    %1481 = vmatpush1.msra.mxu0 0.0
    %1482 = vmatprep.mubr.f32.mxu0 %v1416
    %1483 = vmatmul.mubr.f32.gmra.mrb[0].mxu0 %v1413
    %v1484 = vpop.f32.mrb[0].mxu0
    %v1485 = vadd.f32 0.0, %v1484
    %v1486 = vpop.f32.mrb[0].mxu0
    %v1487 = vadd.f32 0.0, %v1486
    %1488 = vdwg.mxu0
    %1489 = vmatprep.subr.mxu0 %v1344
    %1490 = vmatpush1.msra.mxu0 %v1343
    %1491 = vmatprep.subr.mxu0 %v1348
    %1492 = vmatpush1.msra.mxu0 %v1347
    %1493 = vmatprep.subr.mxu0 %v1352
    %1494 = vmatpush1.msra.mxu0 %v1351
    %1495 = vmatprep.subr.mxu0 %v1356
    %1496 = vmatpush1.msra.mxu0 %v1355
    %1497 = vmatprep.subr.mxu0 %v1360
    %1498 = vmatpush1.msra.mxu0 %v1359
    %1499 = vmatprep.subr.mxu0 %v1364
    %1500 = vmatpush1.msra.mxu0 %v1363
    %1501 = vmatprep.subr.mxu0 %v1368
    %1502 = vmatpush1.msra.mxu0 %v1367
    %1503 = vmatprep.subr.mxu0 %v1372
    %1504 = vmatpush1.msra.mxu0 %v1371
    %1505 = vmatprep.subr.mxu0 %v1376
    %1506 = vmatpush1.msra.mxu0 %v1375
    %1507 = vmatprep.subr.mxu0 %v1380
    %1508 = vmatpush1.msra.mxu0 %v1379
    %1509 = vmatprep.subr.mxu0 %v1384
    %1510 = vmatpush1.msra.mxu0 %v1383
    %1511 = vmatprep.subr.mxu0 %v1388
    %1512 = vmatpush1.msra.mxu0 %v1387
    %1513 = vmatprep.subr.mxu0 %v1392
    %1514 = vmatpush1.msra.mxu0 %v1391
    %1515 = vmatprep.subr.mxu0 %v1396
    %1516 = vmatpush1.msra.mxu0 %v1395
    %1517 = vmatprep.subr.mxu0 %v1400
    %1518 = vmatpush1.msra.mxu0 %v1399
    %1519 = vmatprep.subr.mxu0 %v1404
    %1520 = vmatpush1.msra.mxu0 %v1403
    %1521 = vmatprep.subr.mxu0 %v1408
    %1522 = vmatpush1.msra.mxu0 %v1407
    %1523 = vmatprep.subr.mxu0 %v1412
    %1524 = vmatpush1.msra.mxu0 %v1411
    %1525 = vmatprep.subr.mxu0 0.0
    %1526 = vmatpush1.msra.mxu0 0.0
    %1527 = vmatprep.subr.mxu0 0.0
    %1528 = vmatpush1.msra.mxu0 0.0
    %1529 = vmatprep.subr.mxu0 0.0
    %1530 = vmatpush1.msra.mxu0 0.0
    %1531 = vmatprep.subr.mxu0 0.0
    %1532 = vmatpush1.msra.mxu0 0.0
    %1533 = vmatprep.subr.mxu0 0.0
    %1534 = vmatpush1.msra.mxu0 0.0
    %1535 = vmatprep.subr.mxu0 0.0
    %1536 = vmatpush1.msra.mxu0 0.0
    %1537 = vmatprep.subr.mxu0 0.0
    %1538 = vmatpush1.msra.mxu0 0.0
    %1539 = vmatprep.subr.mxu0 0.0
    %1540 = vmatpush1.msra.mxu0 0.0
    %1541 = vmatprep.subr.mxu0 0.0
    %1542 = vmatpush1.msra.mxu0 0.0
    %1543 = vmatprep.subr.mxu0 0.0
    %1544 = vmatpush1.msra.mxu0 0.0
    %1545 = vmatprep.subr.mxu0 0.0
    %1546 = vmatpush1.msra.mxu0 0.0
    %1547 = vmatprep.subr.mxu0 0.0
    %1548 = vmatpush1.msra.mxu0 0.0
    %1549 = vmatprep.subr.mxu0 0.0
    %1550 = vmatpush1.msra.mxu0 0.0
    %1551 = vmatprep.subr.mxu0 0.0
    %1552 = vmatpush1.msra.mxu0 0.0
    %1553 = vmatprep.mubr.f32.mxu0 %v1416
    %1554 = vmatmul.mubr.f32.gmra.mrb[0].mxu0 %v1413
    %v1555 = vpop.f32.mrb[0].mxu0
    %v1556 = vadd.f32 0.0, %v1555
    %v1557 = vpop.f32.mrb[0].mxu0
    %v1558 = vadd.f32 0.0, %v1557
    %1559 = vdwg.mxu0
    %v1560 = vadd.f32 %v1265, %v1485
    %v1561 = vadd.f32 %v1267, %v1487
    %v1562 = vadd.f32 %v1336, %v1556
    %v1563 = vadd.f32 %v1338, %v1558
    %s1564 = scalar_lea.vmem [#allocation6], 1728
    %v1565 = vld [vmem:[%s1564] sm:$0xff]
    %v1566 = vld [vmem:[%s1564 + $0x8] sm:$0xff]
    %v1567 = vld [vmem:[%s1564 + $0x10] sm:$0xff]
    %v1568 = vld [vmem:[%s1564 + $0x18] sm:$0xff]
    %v1569 = vld [vmem:[%s1564 + $0x20] sm:$0xff]
    %v1570 = vld [vmem:[%s1564 + $0x28] sm:$0xff]
    %v1571 = vld [vmem:[%s1564 + $0x30] sm:$0xff]
    %v1572 = vld [vmem:[%s1564 + $0x38] sm:$0xff]
    %v1573 = vld [vmem:[%s1564 + $0x40] sm:$0xff]
    %v1574 = vld [vmem:[%s1564 + $0x48] sm:$0xff]
    %v1575 = vld [vmem:[%s1564 + $0x50] sm:$0xff]
    %v1576 = vld [vmem:[%s1564 + $0x58] sm:$0xff]
    %v1577 = vld [vmem:[%s1564 + $0x60] sm:$0xff]
    %v1578 = vld [vmem:[%s1564 + $0x68] sm:$0xff]
    %v1579 = vld [vmem:[%s1564 + $0x70] sm:$0xff]
    %v1580 = vld [vmem:[%s1564 + $0x78] sm:$0xff]
    %v1581 = vld [vmem:[%s1564 + $0x80] sm:$0xff]
    %v1582 = vld [vmem:[%s1564 + $0x88] sm:$0xff]
    %v1583 = vld [vmem:[%s1564 + $0x90] sm:$0xff]
    %v1584 = vld [vmem:[%s1564 + $0x98] sm:$0xff]
    %v1585 = vld [vmem:[%s1564 + $0xa0] sm:$0xff]
    %v1586 = vld [vmem:[%s1564 + $0xa8] sm:$0xff]
    %v1587 = vld [vmem:[%s1564 + $0xb0] sm:$0xff]
    %v1588 = vld [vmem:[%s1564 + $0xb8] sm:$0xff]
    %v1589 = vld [vmem:[%s1564 + $0xc0] sm:$0xff]
    %v1590 = vld [vmem:[%s1564 + $0xc8] sm:$0xff]
    %v1591 = vld [vmem:[%s1564 + $0xd0] sm:$0xff]
    %v1592 = vld [vmem:[%s1564 + $0xd8] sm:$0xff]
    %v1593 = vld [vmem:[%s1564 + $0xe0] sm:$0xff]
    %v1594 = vld [vmem:[%s1564 + $0xe8] sm:$0xff]
    %v1595 = vld [vmem:[%s1564 + $0xf0] sm:$0xff]
    %v1596 = vld [vmem:[%s1564 + $0xf8] sm:$0xff]
    %v1597 = vld [vmem:[%s1564 + $0x100] sm:$0xff]
    %v1598 = vld [vmem:[%s1564 + $0x108] sm:$0xff]
    %v1599 = vld [vmem:[%s1564 + $0x110] sm:$0xff]
    %v1600 = vld [vmem:[%s1564 + $0x118] sm:$0xff]
    %v1601 = vld [vmem:[%s1564 + $0x120] sm:$0xff]
    %v1602 = vld [vmem:[%s1564 + $0x128] sm:$0xff]
    %v1603 = vld [vmem:[%s1564 + $0x130] sm:$0xff]
    %v1604 = vld [vmem:[%s1564 + $0x138] sm:$0xff]
    %v1605 = vld [vmem:[%s1564 + $0x140] sm:$0xff]
    %v1606 = vld [vmem:[%s1564 + $0x148] sm:$0xff]
    %v1607 = vld [vmem:[%s1564 + $0x150] sm:$0xff]
    %v1608 = vld [vmem:[%s1564 + $0x158] sm:$0xff]
    %v1609 = vld [vmem:[%s1564 + $0x160] sm:$0xff]
    %v1610 = vld [vmem:[%s1564 + $0x168] sm:$0xff]
    %v1611 = vld [vmem:[%s1564 + $0x170] sm:$0xff]
    %v1612 = vld [vmem:[%s1564 + $0x178] sm:$0xff]
    %v1613 = vld [vmem:[%s1564 + $0x180] sm:$0xff]
    %v1614 = vld [vmem:[%s1564 + $0x188] sm:$0xff]
    %v1615 = vld [vmem:[%s1564 + $0x190] sm:$0xff]
    %v1616 = vld [vmem:[%s1564 + $0x198] sm:$0xff]
    %v1617 = vld [vmem:[%s1564 + $0x1a0] sm:$0xff]
    %v1618 = vld [vmem:[%s1564 + $0x1a8] sm:$0xff]
    %v1619 = vld [vmem:[%s1564 + $0x1b0] sm:$0xff]
    %v1620 = vld [vmem:[%s1564 + $0x1b8] sm:$0xff]
    %v1621 = vld [vmem:[%s1564 + $0x1c0] sm:$0xff]
    %v1622 = vld [vmem:[%s1564 + $0x1c8] sm:$0xff]
    %v1623 = vld [vmem:[%s1564 + $0x1d0] sm:$0xff]
    %v1624 = vld [vmem:[%s1564 + $0x1d8] sm:$0xff]
    %v1625 = vld [vmem:[%s1564 + $0x1e0] sm:$0xff]
    %v1626 = vld [vmem:[%s1564 + $0x1e8] sm:$0xff]
    %v1627 = vld [vmem:[%s1564 + $0x1f0] sm:$0xff]
    %v1628 = vld [vmem:[%s1564 + $0x1f8] sm:$0xff]
    %v1629 = vld [vmem:[%s1564 + $0x200] sm:$0xff]
    %v1630 = vld [vmem:[%s1564 + $0x208] sm:$0xff]
    %v1631 = vld [vmem:[%s1564 + $0x210] sm:$0xff]
    %v1632 = vld [vmem:[%s1564 + $0x218] sm:$0xff]
    %v1633 = vld [vmem:[%s1564 + $0x220] sm:$0xff]
    %v1634 = vld [vmem:[%s1564 + $0x228] sm:$0xff]
    %v1635 = vld [vmem:[%s1564 + $0x230] sm:$0xff]
    %v1636 = vld [vmem:[%s1564 + $0x238] sm:$0xff]
    %v1637 = vrot.slane %v887, 6
    %v1638 = vrot.slane %v888, 6
    %v1640 = vsel %vm1051, %v1638, 0
    %1642 = vmatprep.subr.mxu0 %v1566
    %1643 = vmatpush1.msra.mxu0 %v1565
    %1644 = vmatprep.subr.mxu0 %v1570
    %1645 = vmatpush1.msra.mxu0 %v1569
    %1646 = vmatprep.subr.mxu0 %v1574
    %1647 = vmatpush1.msra.mxu0 %v1573
    %1648 = vmatprep.subr.mxu0 %v1578
    %1649 = vmatpush1.msra.mxu0 %v1577
    %1650 = vmatprep.subr.mxu0 %v1582
    %1651 = vmatpush1.msra.mxu0 %v1581
    %1652 = vmatprep.subr.mxu0 %v1586
    %1653 = vmatpush1.msra.mxu0 %v1585
    %1654 = vmatprep.subr.mxu0 %v1590
    %1655 = vmatpush1.msra.mxu0 %v1589
    %1656 = vmatprep.subr.mxu0 %v1594
    %1657 = vmatpush1.msra.mxu0 %v1593
    %1658 = vmatprep.subr.mxu0 %v1598
    %1659 = vmatpush1.msra.mxu0 %v1597
    %1660 = vmatprep.subr.mxu0 %v1602
    %1661 = vmatpush1.msra.mxu0 %v1601
    %1662 = vmatprep.subr.mxu0 %v1606
    %1663 = vmatpush1.msra.mxu0 %v1605
    %1664 = vmatprep.subr.mxu0 %v1610
    %1665 = vmatpush1.msra.mxu0 %v1609
    %1666 = vmatprep.subr.mxu0 %v1614
    %1667 = vmatpush1.msra.mxu0 %v1613
    %1668 = vmatprep.subr.mxu0 %v1618
    %1669 = vmatpush1.msra.mxu0 %v1617
    %1670 = vmatprep.subr.mxu0 %v1622
    %1671 = vmatpush1.msra.mxu0 %v1621
    %1672 = vmatprep.subr.mxu0 %v1626
    %1673 = vmatpush1.msra.mxu0 %v1625
    %1674 = vmatprep.subr.mxu0 %v1630
    %1675 = vmatpush1.msra.mxu0 %v1629
    %1676 = vmatprep.subr.mxu0 %v1634
    %1677 = vmatpush1.msra.mxu0 %v1633
    %1678 = vmatprep.subr.mxu0 0.0
    %1679 = vmatpush1.msra.mxu0 0.0
    %1680 = vmatprep.subr.mxu0 0.0
    %1681 = vmatpush1.msra.mxu0 0.0
    %1682 = vmatprep.subr.mxu0 0.0
    %1683 = vmatpush1.msra.mxu0 0.0
    %1684 = vmatprep.subr.mxu0 0.0
    %1685 = vmatpush1.msra.mxu0 0.0
    %1686 = vmatprep.subr.mxu0 0.0
    %1687 = vmatpush1.msra.mxu0 0.0
    %1688 = vmatprep.subr.mxu0 0.0
    %1689 = vmatpush1.msra.mxu0 0.0
    %1690 = vmatprep.subr.mxu0 0.0
    %1691 = vmatpush1.msra.mxu0 0.0
    %1692 = vmatprep.subr.mxu0 0.0
    %1693 = vmatpush1.msra.mxu0 0.0
    %1694 = vmatprep.subr.mxu0 0.0
    %1695 = vmatpush1.msra.mxu0 0.0
    %1696 = vmatprep.subr.mxu0 0.0
    %1697 = vmatpush1.msra.mxu0 0.0
    %1698 = vmatprep.subr.mxu0 0.0
    %1699 = vmatpush1.msra.mxu0 0.0
    %1700 = vmatprep.subr.mxu0 0.0
    %1701 = vmatpush1.msra.mxu0 0.0
    %1702 = vmatprep.subr.mxu0 0.0
    %1703 = vmatpush1.msra.mxu0 0.0
    %1704 = vmatprep.subr.mxu0 0.0
    %1705 = vmatpush1.msra.mxu0 0.0
    %1706 = vmatprep.mubr.f32.mxu0 %v1640
    %1707 = vmatmul.mubr.f32.gmra.mrb[0].mxu0 %v1637
    %v1708 = vpop.f32.mrb[0].mxu0
    %v1709 = vadd.f32 0.0, %v1708
    %v1710 = vpop.f32.mrb[0].mxu0
    %v1711 = vadd.f32 0.0, %v1710
    %1712 = vdwg.mxu0
    %1713 = vmatprep.subr.mxu0 %v1568
    %1714 = vmatpush1.msra.mxu0 %v1567
    %1715 = vmatprep.subr.mxu0 %v1572
    %1716 = vmatpush1.msra.mxu0 %v1571
    %1717 = vmatprep.subr.mxu0 %v1576
    %1718 = vmatpush1.msra.mxu0 %v1575
    %1719 = vmatprep.subr.mxu0 %v1580
    %1720 = vmatpush1.msra.mxu0 %v1579
    %1721 = vmatprep.subr.mxu0 %v1584
    %1722 = vmatpush1.msra.mxu0 %v1583
    %1723 = vmatprep.subr.mxu0 %v1588
    %1724 = vmatpush1.msra.mxu0 %v1587
    %1725 = vmatprep.subr.mxu0 %v1592
    %1726 = vmatpush1.msra.mxu0 %v1591
    %1727 = vmatprep.subr.mxu0 %v1596
    %1728 = vmatpush1.msra.mxu0 %v1595
    %1729 = vmatprep.subr.mxu0 %v1600
    %1730 = vmatpush1.msra.mxu0 %v1599
    %1731 = vmatprep.subr.mxu0 %v1604
    %1732 = vmatpush1.msra.mxu0 %v1603
    %1733 = vmatprep.subr.mxu0 %v1608
    %1734 = vmatpush1.msra.mxu0 %v1607
    %1735 = vmatprep.subr.mxu0 %v1612
    %1736 = vmatpush1.msra.mxu0 %v1611
    %1737 = vmatprep.subr.mxu0 %v1616
    %1738 = vmatpush1.msra.mxu0 %v1615
    %1739 = vmatprep.subr.mxu0 %v1620
    %1740 = vmatpush1.msra.mxu0 %v1619
    %1741 = vmatprep.subr.mxu0 %v1624
    %1742 = vmatpush1.msra.mxu0 %v1623
    %1743 = vmatprep.subr.mxu0 %v1628
    %1744 = vmatpush1.msra.mxu0 %v1627
    %1745 = vmatprep.subr.mxu0 %v1632
    %1746 = vmatpush1.msra.mxu0 %v1631
    %1747 = vmatprep.subr.mxu0 %v1636
    %1748 = vmatpush1.msra.mxu0 %v1635
    %1749 = vmatprep.subr.mxu0 0.0
    %1750 = vmatpush1.msra.mxu0 0.0
    %1751 = vmatprep.subr.mxu0 0.0
    %1752 = vmatpush1.msra.mxu0 0.0
    %1753 = vmatprep.subr.mxu0 0.0
    %1754 = vmatpush1.msra.mxu0 0.0
    %1755 = vmatprep.subr.mxu0 0.0
    %1756 = vmatpush1.msra.mxu0 0.0
    %1757 = vmatprep.subr.mxu0 0.0
    %1758 = vmatpush1.msra.mxu0 0.0
    %1759 = vmatprep.subr.mxu0 0.0
    %1760 = vmatpush1.msra.mxu0 0.0
    %1761 = vmatprep.subr.mxu0 0.0
    %1762 = vmatpush1.msra.mxu0 0.0
    %1763 = vmatprep.subr.mxu0 0.0
    %1764 = vmatpush1.msra.mxu0 0.0
    %1765 = vmatprep.subr.mxu0 0.0
    %1766 = vmatpush1.msra.mxu0 0.0
    %1767 = vmatprep.subr.mxu0 0.0
    %1768 = vmatpush1.msra.mxu0 0.0
    %1769 = vmatprep.subr.mxu0 0.0
    %1770 = vmatpush1.msra.mxu0 0.0
    %1771 = vmatprep.subr.mxu0 0.0
    %1772 = vmatpush1.msra.mxu0 0.0
    %1773 = vmatprep.subr.mxu0 0.0
    %1774 = vmatpush1.msra.mxu0 0.0
    %1775 = vmatprep.subr.mxu0 0.0
    %1776 = vmatpush1.msra.mxu0 0.0
    %1777 = vmatprep.mubr.f32.mxu0 %v1640
    %1778 = vmatmul.mubr.f32.gmra.mrb[0].mxu0 %v1637
    %v1779 = vpop.f32.mrb[0].mxu0
    %v1780 = vadd.f32 0.0, %v1779
    %v1781 = vpop.f32.mrb[0].mxu0
    %v1782 = vadd.f32 0.0, %v1781
    %1783 = vdwg.mxu0
    %v1784 = vadd.f32 %v1560, %v1709
    %v1785 = vadd.f32 %v1561, %v1711
    %v1786 = vadd.f32 %v1562, %v1780
    %v1787 = vadd.f32 %v1563, %v1782
    %s1788 = scalar_lea.vmem [#allocation6], 2304
    %v1789 = vld [vmem:[%s1788] sm:$0xff]
    %v1790 = vld [vmem:[%s1788 + $0x8] sm:$0xff]
    %v1791 = vld [vmem:[%s1788 + $0x10] sm:$0xff]
    %v1792 = vld [vmem:[%s1788 + $0x18] sm:$0xff]
    %v1793 = vld [vmem:[%s1788 + $0x20] sm:$0xff]
    %v1794 = vld [vmem:[%s1788 + $0x28] sm:$0xff]
    %v1795 = vld [vmem:[%s1788 + $0x30] sm:$0xff]
    %v1796 = vld [vmem:[%s1788 + $0x38] sm:$0xff]
    %v1797 = vld [vmem:[%s1788 + $0x40] sm:$0xff]
    %v1798 = vld [vmem:[%s1788 + $0x48] sm:$0xff]
    %v1799 = vld [vmem:[%s1788 + $0x50] sm:$0xff]
    %v1800 = vld [vmem:[%s1788 + $0x58] sm:$0xff]
    %v1801 = vld [vmem:[%s1788 + $0x60] sm:$0xff]
    %v1802 = vld [vmem:[%s1788 + $0x68] sm:$0xff]
    %v1803 = vld [vmem:[%s1788 + $0x70] sm:$0xff]
    %v1804 = vld [vmem:[%s1788 + $0x78] sm:$0xff]
    %v1805 = vld [vmem:[%s1788 + $0x80] sm:$0xff]
    %v1806 = vld [vmem:[%s1788 + $0x88] sm:$0xff]
    %v1807 = vld [vmem:[%s1788 + $0x90] sm:$0xff]
    %v1808 = vld [vmem:[%s1788 + $0x98] sm:$0xff]
    %v1809 = vld [vmem:[%s1788 + $0xa0] sm:$0xff]
    %v1810 = vld [vmem:[%s1788 + $0xa8] sm:$0xff]
    %v1811 = vld [vmem:[%s1788 + $0xb0] sm:$0xff]
    %v1812 = vld [vmem:[%s1788 + $0xb8] sm:$0xff]
    %v1813 = vld [vmem:[%s1788 + $0xc0] sm:$0xff]
    %v1814 = vld [vmem:[%s1788 + $0xc8] sm:$0xff]
    %v1815 = vld [vmem:[%s1788 + $0xd0] sm:$0xff]
    %v1816 = vld [vmem:[%s1788 + $0xd8] sm:$0xff]
    %v1817 = vld [vmem:[%s1788 + $0xe0] sm:$0xff]
    %v1818 = vld [vmem:[%s1788 + $0xe8] sm:$0xff]
    %v1819 = vld [vmem:[%s1788 + $0xf0] sm:$0xff]
    %v1820 = vld [vmem:[%s1788 + $0xf8] sm:$0xff]
    %v1821 = vld [vmem:[%s1788 + $0x100] sm:$0xff]
    %v1822 = vld [vmem:[%s1788 + $0x108] sm:$0xff]
    %v1823 = vld [vmem:[%s1788 + $0x110] sm:$0xff]
    %v1824 = vld [vmem:[%s1788 + $0x118] sm:$0xff]
    %v1825 = vld [vmem:[%s1788 + $0x120] sm:$0xff]
    %v1826 = vld [vmem:[%s1788 + $0x128] sm:$0xff]
    %v1827 = vld [vmem:[%s1788 + $0x130] sm:$0xff]
    %v1828 = vld [vmem:[%s1788 + $0x138] sm:$0xff]
    %v1829 = vld [vmem:[%s1788 + $0x140] sm:$0xff]
    %v1830 = vld [vmem:[%s1788 + $0x148] sm:$0xff]
    %v1831 = vld [vmem:[%s1788 + $0x150] sm:$0xff]
    %v1832 = vld [vmem:[%s1788 + $0x158] sm:$0xff]
    %v1833 = vld [vmem:[%s1788 + $0x160] sm:$0xff]
    %v1834 = vld [vmem:[%s1788 + $0x168] sm:$0xff]
    %v1835 = vld [vmem:[%s1788 + $0x170] sm:$0xff]
    %v1836 = vld [vmem:[%s1788 + $0x178] sm:$0xff]
    %v1837 = vld [vmem:[%s1788 + $0x180] sm:$0xff]
    %v1838 = vld [vmem:[%s1788 + $0x188] sm:$0xff]
    %v1839 = vld [vmem:[%s1788 + $0x190] sm:$0xff]
    %v1840 = vld [vmem:[%s1788 + $0x198] sm:$0xff]
    %v1841 = vld [vmem:[%s1788 + $0x1a0] sm:$0xff]
    %v1842 = vld [vmem:[%s1788 + $0x1a8] sm:$0xff]
    %v1843 = vld [vmem:[%s1788 + $0x1b0] sm:$0xff]
    %v1844 = vld [vmem:[%s1788 + $0x1b8] sm:$0xff]
    %v1845 = vld [vmem:[%s1788 + $0x1c0] sm:$0xff]
    %v1846 = vld [vmem:[%s1788 + $0x1c8] sm:$0xff]
    %v1847 = vld [vmem:[%s1788 + $0x1d0] sm:$0xff]
    %v1848 = vld [vmem:[%s1788 + $0x1d8] sm:$0xff]
    %v1849 = vld [vmem:[%s1788 + $0x1e0] sm:$0xff]
    %v1850 = vld [vmem:[%s1788 + $0x1e8] sm:$0xff]
    %v1851 = vld [vmem:[%s1788 + $0x1f0] sm:$0xff]
    %v1852 = vld [vmem:[%s1788 + $0x1f8] sm:$0xff]
    %v1853 = vld [vmem:[%s1788 + $0x200] sm:$0xff]
    %v1854 = vld [vmem:[%s1788 + $0x208] sm:$0xff]
    %v1855 = vld [vmem:[%s1788 + $0x210] sm:$0xff]
    %v1856 = vld [vmem:[%s1788 + $0x218] sm:$0xff]
    %v1857 = vld [vmem:[%s1788 + $0x220] sm:$0xff]
    %v1858 = vld [vmem:[%s1788 + $0x228] sm:$0xff]
    %v1859 = vld [vmem:[%s1788 + $0x230] sm:$0xff]
    %v1860 = vld [vmem:[%s1788 + $0x238] sm:$0xff]
    %v1862 = vsel %vm1051, %v890, 0
    %1864 = vmatprep.subr.mxu0 %v1790
    %1865 = vmatpush1.msra.mxu0 %v1789
    %1866 = vmatprep.subr.mxu0 %v1794
    %1867 = vmatpush1.msra.mxu0 %v1793
    %1868 = vmatprep.subr.mxu0 %v1798
    %1869 = vmatpush1.msra.mxu0 %v1797
    %1870 = vmatprep.subr.mxu0 %v1802
    %1871 = vmatpush1.msra.mxu0 %v1801
    %1872 = vmatprep.subr.mxu0 %v1806
    %1873 = vmatpush1.msra.mxu0 %v1805
    %1874 = vmatprep.subr.mxu0 %v1810
    %1875 = vmatpush1.msra.mxu0 %v1809
    %1876 = vmatprep.subr.mxu0 %v1814
    %1877 = vmatpush1.msra.mxu0 %v1813
    %1878 = vmatprep.subr.mxu0 %v1818
    %1879 = vmatpush1.msra.mxu0 %v1817
    %1880 = vmatprep.subr.mxu0 %v1822
    %1881 = vmatpush1.msra.mxu0 %v1821
    %1882 = vmatprep.subr.mxu0 %v1826
    %1883 = vmatpush1.msra.mxu0 %v1825
    %1884 = vmatprep.subr.mxu0 %v1830
    %1885 = vmatpush1.msra.mxu0 %v1829
    %1886 = vmatprep.subr.mxu0 %v1834
    %1887 = vmatpush1.msra.mxu0 %v1833
    %1888 = vmatprep.subr.mxu0 %v1838
    %1889 = vmatpush1.msra.mxu0 %v1837
    %1890 = vmatprep.subr.mxu0 %v1842
    %1891 = vmatpush1.msra.mxu0 %v1841
    %1892 = vmatprep.subr.mxu0 %v1846
    %1893 = vmatpush1.msra.mxu0 %v1845
    %1894 = vmatprep.subr.mxu0 %v1850
    %1895 = vmatpush1.msra.mxu0 %v1849
    %1896 = vmatprep.subr.mxu0 %v1854
    %1897 = vmatpush1.msra.mxu0 %v1853
    %1898 = vmatprep.subr.mxu0 %v1858
    %1899 = vmatpush1.msra.mxu0 %v1857
    %1900 = vmatprep.subr.mxu0 0.0
    %1901 = vmatpush1.msra.mxu0 0.0
    %1902 = vmatprep.subr.mxu0 0.0
    %1903 = vmatpush1.msra.mxu0 0.0
    %1904 = vmatprep.subr.mxu0 0.0
    %1905 = vmatpush1.msra.mxu0 0.0
    %1906 = vmatprep.subr.mxu0 0.0
    %1907 = vmatpush1.msra.mxu0 0.0
    %1908 = vmatprep.subr.mxu0 0.0
    %1909 = vmatpush1.msra.mxu0 0.0
    %1910 = vmatprep.subr.mxu0 0.0
    %1911 = vmatpush1.msra.mxu0 0.0
    %1912 = vmatprep.subr.mxu0 0.0
    %1913 = vmatpush1.msra.mxu0 0.0
    %1914 = vmatprep.subr.mxu0 0.0
    %1915 = vmatpush1.msra.mxu0 0.0
    %1916 = vmatprep.subr.mxu0 0.0
    %1917 = vmatpush1.msra.mxu0 0.0
    %1918 = vmatprep.subr.mxu0 0.0
    %1919 = vmatpush1.msra.mxu0 0.0
    %1920 = vmatprep.subr.mxu0 0.0
    %1921 = vmatpush1.msra.mxu0 0.0
    %1922 = vmatprep.subr.mxu0 0.0
    %1923 = vmatpush1.msra.mxu0 0.0
    %1924 = vmatprep.subr.mxu0 0.0
    %1925 = vmatpush1.msra.mxu0 0.0
    %1926 = vmatprep.subr.mxu0 0.0
    %1927 = vmatpush1.msra.mxu0 0.0
    %1928 = vmatprep.mubr.f32.mxu0 %v1862
    %1929 = vmatmul.mubr.f32.gmra.mrb[0].mxu0 %v889
    %v1930 = vpop.f32.mrb[0].mxu0
    %v1931 = vadd.f32 0.0, %v1930
    %v1932 = vpop.f32.mrb[0].mxu0
    %v1933 = vadd.f32 0.0, %v1932
    %1934 = vdwg.mxu0
    %1935 = vmatprep.subr.mxu0 %v1792
    %1936 = vmatpush1.msra.mxu0 %v1791
    %1937 = vmatprep.subr.mxu0 %v1796
    %1938 = vmatpush1.msra.mxu0 %v1795
    %1939 = vmatprep.subr.mxu0 %v1800
    %1940 = vmatpush1.msra.mxu0 %v1799
    %1941 = vmatprep.subr.mxu0 %v1804
    %1942 = vmatpush1.msra.mxu0 %v1803
    %1943 = vmatprep.subr.mxu0 %v1808
    %1944 = vmatpush1.msra.mxu0 %v1807
    %1945 = vmatprep.subr.mxu0 %v1812
    %1946 = vmatpush1.msra.mxu0 %v1811
    %1947 = vmatprep.subr.mxu0 %v1816
    %1948 = vmatpush1.msra.mxu0 %v1815
    %1949 = vmatprep.subr.mxu0 %v1820
    %1950 = vmatpush1.msra.mxu0 %v1819
    %1951 = vmatprep.subr.mxu0 %v1824
    %1952 = vmatpush1.msra.mxu0 %v1823
    %1953 = vmatprep.subr.mxu0 %v1828
    %1954 = vmatpush1.msra.mxu0 %v1827
    %1955 = vmatprep.subr.mxu0 %v1832
    %1956 = vmatpush1.msra.mxu0 %v1831
    %1957 = vmatprep.subr.mxu0 %v1836
    %1958 = vmatpush1.msra.mxu0 %v1835
    %1959 = vmatprep.subr.mxu0 %v1840
    %1960 = vmatpush1.msra.mxu0 %v1839
    %1961 = vmatprep.subr.mxu0 %v1844
    %1962 = vmatpush1.msra.mxu0 %v1843
    %1963 = vmatprep.subr.mxu0 %v1848
    %1964 = vmatpush1.msra.mxu0 %v1847
    %1965 = vmatprep.subr.mxu0 %v1852
    %1966 = vmatpush1.msra.mxu0 %v1851
    %1967 = vmatprep.subr.mxu0 %v1856
    %1968 = vmatpush1.msra.mxu0 %v1855
    %1969 = vmatprep.subr.mxu0 %v1860
    %1970 = vmatpush1.msra.mxu0 %v1859
    %1971 = vmatprep.subr.mxu0 0.0
    %1972 = vmatpush1.msra.mxu0 0.0
    %1973 = vmatprep.subr.mxu0 0.0
    %1974 = vmatpush1.msra.mxu0 0.0
    %1975 = vmatprep.subr.mxu0 0.0
    %1976 = vmatpush1.msra.mxu0 0.0
    %1977 = vmatprep.subr.mxu0 0.0
    %1978 = vmatpush1.msra.mxu0 0.0
    %1979 = vmatprep.subr.mxu0 0.0
    %1980 = vmatpush1.msra.mxu0 0.0
    %1981 = vmatprep.subr.mxu0 0.0
    %1982 = vmatpush1.msra.mxu0 0.0
    %1983 = vmatprep.subr.mxu0 0.0
    %1984 = vmatpush1.msra.mxu0 0.0
    %1985 = vmatprep.subr.mxu0 0.0
    %1986 = vmatpush1.msra.mxu0 0.0
    %1987 = vmatprep.subr.mxu0 0.0
    %1988 = vmatpush1.msra.mxu0 0.0
    %1989 = vmatprep.subr.mxu0 0.0
    %1990 = vmatpush1.msra.mxu0 0.0
    %1991 = vmatprep.subr.mxu0 0.0
    %1992 = vmatpush1.msra.mxu0 0.0
    %1993 = vmatprep.subr.mxu0 0.0
    %1994 = vmatpush1.msra.mxu0 0.0
    %1995 = vmatprep.subr.mxu0 0.0
    %1996 = vmatpush1.msra.mxu0 0.0
    %1997 = vmatprep.subr.mxu0 0.0
    %1998 = vmatpush1.msra.mxu0 0.0
    %1999 = vmatprep.mubr.f32.mxu0 %v1862
    %2000 = vmatmul.mubr.f32.gmra.mrb[0].mxu0 %v889
    %v2001 = vpop.f32.mrb[0].mxu0
    %v2002 = vadd.f32 0.0, %v2001
    %v2003 = vpop.f32.mrb[0].mxu0
    %v2004 = vadd.f32 0.0, %v2003
    %2005 = vdwg.mxu0
    %v2006 = vadd.f32 %v1784, %v1931
    %v2007 = vadd.f32 %v1785, %v1933
    %v2008 = vadd.f32 %v1786, %v2002
    %v2009 = vadd.f32 %v1787, %v2004
    %s2010 = scalar_lea.vmem [#allocation6], 2880
    %v2011 = vld [vmem:[%s2010] sm:$0xff]
    %v2012 = vld [vmem:[%s2010 + $0x8] sm:$0xff]
    %v2013 = vld [vmem:[%s2010 + $0x10] sm:$0xff]
    %v2014 = vld [vmem:[%s2010 + $0x18] sm:$0xff]
    %v2015 = vld [vmem:[%s2010 + $0x20] sm:$0xff]
    %v2016 = vld [vmem:[%s2010 + $0x28] sm:$0xff]
    %v2017 = vld [vmem:[%s2010 + $0x30] sm:$0xff]
    %v2018 = vld [vmem:[%s2010 + $0x38] sm:$0xff]
    %v2019 = vld [vmem:[%s2010 + $0x40] sm:$0xff]
    %v2020 = vld [vmem:[%s2010 + $0x48] sm:$0xff]
    %v2021 = vld [vmem:[%s2010 + $0x50] sm:$0xff]
    %v2022 = vld [vmem:[%s2010 + $0x58] sm:$0xff]
    %v2023 = vld [vmem:[%s2010 + $0x60] sm:$0xff]
    %v2024 = vld [vmem:[%s2010 + $0x68] sm:$0xff]
    %v2025 = vld [vmem:[%s2010 + $0x70] sm:$0xff]
    %v2026 = vld [vmem:[%s2010 + $0x78] sm:$0xff]
    %v2027 = vld [vmem:[%s2010 + $0x80] sm:$0xff]
    %v2028 = vld [vmem:[%s2010 + $0x88] sm:$0xff]
    %v2029 = vld [vmem:[%s2010 + $0x90] sm:$0xff]
    %v2030 = vld [vmem:[%s2010 + $0x98] sm:$0xff]
    %v2031 = vld [vmem:[%s2010 + $0xa0] sm:$0xff]
    %v2032 = vld [vmem:[%s2010 + $0xa8] sm:$0xff]
    %v2033 = vld [vmem:[%s2010 + $0xb0] sm:$0xff]
    %v2034 = vld [vmem:[%s2010 + $0xb8] sm:$0xff]
    %v2035 = vld [vmem:[%s2010 + $0xc0] sm:$0xff]
    %v2036 = vld [vmem:[%s2010 + $0xc8] sm:$0xff]
    %v2037 = vld [vmem:[%s2010 + $0xd0] sm:$0xff]
    %v2038 = vld [vmem:[%s2010 + $0xd8] sm:$0xff]
    %v2039 = vld [vmem:[%s2010 + $0xe0] sm:$0xff]
    %v2040 = vld [vmem:[%s2010 + $0xe8] sm:$0xff]
    %v2041 = vld [vmem:[%s2010 + $0xf0] sm:$0xff]
    %v2042 = vld [vmem:[%s2010 + $0xf8] sm:$0xff]
    %v2043 = vld [vmem:[%s2010 + $0x100] sm:$0xff]
    %v2044 = vld [vmem:[%s2010 + $0x108] sm:$0xff]
    %v2045 = vld [vmem:[%s2010 + $0x110] sm:$0xff]
    %v2046 = vld [vmem:[%s2010 + $0x118] sm:$0xff]
    %v2047 = vld [vmem:[%s2010 + $0x120] sm:$0xff]
    %v2048 = vld [vmem:[%s2010 + $0x128] sm:$0xff]
    %v2049 = vld [vmem:[%s2010 + $0x130] sm:$0xff]
    %v2050 = vld [vmem:[%s2010 + $0x138] sm:$0xff]
    %v2051 = vld [vmem:[%s2010 + $0x140] sm:$0xff]
    %v2052 = vld [vmem:[%s2010 + $0x148] sm:$0xff]
    %v2053 = vld [vmem:[%s2010 + $0x150] sm:$0xff]
    %v2054 = vld [vmem:[%s2010 + $0x158] sm:$0xff]
    %v2055 = vld [vmem:[%s2010 + $0x160] sm:$0xff]
    %v2056 = vld [vmem:[%s2010 + $0x168] sm:$0xff]
    %v2057 = vld [vmem:[%s2010 + $0x170] sm:$0xff]
    %v2058 = vld [vmem:[%s2010 + $0x178] sm:$0xff]
    %v2059 = vld [vmem:[%s2010 + $0x180] sm:$0xff]
    %v2060 = vld [vmem:[%s2010 + $0x188] sm:$0xff]
    %v2061 = vld [vmem:[%s2010 + $0x190] sm:$0xff]
    %v2062 = vld [vmem:[%s2010 + $0x198] sm:$0xff]
    %v2063 = vld [vmem:[%s2010 + $0x1a0] sm:$0xff]
    %v2064 = vld [vmem:[%s2010 + $0x1a8] sm:$0xff]
    %v2065 = vld [vmem:[%s2010 + $0x1b0] sm:$0xff]
    %v2066 = vld [vmem:[%s2010 + $0x1b8] sm:$0xff]
    %v2067 = vld [vmem:[%s2010 + $0x1c0] sm:$0xff]
    %v2068 = vld [vmem:[%s2010 + $0x1c8] sm:$0xff]
    %v2069 = vld [vmem:[%s2010 + $0x1d0] sm:$0xff]
    %v2070 = vld [vmem:[%s2010 + $0x1d8] sm:$0xff]
    %v2071 = vld [vmem:[%s2010 + $0x1e0] sm:$0xff]
    %v2072 = vld [vmem:[%s2010 + $0x1e8] sm:$0xff]
    %v2073 = vld [vmem:[%s2010 + $0x1f0] sm:$0xff]
    %v2074 = vld [vmem:[%s2010 + $0x1f8] sm:$0xff]
    %v2075 = vld [vmem:[%s2010 + $0x200] sm:$0xff]
    %v2076 = vld [vmem:[%s2010 + $0x208] sm:$0xff]
    %v2077 = vld [vmem:[%s2010 + $0x210] sm:$0xff]
    %v2078 = vld [vmem:[%s2010 + $0x218] sm:$0xff]
    %v2079 = vld [vmem:[%s2010 + $0x220] sm:$0xff]
    %v2080 = vld [vmem:[%s2010 + $0x228] sm:$0xff]
    %v2081 = vld [vmem:[%s2010 + $0x230] sm:$0xff]
    %v2082 = vld [vmem:[%s2010 + $0x238] sm:$0xff]
    %v2084 = vrot.slane %v889, 2
    %v2085 = vrot.slane %v890, 2
    %v2087 = vsel %vm1051, %v2085, 0
    %2089 = vmatprep.subr.mxu0 %v2012
    %2090 = vmatpush1.msra.mxu0 %v2011
    %2091 = vmatprep.subr.mxu0 %v2016
    %2092 = vmatpush1.msra.mxu0 %v2015
    %2093 = vmatprep.subr.mxu0 %v2020
    %2094 = vmatpush1.msra.mxu0 %v2019
    %2095 = vmatprep.subr.mxu0 %v2024
    %2096 = vmatpush1.msra.mxu0 %v2023
    %2097 = vmatprep.subr.mxu0 %v2028
    %2098 = vmatpush1.msra.mxu0 %v2027
    %2099 = vmatprep.subr.mxu0 %v2032
    %2100 = vmatpush1.msra.mxu0 %v2031
    %2101 = vmatprep.subr.mxu0 %v2036
    %2102 = vmatpush1.msra.mxu0 %v2035
    %2103 = vmatprep.subr.mxu0 %v2040
    %2104 = vmatpush1.msra.mxu0 %v2039
    %2105 = vmatprep.subr.mxu0 %v2044
    %2106 = vmatpush1.msra.mxu0 %v2043
    %2107 = vmatprep.subr.mxu0 %v2048
    %2108 = vmatpush1.msra.mxu0 %v2047
    %2109 = vmatprep.subr.mxu0 %v2052
    %2110 = vmatpush1.msra.mxu0 %v2051
    %2111 = vmatprep.subr.mxu0 %v2056
    %2112 = vmatpush1.msra.mxu0 %v2055
    %2113 = vmatprep.subr.mxu0 %v2060
    %2114 = vmatpush1.msra.mxu0 %v2059
    %2115 = vmatprep.subr.mxu0 %v2064
    %2116 = vmatpush1.msra.mxu0 %v2063
    %2117 = vmatprep.subr.mxu0 %v2068
    %2118 = vmatpush1.msra.mxu0 %v2067
    %2119 = vmatprep.subr.mxu0 %v2072
    %2120 = vmatpush1.msra.mxu0 %v2071
    %2121 = vmatprep.subr.mxu0 %v2076
    %2122 = vmatpush1.msra.mxu0 %v2075
    %2123 = vmatprep.subr.mxu0 %v2080
    %2124 = vmatpush1.msra.mxu0 %v2079
    %2125 = vmatprep.subr.mxu0 0.0
    %2126 = vmatpush1.msra.mxu0 0.0
    %2127 = vmatprep.subr.mxu0 0.0
    %2128 = vmatpush1.msra.mxu0 0.0
    %2129 = vmatprep.subr.mxu0 0.0
    %2130 = vmatpush1.msra.mxu0 0.0
    %2131 = vmatprep.subr.mxu0 0.0
    %2132 = vmatpush1.msra.mxu0 0.0
    %2133 = vmatprep.subr.mxu0 0.0
    %2134 = vmatpush1.msra.mxu0 0.0
    %2135 = vmatprep.subr.mxu0 0.0
    %2136 = vmatpush1.msra.mxu0 0.0
    %2137 = vmatprep.subr.mxu0 0.0
    %2138 = vmatpush1.msra.mxu0 0.0
    %2139 = vmatprep.subr.mxu0 0.0
    %2140 = vmatpush1.msra.mxu0 0.0
    %2141 = vmatprep.subr.mxu0 0.0
    %2142 = vmatpush1.msra.mxu0 0.0
    %2143 = vmatprep.subr.mxu0 0.0
    %2144 = vmatpush1.msra.mxu0 0.0
    %2145 = vmatprep.subr.mxu0 0.0
    %2146 = vmatpush1.msra.mxu0 0.0
    %2147 = vmatprep.subr.mxu0 0.0
    %2148 = vmatpush1.msra.mxu0 0.0
    %2149 = vmatprep.subr.mxu0 0.0
    %2150 = vmatpush1.msra.mxu0 0.0
    %2151 = vmatprep.subr.mxu0 0.0
    %2152 = vmatpush1.msra.mxu0 0.0
    %2153 = vmatprep.mubr.f32.mxu0 %v2087
    %2154 = vmatmul.mubr.f32.gmra.mrb[0].mxu0 %v2084
    %v2155 = vpop.f32.mrb[0].mxu0
    %v2156 = vadd.f32 0.0, %v2155
    %v2157 = vpop.f32.mrb[0].mxu0
    %v2158 = vadd.f32 0.0, %v2157
    %2159 = vdwg.mxu0
    %2160 = vmatprep.subr.mxu0 %v2014
    %2161 = vmatpush1.msra.mxu0 %v2013
    %2162 = vmatprep.subr.mxu0 %v2018
    %2163 = vmatpush1.msra.mxu0 %v2017
    %2164 = vmatprep.subr.mxu0 %v2022
    %2165 = vmatpush1.msra.mxu0 %v2021
    %2166 = vmatprep.subr.mxu0 %v2026
    %2167 = vmatpush1.msra.mxu0 %v2025
    %2168 = vmatprep.subr.mxu0 %v2030
    %2169 = vmatpush1.msra.mxu0 %v2029
    %2170 = vmatprep.subr.mxu0 %v2034
    %2171 = vmatpush1.msra.mxu0 %v2033
    %2172 = vmatprep.subr.mxu0 %v2038
    %2173 = vmatpush1.msra.mxu0 %v2037
    %2174 = vmatprep.subr.mxu0 %v2042
    %2175 = vmatpush1.msra.mxu0 %v2041
    %2176 = vmatprep.subr.mxu0 %v2046
    %2177 = vmatpush1.msra.mxu0 %v2045
    %2178 = vmatprep.subr.mxu0 %v2050
    %2179 = vmatpush1.msra.mxu0 %v2049
    %2180 = vmatprep.subr.mxu0 %v2054
    %2181 = vmatpush1.msra.mxu0 %v2053
    %2182 = vmatprep.subr.mxu0 %v2058
    %2183 = vmatpush1.msra.mxu0 %v2057
    %2184 = vmatprep.subr.mxu0 %v2062
    %2185 = vmatpush1.msra.mxu0 %v2061
    %2186 = vmatprep.subr.mxu0 %v2066
    %2187 = vmatpush1.msra.mxu0 %v2065
    %2188 = vmatprep.subr.mxu0 %v2070
    %2189 = vmatpush1.msra.mxu0 %v2069
    %2190 = vmatprep.subr.mxu0 %v2074
    %2191 = vmatpush1.msra.mxu0 %v2073
    %2192 = vmatprep.subr.mxu0 %v2078
    %2193 = vmatpush1.msra.mxu0 %v2077
    %2194 = vmatprep.subr.mxu0 %v2082
    %2195 = vmatpush1.msra.mxu0 %v2081
    %2196 = vmatprep.subr.mxu0 0.0
    %2197 = vmatpush1.msra.mxu0 0.0
    %2198 = vmatprep.subr.mxu0 0.0
    %2199 = vmatpush1.msra.mxu0 0.0
    %2200 = vmatprep.subr.mxu0 0.0
    %2201 = vmatpush1.msra.mxu0 0.0
    %2202 = vmatprep.subr.mxu0 0.0
    %2203 = vmatpush1.msra.mxu0 0.0
    %2204 = vmatprep.subr.mxu0 0.0
    %2205 = vmatpush1.msra.mxu0 0.0
    %2206 = vmatprep.subr.mxu0 0.0
    %2207 = vmatpush1.msra.mxu0 0.0
    %2208 = vmatprep.subr.mxu0 0.0
    %2209 = vmatpush1.msra.mxu0 0.0
    %2210 = vmatprep.subr.mxu0 0.0
    %2211 = vmatpush1.msra.mxu0 0.0
    %2212 = vmatprep.subr.mxu0 0.0
    %2213 = vmatpush1.msra.mxu0 0.0
    %2214 = vmatprep.subr.mxu0 0.0
    %2215 = vmatpush1.msra.mxu0 0.0
    %2216 = vmatprep.subr.mxu0 0.0
    %2217 = vmatpush1.msra.mxu0 0.0
    %2218 = vmatprep.subr.mxu0 0.0
    %2219 = vmatpush1.msra.mxu0 0.0
    %2220 = vmatprep.subr.mxu0 0.0
    %2221 = vmatpush1.msra.mxu0 0.0
    %2222 = vmatprep.subr.mxu0 0.0
    %2223 = vmatpush1.msra.mxu0 0.0
    %2224 = vmatprep.mubr.f32.mxu0 %v2087
    %2225 = vmatmul.mubr.f32.gmra.mrb[0].mxu0 %v2084
    %v2226 = vpop.f32.mrb[0].mxu0
    %v2227 = vadd.f32 0.0, %v2226
    %v2228 = vpop.f32.mrb[0].mxu0
    %v2229 = vadd.f32 0.0, %v2228
    %2230 = vdwg.mxu0
    %v2231 = vadd.f32 %v2006, %v2156
    %v2232 = vadd.f32 %v2007, %v2158
    %v2233 = vadd.f32 %v2008, %v2227
    %v2234 = vadd.f32 %v2009, %v2229
    %s2235 = scalar_lea.vmem [#allocation6], 3456
    %v2236 = vld [vmem:[%s2235] sm:$0xff]
    %v2237 = vld [vmem:[%s2235 + $0x8] sm:$0xff]
    %v2238 = vld [vmem:[%s2235 + $0x10] sm:$0xff]
    %v2239 = vld [vmem:[%s2235 + $0x18] sm:$0xff]
    %v2240 = vld [vmem:[%s2235 + $0x20] sm:$0xff]
    %v2241 = vld [vmem:[%s2235 + $0x28] sm:$0xff]
    %v2242 = vld [vmem:[%s2235 + $0x30] sm:$0xff]
    %v2243 = vld [vmem:[%s2235 + $0x38] sm:$0xff]
    %v2244 = vld [vmem:[%s2235 + $0x40] sm:$0xff]
    %v2245 = vld [vmem:[%s2235 + $0x48] sm:$0xff]
    %v2246 = vld [vmem:[%s2235 + $0x50] sm:$0xff]
    %v2247 = vld [vmem:[%s2235 + $0x58] sm:$0xff]
    %v2248 = vld [vmem:[%s2235 + $0x60] sm:$0xff]
    %v2249 = vld [vmem:[%s2235 + $0x68] sm:$0xff]
    %v2250 = vld [vmem:[%s2235 + $0x70] sm:$0xff]
    %v2251 = vld [vmem:[%s2235 + $0x78] sm:$0xff]
    %v2252 = vld [vmem:[%s2235 + $0x80] sm:$0xff]
    %v2253 = vld [vmem:[%s2235 + $0x88] sm:$0xff]
    %v2254 = vld [vmem:[%s2235 + $0x90] sm:$0xff]
    %v2255 = vld [vmem:[%s2235 + $0x98] sm:$0xff]
    %v2256 = vld [vmem:[%s2235 + $0xa0] sm:$0xff]
    %v2257 = vld [vmem:[%s2235 + $0xa8] sm:$0xff]
    %v2258 = vld [vmem:[%s2235 + $0xb0] sm:$0xff]
    %v2259 = vld [vmem:[%s2235 + $0xb8] sm:$0xff]
    %v2260 = vld [vmem:[%s2235 + $0xc0] sm:$0xff]
    %v2261 = vld [vmem:[%s2235 + $0xc8] sm:$0xff]
    %v2262 = vld [vmem:[%s2235 + $0xd0] sm:$0xff]
    %v2263 = vld [vmem:[%s2235 + $0xd8] sm:$0xff]
    %v2264 = vld [vmem:[%s2235 + $0xe0] sm:$0xff]
    %v2265 = vld [vmem:[%s2235 + $0xe8] sm:$0xff]
    %v2266 = vld [vmem:[%s2235 + $0xf0] sm:$0xff]
    %v2267 = vld [vmem:[%s2235 + $0xf8] sm:$0xff]
    %v2268 = vld [vmem:[%s2235 + $0x100] sm:$0xff]
    %v2269 = vld [vmem:[%s2235 + $0x108] sm:$0xff]
    %v2270 = vld [vmem:[%s2235 + $0x110] sm:$0xff]
    %v2271 = vld [vmem:[%s2235 + $0x118] sm:$0xff]
    %v2272 = vld [vmem:[%s2235 + $0x120] sm:$0xff]
    %v2273 = vld [vmem:[%s2235 + $0x128] sm:$0xff]
    %v2274 = vld [vmem:[%s2235 + $0x130] sm:$0xff]
    %v2275 = vld [vmem:[%s2235 + $0x138] sm:$0xff]
    %v2276 = vld [vmem:[%s2235 + $0x140] sm:$0xff]
    %v2277 = vld [vmem:[%s2235 + $0x148] sm:$0xff]
    %v2278 = vld [vmem:[%s2235 + $0x150] sm:$0xff]
    %v2279 = vld [vmem:[%s2235 + $0x158] sm:$0xff]
    %v2280 = vld [vmem:[%s2235 + $0x160] sm:$0xff]
    %v2281 = vld [vmem:[%s2235 + $0x168] sm:$0xff]
    %v2282 = vld [vmem:[%s2235 + $0x170] sm:$0xff]
    %v2283 = vld [vmem:[%s2235 + $0x178] sm:$0xff]
    %v2284 = vld [vmem:[%s2235 + $0x180] sm:$0xff]
    %v2285 = vld [vmem:[%s2235 + $0x188] sm:$0xff]
    %v2286 = vld [vmem:[%s2235 + $0x190] sm:$0xff]
    %v2287 = vld [vmem:[%s2235 + $0x198] sm:$0xff]
    %v2288 = vld [vmem:[%s2235 + $0x1a0] sm:$0xff]
    %v2289 = vld [vmem:[%s2235 + $0x1a8] sm:$0xff]
    %v2290 = vld [vmem:[%s2235 + $0x1b0] sm:$0xff]
    %v2291 = vld [vmem:[%s2235 + $0x1b8] sm:$0xff]
    %v2292 = vld [vmem:[%s2235 + $0x1c0] sm:$0xff]
    %v2293 = vld [vmem:[%s2235 + $0x1c8] sm:$0xff]
    %v2294 = vld [vmem:[%s2235 + $0x1d0] sm:$0xff]
    %v2295 = vld [vmem:[%s2235 + $0x1d8] sm:$0xff]
    %v2296 = vld [vmem:[%s2235 + $0x1e0] sm:$0xff]
    %v2297 = vld [vmem:[%s2235 + $0x1e8] sm:$0xff]
    %v2298 = vld [vmem:[%s2235 + $0x1f0] sm:$0xff]
    %v2299 = vld [vmem:[%s2235 + $0x1f8] sm:$0xff]
    %v2300 = vld [vmem:[%s2235 + $0x200] sm:$0xff]
    %v2301 = vld [vmem:[%s2235 + $0x208] sm:$0xff]
    %v2302 = vld [vmem:[%s2235 + $0x210] sm:$0xff]
    %v2303 = vld [vmem:[%s2235 + $0x218] sm:$0xff]
    %v2304 = vld [vmem:[%s2235 + $0x220] sm:$0xff]
    %v2305 = vld [vmem:[%s2235 + $0x228] sm:$0xff]
    %v2306 = vld [vmem:[%s2235 + $0x230] sm:$0xff]
    %v2307 = vld [vmem:[%s2235 + $0x238] sm:$0xff]
    %v2308 = vrot.slane %v889, 4
    %v2309 = vrot.slane %v890, 4
    %v2311 = vsel %vm1051, %v2309, 0
    %2313 = vmatprep.subr.mxu0 %v2237
    %2314 = vmatpush1.msra.mxu0 %v2236
    %2315 = vmatprep.subr.mxu0 %v2241
    %2316 = vmatpush1.msra.mxu0 %v2240
    %2317 = vmatprep.subr.mxu0 %v2245
    %2318 = vmatpush1.msra.mxu0 %v2244
    %2319 = vmatprep.subr.mxu0 %v2249
    %2320 = vmatpush1.msra.mxu0 %v2248
    %2321 = vmatprep.subr.mxu0 %v2253
    %2322 = vmatpush1.msra.mxu0 %v2252
    %2323 = vmatprep.subr.mxu0 %v2257
    %2324 = vmatpush1.msra.mxu0 %v2256
    %2325 = vmatprep.subr.mxu0 %v2261
    %2326 = vmatpush1.msra.mxu0 %v2260
    %2327 = vmatprep.subr.mxu0 %v2265
    %2328 = vmatpush1.msra.mxu0 %v2264
    %2329 = vmatprep.subr.mxu0 %v2269
    %2330 = vmatpush1.msra.mxu0 %v2268
    %2331 = vmatprep.subr.mxu0 %v2273
    %2332 = vmatpush1.msra.mxu0 %v2272
    %2333 = vmatprep.subr.mxu0 %v2277
    %2334 = vmatpush1.msra.mxu0 %v2276
    %2335 = vmatprep.subr.mxu0 %v2281
    %2336 = vmatpush1.msra.mxu0 %v2280
    %2337 = vmatprep.subr.mxu0 %v2285
    %2338 = vmatpush1.msra.mxu0 %v2284
    %2339 = vmatprep.subr.mxu0 %v2289
    %2340 = vmatpush1.msra.mxu0 %v2288
    %2341 = vmatprep.subr.mxu0 %v2293
    %2342 = vmatpush1.msra.mxu0 %v2292
    %2343 = vmatprep.subr.mxu0 %v2297
    %2344 = vmatpush1.msra.mxu0 %v2296
    %2345 = vmatprep.subr.mxu0 %v2301
    %2346 = vmatpush1.msra.mxu0 %v2300
    %2347 = vmatprep.subr.mxu0 %v2305
    %2348 = vmatpush1.msra.mxu0 %v2304
    %2349 = vmatprep.subr.mxu0 0.0
    %2350 = vmatpush1.msra.mxu0 0.0
    %2351 = vmatprep.subr.mxu0 0.0
    %2352 = vmatpush1.msra.mxu0 0.0
    %2353 = vmatprep.subr.mxu0 0.0
    %2354 = vmatpush1.msra.mxu0 0.0
    %2355 = vmatprep.subr.mxu0 0.0
    %2356 = vmatpush1.msra.mxu0 0.0
    %2357 = vmatprep.subr.mxu0 0.0
    %2358 = vmatpush1.msra.mxu0 0.0
    %2359 = vmatprep.subr.mxu0 0.0
    %2360 = vmatpush1.msra.mxu0 0.0
    %2361 = vmatprep.subr.mxu0 0.0
    %2362 = vmatpush1.msra.mxu0 0.0
    %2363 = vmatprep.subr.mxu0 0.0
    %2364 = vmatpush1.msra.mxu0 0.0
    %2365 = vmatprep.subr.mxu0 0.0
    %2366 = vmatpush1.msra.mxu0 0.0
    %2367 = vmatprep.subr.mxu0 0.0
    %2368 = vmatpush1.msra.mxu0 0.0
    %2369 = vmatprep.subr.mxu0 0.0
    %2370 = vmatpush1.msra.mxu0 0.0
    %2371 = vmatprep.subr.mxu0 0.0
    %2372 = vmatpush1.msra.mxu0 0.0
    %2373 = vmatprep.subr.mxu0 0.0
    %2374 = vmatpush1.msra.mxu0 0.0
    %2375 = vmatprep.subr.mxu0 0.0
    %2376 = vmatpush1.msra.mxu0 0.0
    %2377 = vmatprep.mubr.f32.mxu0 %v2311
    %2378 = vmatmul.mubr.f32.gmra.mrb[0].mxu0 %v2308
    %v2379 = vpop.f32.mrb[0].mxu0
    %v2380 = vadd.f32 0.0, %v2379
    %v2381 = vpop.f32.mrb[0].mxu0
    %v2382 = vadd.f32 0.0, %v2381
    %2383 = vdwg.mxu0
    %2384 = vmatprep.subr.mxu0 %v2239
    %2385 = vmatpush1.msra.mxu0 %v2238
    %2386 = vmatprep.subr.mxu0 %v2243
    %2387 = vmatpush1.msra.mxu0 %v2242
    %2388 = vmatprep.subr.mxu0 %v2247
    %2389 = vmatpush1.msra.mxu0 %v2246
    %2390 = vmatprep.subr.mxu0 %v2251
    %2391 = vmatpush1.msra.mxu0 %v2250
    %2392 = vmatprep.subr.mxu0 %v2255
    %2393 = vmatpush1.msra.mxu0 %v2254
    %2394 = vmatprep.subr.mxu0 %v2259
    %2395 = vmatpush1.msra.mxu0 %v2258
    %2396 = vmatprep.subr.mxu0 %v2263
    %2397 = vmatpush1.msra.mxu0 %v2262
    %2398 = vmatprep.subr.mxu0 %v2267
    %2399 = vmatpush1.msra.mxu0 %v2266
    %2400 = vmatprep.subr.mxu0 %v2271
    %2401 = vmatpush1.msra.mxu0 %v2270
    %2402 = vmatprep.subr.mxu0 %v2275
    %2403 = vmatpush1.msra.mxu0 %v2274
    %2404 = vmatprep.subr.mxu0 %v2279
    %2405 = vmatpush1.msra.mxu0 %v2278
    %2406 = vmatprep.subr.mxu0 %v2283
    %2407 = vmatpush1.msra.mxu0 %v2282
    %2408 = vmatprep.subr.mxu0 %v2287
    %2409 = vmatpush1.msra.mxu0 %v2286
    %2410 = vmatprep.subr.mxu0 %v2291
    %2411 = vmatpush1.msra.mxu0 %v2290
    %2412 = vmatprep.subr.mxu0 %v2295
    %2413 = vmatpush1.msra.mxu0 %v2294
    %2414 = vmatprep.subr.mxu0 %v2299
    %2415 = vmatpush1.msra.mxu0 %v2298
    %2416 = vmatprep.subr.mxu0 %v2303
    %2417 = vmatpush1.msra.mxu0 %v2302
    %2418 = vmatprep.subr.mxu0 %v2307
    %2419 = vmatpush1.msra.mxu0 %v2306
    %2420 = vmatprep.subr.mxu0 0.0
    %2421 = vmatpush1.msra.mxu0 0.0
    %2422 = vmatprep.subr.mxu0 0.0
    %2423 = vmatpush1.msra.mxu0 0.0
    %2424 = vmatprep.subr.mxu0 0.0
    %2425 = vmatpush1.msra.mxu0 0.0
    %2426 = vmatprep.subr.mxu0 0.0
    %2427 = vmatpush1.msra.mxu0 0.0
    %2428 = vmatprep.subr.mxu0 0.0
    %2429 = vmatpush1.msra.mxu0 0.0
    %2430 = vmatprep.subr.mxu0 0.0
    %2431 = vmatpush1.msra.mxu0 0.0
    %2432 = vmatprep.subr.mxu0 0.0
    %2433 = vmatpush1.msra.mxu0 0.0
    %2434 = vmatprep.subr.mxu0 0.0
    %2435 = vmatpush1.msra.mxu0 0.0
    %2436 = vmatprep.subr.mxu0 0.0
    %2437 = vmatpush1.msra.mxu0 0.0
    %2438 = vmatprep.subr.mxu0 0.0
    %2439 = vmatpush1.msra.mxu0 0.0
    %2440 = vmatprep.subr.mxu0 0.0
    %2441 = vmatpush1.msra.mxu0 0.0
    %2442 = vmatprep.subr.mxu0 0.0
    %2443 = vmatpush1.msra.mxu0 0.0
    %2444 = vmatprep.subr.mxu0 0.0
    %2445 = vmatpush1.msra.mxu0 0.0
    %2446 = vmatprep.subr.mxu0 0.0
    %2447 = vmatpush1.msra.mxu0 0.0
    %2448 = vmatprep.mubr.f32.mxu0 %v2311
    %2449 = vmatmul.mubr.f32.gmra.mrb[0].mxu0 %v2308
    %v2450 = vpop.f32.mrb[0].mxu0
    %v2451 = vadd.f32 0.0, %v2450
    %v2452 = vpop.f32.mrb[0].mxu0
    %v2453 = vadd.f32 0.0, %v2452
    %2454 = vdwg.mxu0
    %v2455 = vadd.f32 %v2231, %v2380
    %v2456 = vadd.f32 %v2232, %v2382
    %v2457 = vadd.f32 %v2233, %v2451
    %v2458 = vadd.f32 %v2234, %v2453
    %s2459 = scalar_lea.vmem [#allocation6], 4032
    %v2460 = vld [vmem:[%s2459] sm:$0xff]
    %v2461 = vld [vmem:[%s2459 + $0x8] sm:$0xff]
    %v2462 = vld [vmem:[%s2459 + $0x10] sm:$0xff]
    %v2463 = vld [vmem:[%s2459 + $0x18] sm:$0xff]
    %v2464 = vld [vmem:[%s2459 + $0x20] sm:$0xff]
    %v2465 = vld [vmem:[%s2459 + $0x28] sm:$0xff]
    %v2466 = vld [vmem:[%s2459 + $0x30] sm:$0xff]
    %v2467 = vld [vmem:[%s2459 + $0x38] sm:$0xff]
    %v2468 = vld [vmem:[%s2459 + $0x40] sm:$0xff]
    %v2469 = vld [vmem:[%s2459 + $0x48] sm:$0xff]
    %v2470 = vld [vmem:[%s2459 + $0x50] sm:$0xff]
    %v2471 = vld [vmem:[%s2459 + $0x58] sm:$0xff]
    %v2472 = vld [vmem:[%s2459 + $0x60] sm:$0xff]
    %v2473 = vld [vmem:[%s2459 + $0x68] sm:$0xff]
    %v2474 = vld [vmem:[%s2459 + $0x70] sm:$0xff]
    %v2475 = vld [vmem:[%s2459 + $0x78] sm:$0xff]
    %v2476 = vld [vmem:[%s2459 + $0x80] sm:$0xff]
    %v2477 = vld [vmem:[%s2459 + $0x88] sm:$0xff]
    %v2478 = vld [vmem:[%s2459 + $0x90] sm:$0xff]
    %v2479 = vld [vmem:[%s2459 + $0x98] sm:$0xff]
    %v2480 = vld [vmem:[%s2459 + $0xa0] sm:$0xff]
    %v2481 = vld [vmem:[%s2459 + $0xa8] sm:$0xff]
    %v2482 = vld [vmem:[%s2459 + $0xb0] sm:$0xff]
    %v2483 = vld [vmem:[%s2459 + $0xb8] sm:$0xff]
    %v2484 = vld [vmem:[%s2459 + $0xc0] sm:$0xff]
    %v2485 = vld [vmem:[%s2459 + $0xc8] sm:$0xff]
    %v2486 = vld [vmem:[%s2459 + $0xd0] sm:$0xff]
    %v2487 = vld [vmem:[%s2459 + $0xd8] sm:$0xff]
    %v2488 = vld [vmem:[%s2459 + $0xe0] sm:$0xff]
    %v2489 = vld [vmem:[%s2459 + $0xe8] sm:$0xff]
    %v2490 = vld [vmem:[%s2459 + $0xf0] sm:$0xff]
    %v2491 = vld [vmem:[%s2459 + $0xf8] sm:$0xff]
    %v2492 = vld [vmem:[%s2459 + $0x100] sm:$0xff]
    %v2493 = vld [vmem:[%s2459 + $0x108] sm:$0xff]
    %v2494 = vld [vmem:[%s2459 + $0x110] sm:$0xff]
    %v2495 = vld [vmem:[%s2459 + $0x118] sm:$0xff]
    %v2496 = vld [vmem:[%s2459 + $0x120] sm:$0xff]
    %v2497 = vld [vmem:[%s2459 + $0x128] sm:$0xff]
    %v2498 = vld [vmem:[%s2459 + $0x130] sm:$0xff]
    %v2499 = vld [vmem:[%s2459 + $0x138] sm:$0xff]
    %v2500 = vld [vmem:[%s2459 + $0x140] sm:$0xff]
    %v2501 = vld [vmem:[%s2459 + $0x148] sm:$0xff]
    %v2502 = vld [vmem:[%s2459 + $0x150] sm:$0xff]
    %v2503 = vld [vmem:[%s2459 + $0x158] sm:$0xff]
    %v2504 = vld [vmem:[%s2459 + $0x160] sm:$0xff]
    %v2505 = vld [vmem:[%s2459 + $0x168] sm:$0xff]
    %v2506 = vld [vmem:[%s2459 + $0x170] sm:$0xff]
    %v2507 = vld [vmem:[%s2459 + $0x178] sm:$0xff]
    %v2508 = vld [vmem:[%s2459 + $0x180] sm:$0xff]
    %v2509 = vld [vmem:[%s2459 + $0x188] sm:$0xff]
    %v2510 = vld [vmem:[%s2459 + $0x190] sm:$0xff]
    %v2511 = vld [vmem:[%s2459 + $0x198] sm:$0xff]
    %v2512 = vld [vmem:[%s2459 + $0x1a0] sm:$0xff]
    %v2513 = vld [vmem:[%s2459 + $0x1a8] sm:$0xff]
    %v2514 = vld [vmem:[%s2459 + $0x1b0] sm:$0xff]
    %v2515 = vld [vmem:[%s2459 + $0x1b8] sm:$0xff]
    %v2516 = vld [vmem:[%s2459 + $0x1c0] sm:$0xff]
    %v2517 = vld [vmem:[%s2459 + $0x1c8] sm:$0xff]
    %v2518 = vld [vmem:[%s2459 + $0x1d0] sm:$0xff]
    %v2519 = vld [vmem:[%s2459 + $0x1d8] sm:$0xff]
    %v2520 = vld [vmem:[%s2459 + $0x1e0] sm:$0xff]
    %v2521 = vld [vmem:[%s2459 + $0x1e8] sm:$0xff]
    %v2522 = vld [vmem:[%s2459 + $0x1f0] sm:$0xff]
    %v2523 = vld [vmem:[%s2459 + $0x1f8] sm:$0xff]
    %v2524 = vld [vmem:[%s2459 + $0x200] sm:$0xff]
    %v2525 = vld [vmem:[%s2459 + $0x208] sm:$0xff]
    %v2526 = vld [vmem:[%s2459 + $0x210] sm:$0xff]
    %v2527 = vld [vmem:[%s2459 + $0x218] sm:$0xff]
    %v2528 = vld [vmem:[%s2459 + $0x220] sm:$0xff]
    %v2529 = vld [vmem:[%s2459 + $0x228] sm:$0xff]
    %v2530 = vld [vmem:[%s2459 + $0x230] sm:$0xff]
    %v2531 = vld [vmem:[%s2459 + $0x238] sm:$0xff]
    %v2532 = vrot.slane %v889, 6
    %v2533 = vrot.slane %v890, 6
    %v2535 = vsel %vm1051, %v2533, 0
    %2537 = vmatprep.subr.mxu0 %v2461
    %2538 = vmatpush1.msra.mxu0 %v2460
    %2539 = vmatprep.subr.mxu0 %v2465
    %2540 = vmatpush1.msra.mxu0 %v2464
    %2541 = vmatprep.subr.mxu0 %v2469
    %2542 = vmatpush1.msra.mxu0 %v2468
    %2543 = vmatprep.subr.mxu0 %v2473
    %2544 = vmatpush1.msra.mxu0 %v2472
    %2545 = vmatprep.subr.mxu0 %v2477
    %2546 = vmatpush1.msra.mxu0 %v2476
    %2547 = vmatprep.subr.mxu0 %v2481
    %2548 = vmatpush1.msra.mxu0 %v2480
    %2549 = vmatprep.subr.mxu0 %v2485
    %2550 = vmatpush1.msra.mxu0 %v2484
    %2551 = vmatprep.subr.mxu0 %v2489
    %2552 = vmatpush1.msra.mxu0 %v2488
    %2553 = vmatprep.subr.mxu0 %v2493
    %2554 = vmatpush1.msra.mxu0 %v2492
    %2555 = vmatprep.subr.mxu0 %v2497
    %2556 = vmatpush1.msra.mxu0 %v2496
    %2557 = vmatprep.subr.mxu0 %v2501
    %2558 = vmatpush1.msra.mxu0 %v2500
    %2559 = vmatprep.subr.mxu0 %v2505
    %2560 = vmatpush1.msra.mxu0 %v2504
    %2561 = vmatprep.subr.mxu0 %v2509
    %2562 = vmatpush1.msra.mxu0 %v2508
    %2563 = vmatprep.subr.mxu0 %v2513
    %2564 = vmatpush1.msra.mxu0 %v2512
    %2565 = vmatprep.subr.mxu0 %v2517
    %2566 = vmatpush1.msra.mxu0 %v2516
    %2567 = vmatprep.subr.mxu0 %v2521
    %2568 = vmatpush1.msra.mxu0 %v2520
    %2569 = vmatprep.subr.mxu0 %v2525
    %2570 = vmatpush1.msra.mxu0 %v2524
    %2571 = vmatprep.subr.mxu0 %v2529
    %2572 = vmatpush1.msra.mxu0 %v2528
    %2573 = vmatprep.subr.mxu0 0.0
    %2574 = vmatpush1.msra.mxu0 0.0
    %2575 = vmatprep.subr.mxu0 0.0
    %2576 = vmatpush1.msra.mxu0 0.0
    %2577 = vmatprep.subr.mxu0 0.0
    %2578 = vmatpush1.msra.mxu0 0.0
    %2579 = vmatprep.subr.mxu0 0.0
    %2580 = vmatpush1.msra.mxu0 0.0
    %2581 = vmatprep.subr.mxu0 0.0
    %2582 = vmatpush1.msra.mxu0 0.0
    %2583 = vmatprep.subr.mxu0 0.0
    %2584 = vmatpush1.msra.mxu0 0.0
    %2585 = vmatprep.subr.mxu0 0.0
    %2586 = vmatpush1.msra.mxu0 0.0
    %2587 = vmatprep.subr.mxu0 0.0
    %2588 = vmatpush1.msra.mxu0 0.0
    %2589 = vmatprep.subr.mxu0 0.0
    %2590 = vmatpush1.msra.mxu0 0.0
    %2591 = vmatprep.subr.mxu0 0.0
    %2592 = vmatpush1.msra.mxu0 0.0
    %2593 = vmatprep.subr.mxu0 0.0
    %2594 = vmatpush1.msra.mxu0 0.0
    %2595 = vmatprep.subr.mxu0 0.0
    %2596 = vmatpush1.msra.mxu0 0.0
    %2597 = vmatprep.subr.mxu0 0.0
    %2598 = vmatpush1.msra.mxu0 0.0
    %2599 = vmatprep.subr.mxu0 0.0
    %2600 = vmatpush1.msra.mxu0 0.0
    %2601 = vmatprep.mubr.f32.mxu0 %v2535
    %2602 = vmatmul.mubr.f32.gmra.mrb[0].mxu0 %v2532
    %v2603 = vpop.f32.mrb[0].mxu0
    %v2604 = vadd.f32 0.0, %v2603
    %v2605 = vpop.f32.mrb[0].mxu0
    %v2606 = vadd.f32 0.0, %v2605
    %2607 = vdwg.mxu0
    %2608 = vmatprep.subr.mxu0 %v2463
    %2609 = vmatpush1.msra.mxu0 %v2462
    %2610 = vmatprep.subr.mxu0 %v2467
    %2611 = vmatpush1.msra.mxu0 %v2466
    %2612 = vmatprep.subr.mxu0 %v2471
    %2613 = vmatpush1.msra.mxu0 %v2470
    %2614 = vmatprep.subr.mxu0 %v2475
    %2615 = vmatpush1.msra.mxu0 %v2474
    %2616 = vmatprep.subr.mxu0 %v2479
    %2617 = vmatpush1.msra.mxu0 %v2478
    %2618 = vmatprep.subr.mxu0 %v2483
    %2619 = vmatpush1.msra.mxu0 %v2482
    %2620 = vmatprep.subr.mxu0 %v2487
    %2621 = vmatpush1.msra.mxu0 %v2486
    %2622 = vmatprep.subr.mxu0 %v2491
    %2623 = vmatpush1.msra.mxu0 %v2490
    %2624 = vmatprep.subr.mxu0 %v2495
    %2625 = vmatpush1.msra.mxu0 %v2494
    %2626 = vmatprep.subr.mxu0 %v2499
    %2627 = vmatpush1.msra.mxu0 %v2498
    %2628 = vmatprep.subr.mxu0 %v2503
    %2629 = vmatpush1.msra.mxu0 %v2502
    %2630 = vmatprep.subr.mxu0 %v2507
    %2631 = vmatpush1.msra.mxu0 %v2506
    %2632 = vmatprep.subr.mxu0 %v2511
    %2633 = vmatpush1.msra.mxu0 %v2510
    %2634 = vmatprep.subr.mxu0 %v2515
    %2635 = vmatpush1.msra.mxu0 %v2514
    %2636 = vmatprep.subr.mxu0 %v2519
    %2637 = vmatpush1.msra.mxu0 %v2518
    %2638 = vmatprep.subr.mxu0 %v2523
    %2639 = vmatpush1.msra.mxu0 %v2522
    %2640 = vmatprep.subr.mxu0 %v2527
    %2641 = vmatpush1.msra.mxu0 %v2526
    %2642 = vmatprep.subr.mxu0 %v2531
    %2643 = vmatpush1.msra.mxu0 %v2530
    %2644 = vmatprep.subr.mxu0 0.0
    %2645 = vmatpush1.msra.mxu0 0.0
    %2646 = vmatprep.subr.mxu0 0.0
    %2647 = vmatpush1.msra.mxu0 0.0
    %2648 = vmatprep.subr.mxu0 0.0
    %2649 = vmatpush1.msra.mxu0 0.0
    %2650 = vmatprep.subr.mxu0 0.0
    %2651 = vmatpush1.msra.mxu0 0.0
    %2652 = vmatprep.subr.mxu0 0.0
    %2653 = vmatpush1.msra.mxu0 0.0
    %2654 = vmatprep.subr.mxu0 0.0
    %2655 = vmatpush1.msra.mxu0 0.0
    %2656 = vmatprep.subr.mxu0 0.0
    %2657 = vmatpush1.msra.mxu0 0.0
    %2658 = vmatprep.subr.mxu0 0.0
    %2659 = vmatpush1.msra.mxu0 0.0
    %2660 = vmatprep.subr.mxu0 0.0
    %2661 = vmatpush1.msra.mxu0 0.0
    %2662 = vmatprep.subr.mxu0 0.0
    %2663 = vmatpush1.msra.mxu0 0.0
    %2664 = vmatprep.subr.mxu0 0.0
    %2665 = vmatpush1.msra.mxu0 0.0
    %2666 = vmatprep.subr.mxu0 0.0
    %2667 = vmatpush1.msra.mxu0 0.0
    %2668 = vmatprep.subr.mxu0 0.0
    %2669 = vmatpush1.msra.mxu0 0.0
    %2670 = vmatprep.subr.mxu0 0.0
    %2671 = vmatpush1.msra.mxu0 0.0
    %2672 = vmatprep.mubr.f32.mxu0 %v2535
    %2673 = vmatmul.mubr.f32.gmra.mrb[0].mxu0 %v2532
    %v2674 = vpop.f32.mrb[0].mxu0
    %v2675 = vadd.f32 0.0, %v2674
    %v2676 = vpop.f32.mrb[0].mxu0
    %v2677 = vadd.f32 0.0, %v2676
    %2678 = vdwg.mxu0
    %v2679 = vadd.f32 %v2455, %v2604
    %v2680 = vadd.f32 %v2456, %v2606
    %v2681 = vadd.f32 %v2457, %v2675
    %v2682 = vadd.f32 %v2458, %v2677
    %s2683 = scalar_lea.vmem [#allocation6], 4608
    %v2684 = vld [vmem:[%s2683] sm:$0xff]
    %v2685 = vld [vmem:[%s2683 + $0x8] sm:$0xff]
    %v2686 = vld [vmem:[%s2683 + $0x10] sm:$0xff]
    %v2687 = vld [vmem:[%s2683 + $0x18] sm:$0xff]
    %v2688 = vld [vmem:[%s2683 + $0x20] sm:$0xff]
    %v2689 = vld [vmem:[%s2683 + $0x28] sm:$0xff]
    %v2690 = vld [vmem:[%s2683 + $0x30] sm:$0xff]
    %v2691 = vld [vmem:[%s2683 + $0x38] sm:$0xff]
    %v2692 = vld [vmem:[%s2683 + $0x40] sm:$0xff]
    %v2693 = vld [vmem:[%s2683 + $0x48] sm:$0xff]
    %v2694 = vld [vmem:[%s2683 + $0x50] sm:$0xff]
    %v2695 = vld [vmem:[%s2683 + $0x58] sm:$0xff]
    %v2696 = vld [vmem:[%s2683 + $0x60] sm:$0xff]
    %v2697 = vld [vmem:[%s2683 + $0x68] sm:$0xff]
    %v2698 = vld [vmem:[%s2683 + $0x70] sm:$0xff]
    %v2699 = vld [vmem:[%s2683 + $0x78] sm:$0xff]
    %v2700 = vld [vmem:[%s2683 + $0x80] sm:$0xff]
    %v2701 = vld [vmem:[%s2683 + $0x88] sm:$0xff]
    %v2702 = vld [vmem:[%s2683 + $0x90] sm:$0xff]
    %v2703 = vld [vmem:[%s2683 + $0x98] sm:$0xff]
    %v2704 = vld [vmem:[%s2683 + $0xa0] sm:$0xff]
    %v2705 = vld [vmem:[%s2683 + $0xa8] sm:$0xff]
    %v2706 = vld [vmem:[%s2683 + $0xb0] sm:$0xff]
    %v2707 = vld [vmem:[%s2683 + $0xb8] sm:$0xff]
    %v2708 = vld [vmem:[%s2683 + $0xc0] sm:$0xff]
    %v2709 = vld [vmem:[%s2683 + $0xc8] sm:$0xff]
    %v2710 = vld [vmem:[%s2683 + $0xd0] sm:$0xff]
    %v2711 = vld [vmem:[%s2683 + $0xd8] sm:$0xff]
    %v2712 = vld [vmem:[%s2683 + $0xe0] sm:$0xff]
    %v2713 = vld [vmem:[%s2683 + $0xe8] sm:$0xff]
    %v2714 = vld [vmem:[%s2683 + $0xf0] sm:$0xff]
    %v2715 = vld [vmem:[%s2683 + $0xf8] sm:$0xff]
    %v2716 = vld [vmem:[%s2683 + $0x100] sm:$0xff]
    %v2717 = vld [vmem:[%s2683 + $0x108] sm:$0xff]
    %v2718 = vld [vmem:[%s2683 + $0x110] sm:$0xff]
    %v2719 = vld [vmem:[%s2683 + $0x118] sm:$0xff]
    %v2720 = vld [vmem:[%s2683 + $0x120] sm:$0xff]
    %v2721 = vld [vmem:[%s2683 + $0x128] sm:$0xff]
    %v2722 = vld [vmem:[%s2683 + $0x130] sm:$0xff]
    %v2723 = vld [vmem:[%s2683 + $0x138] sm:$0xff]
    %v2724 = vld [vmem:[%s2683 + $0x140] sm:$0xff]
    %v2725 = vld [vmem:[%s2683 + $0x148] sm:$0xff]
    %v2726 = vld [vmem:[%s2683 + $0x150] sm:$0xff]
    %v2727 = vld [vmem:[%s2683 + $0x158] sm:$0xff]
    %v2728 = vld [vmem:[%s2683 + $0x160] sm:$0xff]
    %v2729 = vld [vmem:[%s2683 + $0x168] sm:$0xff]
    %v2730 = vld [vmem:[%s2683 + $0x170] sm:$0xff]
    %v2731 = vld [vmem:[%s2683 + $0x178] sm:$0xff]
    %v2732 = vld [vmem:[%s2683 + $0x180] sm:$0xff]
    %v2733 = vld [vmem:[%s2683 + $0x188] sm:$0xff]
    %v2734 = vld [vmem:[%s2683 + $0x190] sm:$0xff]
    %v2735 = vld [vmem:[%s2683 + $0x198] sm:$0xff]
    %v2736 = vld [vmem:[%s2683 + $0x1a0] sm:$0xff]
    %v2737 = vld [vmem:[%s2683 + $0x1a8] sm:$0xff]
    %v2738 = vld [vmem:[%s2683 + $0x1b0] sm:$0xff]
    %v2739 = vld [vmem:[%s2683 + $0x1b8] sm:$0xff]
    %v2740 = vld [vmem:[%s2683 + $0x1c0] sm:$0xff]
    %v2741 = vld [vmem:[%s2683 + $0x1c8] sm:$0xff]
    %v2742 = vld [vmem:[%s2683 + $0x1d0] sm:$0xff]
    %v2743 = vld [vmem:[%s2683 + $0x1d8] sm:$0xff]
    %v2744 = vld [vmem:[%s2683 + $0x1e0] sm:$0xff]
    %v2745 = vld [vmem:[%s2683 + $0x1e8] sm:$0xff]
    %v2746 = vld [vmem:[%s2683 + $0x1f0] sm:$0xff]
    %v2747 = vld [vmem:[%s2683 + $0x1f8] sm:$0xff]
    %v2748 = vld [vmem:[%s2683 + $0x200] sm:$0xff]
    %v2749 = vld [vmem:[%s2683 + $0x208] sm:$0xff]
    %v2750 = vld [vmem:[%s2683 + $0x210] sm:$0xff]
    %v2751 = vld [vmem:[%s2683 + $0x218] sm:$0xff]
    %v2752 = vld [vmem:[%s2683 + $0x220] sm:$0xff]
    %v2753 = vld [vmem:[%s2683 + $0x228] sm:$0xff]
    %v2754 = vld [vmem:[%s2683 + $0x230] sm:$0xff]
    %v2755 = vld [vmem:[%s2683 + $0x238] sm:$0xff]
    %v2757 = vsel %vm1051, %v892, 0
    %2759 = vmatprep.subr.mxu0 %v2685
    %2760 = vmatpush1.msra.mxu0 %v2684
    %2761 = vmatprep.subr.mxu0 %v2689
    %2762 = vmatpush1.msra.mxu0 %v2688
    %2763 = vmatprep.subr.mxu0 %v2693
    %2764 = vmatpush1.msra.mxu0 %v2692
    %2765 = vmatprep.subr.mxu0 %v2697
    %2766 = vmatpush1.msra.mxu0 %v2696
    %2767 = vmatprep.subr.mxu0 %v2701
    %2768 = vmatpush1.msra.mxu0 %v2700
    %2769 = vmatprep.subr.mxu0 %v2705
    %2770 = vmatpush1.msra.mxu0 %v2704
    %2771 = vmatprep.subr.mxu0 %v2709
    %2772 = vmatpush1.msra.mxu0 %v2708
    %2773 = vmatprep.subr.mxu0 %v2713
    %2774 = vmatpush1.msra.mxu0 %v2712
    %2775 = vmatprep.subr.mxu0 %v2717
    %2776 = vmatpush1.msra.mxu0 %v2716
    %2777 = vmatprep.subr.mxu0 %v2721
    %2778 = vmatpush1.msra.mxu0 %v2720
    %2779 = vmatprep.subr.mxu0 %v2725
    %2780 = vmatpush1.msra.mxu0 %v2724
    %2781 = vmatprep.subr.mxu0 %v2729
    %2782 = vmatpush1.msra.mxu0 %v2728
    %2783 = vmatprep.subr.mxu0 %v2733
    %2784 = vmatpush1.msra.mxu0 %v2732
    %2785 = vmatprep.subr.mxu0 %v2737
    %2786 = vmatpush1.msra.mxu0 %v2736
    %2787 = vmatprep.subr.mxu0 %v2741
    %2788 = vmatpush1.msra.mxu0 %v2740
    %2789 = vmatprep.subr.mxu0 %v2745
    %2790 = vmatpush1.msra.mxu0 %v2744
    %2791 = vmatprep.subr.mxu0 %v2749
    %2792 = vmatpush1.msra.mxu0 %v2748
    %2793 = vmatprep.subr.mxu0 %v2753
    %2794 = vmatpush1.msra.mxu0 %v2752
    %2795 = vmatprep.subr.mxu0 0.0
    %2796 = vmatpush1.msra.mxu0 0.0
    %2797 = vmatprep.subr.mxu0 0.0
    %2798 = vmatpush1.msra.mxu0 0.0
    %2799 = vmatprep.subr.mxu0 0.0
    %2800 = vmatpush1.msra.mxu0 0.0
    %2801 = vmatprep.subr.mxu0 0.0
    %2802 = vmatpush1.msra.mxu0 0.0
    %2803 = vmatprep.subr.mxu0 0.0
    %2804 = vmatpush1.msra.mxu0 0.0
    %2805 = vmatprep.subr.mxu0 0.0
    %2806 = vmatpush1.msra.mxu0 0.0
    %2807 = vmatprep.subr.mxu0 0.0
    %2808 = vmatpush1.msra.mxu0 0.0
    %2809 = vmatprep.subr.mxu0 0.0
    %2810 = vmatpush1.msra.mxu0 0.0
    %2811 = vmatprep.subr.mxu0 0.0
    %2812 = vmatpush1.msra.mxu0 0.0
    %2813 = vmatprep.subr.mxu0 0.0
    %2814 = vmatpush1.msra.mxu0 0.0
    %2815 = vmatprep.subr.mxu0 0.0
    %2816 = vmatpush1.msra.mxu0 0.0
    %2817 = vmatprep.subr.mxu0 0.0
    %2818 = vmatpush1.msra.mxu0 0.0
    %2819 = vmatprep.subr.mxu0 0.0
    %2820 = vmatpush1.msra.mxu0 0.0
    %2821 = vmatprep.subr.mxu0 0.0
    %2822 = vmatpush1.msra.mxu0 0.0
    %2823 = vmatprep.mubr.f32.mxu0 %v2757
    %2824 = vmatmul.mubr.f32.gmra.mrb[0].mxu0 %v891
    %v2825 = vpop.f32.mrb[0].mxu0
    %v2826 = vadd.f32 0.0, %v2825
    %v2827 = vpop.f32.mrb[0].mxu0
    %v2828 = vadd.f32 0.0, %v2827
    %2829 = vdwg.mxu0
    %2830 = vmatprep.subr.mxu0 %v2687
    %2831 = vmatpush1.msra.mxu0 %v2686
    %2832 = vmatprep.subr.mxu0 %v2691
    %2833 = vmatpush1.msra.mxu0 %v2690
    %2834 = vmatprep.subr.mxu0 %v2695
    %2835 = vmatpush1.msra.mxu0 %v2694
    %2836 = vmatprep.subr.mxu0 %v2699
    %2837 = vmatpush1.msra.mxu0 %v2698
    %2838 = vmatprep.subr.mxu0 %v2703
    %2839 = vmatpush1.msra.mxu0 %v2702
    %2840 = vmatprep.subr.mxu0 %v2707
    %2841 = vmatpush1.msra.mxu0 %v2706
    %2842 = vmatprep.subr.mxu0 %v2711
    %2843 = vmatpush1.msra.mxu0 %v2710
    %2844 = vmatprep.subr.mxu0 %v2715
    %2845 = vmatpush1.msra.mxu0 %v2714
    %2846 = vmatprep.subr.mxu0 %v2719
    %2847 = vmatpush1.msra.mxu0 %v2718
    %2848 = vmatprep.subr.mxu0 %v2723
    %2849 = vmatpush1.msra.mxu0 %v2722
    %2850 = vmatprep.subr.mxu0 %v2727
    %2851 = vmatpush1.msra.mxu0 %v2726
    %2852 = vmatprep.subr.mxu0 %v2731
    %2853 = vmatpush1.msra.mxu0 %v2730
    %2854 = vmatprep.subr.mxu0 %v2735
    %2855 = vmatpush1.msra.mxu0 %v2734
    %2856 = vmatprep.subr.mxu0 %v2739
    %2857 = vmatpush1.msra.mxu0 %v2738
    %2858 = vmatprep.subr.mxu0 %v2743
    %2859 = vmatpush1.msra.mxu0 %v2742
    %2860 = vmatprep.subr.mxu0 %v2747
    %2861 = vmatpush1.msra.mxu0 %v2746
    %2862 = vmatprep.subr.mxu0 %v2751
    %2863 = vmatpush1.msra.mxu0 %v2750
    %2864 = vmatprep.subr.mxu0 %v2755
    %2865 = vmatpush1.msra.mxu0 %v2754
    %2866 = vmatprep.subr.mxu0 0.0
    %2867 = vmatpush1.msra.mxu0 0.0
    %2868 = vmatprep.subr.mxu0 0.0
    %2869 = vmatpush1.msra.mxu0 0.0
    %2870 = vmatprep.subr.mxu0 0.0
    %2871 = vmatpush1.msra.mxu0 0.0
    %2872 = vmatprep.subr.mxu0 0.0
    %2873 = vmatpush1.msra.mxu0 0.0
    %2874 = vmatprep.subr.mxu0 0.0
    %2875 = vmatpush1.msra.mxu0 0.0
    %2876 = vmatprep.subr.mxu0 0.0
    %2877 = vmatpush1.msra.mxu0 0.0
    %2878 = vmatprep.subr.mxu0 0.0
    %2879 = vmatpush1.msra.mxu0 0.0
    %2880 = vmatprep.subr.mxu0 0.0
    %2881 = vmatpush1.msra.mxu0 0.0
    %2882 = vmatprep.subr.mxu0 0.0
    %2883 = vmatpush1.msra.mxu0 0.0
    %2884 = vmatprep.subr.mxu0 0.0
    %2885 = vmatpush1.msra.mxu0 0.0
    %2886 = vmatprep.subr.mxu0 0.0
    %2887 = vmatpush1.msra.mxu0 0.0
    %2888 = vmatprep.subr.mxu0 0.0
    %2889 = vmatpush1.msra.mxu0 0.0
    %2890 = vmatprep.subr.mxu0 0.0
    %2891 = vmatpush1.msra.mxu0 0.0
    %2892 = vmatprep.subr.mxu0 0.0
    %2893 = vmatpush1.msra.mxu0 0.0
    %2894 = vmatprep.mubr.f32.mxu0 %v2757
    %2895 = vmatmul.mubr.f32.gmra.mrb[0].mxu0 %v891
    %v2896 = vpop.f32.mrb[0].mxu0
    %v2897 = vadd.f32 0.0, %v2896
    %v2898 = vpop.f32.mrb[0].mxu0
    %v2899 = vadd.f32 0.0, %v2898
    %2900 = vdwg.mxu0
    %v2901 = vadd.f32 %v2679, %v2826
    %v2902 = vadd.f32 %v2680, %v2828
    %v2903 = vadd.f32 %v2681, %v2897
    %v2904 = vadd.f32 %v2682, %v2899
    %s2905 = scalar_lea.vmem [#allocation6], 5184
    %v2906 = vld [vmem:[%s2905] sm:$0xff]
    %v2907 = vld [vmem:[%s2905 + $0x8] sm:$0xff]
    %v2908 = vld [vmem:[%s2905 + $0x10] sm:$0xff]
    %v2909 = vld [vmem:[%s2905 + $0x18] sm:$0xff]
    %v2910 = vld [vmem:[%s2905 + $0x20] sm:$0xff]
    %v2911 = vld [vmem:[%s2905 + $0x28] sm:$0xff]
    %v2912 = vld [vmem:[%s2905 + $0x30] sm:$0xff]
    %v2913 = vld [vmem:[%s2905 + $0x38] sm:$0xff]
    %v2914 = vld [vmem:[%s2905 + $0x40] sm:$0xff]
    %v2915 = vld [vmem:[%s2905 + $0x48] sm:$0xff]
    %v2916 = vld [vmem:[%s2905 + $0x50] sm:$0xff]
    %v2917 = vld [vmem:[%s2905 + $0x58] sm:$0xff]
    %v2918 = vld [vmem:[%s2905 + $0x60] sm:$0xff]
    %v2919 = vld [vmem:[%s2905 + $0x68] sm:$0xff]
    %v2920 = vld [vmem:[%s2905 + $0x70] sm:$0xff]
    %v2921 = vld [vmem:[%s2905 + $0x78] sm:$0xff]
    %v2922 = vld [vmem:[%s2905 + $0x80] sm:$0xff]
    %v2923 = vld [vmem:[%s2905 + $0x88] sm:$0xff]
    %v2924 = vld [vmem:[%s2905 + $0x90] sm:$0xff]
    %v2925 = vld [vmem:[%s2905 + $0x98] sm:$0xff]
    %v2926 = vld [vmem:[%s2905 + $0xa0] sm:$0xff]
    %v2927 = vld [vmem:[%s2905 + $0xa8] sm:$0xff]
    %v2928 = vld [vmem:[%s2905 + $0xb0] sm:$0xff]
    %v2929 = vld [vmem:[%s2905 + $0xb8] sm:$0xff]
    %v2930 = vld [vmem:[%s2905 + $0xc0] sm:$0xff]
    %v2931 = vld [vmem:[%s2905 + $0xc8] sm:$0xff]
    %v2932 = vld [vmem:[%s2905 + $0xd0] sm:$0xff]
    %v2933 = vld [vmem:[%s2905 + $0xd8] sm:$0xff]
    %v2934 = vld [vmem:[%s2905 + $0xe0] sm:$0xff]
    %v2935 = vld [vmem:[%s2905 + $0xe8] sm:$0xff]
    %v2936 = vld [vmem:[%s2905 + $0xf0] sm:$0xff]
    %v2937 = vld [vmem:[%s2905 + $0xf8] sm:$0xff]
    %v2938 = vld [vmem:[%s2905 + $0x100] sm:$0xff]
    %v2939 = vld [vmem:[%s2905 + $0x108] sm:$0xff]
    %v2940 = vld [vmem:[%s2905 + $0x110] sm:$0xff]
    %v2941 = vld [vmem:[%s2905 + $0x118] sm:$0xff]
    %v2942 = vld [vmem:[%s2905 + $0x120] sm:$0xff]
    %v2943 = vld [vmem:[%s2905 + $0x128] sm:$0xff]
    %v2944 = vld [vmem:[%s2905 + $0x130] sm:$0xff]
    %v2945 = vld [vmem:[%s2905 + $0x138] sm:$0xff]
    %v2946 = vld [vmem:[%s2905 + $0x140] sm:$0xff]
    %v2947 = vld [vmem:[%s2905 + $0x148] sm:$0xff]
    %v2948 = vld [vmem:[%s2905 + $0x150] sm:$0xff]
    %v2949 = vld [vmem:[%s2905 + $0x158] sm:$0xff]
    %v2950 = vld [vmem:[%s2905 + $0x160] sm:$0xff]
    %v2951 = vld [vmem:[%s2905 + $0x168] sm:$0xff]
    %v2952 = vld [vmem:[%s2905 + $0x170] sm:$0xff]
    %v2953 = vld [vmem:[%s2905 + $0x178] sm:$0xff]
    %v2954 = vld [vmem:[%s2905 + $0x180] sm:$0xff]
    %v2955 = vld [vmem:[%s2905 + $0x188] sm:$0xff]
    %v2956 = vld [vmem:[%s2905 + $0x190] sm:$0xff]
    %v2957 = vld [vmem:[%s2905 + $0x198] sm:$0xff]
    %v2958 = vld [vmem:[%s2905 + $0x1a0] sm:$0xff]
    %v2959 = vld [vmem:[%s2905 + $0x1a8] sm:$0xff]
    %v2960 = vld [vmem:[%s2905 + $0x1b0] sm:$0xff]
    %v2961 = vld [vmem:[%s2905 + $0x1b8] sm:$0xff]
    %v2962 = vld [vmem:[%s2905 + $0x1c0] sm:$0xff]
    %v2963 = vld [vmem:[%s2905 + $0x1c8] sm:$0xff]
    %v2964 = vld [vmem:[%s2905 + $0x1d0] sm:$0xff]
    %v2965 = vld [vmem:[%s2905 + $0x1d8] sm:$0xff]
    %v2966 = vld [vmem:[%s2905 + $0x1e0] sm:$0xff]
    %v2967 = vld [vmem:[%s2905 + $0x1e8] sm:$0xff]
    %v2968 = vld [vmem:[%s2905 + $0x1f0] sm:$0xff]
    %v2969 = vld [vmem:[%s2905 + $0x1f8] sm:$0xff]
    %v2970 = vld [vmem:[%s2905 + $0x200] sm:$0xff]
    %v2971 = vld [vmem:[%s2905 + $0x208] sm:$0xff]
    %v2972 = vld [vmem:[%s2905 + $0x210] sm:$0xff]
    %v2973 = vld [vmem:[%s2905 + $0x218] sm:$0xff]
    %v2974 = vld [vmem:[%s2905 + $0x220] sm:$0xff]
    %v2975 = vld [vmem:[%s2905 + $0x228] sm:$0xff]
    %v2976 = vld [vmem:[%s2905 + $0x230] sm:$0xff]
    %v2977 = vld [vmem:[%s2905 + $0x238] sm:$0xff]
    %v2979 = vrot.slane %v891, 2
    %v2980 = vrot.slane %v892, 2
    %v2982 = vsel %vm1051, %v2980, 0
    %2984 = vmatprep.subr.mxu0 %v2907
    %2985 = vmatpush1.msra.mxu0 %v2906
    %2986 = vmatprep.subr.mxu0 %v2911
    %2987 = vmatpush1.msra.mxu0 %v2910
    %2988 = vmatprep.subr.mxu0 %v2915
    %2989 = vmatpush1.msra.mxu0 %v2914
    %2990 = vmatprep.subr.mxu0 %v2919
    %2991 = vmatpush1.msra.mxu0 %v2918
    %2992 = vmatprep.subr.mxu0 %v2923
    %2993 = vmatpush1.msra.mxu0 %v2922
    %2994 = vmatprep.subr.mxu0 %v2927
    %2995 = vmatpush1.msra.mxu0 %v2926
    %2996 = vmatprep.subr.mxu0 %v2931
    %2997 = vmatpush1.msra.mxu0 %v2930
    %2998 = vmatprep.subr.mxu0 %v2935
    %2999 = vmatpush1.msra.mxu0 %v2934
    %3000 = vmatprep.subr.mxu0 %v2939
    %3001 = vmatpush1.msra.mxu0 %v2938
    %3002 = vmatprep.subr.mxu0 %v2943
    %3003 = vmatpush1.msra.mxu0 %v2942
    %3004 = vmatprep.subr.mxu0 %v2947
    %3005 = vmatpush1.msra.mxu0 %v2946
    %3006 = vmatprep.subr.mxu0 %v2951
    %3007 = vmatpush1.msra.mxu0 %v2950
    %3008 = vmatprep.subr.mxu0 %v2955
    %3009 = vmatpush1.msra.mxu0 %v2954
    %3010 = vmatprep.subr.mxu0 %v2959
    %3011 = vmatpush1.msra.mxu0 %v2958
    %3012 = vmatprep.subr.mxu0 %v2963
    %3013 = vmatpush1.msra.mxu0 %v2962
    %3014 = vmatprep.subr.mxu0 %v2967
    %3015 = vmatpush1.msra.mxu0 %v2966
    %3016 = vmatprep.subr.mxu0 %v2971
    %3017 = vmatpush1.msra.mxu0 %v2970
    %3018 = vmatprep.subr.mxu0 %v2975
    %3019 = vmatpush1.msra.mxu0 %v2974
    %3020 = vmatprep.subr.mxu0 0.0
    %3021 = vmatpush1.msra.mxu0 0.0
    %3022 = vmatprep.subr.mxu0 0.0
    %3023 = vmatpush1.msra.mxu0 0.0
    %3024 = vmatprep.subr.mxu0 0.0
    %3025 = vmatpush1.msra.mxu0 0.0
    %3026 = vmatprep.subr.mxu0 0.0
    %3027 = vmatpush1.msra.mxu0 0.0
    %3028 = vmatprep.subr.mxu0 0.0
    %3029 = vmatpush1.msra.mxu0 0.0
    %3030 = vmatprep.subr.mxu0 0.0
    %3031 = vmatpush1.msra.mxu0 0.0
    %3032 = vmatprep.subr.mxu0 0.0
    %3033 = vmatpush1.msra.mxu0 0.0
    %3034 = vmatprep.subr.mxu0 0.0
    %3035 = vmatpush1.msra.mxu0 0.0
    %3036 = vmatprep.subr.mxu0 0.0
    %3037 = vmatpush1.msra.mxu0 0.0
    %3038 = vmatprep.subr.mxu0 0.0
    %3039 = vmatpush1.msra.mxu0 0.0
    %3040 = vmatprep.subr.mxu0 0.0
    %3041 = vmatpush1.msra.mxu0 0.0
    %3042 = vmatprep.subr.mxu0 0.0
    %3043 = vmatpush1.msra.mxu0 0.0
    %3044 = vmatprep.subr.mxu0 0.0
    %3045 = vmatpush1.msra.mxu0 0.0
    %3046 = vmatprep.subr.mxu0 0.0
    %3047 = vmatpush1.msra.mxu0 0.0
    %3048 = vmatprep.mubr.f32.mxu0 %v2982
    %3049 = vmatmul.mubr.f32.gmra.mrb[0].mxu0 %v2979
    %v3050 = vpop.f32.mrb[0].mxu0
    %v3051 = vadd.f32 0.0, %v3050
    %v3052 = vpop.f32.mrb[0].mxu0
    %v3053 = vadd.f32 0.0, %v3052
    %3054 = vdwg.mxu0
    %3055 = vmatprep.subr.mxu0 %v2909
    %3056 = vmatpush1.msra.mxu0 %v2908
    %3057 = vmatprep.subr.mxu0 %v2913
    %3058 = vmatpush1.msra.mxu0 %v2912
    %3059 = vmatprep.subr.mxu0 %v2917
    %3060 = vmatpush1.msra.mxu0 %v2916
    %3061 = vmatprep.subr.mxu0 %v2921
    %3062 = vmatpush1.msra.mxu0 %v2920
    %3063 = vmatprep.subr.mxu0 %v2925
    %3064 = vmatpush1.msra.mxu0 %v2924
    %3065 = vmatprep.subr.mxu0 %v2929
    %3066 = vmatpush1.msra.mxu0 %v2928
    %3067 = vmatprep.subr.mxu0 %v2933
    %3068 = vmatpush1.msra.mxu0 %v2932
    %3069 = vmatprep.subr.mxu0 %v2937
    %3070 = vmatpush1.msra.mxu0 %v2936
    %3071 = vmatprep.subr.mxu0 %v2941
    %3072 = vmatpush1.msra.mxu0 %v2940
    %3073 = vmatprep.subr.mxu0 %v2945
    %3074 = vmatpush1.msra.mxu0 %v2944
    %3075 = vmatprep.subr.mxu0 %v2949
    %3076 = vmatpush1.msra.mxu0 %v2948
    %3077 = vmatprep.subr.mxu0 %v2953
    %3078 = vmatpush1.msra.mxu0 %v2952
    %3079 = vmatprep.subr.mxu0 %v2957
    %3080 = vmatpush1.msra.mxu0 %v2956
    %3081 = vmatprep.subr.mxu0 %v2961
    %3082 = vmatpush1.msra.mxu0 %v2960
    %3083 = vmatprep.subr.mxu0 %v2965
    %3084 = vmatpush1.msra.mxu0 %v2964
    %3085 = vmatprep.subr.mxu0 %v2969
    %3086 = vmatpush1.msra.mxu0 %v2968
    %3087 = vmatprep.subr.mxu0 %v2973
    %3088 = vmatpush1.msra.mxu0 %v2972
    %3089 = vmatprep.subr.mxu0 %v2977
    %3090 = vmatpush1.msra.mxu0 %v2976
    %3091 = vmatprep.subr.mxu0 0.0
    %3092 = vmatpush1.msra.mxu0 0.0
    %3093 = vmatprep.subr.mxu0 0.0
    %3094 = vmatpush1.msra.mxu0 0.0
    %3095 = vmatprep.subr.mxu0 0.0
    %3096 = vmatpush1.msra.mxu0 0.0
    %3097 = vmatprep.subr.mxu0 0.0
    %3098 = vmatpush1.msra.mxu0 0.0
    %3099 = vmatprep.subr.mxu0 0.0
    %3100 = vmatpush1.msra.mxu0 0.0
    %3101 = vmatprep.subr.mxu0 0.0
    %3102 = vmatpush1.msra.mxu0 0.0
    %3103 = vmatprep.subr.mxu0 0.0
    %3104 = vmatpush1.msra.mxu0 0.0
    %3105 = vmatprep.subr.mxu0 0.0
    %3106 = vmatpush1.msra.mxu0 0.0
    %3107 = vmatprep.subr.mxu0 0.0
    %3108 = vmatpush1.msra.mxu0 0.0
    %3109 = vmatprep.subr.mxu0 0.0
    %3110 = vmatpush1.msra.mxu0 0.0
    %3111 = vmatprep.subr.mxu0 0.0
    %3112 = vmatpush1.msra.mxu0 0.0
    %3113 = vmatprep.subr.mxu0 0.0
    %3114 = vmatpush1.msra.mxu0 0.0
    %3115 = vmatprep.subr.mxu0 0.0
    %3116 = vmatpush1.msra.mxu0 0.0
    %3117 = vmatprep.subr.mxu0 0.0
    %3118 = vmatpush1.msra.mxu0 0.0
    %3119 = vmatprep.mubr.f32.mxu0 %v2982
    %3120 = vmatmul.mubr.f32.gmra.mrb[0].mxu0 %v2979
    %v3121 = vpop.f32.mrb[0].mxu0
    %v3122 = vadd.f32 0.0, %v3121
    %v3123 = vpop.f32.mrb[0].mxu0
    %v3124 = vadd.f32 0.0, %v3123
    %3125 = vdwg.mxu0
    %v3126 = vadd.f32 %v2901, %v3051
    %v3127 = vadd.f32 %v2902, %v3053
    %v3128 = vadd.f32 %v2903, %v3122
    %v3129 = vadd.f32 %v2904, %v3124
    %s3130 = scalar_lea.vmem [#allocation6], 5760
    %v3131 = vld [vmem:[%s3130] sm:$0xff]
    %v3132 = vld [vmem:[%s3130 + $0x8] sm:$0xff]
    %v3133 = vld [vmem:[%s3130 + $0x10] sm:$0xff]
    %v3134 = vld [vmem:[%s3130 + $0x18] sm:$0xff]
    %v3135 = vld [vmem:[%s3130 + $0x20] sm:$0xff]
    %v3136 = vld [vmem:[%s3130 + $0x28] sm:$0xff]
    %v3137 = vld [vmem:[%s3130 + $0x30] sm:$0xff]
    %v3138 = vld [vmem:[%s3130 + $0x38] sm:$0xff]
    %v3139 = vld [vmem:[%s3130 + $0x40] sm:$0xff]
    %v3140 = vld [vmem:[%s3130 + $0x48] sm:$0xff]
    %v3141 = vld [vmem:[%s3130 + $0x50] sm:$0xff]
    %v3142 = vld [vmem:[%s3130 + $0x58] sm:$0xff]
    %v3143 = vld [vmem:[%s3130 + $0x60] sm:$0xff]
    %v3144 = vld [vmem:[%s3130 + $0x68] sm:$0xff]
    %v3145 = vld [vmem:[%s3130 + $0x70] sm:$0xff]
    %v3146 = vld [vmem:[%s3130 + $0x78] sm:$0xff]
    %v3147 = vld [vmem:[%s3130 + $0x80] sm:$0xff]
    %v3148 = vld [vmem:[%s3130 + $0x88] sm:$0xff]
    %v3149 = vld [vmem:[%s3130 + $0x90] sm:$0xff]
    %v3150 = vld [vmem:[%s3130 + $0x98] sm:$0xff]
    %v3151 = vld [vmem:[%s3130 + $0xa0] sm:$0xff]
    %v3152 = vld [vmem:[%s3130 + $0xa8] sm:$0xff]
    %v3153 = vld [vmem:[%s3130 + $0xb0] sm:$0xff]
    %v3154 = vld [vmem:[%s3130 + $0xb8] sm:$0xff]
    %v3155 = vld [vmem:[%s3130 + $0xc0] sm:$0xff]
    %v3156 = vld [vmem:[%s3130 + $0xc8] sm:$0xff]
    %v3157 = vld [vmem:[%s3130 + $0xd0] sm:$0xff]
    %v3158 = vld [vmem:[%s3130 + $0xd8] sm:$0xff]
    %v3159 = vld [vmem:[%s3130 + $0xe0] sm:$0xff]
    %v3160 = vld [vmem:[%s3130 + $0xe8] sm:$0xff]
    %v3161 = vld [vmem:[%s3130 + $0xf0] sm:$0xff]
    %v3162 = vld [vmem:[%s3130 + $0xf8] sm:$0xff]
    %v3163 = vld [vmem:[%s3130 + $0x100] sm:$0xff]
    %v3164 = vld [vmem:[%s3130 + $0x108] sm:$0xff]
    %v3165 = vld [vmem:[%s3130 + $0x110] sm:$0xff]
    %v3166 = vld [vmem:[%s3130 + $0x118] sm:$0xff]
    %v3167 = vld [vmem:[%s3130 + $0x120] sm:$0xff]
    %v3168 = vld [vmem:[%s3130 + $0x128] sm:$0xff]
    %v3169 = vld [vmem:[%s3130 + $0x130] sm:$0xff]
    %v3170 = vld [vmem:[%s3130 + $0x138] sm:$0xff]
    %v3171 = vld [vmem:[%s3130 + $0x140] sm:$0xff]
    %v3172 = vld [vmem:[%s3130 + $0x148] sm:$0xff]
    %v3173 = vld [vmem:[%s3130 + $0x150] sm:$0xff]
    %v3174 = vld [vmem:[%s3130 + $0x158] sm:$0xff]
    %v3175 = vld [vmem:[%s3130 + $0x160] sm:$0xff]
    %v3176 = vld [vmem:[%s3130 + $0x168] sm:$0xff]
    %v3177 = vld [vmem:[%s3130 + $0x170] sm:$0xff]
    %v3178 = vld [vmem:[%s3130 + $0x178] sm:$0xff]
    %v3179 = vld [vmem:[%s3130 + $0x180] sm:$0xff]
    %v3180 = vld [vmem:[%s3130 + $0x188] sm:$0xff]
    %v3181 = vld [vmem:[%s3130 + $0x190] sm:$0xff]
    %v3182 = vld [vmem:[%s3130 + $0x198] sm:$0xff]
    %v3183 = vld [vmem:[%s3130 + $0x1a0] sm:$0xff]
    %v3184 = vld [vmem:[%s3130 + $0x1a8] sm:$0xff]
    %v3185 = vld [vmem:[%s3130 + $0x1b0] sm:$0xff]
    %v3186 = vld [vmem:[%s3130 + $0x1b8] sm:$0xff]
    %v3187 = vld [vmem:[%s3130 + $0x1c0] sm:$0xff]
    %v3188 = vld [vmem:[%s3130 + $0x1c8] sm:$0xff]
    %v3189 = vld [vmem:[%s3130 + $0x1d0] sm:$0xff]
    %v3190 = vld [vmem:[%s3130 + $0x1d8] sm:$0xff]
    %v3191 = vld [vmem:[%s3130 + $0x1e0] sm:$0xff]
    %v3192 = vld [vmem:[%s3130 + $0x1e8] sm:$0xff]
    %v3193 = vld [vmem:[%s3130 + $0x1f0] sm:$0xff]
    %v3194 = vld [vmem:[%s3130 + $0x1f8] sm:$0xff]
    %v3195 = vld [vmem:[%s3130 + $0x200] sm:$0xff]
    %v3196 = vld [vmem:[%s3130 + $0x208] sm:$0xff]
    %v3197 = vld [vmem:[%s3130 + $0x210] sm:$0xff]
    %v3198 = vld [vmem:[%s3130 + $0x218] sm:$0xff]
    %v3199 = vld [vmem:[%s3130 + $0x220] sm:$0xff]
    %v3200 = vld [vmem:[%s3130 + $0x228] sm:$0xff]
    %v3201 = vld [vmem:[%s3130 + $0x230] sm:$0xff]
    %v3202 = vld [vmem:[%s3130 + $0x238] sm:$0xff]
    %v3203 = vrot.slane %v891, 4
    %v3204 = vrot.slane %v892, 4
    %v3206 = vsel %vm1051, %v3204, 0
    %3208 = vmatprep.subr.mxu0 %v3132
    %3209 = vmatpush1.msra.mxu0 %v3131
    %3210 = vmatprep.subr.mxu0 %v3136
    %3211 = vmatpush1.msra.mxu0 %v3135
    %3212 = vmatprep.subr.mxu0 %v3140
    %3213 = vmatpush1.msra.mxu0 %v3139
    %3214 = vmatprep.subr.mxu0 %v3144
    %3215 = vmatpush1.msra.mxu0 %v3143
    %3216 = vmatprep.subr.mxu0 %v3148
    %3217 = vmatpush1.msra.mxu0 %v3147
    %3218 = vmatprep.subr.mxu0 %v3152
    %3219 = vmatpush1.msra.mxu0 %v3151
    %3220 = vmatprep.subr.mxu0 %v3156
    %3221 = vmatpush1.msra.mxu0 %v3155
    %3222 = vmatprep.subr.mxu0 %v3160
    %3223 = vmatpush1.msra.mxu0 %v3159
    %3224 = vmatprep.subr.mxu0 %v3164
    %3225 = vmatpush1.msra.mxu0 %v3163
    %3226 = vmatprep.subr.mxu0 %v3168
    %3227 = vmatpush1.msra.mxu0 %v3167
    %3228 = vmatprep.subr.mxu0 %v3172
    %3229 = vmatpush1.msra.mxu0 %v3171
    %3230 = vmatprep.subr.mxu0 %v3176
    %3231 = vmatpush1.msra.mxu0 %v3175
    %3232 = vmatprep.subr.mxu0 %v3180
    %3233 = vmatpush1.msra.mxu0 %v3179
    %3234 = vmatprep.subr.mxu0 %v3184
    %3235 = vmatpush1.msra.mxu0 %v3183
    %3236 = vmatprep.subr.mxu0 %v3188
    %3237 = vmatpush1.msra.mxu0 %v3187
    %3238 = vmatprep.subr.mxu0 %v3192
    %3239 = vmatpush1.msra.mxu0 %v3191
    %3240 = vmatprep.subr.mxu0 %v3196
    %3241 = vmatpush1.msra.mxu0 %v3195
    %3242 = vmatprep.subr.mxu0 %v3200
    %3243 = vmatpush1.msra.mxu0 %v3199
    %3244 = vmatprep.subr.mxu0 0.0
    %3245 = vmatpush1.msra.mxu0 0.0
    %3246 = vmatprep.subr.mxu0 0.0
    %3247 = vmatpush1.msra.mxu0 0.0
    %3248 = vmatprep.subr.mxu0 0.0
    %3249 = vmatpush1.msra.mxu0 0.0
    %3250 = vmatprep.subr.mxu0 0.0
    %3251 = vmatpush1.msra.mxu0 0.0
    %3252 = vmatprep.subr.mxu0 0.0
    %3253 = vmatpush1.msra.mxu0 0.0
    %3254 = vmatprep.subr.mxu0 0.0
    %3255 = vmatpush1.msra.mxu0 0.0
    %3256 = vmatprep.subr.mxu0 0.0
    %3257 = vmatpush1.msra.mxu0 0.0
    %3258 = vmatprep.subr.mxu0 0.0
    %3259 = vmatpush1.msra.mxu0 0.0
    %3260 = vmatprep.subr.mxu0 0.0
    %3261 = vmatpush1.msra.mxu0 0.0
    %3262 = vmatprep.subr.mxu0 0.0
    %3263 = vmatpush1.msra.mxu0 0.0
    %3264 = vmatprep.subr.mxu0 0.0
    %3265 = vmatpush1.msra.mxu0 0.0
    %3266 = vmatprep.subr.mxu0 0.0
    %3267 = vmatpush1.msra.mxu0 0.0
    %3268 = vmatprep.subr.mxu0 0.0
    %3269 = vmatpush1.msra.mxu0 0.0
    %3270 = vmatprep.subr.mxu0 0.0
    %3271 = vmatpush1.msra.mxu0 0.0
    %3272 = vmatprep.mubr.f32.mxu0 %v3206
    %3273 = vmatmul.mubr.f32.gmra.mrb[0].mxu0 %v3203
    %v3274 = vpop.f32.mrb[0].mxu0
    %v3275 = vadd.f32 0.0, %v3274
    %v3276 = vpop.f32.mrb[0].mxu0
    %v3277 = vadd.f32 0.0, %v3276
    %3278 = vdwg.mxu0
    %3279 = vmatprep.subr.mxu0 %v3134
    %3280 = vmatpush1.msra.mxu0 %v3133
    %3281 = vmatprep.subr.mxu0 %v3138
    %3282 = vmatpush1.msra.mxu0 %v3137
    %3283 = vmatprep.subr.mxu0 %v3142
    %3284 = vmatpush1.msra.mxu0 %v3141
    %3285 = vmatprep.subr.mxu0 %v3146
    %3286 = vmatpush1.msra.mxu0 %v3145
    %3287 = vmatprep.subr.mxu0 %v3150
    %3288 = vmatpush1.msra.mxu0 %v3149
    %3289 = vmatprep.subr.mxu0 %v3154
    %3290 = vmatpush1.msra.mxu0 %v3153
    %3291 = vmatprep.subr.mxu0 %v3158
    %3292 = vmatpush1.msra.mxu0 %v3157
    %3293 = vmatprep.subr.mxu0 %v3162
    %3294 = vmatpush1.msra.mxu0 %v3161
    %3295 = vmatprep.subr.mxu0 %v3166
    %3296 = vmatpush1.msra.mxu0 %v3165
    %3297 = vmatprep.subr.mxu0 %v3170
    %3298 = vmatpush1.msra.mxu0 %v3169
    %3299 = vmatprep.subr.mxu0 %v3174
    %3300 = vmatpush1.msra.mxu0 %v3173
    %3301 = vmatprep.subr.mxu0 %v3178
    %3302 = vmatpush1.msra.mxu0 %v3177
    %3303 = vmatprep.subr.mxu0 %v3182
    %3304 = vmatpush1.msra.mxu0 %v3181
    %3305 = vmatprep.subr.mxu0 %v3186
    %3306 = vmatpush1.msra.mxu0 %v3185
    %3307 = vmatprep.subr.mxu0 %v3190
    %3308 = vmatpush1.msra.mxu0 %v3189
    %3309 = vmatprep.subr.mxu0 %v3194
    %3310 = vmatpush1.msra.mxu0 %v3193
    %3311 = vmatprep.subr.mxu0 %v3198
    %3312 = vmatpush1.msra.mxu0 %v3197
    %3313 = vmatprep.subr.mxu0 %v3202
    %3314 = vmatpush1.msra.mxu0 %v3201
    %3315 = vmatprep.subr.mxu0 0.0
    %3316 = vmatpush1.msra.mxu0 0.0
    %3317 = vmatprep.subr.mxu0 0.0
    %3318 = vmatpush1.msra.mxu0 0.0
    %3319 = vmatprep.subr.mxu0 0.0
    %3320 = vmatpush1.msra.mxu0 0.0
    %3321 = vmatprep.subr.mxu0 0.0
    %3322 = vmatpush1.msra.mxu0 0.0
    %3323 = vmatprep.subr.mxu0 0.0
    %3324 = vmatpush1.msra.mxu0 0.0
    %3325 = vmatprep.subr.mxu0 0.0
    %3326 = vmatpush1.msra.mxu0 0.0
    %3327 = vmatprep.subr.mxu0 0.0
    %3328 = vmatpush1.msra.mxu0 0.0
    %3329 = vmatprep.subr.mxu0 0.0
    %3330 = vmatpush1.msra.mxu0 0.0
    %3331 = vmatprep.subr.mxu0 0.0
    %3332 = vmatpush1.msra.mxu0 0.0
    %3333 = vmatprep.subr.mxu0 0.0
    %3334 = vmatpush1.msra.mxu0 0.0
    %3335 = vmatprep.subr.mxu0 0.0
    %3336 = vmatpush1.msra.mxu0 0.0
    %3337 = vmatprep.subr.mxu0 0.0
    %3338 = vmatpush1.msra.mxu0 0.0
    %3339 = vmatprep.subr.mxu0 0.0
    %3340 = vmatpush1.msra.mxu0 0.0
    %3341 = vmatprep.subr.mxu0 0.0
    %3342 = vmatpush1.msra.mxu0 0.0
    %3343 = vmatprep.mubr.f32.mxu0 %v3206
    %3344 = vmatmul.mubr.f32.gmra.mrb[0].mxu0 %v3203
    %v3345 = vpop.f32.mrb[0].mxu0
    %v3346 = vadd.f32 0.0, %v3345
    %v3347 = vpop.f32.mrb[0].mxu0
    %v3348 = vadd.f32 0.0, %v3347
    %3349 = vdwg.mxu0
    %v3350 = vadd.f32 %v3126, %v3275
    %v3351 = vadd.f32 %v3127, %v3277
    %v3352 = vadd.f32 %v3128, %v3346
    %v3353 = vadd.f32 %v3129, %v3348
    %s3354 = scalar_lea.vmem [#allocation6], 6336
    %v3355 = vld [vmem:[%s3354] sm:$0xff]
    %v3356 = vld [vmem:[%s3354 + $0x8] sm:$0xff]
    %v3357 = vld [vmem:[%s3354 + $0x10] sm:$0xff]
    %v3358 = vld [vmem:[%s3354 + $0x18] sm:$0xff]
    %v3359 = vld [vmem:[%s3354 + $0x20] sm:$0xff]
    %v3360 = vld [vmem:[%s3354 + $0x28] sm:$0xff]
    %v3361 = vld [vmem:[%s3354 + $0x30] sm:$0xff]
    %v3362 = vld [vmem:[%s3354 + $0x38] sm:$0xff]
    %v3363 = vld [vmem:[%s3354 + $0x40] sm:$0xff]
    %v3364 = vld [vmem:[%s3354 + $0x48] sm:$0xff]
    %v3365 = vld [vmem:[%s3354 + $0x50] sm:$0xff]
    %v3366 = vld [vmem:[%s3354 + $0x58] sm:$0xff]
    %v3367 = vld [vmem:[%s3354 + $0x60] sm:$0xff]
    %v3368 = vld [vmem:[%s3354 + $0x68] sm:$0xff]
    %v3369 = vld [vmem:[%s3354 + $0x70] sm:$0xff]
    %v3370 = vld [vmem:[%s3354 + $0x78] sm:$0xff]
    %v3371 = vld [vmem:[%s3354 + $0x80] sm:$0xff]
    %v3372 = vld [vmem:[%s3354 + $0x88] sm:$0xff]
    %v3373 = vld [vmem:[%s3354 + $0x90] sm:$0xff]
    %v3374 = vld [vmem:[%s3354 + $0x98] sm:$0xff]
    %v3375 = vld [vmem:[%s3354 + $0xa0] sm:$0xff]
    %v3376 = vld [vmem:[%s3354 + $0xa8] sm:$0xff]
    %v3377 = vld [vmem:[%s3354 + $0xb0] sm:$0xff]
    %v3378 = vld [vmem:[%s3354 + $0xb8] sm:$0xff]
    %v3379 = vld [vmem:[%s3354 + $0xc0] sm:$0xff]
    %v3380 = vld [vmem:[%s3354 + $0xc8] sm:$0xff]
    %v3381 = vld [vmem:[%s3354 + $0xd0] sm:$0xff]
    %v3382 = vld [vmem:[%s3354 + $0xd8] sm:$0xff]
    %v3383 = vld [vmem:[%s3354 + $0xe0] sm:$0xff]
    %v3384 = vld [vmem:[%s3354 + $0xe8] sm:$0xff]
    %v3385 = vld [vmem:[%s3354 + $0xf0] sm:$0xff]
    %v3386 = vld [vmem:[%s3354 + $0xf8] sm:$0xff]
    %v3387 = vld [vmem:[%s3354 + $0x100] sm:$0xff]
    %v3388 = vld [vmem:[%s3354 + $0x108] sm:$0xff]
    %v3389 = vld [vmem:[%s3354 + $0x110] sm:$0xff]
    %v3390 = vld [vmem:[%s3354 + $0x118] sm:$0xff]
    %v3391 = vld [vmem:[%s3354 + $0x120] sm:$0xff]
    %v3392 = vld [vmem:[%s3354 + $0x128] sm:$0xff]
    %v3393 = vld [vmem:[%s3354 + $0x130] sm:$0xff]
    %v3394 = vld [vmem:[%s3354 + $0x138] sm:$0xff]
    %v3395 = vld [vmem:[%s3354 + $0x140] sm:$0xff]
    %v3396 = vld [vmem:[%s3354 + $0x148] sm:$0xff]
    %v3397 = vld [vmem:[%s3354 + $0x150] sm:$0xff]
    %v3398 = vld [vmem:[%s3354 + $0x158] sm:$0xff]
    %v3399 = vld [vmem:[%s3354 + $0x160] sm:$0xff]
    %v3400 = vld [vmem:[%s3354 + $0x168] sm:$0xff]
    %v3401 = vld [vmem:[%s3354 + $0x170] sm:$0xff]
    %v3402 = vld [vmem:[%s3354 + $0x178] sm:$0xff]
    %v3403 = vld [vmem:[%s3354 + $0x180] sm:$0xff]
    %v3404 = vld [vmem:[%s3354 + $0x188] sm:$0xff]
    %v3405 = vld [vmem:[%s3354 + $0x190] sm:$0xff]
    %v3406 = vld [vmem:[%s3354 + $0x198] sm:$0xff]
    %v3407 = vld [vmem:[%s3354 + $0x1a0] sm:$0xff]
    %v3408 = vld [vmem:[%s3354 + $0x1a8] sm:$0xff]
    %v3409 = vld [vmem:[%s3354 + $0x1b0] sm:$0xff]
    %v3410 = vld [vmem:[%s3354 + $0x1b8] sm:$0xff]
    %v3411 = vld [vmem:[%s3354 + $0x1c0] sm:$0xff]
    %v3412 = vld [vmem:[%s3354 + $0x1c8] sm:$0xff]
    %v3413 = vld [vmem:[%s3354 + $0x1d0] sm:$0xff]
    %v3414 = vld [vmem:[%s3354 + $0x1d8] sm:$0xff]
    %v3415 = vld [vmem:[%s3354 + $0x1e0] sm:$0xff]
    %v3416 = vld [vmem:[%s3354 + $0x1e8] sm:$0xff]
    %v3417 = vld [vmem:[%s3354 + $0x1f0] sm:$0xff]
    %v3418 = vld [vmem:[%s3354 + $0x1f8] sm:$0xff]
    %v3419 = vld [vmem:[%s3354 + $0x200] sm:$0xff]
    %v3420 = vld [vmem:[%s3354 + $0x208] sm:$0xff]
    %v3421 = vld [vmem:[%s3354 + $0x210] sm:$0xff]
    %v3422 = vld [vmem:[%s3354 + $0x218] sm:$0xff]
    %v3423 = vld [vmem:[%s3354 + $0x220] sm:$0xff]
    %v3424 = vld [vmem:[%s3354 + $0x228] sm:$0xff]
    %v3425 = vld [vmem:[%s3354 + $0x230] sm:$0xff]
    %v3426 = vld [vmem:[%s3354 + $0x238] sm:$0xff]
    %v3427 = vrot.slane %v891, 6
    %v3428 = vrot.slane %v892, 6
    %v3430 = vsel %vm1051, %v3428, 0
    %3432 = vmatprep.subr.mxu0 %v3356
    %3433 = vmatpush1.msra.mxu0 %v3355
    %3434 = vmatprep.subr.mxu0 %v3360
    %3435 = vmatpush1.msra.mxu0 %v3359
    %3436 = vmatprep.subr.mxu0 %v3364
    %3437 = vmatpush1.msra.mxu0 %v3363
    %3438 = vmatprep.subr.mxu0 %v3368
    %3439 = vmatpush1.msra.mxu0 %v3367
    %3440 = vmatprep.subr.mxu0 %v3372
    %3441 = vmatpush1.msra.mxu0 %v3371
    %3442 = vmatprep.subr.mxu0 %v3376
    %3443 = vmatpush1.msra.mxu0 %v3375
    %3444 = vmatprep.subr.mxu0 %v3380
    %3445 = vmatpush1.msra.mxu0 %v3379
    %3446 = vmatprep.subr.mxu0 %v3384
    %3447 = vmatpush1.msra.mxu0 %v3383
    %3448 = vmatprep.subr.mxu0 %v3388
    %3449 = vmatpush1.msra.mxu0 %v3387
    %3450 = vmatprep.subr.mxu0 %v3392
    %3451 = vmatpush1.msra.mxu0 %v3391
    %3452 = vmatprep.subr.mxu0 %v3396
    %3453 = vmatpush1.msra.mxu0 %v3395
    %3454 = vmatprep.subr.mxu0 %v3400
    %3455 = vmatpush1.msra.mxu0 %v3399
    %3456 = vmatprep.subr.mxu0 %v3404
    %3457 = vmatpush1.msra.mxu0 %v3403
    %3458 = vmatprep.subr.mxu0 %v3408
    %3459 = vmatpush1.msra.mxu0 %v3407
    %3460 = vmatprep.subr.mxu0 %v3412
    %3461 = vmatpush1.msra.mxu0 %v3411
    %3462 = vmatprep.subr.mxu0 %v3416
    %3463 = vmatpush1.msra.mxu0 %v3415
    %3464 = vmatprep.subr.mxu0 %v3420
    %3465 = vmatpush1.msra.mxu0 %v3419
    %3466 = vmatprep.subr.mxu0 %v3424
    %3467 = vmatpush1.msra.mxu0 %v3423
    %3468 = vmatprep.subr.mxu0 0.0
    %3469 = vmatpush1.msra.mxu0 0.0
    %3470 = vmatprep.subr.mxu0 0.0
    %3471 = vmatpush1.msra.mxu0 0.0
    %3472 = vmatprep.subr.mxu0 0.0
    %3473 = vmatpush1.msra.mxu0 0.0
    %3474 = vmatprep.subr.mxu0 0.0
    %3475 = vmatpush1.msra.mxu0 0.0
    %3476 = vmatprep.subr.mxu0 0.0
    %3477 = vmatpush1.msra.mxu0 0.0
    %3478 = vmatprep.subr.mxu0 0.0
    %3479 = vmatpush1.msra.mxu0 0.0
    %3480 = vmatprep.subr.mxu0 0.0
    %3481 = vmatpush1.msra.mxu0 0.0
    %3482 = vmatprep.subr.mxu0 0.0
    %3483 = vmatpush1.msra.mxu0 0.0
    %3484 = vmatprep.subr.mxu0 0.0
    %3485 = vmatpush1.msra.mxu0 0.0
    %3486 = vmatprep.subr.mxu0 0.0
    %3487 = vmatpush1.msra.mxu0 0.0
    %3488 = vmatprep.subr.mxu0 0.0
    %3489 = vmatpush1.msra.mxu0 0.0
    %3490 = vmatprep.subr.mxu0 0.0
    %3491 = vmatpush1.msra.mxu0 0.0
    %3492 = vmatprep.subr.mxu0 0.0
    %3493 = vmatpush1.msra.mxu0 0.0
    %3494 = vmatprep.subr.mxu0 0.0
    %3495 = vmatpush1.msra.mxu0 0.0
    %3496 = vmatprep.mubr.f32.mxu0 %v3430
    %3497 = vmatmul.mubr.f32.gmra.mrb[0].mxu0 %v3427
    %v3498 = vpop.f32.mrb[0].mxu0
    %v3499 = vadd.f32 0.0, %v3498
    %v3500 = vpop.f32.mrb[0].mxu0
    %v3501 = vadd.f32 0.0, %v3500
    %3502 = vdwg.mxu0
    %3503 = vmatprep.subr.mxu0 %v3358
    %3504 = vmatpush1.msra.mxu0 %v3357
    %3505 = vmatprep.subr.mxu0 %v3362
    %3506 = vmatpush1.msra.mxu0 %v3361
    %3507 = vmatprep.subr.mxu0 %v3366
    %3508 = vmatpush1.msra.mxu0 %v3365
    %3509 = vmatprep.subr.mxu0 %v3370
    %3510 = vmatpush1.msra.mxu0 %v3369
    %3511 = vmatprep.subr.mxu0 %v3374
    %3512 = vmatpush1.msra.mxu0 %v3373
    %3513 = vmatprep.subr.mxu0 %v3378
    %3514 = vmatpush1.msra.mxu0 %v3377
    %3515 = vmatprep.subr.mxu0 %v3382
    %3516 = vmatpush1.msra.mxu0 %v3381
    %3517 = vmatprep.subr.mxu0 %v3386
    %3518 = vmatpush1.msra.mxu0 %v3385
    %3519 = vmatprep.subr.mxu0 %v3390
    %3520 = vmatpush1.msra.mxu0 %v3389
    %3521 = vmatprep.subr.mxu0 %v3394
    %3522 = vmatpush1.msra.mxu0 %v3393
    %3523 = vmatprep.subr.mxu0 %v3398
    %3524 = vmatpush1.msra.mxu0 %v3397
    %3525 = vmatprep.subr.mxu0 %v3402
    %3526 = vmatpush1.msra.mxu0 %v3401
    %3527 = vmatprep.subr.mxu0 %v3406
    %3528 = vmatpush1.msra.mxu0 %v3405
    %3529 = vmatprep.subr.mxu0 %v3410
    %3530 = vmatpush1.msra.mxu0 %v3409
    %3531 = vmatprep.subr.mxu0 %v3414
    %3532 = vmatpush1.msra.mxu0 %v3413
    %3533 = vmatprep.subr.mxu0 %v3418
    %3534 = vmatpush1.msra.mxu0 %v3417
    %3535 = vmatprep.subr.mxu0 %v3422
    %3536 = vmatpush1.msra.mxu0 %v3421
    %3537 = vmatprep.subr.mxu0 %v3426
    %3538 = vmatpush1.msra.mxu0 %v3425
    %3539 = vmatprep.subr.mxu0 0.0
    %3540 = vmatpush1.msra.mxu0 0.0
    %3541 = vmatprep.subr.mxu0 0.0
    %3542 = vmatpush1.msra.mxu0 0.0
    %3543 = vmatprep.subr.mxu0 0.0
    %3544 = vmatpush1.msra.mxu0 0.0
    %3545 = vmatprep.subr.mxu0 0.0
    %3546 = vmatpush1.msra.mxu0 0.0
    %3547 = vmatprep.subr.mxu0 0.0
    %3548 = vmatpush1.msra.mxu0 0.0
    %3549 = vmatprep.subr.mxu0 0.0
    %3550 = vmatpush1.msra.mxu0 0.0
    %3551 = vmatprep.subr.mxu0 0.0
    %3552 = vmatpush1.msra.mxu0 0.0
    %3553 = vmatprep.subr.mxu0 0.0
    %3554 = vmatpush1.msra.mxu0 0.0
    %3555 = vmatprep.subr.mxu0 0.0
    %3556 = vmatpush1.msra.mxu0 0.0
    %3557 = vmatprep.subr.mxu0 0.0
    %3558 = vmatpush1.msra.mxu0 0.0
    %3559 = vmatprep.subr.mxu0 0.0
    %3560 = vmatpush1.msra.mxu0 0.0
    %3561 = vmatprep.subr.mxu0 0.0
    %3562 = vmatpush1.msra.mxu0 0.0
    %3563 = vmatprep.subr.mxu0 0.0
    %3564 = vmatpush1.msra.mxu0 0.0
    %3565 = vmatprep.subr.mxu0 0.0
    %3566 = vmatpush1.msra.mxu0 0.0
    %3567 = vmatprep.mubr.f32.mxu0 %v3430
    %3568 = vmatmul.mubr.f32.gmra.mrb[0].mxu0 %v3427
    %v3569 = vpop.f32.mrb[0].mxu0
    %v3570 = vadd.f32 0.0, %v3569
    %v3571 = vpop.f32.mrb[0].mxu0
    %v3572 = vadd.f32 0.0, %v3571
    %3573 = vdwg.mxu0
    %v3574 = vadd.f32 %v3350, %v3499
    %v3575 = vadd.f32 %v3351, %v3501
    %v3576 = vadd.f32 %v3352, %v3570
    %v3577 = vadd.f32 %v3353, %v3572
    %s3578 = scalar_lea.vmem [#allocation6], 6912
    %v3579 = vld [vmem:[%s3578] sm:$0xff]
    %v3580 = vld [vmem:[%s3578 + $0x8] sm:$0xff]
    %v3581 = vld [vmem:[%s3578 + $0x10] sm:$0xff]
    %v3582 = vld [vmem:[%s3578 + $0x18] sm:$0xff]
    %v3583 = vld [vmem:[%s3578 + $0x20] sm:$0xff]
    %v3584 = vld [vmem:[%s3578 + $0x28] sm:$0xff]
    %v3585 = vld [vmem:[%s3578 + $0x30] sm:$0xff]
    %v3586 = vld [vmem:[%s3578 + $0x38] sm:$0xff]
    %v3587 = vld [vmem:[%s3578 + $0x40] sm:$0xff]
    %v3588 = vld [vmem:[%s3578 + $0x48] sm:$0xff]
    %v3589 = vld [vmem:[%s3578 + $0x50] sm:$0xff]
    %v3590 = vld [vmem:[%s3578 + $0x58] sm:$0xff]
    %v3591 = vld [vmem:[%s3578 + $0x60] sm:$0xff]
    %v3592 = vld [vmem:[%s3578 + $0x68] sm:$0xff]
    %v3593 = vld [vmem:[%s3578 + $0x70] sm:$0xff]
    %v3594 = vld [vmem:[%s3578 + $0x78] sm:$0xff]
    %v3595 = vld [vmem:[%s3578 + $0x80] sm:$0xff]
    %v3596 = vld [vmem:[%s3578 + $0x88] sm:$0xff]
    %v3597 = vld [vmem:[%s3578 + $0x90] sm:$0xff]
    %v3598 = vld [vmem:[%s3578 + $0x98] sm:$0xff]
    %v3599 = vld [vmem:[%s3578 + $0xa0] sm:$0xff]
    %v3600 = vld [vmem:[%s3578 + $0xa8] sm:$0xff]
    %v3601 = vld [vmem:[%s3578 + $0xb0] sm:$0xff]
    %v3602 = vld [vmem:[%s3578 + $0xb8] sm:$0xff]
    %v3603 = vld [vmem:[%s3578 + $0xc0] sm:$0xff]
    %v3604 = vld [vmem:[%s3578 + $0xc8] sm:$0xff]
    %v3605 = vld [vmem:[%s3578 + $0xd0] sm:$0xff]
    %v3606 = vld [vmem:[%s3578 + $0xd8] sm:$0xff]
    %v3607 = vld [vmem:[%s3578 + $0xe0] sm:$0xff]
    %v3608 = vld [vmem:[%s3578 + $0xe8] sm:$0xff]
    %v3609 = vld [vmem:[%s3578 + $0xf0] sm:$0xff]
    %v3610 = vld [vmem:[%s3578 + $0xf8] sm:$0xff]
    %v3611 = vld [vmem:[%s3578 + $0x100] sm:$0xff]
    %v3612 = vld [vmem:[%s3578 + $0x108] sm:$0xff]
    %v3613 = vld [vmem:[%s3578 + $0x110] sm:$0xff]
    %v3614 = vld [vmem:[%s3578 + $0x118] sm:$0xff]
    %v3615 = vld [vmem:[%s3578 + $0x120] sm:$0xff]
    %v3616 = vld [vmem:[%s3578 + $0x128] sm:$0xff]
    %v3617 = vld [vmem:[%s3578 + $0x130] sm:$0xff]
    %v3618 = vld [vmem:[%s3578 + $0x138] sm:$0xff]
    %v3619 = vld [vmem:[%s3578 + $0x140] sm:$0xff]
    %v3620 = vld [vmem:[%s3578 + $0x148] sm:$0xff]
    %v3621 = vld [vmem:[%s3578 + $0x150] sm:$0xff]
    %v3622 = vld [vmem:[%s3578 + $0x158] sm:$0xff]
    %v3623 = vld [vmem:[%s3578 + $0x160] sm:$0xff]
    %v3624 = vld [vmem:[%s3578 + $0x168] sm:$0xff]
    %v3625 = vld [vmem:[%s3578 + $0x170] sm:$0xff]
    %v3626 = vld [vmem:[%s3578 + $0x178] sm:$0xff]
    %v3627 = vld [vmem:[%s3578 + $0x180] sm:$0xff]
    %v3628 = vld [vmem:[%s3578 + $0x188] sm:$0xff]
    %v3629 = vld [vmem:[%s3578 + $0x190] sm:$0xff]
    %v3630 = vld [vmem:[%s3578 + $0x198] sm:$0xff]
    %v3631 = vld [vmem:[%s3578 + $0x1a0] sm:$0xff]
    %v3632 = vld [vmem:[%s3578 + $0x1a8] sm:$0xff]
    %v3633 = vld [vmem:[%s3578 + $0x1b0] sm:$0xff]
    %v3634 = vld [vmem:[%s3578 + $0x1b8] sm:$0xff]
    %v3635 = vld [vmem:[%s3578 + $0x1c0] sm:$0xff]
    %v3636 = vld [vmem:[%s3578 + $0x1c8] sm:$0xff]
    %v3637 = vld [vmem:[%s3578 + $0x1d0] sm:$0xff]
    %v3638 = vld [vmem:[%s3578 + $0x1d8] sm:$0xff]
    %v3639 = vld [vmem:[%s3578 + $0x1e0] sm:$0xff]
    %v3640 = vld [vmem:[%s3578 + $0x1e8] sm:$0xff]
    %v3641 = vld [vmem:[%s3578 + $0x1f0] sm:$0xff]
    %v3642 = vld [vmem:[%s3578 + $0x1f8] sm:$0xff]
    %v3643 = vld [vmem:[%s3578 + $0x200] sm:$0xff]
    %v3644 = vld [vmem:[%s3578 + $0x208] sm:$0xff]
    %v3645 = vld [vmem:[%s3578 + $0x210] sm:$0xff]
    %v3646 = vld [vmem:[%s3578 + $0x218] sm:$0xff]
    %v3647 = vld [vmem:[%s3578 + $0x220] sm:$0xff]
    %v3648 = vld [vmem:[%s3578 + $0x228] sm:$0xff]
    %v3649 = vld [vmem:[%s3578 + $0x230] sm:$0xff]
    %v3650 = vld [vmem:[%s3578 + $0x238] sm:$0xff]
    %v3652 = vsel %vm1051, %v894, 0
    %3654 = vmatprep.subr.mxu0 %v3580
    %3655 = vmatpush1.msra.mxu0 %v3579
    %3656 = vmatprep.subr.mxu0 %v3584
    %3657 = vmatpush1.msra.mxu0 %v3583
    %3658 = vmatprep.subr.mxu0 %v3588
    %3659 = vmatpush1.msra.mxu0 %v3587
    %3660 = vmatprep.subr.mxu0 %v3592
    %3661 = vmatpush1.msra.mxu0 %v3591
    %3662 = vmatprep.subr.mxu0 %v3596
    %3663 = vmatpush1.msra.mxu0 %v3595
    %3664 = vmatprep.subr.mxu0 %v3600
    %3665 = vmatpush1.msra.mxu0 %v3599
    %3666 = vmatprep.subr.mxu0 %v3604
    %3667 = vmatpush1.msra.mxu0 %v3603
    %3668 = vmatprep.subr.mxu0 %v3608
    %3669 = vmatpush1.msra.mxu0 %v3607
    %3670 = vmatprep.subr.mxu0 %v3612
    %3671 = vmatpush1.msra.mxu0 %v3611
    %3672 = vmatprep.subr.mxu0 %v3616
    %3673 = vmatpush1.msra.mxu0 %v3615
    %3674 = vmatprep.subr.mxu0 %v3620
    %3675 = vmatpush1.msra.mxu0 %v3619
    %3676 = vmatprep.subr.mxu0 %v3624
    %3677 = vmatpush1.msra.mxu0 %v3623
    %3678 = vmatprep.subr.mxu0 %v3628
    %3679 = vmatpush1.msra.mxu0 %v3627
    %3680 = vmatprep.subr.mxu0 %v3632
    %3681 = vmatpush1.msra.mxu0 %v3631
    %3682 = vmatprep.subr.mxu0 %v3636
    %3683 = vmatpush1.msra.mxu0 %v3635
    %3684 = vmatprep.subr.mxu0 %v3640
    %3685 = vmatpush1.msra.mxu0 %v3639
    %3686 = vmatprep.subr.mxu0 %v3644
    %3687 = vmatpush1.msra.mxu0 %v3643
    %3688 = vmatprep.subr.mxu0 %v3648
    %3689 = vmatpush1.msra.mxu0 %v3647
    %3690 = vmatprep.subr.mxu0 0.0
    %3691 = vmatpush1.msra.mxu0 0.0
    %3692 = vmatprep.subr.mxu0 0.0
    %3693 = vmatpush1.msra.mxu0 0.0
    %3694 = vmatprep.subr.mxu0 0.0
    %3695 = vmatpush1.msra.mxu0 0.0
    %3696 = vmatprep.subr.mxu0 0.0
    %3697 = vmatpush1.msra.mxu0 0.0
    %3698 = vmatprep.subr.mxu0 0.0
    %3699 = vmatpush1.msra.mxu0 0.0
    %3700 = vmatprep.subr.mxu0 0.0
    %3701 = vmatpush1.msra.mxu0 0.0
    %3702 = vmatprep.subr.mxu0 0.0
    %3703 = vmatpush1.msra.mxu0 0.0
    %3704 = vmatprep.subr.mxu0 0.0
    %3705 = vmatpush1.msra.mxu0 0.0
    %3706 = vmatprep.subr.mxu0 0.0
    %3707 = vmatpush1.msra.mxu0 0.0
    %3708 = vmatprep.subr.mxu0 0.0
    %3709 = vmatpush1.msra.mxu0 0.0
    %3710 = vmatprep.subr.mxu0 0.0
    %3711 = vmatpush1.msra.mxu0 0.0
    %3712 = vmatprep.subr.mxu0 0.0
    %3713 = vmatpush1.msra.mxu0 0.0
    %3714 = vmatprep.subr.mxu0 0.0
    %3715 = vmatpush1.msra.mxu0 0.0
    %3716 = vmatprep.subr.mxu0 0.0
    %3717 = vmatpush1.msra.mxu0 0.0
    %3718 = vmatprep.mubr.f32.mxu0 %v3652
    %3719 = vmatmul.mubr.f32.gmra.mrb[0].mxu0 %v893
    %v3720 = vpop.f32.mrb[0].mxu0
    %v3721 = vadd.f32 0.0, %v3720
    %v3722 = vpop.f32.mrb[0].mxu0
    %v3723 = vadd.f32 0.0, %v3722
    %3724 = vdwg.mxu0
    %3725 = vmatprep.subr.mxu0 %v3582
    %3726 = vmatpush1.msra.mxu0 %v3581
    %3727 = vmatprep.subr.mxu0 %v3586
    %3728 = vmatpush1.msra.mxu0 %v3585
    %3729 = vmatprep.subr.mxu0 %v3590
    %3730 = vmatpush1.msra.mxu0 %v3589
    %3731 = vmatprep.subr.mxu0 %v3594
    %3732 = vmatpush1.msra.mxu0 %v3593
    %3733 = vmatprep.subr.mxu0 %v3598
    %3734 = vmatpush1.msra.mxu0 %v3597
    %3735 = vmatprep.subr.mxu0 %v3602
    %3736 = vmatpush1.msra.mxu0 %v3601
    %3737 = vmatprep.subr.mxu0 %v3606
    %3738 = vmatpush1.msra.mxu0 %v3605
    %3739 = vmatprep.subr.mxu0 %v3610
    %3740 = vmatpush1.msra.mxu0 %v3609
    %3741 = vmatprep.subr.mxu0 %v3614
    %3742 = vmatpush1.msra.mxu0 %v3613
    %3743 = vmatprep.subr.mxu0 %v3618
    %3744 = vmatpush1.msra.mxu0 %v3617
    %3745 = vmatprep.subr.mxu0 %v3622
    %3746 = vmatpush1.msra.mxu0 %v3621
    %3747 = vmatprep.subr.mxu0 %v3626
    %3748 = vmatpush1.msra.mxu0 %v3625
    %3749 = vmatprep.subr.mxu0 %v3630
    %3750 = vmatpush1.msra.mxu0 %v3629
    %3751 = vmatprep.subr.mxu0 %v3634
    %3752 = vmatpush1.msra.mxu0 %v3633
    %3753 = vmatprep.subr.mxu0 %v3638
    %3754 = vmatpush1.msra.mxu0 %v3637
    %3755 = vmatprep.subr.mxu0 %v3642
    %3756 = vmatpush1.msra.mxu0 %v3641
    %3757 = vmatprep.subr.mxu0 %v3646
    %3758 = vmatpush1.msra.mxu0 %v3645
    %3759 = vmatprep.subr.mxu0 %v3650
    %3760 = vmatpush1.msra.mxu0 %v3649
    %3761 = vmatprep.subr.mxu0 0.0
    %3762 = vmatpush1.msra.mxu0 0.0
    %3763 = vmatprep.subr.mxu0 0.0
    %3764 = vmatpush1.msra.mxu0 0.0
    %3765 = vmatprep.subr.mxu0 0.0
    %3766 = vmatpush1.msra.mxu0 0.0
    %3767 = vmatprep.subr.mxu0 0.0
    %3768 = vmatpush1.msra.mxu0 0.0
    %3769 = vmatprep.subr.mxu0 0.0
    %3770 = vmatpush1.msra.mxu0 0.0
    %3771 = vmatprep.subr.mxu0 0.0
    %3772 = vmatpush1.msra.mxu0 0.0
    %3773 = vmatprep.subr.mxu0 0.0
    %3774 = vmatpush1.msra.mxu0 0.0
    %3775 = vmatprep.subr.mxu0 0.0
    %3776 = vmatpush1.msra.mxu0 0.0
    %3777 = vmatprep.subr.mxu0 0.0
    %3778 = vmatpush1.msra.mxu0 0.0
    %3779 = vmatprep.subr.mxu0 0.0
    %3780 = vmatpush1.msra.mxu0 0.0
    %3781 = vmatprep.subr.mxu0 0.0
    %3782 = vmatpush1.msra.mxu0 0.0
    %3783 = vmatprep.subr.mxu0 0.0
    %3784 = vmatpush1.msra.mxu0 0.0
    %3785 = vmatprep.subr.mxu0 0.0
    %3786 = vmatpush1.msra.mxu0 0.0
    %3787 = vmatprep.subr.mxu0 0.0
    %3788 = vmatpush1.msra.mxu0 0.0
    %3789 = vmatprep.mubr.f32.mxu0 %v3652
    %3790 = vmatmul.mubr.f32.gmra.mrb[0].mxu0 %v893
    %v3791 = vpop.f32.mrb[0].mxu0
    %v3792 = vadd.f32 0.0, %v3791
    %v3793 = vpop.f32.mrb[0].mxu0
    %v3794 = vadd.f32 0.0, %v3793
    %3795 = vdwg.mxu0
    %v3796 = vadd.f32 %v3574, %v3721
    %v3797 = vadd.f32 %v3575, %v3723
    %v3798 = vadd.f32 %v3576, %v3792
    %v3799 = vadd.f32 %v3577, %v3794
    %s3800 = scalar_lea.vmem [#allocation6], 7488
    %v3801 = vld [vmem:[%s3800] sm:$0xff]
    %v3802 = vld [vmem:[%s3800 + $0x8] sm:$0xff]
    %v3803 = vld [vmem:[%s3800 + $0x10] sm:$0xff]
    %v3804 = vld [vmem:[%s3800 + $0x18] sm:$0xff]
    %v3805 = vld [vmem:[%s3800 + $0x20] sm:$0xff]
    %v3806 = vld [vmem:[%s3800 + $0x28] sm:$0xff]
    %v3807 = vld [vmem:[%s3800 + $0x30] sm:$0xff]
    %v3808 = vld [vmem:[%s3800 + $0x38] sm:$0xff]
    %v3809 = vld [vmem:[%s3800 + $0x40] sm:$0xff]
    %v3810 = vld [vmem:[%s3800 + $0x48] sm:$0xff]
    %v3811 = vld [vmem:[%s3800 + $0x50] sm:$0xff]
    %v3812 = vld [vmem:[%s3800 + $0x58] sm:$0xff]
    %v3813 = vld [vmem:[%s3800 + $0x60] sm:$0xff]
    %v3814 = vld [vmem:[%s3800 + $0x68] sm:$0xff]
    %v3815 = vld [vmem:[%s3800 + $0x70] sm:$0xff]
    %v3816 = vld [vmem:[%s3800 + $0x78] sm:$0xff]
    %v3817 = vld [vmem:[%s3800 + $0x80] sm:$0xff]
    %v3818 = vld [vmem:[%s3800 + $0x88] sm:$0xff]
    %v3819 = vld [vmem:[%s3800 + $0x90] sm:$0xff]
    %v3820 = vld [vmem:[%s3800 + $0x98] sm:$0xff]
    %v3821 = vld [vmem:[%s3800 + $0xa0] sm:$0xff]
    %v3822 = vld [vmem:[%s3800 + $0xa8] sm:$0xff]
    %v3823 = vld [vmem:[%s3800 + $0xb0] sm:$0xff]
    %v3824 = vld [vmem:[%s3800 + $0xb8] sm:$0xff]
    %v3825 = vld [vmem:[%s3800 + $0xc0] sm:$0xff]
    %v3826 = vld [vmem:[%s3800 + $0xc8] sm:$0xff]
    %v3827 = vld [vmem:[%s3800 + $0xd0] sm:$0xff]
    %v3828 = vld [vmem:[%s3800 + $0xd8] sm:$0xff]
    %v3829 = vld [vmem:[%s3800 + $0xe0] sm:$0xff]
    %v3830 = vld [vmem:[%s3800 + $0xe8] sm:$0xff]
    %v3831 = vld [vmem:[%s3800 + $0xf0] sm:$0xff]
    %v3832 = vld [vmem:[%s3800 + $0xf8] sm:$0xff]
    %v3833 = vld [vmem:[%s3800 + $0x100] sm:$0xff]
    %v3834 = vld [vmem:[%s3800 + $0x108] sm:$0xff]
    %v3835 = vld [vmem:[%s3800 + $0x110] sm:$0xff]
    %v3836 = vld [vmem:[%s3800 + $0x118] sm:$0xff]
    %v3837 = vld [vmem:[%s3800 + $0x120] sm:$0xff]
    %v3838 = vld [vmem:[%s3800 + $0x128] sm:$0xff]
    %v3839 = vld [vmem:[%s3800 + $0x130] sm:$0xff]
    %v3840 = vld [vmem:[%s3800 + $0x138] sm:$0xff]
    %v3841 = vld [vmem:[%s3800 + $0x140] sm:$0xff]
    %v3842 = vld [vmem:[%s3800 + $0x148] sm:$0xff]
    %v3843 = vld [vmem:[%s3800 + $0x150] sm:$0xff]
    %v3844 = vld [vmem:[%s3800 + $0x158] sm:$0xff]
    %v3845 = vld [vmem:[%s3800 + $0x160] sm:$0xff]
    %v3846 = vld [vmem:[%s3800 + $0x168] sm:$0xff]
    %v3847 = vld [vmem:[%s3800 + $0x170] sm:$0xff]
    %v3848 = vld [vmem:[%s3800 + $0x178] sm:$0xff]
    %v3849 = vld [vmem:[%s3800 + $0x180] sm:$0xff]
    %v3850 = vld [vmem:[%s3800 + $0x188] sm:$0xff]
    %v3851 = vld [vmem:[%s3800 + $0x190] sm:$0xff]
    %v3852 = vld [vmem:[%s3800 + $0x198] sm:$0xff]
    %v3853 = vld [vmem:[%s3800 + $0x1a0] sm:$0xff]
    %v3854 = vld [vmem:[%s3800 + $0x1a8] sm:$0xff]
    %v3855 = vld [vmem:[%s3800 + $0x1b0] sm:$0xff]
    %v3856 = vld [vmem:[%s3800 + $0x1b8] sm:$0xff]
    %v3857 = vld [vmem:[%s3800 + $0x1c0] sm:$0xff]
    %v3858 = vld [vmem:[%s3800 + $0x1c8] sm:$0xff]
    %v3859 = vld [vmem:[%s3800 + $0x1d0] sm:$0xff]
    %v3860 = vld [vmem:[%s3800 + $0x1d8] sm:$0xff]
    %v3861 = vld [vmem:[%s3800 + $0x1e0] sm:$0xff]
    %v3862 = vld [vmem:[%s3800 + $0x1e8] sm:$0xff]
    %v3863 = vld [vmem:[%s3800 + $0x1f0] sm:$0xff]
    %v3864 = vld [vmem:[%s3800 + $0x1f8] sm:$0xff]
    %v3865 = vld [vmem:[%s3800 + $0x200] sm:$0xff]
    %v3866 = vld [vmem:[%s3800 + $0x208] sm:$0xff]
    %v3867 = vld [vmem:[%s3800 + $0x210] sm:$0xff]
    %v3868 = vld [vmem:[%s3800 + $0x218] sm:$0xff]
    %v3869 = vld [vmem:[%s3800 + $0x220] sm:$0xff]
    %v3870 = vld [vmem:[%s3800 + $0x228] sm:$0xff]
    %v3871 = vld [vmem:[%s3800 + $0x230] sm:$0xff]
    %v3872 = vld [vmem:[%s3800 + $0x238] sm:$0xff]
    %v3874 = vrot.slane %v893, 2
    %v3875 = vrot.slane %v894, 2
    %v3877 = vsel %vm1051, %v3875, 0
    %3879 = vmatprep.subr.mxu0 %v3802
    %3880 = vmatpush1.msra.mxu0 %v3801
    %3881 = vmatprep.subr.mxu0 %v3806
    %3882 = vmatpush1.msra.mxu0 %v3805
    %3883 = vmatprep.subr.mxu0 %v3810
    %3884 = vmatpush1.msra.mxu0 %v3809
    %3885 = vmatprep.subr.mxu0 %v3814
    %3886 = vmatpush1.msra.mxu0 %v3813
    %3887 = vmatprep.subr.mxu0 %v3818
    %3888 = vmatpush1.msra.mxu0 %v3817
    %3889 = vmatprep.subr.mxu0 %v3822
    %3890 = vmatpush1.msra.mxu0 %v3821
    %3891 = vmatprep.subr.mxu0 %v3826
    %3892 = vmatpush1.msra.mxu0 %v3825
    %3893 = vmatprep.subr.mxu0 %v3830
    %3894 = vmatpush1.msra.mxu0 %v3829
    %3895 = vmatprep.subr.mxu0 %v3834
    %3896 = vmatpush1.msra.mxu0 %v3833
    %3897 = vmatprep.subr.mxu0 %v3838
    %3898 = vmatpush1.msra.mxu0 %v3837
    %3899 = vmatprep.subr.mxu0 %v3842
    %3900 = vmatpush1.msra.mxu0 %v3841
    %3901 = vmatprep.subr.mxu0 %v3846
    %3902 = vmatpush1.msra.mxu0 %v3845
    %3903 = vmatprep.subr.mxu0 %v3850
    %3904 = vmatpush1.msra.mxu0 %v3849
    %3905 = vmatprep.subr.mxu0 %v3854
    %3906 = vmatpush1.msra.mxu0 %v3853
    %3907 = vmatprep.subr.mxu0 %v3858
    %3908 = vmatpush1.msra.mxu0 %v3857
    %3909 = vmatprep.subr.mxu0 %v3862
    %3910 = vmatpush1.msra.mxu0 %v3861
    %3911 = vmatprep.subr.mxu0 %v3866
    %3912 = vmatpush1.msra.mxu0 %v3865
    %3913 = vmatprep.subr.mxu0 %v3870
    %3914 = vmatpush1.msra.mxu0 %v3869
    %3915 = vmatprep.subr.mxu0 0.0
    %3916 = vmatpush1.msra.mxu0 0.0
    %3917 = vmatprep.subr.mxu0 0.0
    %3918 = vmatpush1.msra.mxu0 0.0
    %3919 = vmatprep.subr.mxu0 0.0
    %3920 = vmatpush1.msra.mxu0 0.0
    %3921 = vmatprep.subr.mxu0 0.0
    %3922 = vmatpush1.msra.mxu0 0.0
    %3923 = vmatprep.subr.mxu0 0.0
    %3924 = vmatpush1.msra.mxu0 0.0
    %3925 = vmatprep.subr.mxu0 0.0
    %3926 = vmatpush1.msra.mxu0 0.0
    %3927 = vmatprep.subr.mxu0 0.0
    %3928 = vmatpush1.msra.mxu0 0.0
    %3929 = vmatprep.subr.mxu0 0.0
    %3930 = vmatpush1.msra.mxu0 0.0
    %3931 = vmatprep.subr.mxu0 0.0
    %3932 = vmatpush1.msra.mxu0 0.0
    %3933 = vmatprep.subr.mxu0 0.0
    %3934 = vmatpush1.msra.mxu0 0.0
    %3935 = vmatprep.subr.mxu0 0.0
    %3936 = vmatpush1.msra.mxu0 0.0
    %3937 = vmatprep.subr.mxu0 0.0
    %3938 = vmatpush1.msra.mxu0 0.0
    %3939 = vmatprep.subr.mxu0 0.0
    %3940 = vmatpush1.msra.mxu0 0.0
    %3941 = vmatprep.subr.mxu0 0.0
    %3942 = vmatpush1.msra.mxu0 0.0
    %3943 = vmatprep.mubr.f32.mxu0 %v3877
    %3944 = vmatmul.mubr.f32.gmra.mrb[0].mxu0 %v3874
    %v3945 = vpop.f32.mrb[0].mxu0
    %v3946 = vadd.f32 0.0, %v3945
    %v3947 = vpop.f32.mrb[0].mxu0
    %v3948 = vadd.f32 0.0, %v3947
    %3949 = vdwg.mxu0
    %3950 = vmatprep.subr.mxu0 %v3804
    %3951 = vmatpush1.msra.mxu0 %v3803
    %3952 = vmatprep.subr.mxu0 %v3808
    %3953 = vmatpush1.msra.mxu0 %v3807
    %3954 = vmatprep.subr.mxu0 %v3812
    %3955 = vmatpush1.msra.mxu0 %v3811
    %3956 = vmatprep.subr.mxu0 %v3816
    %3957 = vmatpush1.msra.mxu0 %v3815
    %3958 = vmatprep.subr.mxu0 %v3820
    %3959 = vmatpush1.msra.mxu0 %v3819
    %3960 = vmatprep.subr.mxu0 %v3824
    %3961 = vmatpush1.msra.mxu0 %v3823
    %3962 = vmatprep.subr.mxu0 %v3828
    %3963 = vmatpush1.msra.mxu0 %v3827
    %3964 = vmatprep.subr.mxu0 %v3832
    %3965 = vmatpush1.msra.mxu0 %v3831
    %3966 = vmatprep.subr.mxu0 %v3836
    %3967 = vmatpush1.msra.mxu0 %v3835
    %3968 = vmatprep.subr.mxu0 %v3840
    %3969 = vmatpush1.msra.mxu0 %v3839
    %3970 = vmatprep.subr.mxu0 %v3844
    %3971 = vmatpush1.msra.mxu0 %v3843
    %3972 = vmatprep.subr.mxu0 %v3848
    %3973 = vmatpush1.msra.mxu0 %v3847
    %3974 = vmatprep.subr.mxu0 %v3852
    %3975 = vmatpush1.msra.mxu0 %v3851
    %3976 = vmatprep.subr.mxu0 %v3856
    %3977 = vmatpush1.msra.mxu0 %v3855
    %3978 = vmatprep.subr.mxu0 %v3860
    %3979 = vmatpush1.msra.mxu0 %v3859
    %3980 = vmatprep.subr.mxu0 %v3864
    %3981 = vmatpush1.msra.mxu0 %v3863
    %3982 = vmatprep.subr.mxu0 %v3868
    %3983 = vmatpush1.msra.mxu0 %v3867
    %3984 = vmatprep.subr.mxu0 %v3872
    %3985 = vmatpush1.msra.mxu0 %v3871
    %3986 = vmatprep.subr.mxu0 0.0
    %3987 = vmatpush1.msra.mxu0 0.0
    %3988 = vmatprep.subr.mxu0 0.0
    %3989 = vmatpush1.msra.mxu0 0.0
    %3990 = vmatprep.subr.mxu0 0.0
    %3991 = vmatpush1.msra.mxu0 0.0
    %3992 = vmatprep.subr.mxu0 0.0
    %3993 = vmatpush1.msra.mxu0 0.0
    %3994 = vmatprep.subr.mxu0 0.0
    %3995 = vmatpush1.msra.mxu0 0.0
    %3996 = vmatprep.subr.mxu0 0.0
    %3997 = vmatpush1.msra.mxu0 0.0
    %3998 = vmatprep.subr.mxu0 0.0
    %3999 = vmatpush1.msra.mxu0 0.0
    %4000 = vmatprep.subr.mxu0 0.0
    %4001 = vmatpush1.msra.mxu0 0.0
    %4002 = vmatprep.subr.mxu0 0.0
    %4003 = vmatpush1.msra.mxu0 0.0
    %4004 = vmatprep.subr.mxu0 0.0
    %4005 = vmatpush1.msra.mxu0 0.0
    %4006 = vmatprep.subr.mxu0 0.0
    %4007 = vmatpush1.msra.mxu0 0.0
    %4008 = vmatprep.subr.mxu0 0.0
    %4009 = vmatpush1.msra.mxu0 0.0
    %4010 = vmatprep.subr.mxu0 0.0
    %4011 = vmatpush1.msra.mxu0 0.0
    %4012 = vmatprep.subr.mxu0 0.0
    %4013 = vmatpush1.msra.mxu0 0.0
    %4014 = vmatprep.mubr.f32.mxu0 %v3877
    %4015 = vmatmul.mubr.f32.gmra.mrb[0].mxu0 %v3874
    %v4016 = vpop.f32.mrb[0].mxu0
    %v4017 = vadd.f32 0.0, %v4016
    %v4018 = vpop.f32.mrb[0].mxu0
    %v4019 = vadd.f32 0.0, %v4018
    %4020 = vdwg.mxu0
    %v4021 = vadd.f32 %v3796, %v3946
    %v4022 = vadd.f32 %v3797, %v3948
    %v4023 = vadd.f32 %v3798, %v4017
    %v4024 = vadd.f32 %v3799, %v4019
    %s4025 = scalar_lea.vmem [#allocation6], 8064
    %v4026 = vld [vmem:[%s4025] sm:$0xff]
    %v4027 = vld [vmem:[%s4025 + $0x8] sm:$0xff]
    %v4028 = vld [vmem:[%s4025 + $0x10] sm:$0xff]
    %v4029 = vld [vmem:[%s4025 + $0x18] sm:$0xff]
    %v4030 = vld [vmem:[%s4025 + $0x20] sm:$0xff]
    %v4031 = vld [vmem:[%s4025 + $0x28] sm:$0xff]
    %v4032 = vld [vmem:[%s4025 + $0x30] sm:$0xff]
    %v4033 = vld [vmem:[%s4025 + $0x38] sm:$0xff]
    %v4034 = vld [vmem:[%s4025 + $0x40] sm:$0xff]
    %v4035 = vld [vmem:[%s4025 + $0x48] sm:$0xff]
    %v4036 = vld [vmem:[%s4025 + $0x50] sm:$0xff]
    %v4037 = vld [vmem:[%s4025 + $0x58] sm:$0xff]
    %v4038 = vld [vmem:[%s4025 + $0x60] sm:$0xff]
    %v4039 = vld [vmem:[%s4025 + $0x68] sm:$0xff]
    %v4040 = vld [vmem:[%s4025 + $0x70] sm:$0xff]
    %v4041 = vld [vmem:[%s4025 + $0x78] sm:$0xff]
    %v4042 = vld [vmem:[%s4025 + $0x80] sm:$0xff]
    %v4043 = vld [vmem:[%s4025 + $0x88] sm:$0xff]
    %v4044 = vld [vmem:[%s4025 + $0x90] sm:$0xff]
    %v4045 = vld [vmem:[%s4025 + $0x98] sm:$0xff]
    %v4046 = vld [vmem:[%s4025 + $0xa0] sm:$0xff]
    %v4047 = vld [vmem:[%s4025 + $0xa8] sm:$0xff]
    %v4048 = vld [vmem:[%s4025 + $0xb0] sm:$0xff]
    %v4049 = vld [vmem:[%s4025 + $0xb8] sm:$0xff]
    %v4050 = vld [vmem:[%s4025 + $0xc0] sm:$0xff]
    %v4051 = vld [vmem:[%s4025 + $0xc8] sm:$0xff]
    %v4052 = vld [vmem:[%s4025 + $0xd0] sm:$0xff]
    %v4053 = vld [vmem:[%s4025 + $0xd8] sm:$0xff]
    %v4054 = vld [vmem:[%s4025 + $0xe0] sm:$0xff]
    %v4055 = vld [vmem:[%s4025 + $0xe8] sm:$0xff]
    %v4056 = vld [vmem:[%s4025 + $0xf0] sm:$0xff]
    %v4057 = vld [vmem:[%s4025 + $0xf8] sm:$0xff]
    %v4058 = vld [vmem:[%s4025 + $0x100] sm:$0xff]
    %v4059 = vld [vmem:[%s4025 + $0x108] sm:$0xff]
    %v4060 = vld [vmem:[%s4025 + $0x110] sm:$0xff]
    %v4061 = vld [vmem:[%s4025 + $0x118] sm:$0xff]
    %v4062 = vld [vmem:[%s4025 + $0x120] sm:$0xff]
    %v4063 = vld [vmem:[%s4025 + $0x128] sm:$0xff]
    %v4064 = vld [vmem:[%s4025 + $0x130] sm:$0xff]
    %v4065 = vld [vmem:[%s4025 + $0x138] sm:$0xff]
    %v4066 = vld [vmem:[%s4025 + $0x140] sm:$0xff]
    %v4067 = vld [vmem:[%s4025 + $0x148] sm:$0xff]
    %v4068 = vld [vmem:[%s4025 + $0x150] sm:$0xff]
    %v4069 = vld [vmem:[%s4025 + $0x158] sm:$0xff]
    %v4070 = vld [vmem:[%s4025 + $0x160] sm:$0xff]
    %v4071 = vld [vmem:[%s4025 + $0x168] sm:$0xff]
    %v4072 = vld [vmem:[%s4025 + $0x170] sm:$0xff]
    %v4073 = vld [vmem:[%s4025 + $0x178] sm:$0xff]
    %v4074 = vld [vmem:[%s4025 + $0x180] sm:$0xff]
    %v4075 = vld [vmem:[%s4025 + $0x188] sm:$0xff]
    %v4076 = vld [vmem:[%s4025 + $0x190] sm:$0xff]
    %v4077 = vld [vmem:[%s4025 + $0x198] sm:$0xff]
    %v4078 = vld [vmem:[%s4025 + $0x1a0] sm:$0xff]
    %v4079 = vld [vmem:[%s4025 + $0x1a8] sm:$0xff]
    %v4080 = vld [vmem:[%s4025 + $0x1b0] sm:$0xff]
    %v4081 = vld [vmem:[%s4025 + $0x1b8] sm:$0xff]
    %v4082 = vld [vmem:[%s4025 + $0x1c0] sm:$0xff]
    %v4083 = vld [vmem:[%s4025 + $0x1c8] sm:$0xff]
    %v4084 = vld [vmem:[%s4025 + $0x1d0] sm:$0xff]
    %v4085 = vld [vmem:[%s4025 + $0x1d8] sm:$0xff]
    %v4086 = vld [vmem:[%s4025 + $0x1e0] sm:$0xff]
    %v4087 = vld [vmem:[%s4025 + $0x1e8] sm:$0xff]
    %v4088 = vld [vmem:[%s4025 + $0x1f0] sm:$0xff]
    %v4089 = vld [vmem:[%s4025 + $0x1f8] sm:$0xff]
    %v4090 = vld [vmem:[%s4025 + $0x200] sm:$0xff]
    %v4091 = vld [vmem:[%s4025 + $0x208] sm:$0xff]
    %v4092 = vld [vmem:[%s4025 + $0x210] sm:$0xff]
    %v4093 = vld [vmem:[%s4025 + $0x218] sm:$0xff]
    %v4094 = vld [vmem:[%s4025 + $0x220] sm:$0xff]
    %v4095 = vld [vmem:[%s4025 + $0x228] sm:$0xff]
    %v4096 = vld [vmem:[%s4025 + $0x230] sm:$0xff]
    %v4097 = vld [vmem:[%s4025 + $0x238] sm:$0xff]
    %v4098 = vrot.slane %v893, 4
    %v4099 = vrot.slane %v894, 4
    %v4101 = vsel %vm1051, %v4099, 0
    %4103 = vmatprep.subr.mxu0 %v4027
    %4104 = vmatpush1.msra.mxu0 %v4026
    %4105 = vmatprep.subr.mxu0 %v4031
    %4106 = vmatpush1.msra.mxu0 %v4030
    %4107 = vmatprep.subr.mxu0 %v4035
    %4108 = vmatpush1.msra.mxu0 %v4034
    %4109 = vmatprep.subr.mxu0 %v4039
    %4110 = vmatpush1.msra.mxu0 %v4038
    %4111 = vmatprep.subr.mxu0 %v4043
    %4112 = vmatpush1.msra.mxu0 %v4042
    %4113 = vmatprep.subr.mxu0 %v4047
    %4114 = vmatpush1.msra.mxu0 %v4046
    %4115 = vmatprep.subr.mxu0 %v4051
    %4116 = vmatpush1.msra.mxu0 %v4050
    %4117 = vmatprep.subr.mxu0 %v4055
    %4118 = vmatpush1.msra.mxu0 %v4054
    %4119 = vmatprep.subr.mxu0 %v4059
    %4120 = vmatpush1.msra.mxu0 %v4058
    %4121 = vmatprep.subr.mxu0 %v4063
    %4122 = vmatpush1.msra.mxu0 %v4062
    %4123 = vmatprep.subr.mxu0 %v4067
    %4124 = vmatpush1.msra.mxu0 %v4066
    %4125 = vmatprep.subr.mxu0 %v4071
    %4126 = vmatpush1.msra.mxu0 %v4070
    %4127 = vmatprep.subr.mxu0 %v4075
    %4128 = vmatpush1.msra.mxu0 %v4074
    %4129 = vmatprep.subr.mxu0 %v4079
    %4130 = vmatpush1.msra.mxu0 %v4078
    %4131 = vmatprep.subr.mxu0 %v4083
    %4132 = vmatpush1.msra.mxu0 %v4082
    %4133 = vmatprep.subr.mxu0 %v4087
    %4134 = vmatpush1.msra.mxu0 %v4086
    %4135 = vmatprep.subr.mxu0 %v4091
    %4136 = vmatpush1.msra.mxu0 %v4090
    %4137 = vmatprep.subr.mxu0 %v4095
    %4138 = vmatpush1.msra.mxu0 %v4094
    %4139 = vmatprep.subr.mxu0 0.0
    %4140 = vmatpush1.msra.mxu0 0.0
    %4141 = vmatprep.subr.mxu0 0.0
    %4142 = vmatpush1.msra.mxu0 0.0
    %4143 = vmatprep.subr.mxu0 0.0
    %4144 = vmatpush1.msra.mxu0 0.0
    %4145 = vmatprep.subr.mxu0 0.0
    %4146 = vmatpush1.msra.mxu0 0.0
    %4147 = vmatprep.subr.mxu0 0.0
    %4148 = vmatpush1.msra.mxu0 0.0
    %4149 = vmatprep.subr.mxu0 0.0
    %4150 = vmatpush1.msra.mxu0 0.0
    %4151 = vmatprep.subr.mxu0 0.0
    %4152 = vmatpush1.msra.mxu0 0.0
    %4153 = vmatprep.subr.mxu0 0.0
    %4154 = vmatpush1.msra.mxu0 0.0
    %4155 = vmatprep.subr.mxu0 0.0
    %4156 = vmatpush1.msra.mxu0 0.0
    %4157 = vmatprep.subr.mxu0 0.0
    %4158 = vmatpush1.msra.mxu0 0.0
    %4159 = vmatprep.subr.mxu0 0.0
    %4160 = vmatpush1.msra.mxu0 0.0
    %4161 = vmatprep.subr.mxu0 0.0
    %4162 = vmatpush1.msra.mxu0 0.0
    %4163 = vmatprep.subr.mxu0 0.0
    %4164 = vmatpush1.msra.mxu0 0.0
    %4165 = vmatprep.subr.mxu0 0.0
    %4166 = vmatpush1.msra.mxu0 0.0
    %4167 = vmatprep.mubr.f32.mxu0 %v4101
    %4168 = vmatmul.mubr.f32.gmra.mrb[0].mxu0 %v4098
    %v4169 = vpop.f32.mrb[0].mxu0
    %v4170 = vadd.f32 0.0, %v4169
    %v4171 = vpop.f32.mrb[0].mxu0
    %v4172 = vadd.f32 0.0, %v4171
    %4173 = vdwg.mxu0
    %4174 = vmatprep.subr.mxu0 %v4029
    %4175 = vmatpush1.msra.mxu0 %v4028
    %4176 = vmatprep.subr.mxu0 %v4033
    %4177 = vmatpush1.msra.mxu0 %v4032
    %4178 = vmatprep.subr.mxu0 %v4037
    %4179 = vmatpush1.msra.mxu0 %v4036
    %4180 = vmatprep.subr.mxu0 %v4041
    %4181 = vmatpush1.msra.mxu0 %v4040
    %4182 = vmatprep.subr.mxu0 %v4045
    %4183 = vmatpush1.msra.mxu0 %v4044
    %4184 = vmatprep.subr.mxu0 %v4049
    %4185 = vmatpush1.msra.mxu0 %v4048
    %4186 = vmatprep.subr.mxu0 %v4053
    %4187 = vmatpush1.msra.mxu0 %v4052
    %4188 = vmatprep.subr.mxu0 %v4057
    %4189 = vmatpush1.msra.mxu0 %v4056
    %4190 = vmatprep.subr.mxu0 %v4061
    %4191 = vmatpush1.msra.mxu0 %v4060
    %4192 = vmatprep.subr.mxu0 %v4065
    %4193 = vmatpush1.msra.mxu0 %v4064
    %4194 = vmatprep.subr.mxu0 %v4069
    %4195 = vmatpush1.msra.mxu0 %v4068
    %4196 = vmatprep.subr.mxu0 %v4073
    %4197 = vmatpush1.msra.mxu0 %v4072
    %4198 = vmatprep.subr.mxu0 %v4077
    %4199 = vmatpush1.msra.mxu0 %v4076
    %4200 = vmatprep.subr.mxu0 %v4081
    %4201 = vmatpush1.msra.mxu0 %v4080
    %4202 = vmatprep.subr.mxu0 %v4085
    %4203 = vmatpush1.msra.mxu0 %v4084
    %4204 = vmatprep.subr.mxu0 %v4089
    %4205 = vmatpush1.msra.mxu0 %v4088
    %4206 = vmatprep.subr.mxu0 %v4093
    %4207 = vmatpush1.msra.mxu0 %v4092
    %4208 = vmatprep.subr.mxu0 %v4097
    %4209 = vmatpush1.msra.mxu0 %v4096
    %4210 = vmatprep.subr.mxu0 0.0
    %4211 = vmatpush1.msra.mxu0 0.0
    %4212 = vmatprep.subr.mxu0 0.0
    %4213 = vmatpush1.msra.mxu0 0.0
    %4214 = vmatprep.subr.mxu0 0.0
    %4215 = vmatpush1.msra.mxu0 0.0
    %4216 = vmatprep.subr.mxu0 0.0
    %4217 = vmatpush1.msra.mxu0 0.0
    %4218 = vmatprep.subr.mxu0 0.0
    %4219 = vmatpush1.msra.mxu0 0.0
    %4220 = vmatprep.subr.mxu0 0.0
    %4221 = vmatpush1.msra.mxu0 0.0
    %4222 = vmatprep.subr.mxu0 0.0
    %4223 = vmatpush1.msra.mxu0 0.0
    %4224 = vmatprep.subr.mxu0 0.0
    %4225 = vmatpush1.msra.mxu0 0.0
    %4226 = vmatprep.subr.mxu0 0.0
    %4227 = vmatpush1.msra.mxu0 0.0
    %4228 = vmatprep.subr.mxu0 0.0
    %4229 = vmatpush1.msra.mxu0 0.0
    %4230 = vmatprep.subr.mxu0 0.0
    %4231 = vmatpush1.msra.mxu0 0.0
    %4232 = vmatprep.subr.mxu0 0.0
    %4233 = vmatpush1.msra.mxu0 0.0
    %4234 = vmatprep.subr.mxu0 0.0
    %4235 = vmatpush1.msra.mxu0 0.0
    %4236 = vmatprep.subr.mxu0 0.0
    %4237 = vmatpush1.msra.mxu0 0.0
    %4238 = vmatprep.mubr.f32.mxu0 %v4101
    %4239 = vmatmul.mubr.f32.gmra.mrb[0].mxu0 %v4098
    %v4240 = vpop.f32.mrb[0].mxu0
    %v4241 = vadd.f32 0.0, %v4240
    %v4242 = vpop.f32.mrb[0].mxu0
    %v4243 = vadd.f32 0.0, %v4242
    %4244 = vdwg.mxu0
    %v4245 = vadd.f32 %v4021, %v4170
    %v4246 = vadd.f32 %v4022, %v4172
    %v4247 = vadd.f32 %v4023, %v4241
    %v4248 = vadd.f32 %v4024, %v4243
    %s4249 = scalar_lea.vmem [#allocation6], 8640
    %v4250 = vld [vmem:[%s4249] sm:$0xff]
    %v4251 = vld [vmem:[%s4249 + $0x8] sm:$0xff]
    %v4252 = vld [vmem:[%s4249 + $0x10] sm:$0xff]
    %v4253 = vld [vmem:[%s4249 + $0x18] sm:$0xff]
    %v4254 = vld [vmem:[%s4249 + $0x20] sm:$0xff]
    %v4255 = vld [vmem:[%s4249 + $0x28] sm:$0xff]
    %v4256 = vld [vmem:[%s4249 + $0x30] sm:$0xff]
    %v4257 = vld [vmem:[%s4249 + $0x38] sm:$0xff]
    %v4258 = vld [vmem:[%s4249 + $0x40] sm:$0xff]
    %v4259 = vld [vmem:[%s4249 + $0x48] sm:$0xff]
    %v4260 = vld [vmem:[%s4249 + $0x50] sm:$0xff]
    %v4261 = vld [vmem:[%s4249 + $0x58] sm:$0xff]
    %v4262 = vld [vmem:[%s4249 + $0x60] sm:$0xff]
    %v4263 = vld [vmem:[%s4249 + $0x68] sm:$0xff]
    %v4264 = vld [vmem:[%s4249 + $0x70] sm:$0xff]
    %v4265 = vld [vmem:[%s4249 + $0x78] sm:$0xff]
    %v4266 = vld [vmem:[%s4249 + $0x80] sm:$0xff]
    %v4267 = vld [vmem:[%s4249 + $0x88] sm:$0xff]
    %v4268 = vld [vmem:[%s4249 + $0x90] sm:$0xff]
    %v4269 = vld [vmem:[%s4249 + $0x98] sm:$0xff]
    %v4270 = vld [vmem:[%s4249 + $0xa0] sm:$0xff]
    %v4271 = vld [vmem:[%s4249 + $0xa8] sm:$0xff]
    %v4272 = vld [vmem:[%s4249 + $0xb0] sm:$0xff]
    %v4273 = vld [vmem:[%s4249 + $0xb8] sm:$0xff]
    %v4274 = vld [vmem:[%s4249 + $0xc0] sm:$0xff]
    %v4275 = vld [vmem:[%s4249 + $0xc8] sm:$0xff]
    %v4276 = vld [vmem:[%s4249 + $0xd0] sm:$0xff]
    %v4277 = vld [vmem:[%s4249 + $0xd8] sm:$0xff]
    %v4278 = vld [vmem:[%s4249 + $0xe0] sm:$0xff]
    %v4279 = vld [vmem:[%s4249 + $0xe8] sm:$0xff]
    %v4280 = vld [vmem:[%s4249 + $0xf0] sm:$0xff]
    %v4281 = vld [vmem:[%s4249 + $0xf8] sm:$0xff]
    %v4282 = vld [vmem:[%s4249 + $0x100] sm:$0xff]
    %v4283 = vld [vmem:[%s4249 + $0x108] sm:$0xff]
    %v4284 = vld [vmem:[%s4249 + $0x110] sm:$0xff]
    %v4285 = vld [vmem:[%s4249 + $0x118] sm:$0xff]
    %v4286 = vld [vmem:[%s4249 + $0x120] sm:$0xff]
    %v4287 = vld [vmem:[%s4249 + $0x128] sm:$0xff]
    %v4288 = vld [vmem:[%s4249 + $0x130] sm:$0xff]
    %v4289 = vld [vmem:[%s4249 + $0x138] sm:$0xff]
    %v4290 = vld [vmem:[%s4249 + $0x140] sm:$0xff]
    %v4291 = vld [vmem:[%s4249 + $0x148] sm:$0xff]
    %v4292 = vld [vmem:[%s4249 + $0x150] sm:$0xff]
    %v4293 = vld [vmem:[%s4249 + $0x158] sm:$0xff]
    %v4294 = vld [vmem:[%s4249 + $0x160] sm:$0xff]
    %v4295 = vld [vmem:[%s4249 + $0x168] sm:$0xff]
    %v4296 = vld [vmem:[%s4249 + $0x170] sm:$0xff]
    %v4297 = vld [vmem:[%s4249 + $0x178] sm:$0xff]
    %v4298 = vld [vmem:[%s4249 + $0x180] sm:$0xff]
    %v4299 = vld [vmem:[%s4249 + $0x188] sm:$0xff]
    %v4300 = vld [vmem:[%s4249 + $0x190] sm:$0xff]
    %v4301 = vld [vmem:[%s4249 + $0x198] sm:$0xff]
    %v4302 = vld [vmem:[%s4249 + $0x1a0] sm:$0xff]
    %v4303 = vld [vmem:[%s4249 + $0x1a8] sm:$0xff]
    %v4304 = vld [vmem:[%s4249 + $0x1b0] sm:$0xff]
    %v4305 = vld [vmem:[%s4249 + $0x1b8] sm:$0xff]
    %v4306 = vld [vmem:[%s4249 + $0x1c0] sm:$0xff]
    %v4307 = vld [vmem:[%s4249 + $0x1c8] sm:$0xff]
    %v4308 = vld [vmem:[%s4249 + $0x1d0] sm:$0xff]
    %v4309 = vld [vmem:[%s4249 + $0x1d8] sm:$0xff]
    %v4310 = vld [vmem:[%s4249 + $0x1e0] sm:$0xff]
    %v4311 = vld [vmem:[%s4249 + $0x1e8] sm:$0xff]
    %v4312 = vld [vmem:[%s4249 + $0x1f0] sm:$0xff]
    %v4313 = vld [vmem:[%s4249 + $0x1f8] sm:$0xff]
    %v4314 = vld [vmem:[%s4249 + $0x200] sm:$0xff]
    %v4315 = vld [vmem:[%s4249 + $0x208] sm:$0xff]
    %v4316 = vld [vmem:[%s4249 + $0x210] sm:$0xff]
    %v4317 = vld [vmem:[%s4249 + $0x218] sm:$0xff]
    %v4318 = vld [vmem:[%s4249 + $0x220] sm:$0xff]
    %v4319 = vld [vmem:[%s4249 + $0x228] sm:$0xff]
    %v4320 = vld [vmem:[%s4249 + $0x230] sm:$0xff]
    %v4321 = vld [vmem:[%s4249 + $0x238] sm:$0xff]
    %v4322 = vrot.slane %v893, 6
    %v4323 = vrot.slane %v894, 6
    %v4325 = vsel %vm1051, %v4323, 0
    %4327 = vmatprep.subr.mxu0 %v4251
    %4328 = vmatpush1.msra.mxu0 %v4250
    %4329 = vmatprep.subr.mxu0 %v4255
    %4330 = vmatpush1.msra.mxu0 %v4254
    %4331 = vmatprep.subr.mxu0 %v4259
    %4332 = vmatpush1.msra.mxu0 %v4258
    %4333 = vmatprep.subr.mxu0 %v4263
    %4334 = vmatpush1.msra.mxu0 %v4262
    %4335 = vmatprep.subr.mxu0 %v4267
    %4336 = vmatpush1.msra.mxu0 %v4266
    %4337 = vmatprep.subr.mxu0 %v4271
    %4338 = vmatpush1.msra.mxu0 %v4270
    %4339 = vmatprep.subr.mxu0 %v4275
    %4340 = vmatpush1.msra.mxu0 %v4274
    %4341 = vmatprep.subr.mxu0 %v4279
    %4342 = vmatpush1.msra.mxu0 %v4278
    %4343 = vmatprep.subr.mxu0 %v4283
    %4344 = vmatpush1.msra.mxu0 %v4282
    %4345 = vmatprep.subr.mxu0 %v4287
    %4346 = vmatpush1.msra.mxu0 %v4286
    %4347 = vmatprep.subr.mxu0 %v4291
    %4348 = vmatpush1.msra.mxu0 %v4290
    %4349 = vmatprep.subr.mxu0 %v4295
    %4350 = vmatpush1.msra.mxu0 %v4294
    %4351 = vmatprep.subr.mxu0 %v4299
    %4352 = vmatpush1.msra.mxu0 %v4298
    %4353 = vmatprep.subr.mxu0 %v4303
    %4354 = vmatpush1.msra.mxu0 %v4302
    %4355 = vmatprep.subr.mxu0 %v4307
    %4356 = vmatpush1.msra.mxu0 %v4306
    %4357 = vmatprep.subr.mxu0 %v4311
    %4358 = vmatpush1.msra.mxu0 %v4310
    %4359 = vmatprep.subr.mxu0 %v4315
    %4360 = vmatpush1.msra.mxu0 %v4314
    %4361 = vmatprep.subr.mxu0 %v4319
    %4362 = vmatpush1.msra.mxu0 %v4318
    %4363 = vmatprep.subr.mxu0 0.0
    %4364 = vmatpush1.msra.mxu0 0.0
    %4365 = vmatprep.subr.mxu0 0.0
    %4366 = vmatpush1.msra.mxu0 0.0
    %4367 = vmatprep.subr.mxu0 0.0
    %4368 = vmatpush1.msra.mxu0 0.0
    %4369 = vmatprep.subr.mxu0 0.0
    %4370 = vmatpush1.msra.mxu0 0.0
    %4371 = vmatprep.subr.mxu0 0.0
    %4372 = vmatpush1.msra.mxu0 0.0
    %4373 = vmatprep.subr.mxu0 0.0
    %4374 = vmatpush1.msra.mxu0 0.0
    %4375 = vmatprep.subr.mxu0 0.0
    %4376 = vmatpush1.msra.mxu0 0.0
    %4377 = vmatprep.subr.mxu0 0.0
    %4378 = vmatpush1.msra.mxu0 0.0
    %4379 = vmatprep.subr.mxu0 0.0
    %4380 = vmatpush1.msra.mxu0 0.0
    %4381 = vmatprep.subr.mxu0 0.0
    %4382 = vmatpush1.msra.mxu0 0.0
    %4383 = vmatprep.subr.mxu0 0.0
    %4384 = vmatpush1.msra.mxu0 0.0
    %4385 = vmatprep.subr.mxu0 0.0
    %4386 = vmatpush1.msra.mxu0 0.0
    %4387 = vmatprep.subr.mxu0 0.0
    %4388 = vmatpush1.msra.mxu0 0.0
    %4389 = vmatprep.subr.mxu0 0.0
    %4390 = vmatpush1.msra.mxu0 0.0
    %4391 = vmatprep.mubr.f32.mxu0 %v4325
    %4392 = vmatmul.mubr.f32.gmra.mrb[0].mxu0 %v4322
    %v4393 = vpop.f32.mrb[0].mxu0
    %v4394 = vadd.f32 0.0, %v4393
    %v4395 = vpop.f32.mrb[0].mxu0
    %v4396 = vadd.f32 0.0, %v4395
    %4397 = vdwg.mxu0
    %4398 = vmatprep.subr.mxu0 %v4253
    %4399 = vmatpush1.msra.mxu0 %v4252
    %4400 = vmatprep.subr.mxu0 %v4257
    %4401 = vmatpush1.msra.mxu0 %v4256
    %4402 = vmatprep.subr.mxu0 %v4261
    %4403 = vmatpush1.msra.mxu0 %v4260
    %4404 = vmatprep.subr.mxu0 %v4265
    %4405 = vmatpush1.msra.mxu0 %v4264
    %4406 = vmatprep.subr.mxu0 %v4269
    %4407 = vmatpush1.msra.mxu0 %v4268
    %4408 = vmatprep.subr.mxu0 %v4273
    %4409 = vmatpush1.msra.mxu0 %v4272
    %4410 = vmatprep.subr.mxu0 %v4277
    %4411 = vmatpush1.msra.mxu0 %v4276
    %4412 = vmatprep.subr.mxu0 %v4281
    %4413 = vmatpush1.msra.mxu0 %v4280
    %4414 = vmatprep.subr.mxu0 %v4285
    %4415 = vmatpush1.msra.mxu0 %v4284
    %4416 = vmatprep.subr.mxu0 %v4289
    %4417 = vmatpush1.msra.mxu0 %v4288
    %4418 = vmatprep.subr.mxu0 %v4293
    %4419 = vmatpush1.msra.mxu0 %v4292
    %4420 = vmatprep.subr.mxu0 %v4297
    %4421 = vmatpush1.msra.mxu0 %v4296
    %4422 = vmatprep.subr.mxu0 %v4301
    %4423 = vmatpush1.msra.mxu0 %v4300
    %4424 = vmatprep.subr.mxu0 %v4305
    %4425 = vmatpush1.msra.mxu0 %v4304
    %4426 = vmatprep.subr.mxu0 %v4309
    %4427 = vmatpush1.msra.mxu0 %v4308
    %4428 = vmatprep.subr.mxu0 %v4313
    %4429 = vmatpush1.msra.mxu0 %v4312
    %4430 = vmatprep.subr.mxu0 %v4317
    %4431 = vmatpush1.msra.mxu0 %v4316
    %4432 = vmatprep.subr.mxu0 %v4321
    %4433 = vmatpush1.msra.mxu0 %v4320
    %4434 = vmatprep.subr.mxu0 0.0
    %4435 = vmatpush1.msra.mxu0 0.0
    %4436 = vmatprep.subr.mxu0 0.0
    %4437 = vmatpush1.msra.mxu0 0.0
    %4438 = vmatprep.subr.mxu0 0.0
    %4439 = vmatpush1.msra.mxu0 0.0
    %4440 = vmatprep.subr.mxu0 0.0
    %4441 = vmatpush1.msra.mxu0 0.0
    %4442 = vmatprep.subr.mxu0 0.0
    %4443 = vmatpush1.msra.mxu0 0.0
    %4444 = vmatprep.subr.mxu0 0.0
    %4445 = vmatpush1.msra.mxu0 0.0
    %4446 = vmatprep.subr.mxu0 0.0
    %4447 = vmatpush1.msra.mxu0 0.0
    %4448 = vmatprep.subr.mxu0 0.0
    %4449 = vmatpush1.msra.mxu0 0.0
    %4450 = vmatprep.subr.mxu0 0.0
    %4451 = vmatpush1.msra.mxu0 0.0
    %4452 = vmatprep.subr.mxu0 0.0
    %4453 = vmatpush1.msra.mxu0 0.0
    %4454 = vmatprep.subr.mxu0 0.0
    %4455 = vmatpush1.msra.mxu0 0.0
    %4456 = vmatprep.subr.mxu0 0.0
    %4457 = vmatpush1.msra.mxu0 0.0
    %4458 = vmatprep.subr.mxu0 0.0
    %4459 = vmatpush1.msra.mxu0 0.0
    %4460 = vmatprep.subr.mxu0 0.0
    %4461 = vmatpush1.msra.mxu0 0.0
    %4462 = vmatprep.mubr.f32.mxu0 %v4325
    %4463 = vmatmul.mubr.f32.gmra.mrb[0].mxu0 %v4322
    %v4464 = vpop.f32.mrb[0].mxu0
    %v4465 = vadd.f32 0.0, %v4464
    %v4466 = vpop.f32.mrb[0].mxu0
    %v4467 = vadd.f32 0.0, %v4466
    %4468 = vdwg.mxu0
    %v4469 = vadd.f32 %v4245, %v4394
    %v4470 = vadd.f32 %v4246, %v4396
    %v4471 = vadd.f32 %v4247, %v4465
    %v4472 = vadd.f32 %v4248, %v4467
    %s4473 = scalar_lea.vmem [#allocation6], 9216
    %v4474 = vld [vmem:[%s4473] sm:$0xff]
    %v4475 = vld [vmem:[%s4473 + $0x8] sm:$0xff]
    %v4476 = vld [vmem:[%s4473 + $0x10] sm:$0xff]
    %v4477 = vld [vmem:[%s4473 + $0x18] sm:$0xff]
    %v4478 = vld [vmem:[%s4473 + $0x20] sm:$0xff]
    %v4479 = vld [vmem:[%s4473 + $0x28] sm:$0xff]
    %v4480 = vld [vmem:[%s4473 + $0x30] sm:$0xff]
    %v4481 = vld [vmem:[%s4473 + $0x38] sm:$0xff]
    %v4482 = vld [vmem:[%s4473 + $0x40] sm:$0xff]
    %v4483 = vld [vmem:[%s4473 + $0x48] sm:$0xff]
    %v4484 = vld [vmem:[%s4473 + $0x50] sm:$0xff]
    %v4485 = vld [vmem:[%s4473 + $0x58] sm:$0xff]
    %v4486 = vld [vmem:[%s4473 + $0x60] sm:$0xff]
    %v4487 = vld [vmem:[%s4473 + $0x68] sm:$0xff]
    %v4488 = vld [vmem:[%s4473 + $0x70] sm:$0xff]
    %v4489 = vld [vmem:[%s4473 + $0x78] sm:$0xff]
    %v4490 = vld [vmem:[%s4473 + $0x80] sm:$0xff]
    %v4491 = vld [vmem:[%s4473 + $0x88] sm:$0xff]
    %v4492 = vld [vmem:[%s4473 + $0x90] sm:$0xff]
    %v4493 = vld [vmem:[%s4473 + $0x98] sm:$0xff]
    %v4494 = vld [vmem:[%s4473 + $0xa0] sm:$0xff]
    %v4495 = vld [vmem:[%s4473 + $0xa8] sm:$0xff]
    %v4496 = vld [vmem:[%s4473 + $0xb0] sm:$0xff]
    %v4497 = vld [vmem:[%s4473 + $0xb8] sm:$0xff]
    %v4498 = vld [vmem:[%s4473 + $0xc0] sm:$0xff]
    %v4499 = vld [vmem:[%s4473 + $0xc8] sm:$0xff]
    %v4500 = vld [vmem:[%s4473 + $0xd0] sm:$0xff]
    %v4501 = vld [vmem:[%s4473 + $0xd8] sm:$0xff]
    %v4502 = vld [vmem:[%s4473 + $0xe0] sm:$0xff]
    %v4503 = vld [vmem:[%s4473 + $0xe8] sm:$0xff]
    %v4504 = vld [vmem:[%s4473 + $0xf0] sm:$0xff]
    %v4505 = vld [vmem:[%s4473 + $0xf8] sm:$0xff]
    %v4506 = vld [vmem:[%s4473 + $0x100] sm:$0xff]
    %v4507 = vld [vmem:[%s4473 + $0x108] sm:$0xff]
    %v4508 = vld [vmem:[%s4473 + $0x110] sm:$0xff]
    %v4509 = vld [vmem:[%s4473 + $0x118] sm:$0xff]
    %v4510 = vld [vmem:[%s4473 + $0x120] sm:$0xff]
    %v4511 = vld [vmem:[%s4473 + $0x128] sm:$0xff]
    %v4512 = vld [vmem:[%s4473 + $0x130] sm:$0xff]
    %v4513 = vld [vmem:[%s4473 + $0x138] sm:$0xff]
    %v4514 = vld [vmem:[%s4473 + $0x140] sm:$0xff]
    %v4515 = vld [vmem:[%s4473 + $0x148] sm:$0xff]
    %v4516 = vld [vmem:[%s4473 + $0x150] sm:$0xff]
    %v4517 = vld [vmem:[%s4473 + $0x158] sm:$0xff]
    %v4518 = vld [vmem:[%s4473 + $0x160] sm:$0xff]
    %v4519 = vld [vmem:[%s4473 + $0x168] sm:$0xff]
    %v4520 = vld [vmem:[%s4473 + $0x170] sm:$0xff]
    %v4521 = vld [vmem:[%s4473 + $0x178] sm:$0xff]
    %v4522 = vld [vmem:[%s4473 + $0x180] sm:$0xff]
    %v4523 = vld [vmem:[%s4473 + $0x188] sm:$0xff]
    %v4524 = vld [vmem:[%s4473 + $0x190] sm:$0xff]
    %v4525 = vld [vmem:[%s4473 + $0x198] sm:$0xff]
    %v4526 = vld [vmem:[%s4473 + $0x1a0] sm:$0xff]
    %v4527 = vld [vmem:[%s4473 + $0x1a8] sm:$0xff]
    %v4528 = vld [vmem:[%s4473 + $0x1b0] sm:$0xff]
    %v4529 = vld [vmem:[%s4473 + $0x1b8] sm:$0xff]
    %v4530 = vld [vmem:[%s4473 + $0x1c0] sm:$0xff]
    %v4531 = vld [vmem:[%s4473 + $0x1c8] sm:$0xff]
    %v4532 = vld [vmem:[%s4473 + $0x1d0] sm:$0xff]
    %v4533 = vld [vmem:[%s4473 + $0x1d8] sm:$0xff]
    %v4534 = vld [vmem:[%s4473 + $0x1e0] sm:$0xff]
    %v4535 = vld [vmem:[%s4473 + $0x1e8] sm:$0xff]
    %v4536 = vld [vmem:[%s4473 + $0x1f0] sm:$0xff]
    %v4537 = vld [vmem:[%s4473 + $0x1f8] sm:$0xff]
    %v4538 = vld [vmem:[%s4473 + $0x200] sm:$0xff]
    %v4539 = vld [vmem:[%s4473 + $0x208] sm:$0xff]
    %v4540 = vld [vmem:[%s4473 + $0x210] sm:$0xff]
    %v4541 = vld [vmem:[%s4473 + $0x218] sm:$0xff]
    %v4542 = vld [vmem:[%s4473 + $0x220] sm:$0xff]
    %v4543 = vld [vmem:[%s4473 + $0x228] sm:$0xff]
    %v4544 = vld [vmem:[%s4473 + $0x230] sm:$0xff]
    %v4545 = vld [vmem:[%s4473 + $0x238] sm:$0xff]
    %v4547 = vsel %vm1051, %v896, 0
    %4549 = vmatprep.subr.mxu0 %v4475
    %4550 = vmatpush1.msra.mxu0 %v4474
    %4551 = vmatprep.subr.mxu0 %v4479
    %4552 = vmatpush1.msra.mxu0 %v4478
    %4553 = vmatprep.subr.mxu0 %v4483
    %4554 = vmatpush1.msra.mxu0 %v4482
    %4555 = vmatprep.subr.mxu0 %v4487
    %4556 = vmatpush1.msra.mxu0 %v4486
    %4557 = vmatprep.subr.mxu0 %v4491
    %4558 = vmatpush1.msra.mxu0 %v4490
    %4559 = vmatprep.subr.mxu0 %v4495
    %4560 = vmatpush1.msra.mxu0 %v4494
    %4561 = vmatprep.subr.mxu0 %v4499
    %4562 = vmatpush1.msra.mxu0 %v4498
    %4563 = vmatprep.subr.mxu0 %v4503
    %4564 = vmatpush1.msra.mxu0 %v4502
    %4565 = vmatprep.subr.mxu0 %v4507
    %4566 = vmatpush1.msra.mxu0 %v4506
    %4567 = vmatprep.subr.mxu0 %v4511
    %4568 = vmatpush1.msra.mxu0 %v4510
    %4569 = vmatprep.subr.mxu0 %v4515
    %4570 = vmatpush1.msra.mxu0 %v4514
    %4571 = vmatprep.subr.mxu0 %v4519
    %4572 = vmatpush1.msra.mxu0 %v4518
    %4573 = vmatprep.subr.mxu0 %v4523
    %4574 = vmatpush1.msra.mxu0 %v4522
    %4575 = vmatprep.subr.mxu0 %v4527
    %4576 = vmatpush1.msra.mxu0 %v4526
    %4577 = vmatprep.subr.mxu0 %v4531
    %4578 = vmatpush1.msra.mxu0 %v4530
    %4579 = vmatprep.subr.mxu0 %v4535
    %4580 = vmatpush1.msra.mxu0 %v4534
    %4581 = vmatprep.subr.mxu0 %v4539
    %4582 = vmatpush1.msra.mxu0 %v4538
    %4583 = vmatprep.subr.mxu0 %v4543
    %4584 = vmatpush1.msra.mxu0 %v4542
    %4585 = vmatprep.subr.mxu0 0.0
    %4586 = vmatpush1.msra.mxu0 0.0
    %4587 = vmatprep.subr.mxu0 0.0
    %4588 = vmatpush1.msra.mxu0 0.0
    %4589 = vmatprep.subr.mxu0 0.0
    %4590 = vmatpush1.msra.mxu0 0.0
    %4591 = vmatprep.subr.mxu0 0.0
    %4592 = vmatpush1.msra.mxu0 0.0
    %4593 = vmatprep.subr.mxu0 0.0
    %4594 = vmatpush1.msra.mxu0 0.0
    %4595 = vmatprep.subr.mxu0 0.0
    %4596 = vmatpush1.msra.mxu0 0.0
    %4597 = vmatprep.subr.mxu0 0.0
    %4598 = vmatpush1.msra.mxu0 0.0
    %4599 = vmatprep.subr.mxu0 0.0
    %4600 = vmatpush1.msra.mxu0 0.0
    %4601 = vmatprep.subr.mxu0 0.0
    %4602 = vmatpush1.msra.mxu0 0.0
    %4603 = vmatprep.subr.mxu0 0.0
    %4604 = vmatpush1.msra.mxu0 0.0
    %4605 = vmatprep.subr.mxu0 0.0
    %4606 = vmatpush1.msra.mxu0 0.0
    %4607 = vmatprep.subr.mxu0 0.0
    %4608 = vmatpush1.msra.mxu0 0.0
    %4609 = vmatprep.subr.mxu0 0.0
    %4610 = vmatpush1.msra.mxu0 0.0
    %4611 = vmatprep.subr.mxu0 0.0
    %4612 = vmatpush1.msra.mxu0 0.0
    %4613 = vmatprep.mubr.f32.mxu0 %v4547
    %4614 = vmatmul.mubr.f32.gmra.mrb[0].mxu0 %v895
    %v4615 = vpop.f32.mrb[0].mxu0
    %v4616 = vadd.f32 0.0, %v4615
    %v4617 = vpop.f32.mrb[0].mxu0
    %v4618 = vadd.f32 0.0, %v4617
    %4619 = vdwg.mxu0
    %4620 = vmatprep.subr.mxu0 %v4477
    %4621 = vmatpush1.msra.mxu0 %v4476
    %4622 = vmatprep.subr.mxu0 %v4481
    %4623 = vmatpush1.msra.mxu0 %v4480
    %4624 = vmatprep.subr.mxu0 %v4485
    %4625 = vmatpush1.msra.mxu0 %v4484
    %4626 = vmatprep.subr.mxu0 %v4489
    %4627 = vmatpush1.msra.mxu0 %v4488
    %4628 = vmatprep.subr.mxu0 %v4493
    %4629 = vmatpush1.msra.mxu0 %v4492
    %4630 = vmatprep.subr.mxu0 %v4497
    %4631 = vmatpush1.msra.mxu0 %v4496
    %4632 = vmatprep.subr.mxu0 %v4501
    %4633 = vmatpush1.msra.mxu0 %v4500
    %4634 = vmatprep.subr.mxu0 %v4505
    %4635 = vmatpush1.msra.mxu0 %v4504
    %4636 = vmatprep.subr.mxu0 %v4509
    %4637 = vmatpush1.msra.mxu0 %v4508
    %4638 = vmatprep.subr.mxu0 %v4513
    %4639 = vmatpush1.msra.mxu0 %v4512
    %4640 = vmatprep.subr.mxu0 %v4517
    %4641 = vmatpush1.msra.mxu0 %v4516
    %4642 = vmatprep.subr.mxu0 %v4521
    %4643 = vmatpush1.msra.mxu0 %v4520
    %4644 = vmatprep.subr.mxu0 %v4525
    %4645 = vmatpush1.msra.mxu0 %v4524
    %4646 = vmatprep.subr.mxu0 %v4529
    %4647 = vmatpush1.msra.mxu0 %v4528
    %4648 = vmatprep.subr.mxu0 %v4533
    %4649 = vmatpush1.msra.mxu0 %v4532
    %4650 = vmatprep.subr.mxu0 %v4537
    %4651 = vmatpush1.msra.mxu0 %v4536
    %4652 = vmatprep.subr.mxu0 %v4541
    %4653 = vmatpush1.msra.mxu0 %v4540
    %4654 = vmatprep.subr.mxu0 %v4545
    %4655 = vmatpush1.msra.mxu0 %v4544
    %4656 = vmatprep.subr.mxu0 0.0
    %4657 = vmatpush1.msra.mxu0 0.0
    %4658 = vmatprep.subr.mxu0 0.0
    %4659 = vmatpush1.msra.mxu0 0.0
    %4660 = vmatprep.subr.mxu0 0.0
    %4661 = vmatpush1.msra.mxu0 0.0
    %4662 = vmatprep.subr.mxu0 0.0
    %4663 = vmatpush1.msra.mxu0 0.0
    %4664 = vmatprep.subr.mxu0 0.0
    %4665 = vmatpush1.msra.mxu0 0.0
    %4666 = vmatprep.subr.mxu0 0.0
    %4667 = vmatpush1.msra.mxu0 0.0
    %4668 = vmatprep.subr.mxu0 0.0
    %4669 = vmatpush1.msra.mxu0 0.0
    %4670 = vmatprep.subr.mxu0 0.0
    %4671 = vmatpush1.msra.mxu0 0.0
    %4672 = vmatprep.subr.mxu0 0.0
    %4673 = vmatpush1.msra.mxu0 0.0
    %4674 = vmatprep.subr.mxu0 0.0
    %4675 = vmatpush1.msra.mxu0 0.0
    %4676 = vmatprep.subr.mxu0 0.0
    %4677 = vmatpush1.msra.mxu0 0.0
    %4678 = vmatprep.subr.mxu0 0.0
    %4679 = vmatpush1.msra.mxu0 0.0
    %4680 = vmatprep.subr.mxu0 0.0
    %4681 = vmatpush1.msra.mxu0 0.0
    %4682 = vmatprep.subr.mxu0 0.0
    %4683 = vmatpush1.msra.mxu0 0.0
    %4684 = vmatprep.mubr.f32.mxu0 %v4547
    %4685 = vmatmul.mubr.f32.gmra.mrb[0].mxu0 %v895
    %v4686 = vpop.f32.mrb[0].mxu0
    %v4687 = vadd.f32 0.0, %v4686
    %v4688 = vpop.f32.mrb[0].mxu0
    %v4689 = vadd.f32 0.0, %v4688
    %4690 = vdwg.mxu0
    %v4691 = vadd.f32 %v4469, %v4616
    %v4692 = vadd.f32 %v4470, %v4618
    %v4693 = vadd.f32 %v4471, %v4687
    %v4694 = vadd.f32 %v4472, %v4689
    %s4695 = scalar_lea.vmem [#allocation6], 9792
    %v4696 = vld [vmem:[%s4695] sm:$0xff]
    %v4697 = vld [vmem:[%s4695 + $0x8] sm:$0xff]
    %v4698 = vld [vmem:[%s4695 + $0x10] sm:$0xff]
    %v4699 = vld [vmem:[%s4695 + $0x18] sm:$0xff]
    %v4700 = vld [vmem:[%s4695 + $0x20] sm:$0xff]
    %v4701 = vld [vmem:[%s4695 + $0x28] sm:$0xff]
    %v4702 = vld [vmem:[%s4695 + $0x30] sm:$0xff]
    %v4703 = vld [vmem:[%s4695 + $0x38] sm:$0xff]
    %v4704 = vld [vmem:[%s4695 + $0x40] sm:$0xff]
    %v4705 = vld [vmem:[%s4695 + $0x48] sm:$0xff]
    %v4706 = vld [vmem:[%s4695 + $0x50] sm:$0xff]
    %v4707 = vld [vmem:[%s4695 + $0x58] sm:$0xff]
    %v4708 = vld [vmem:[%s4695 + $0x60] sm:$0xff]
    %v4709 = vld [vmem:[%s4695 + $0x68] sm:$0xff]
    %v4710 = vld [vmem:[%s4695 + $0x70] sm:$0xff]
    %v4711 = vld [vmem:[%s4695 + $0x78] sm:$0xff]
    %v4712 = vld [vmem:[%s4695 + $0x80] sm:$0xff]
    %v4713 = vld [vmem:[%s4695 + $0x88] sm:$0xff]
    %v4714 = vld [vmem:[%s4695 + $0x90] sm:$0xff]
    %v4715 = vld [vmem:[%s4695 + $0x98] sm:$0xff]
    %v4716 = vld [vmem:[%s4695 + $0xa0] sm:$0xff]
    %v4717 = vld [vmem:[%s4695 + $0xa8] sm:$0xff]
    %v4718 = vld [vmem:[%s4695 + $0xb0] sm:$0xff]
    %v4719 = vld [vmem:[%s4695 + $0xb8] sm:$0xff]
    %v4720 = vld [vmem:[%s4695 + $0xc0] sm:$0xff]
    %v4721 = vld [vmem:[%s4695 + $0xc8] sm:$0xff]
    %v4722 = vld [vmem:[%s4695 + $0xd0] sm:$0xff]
    %v4723 = vld [vmem:[%s4695 + $0xd8] sm:$0xff]
    %v4724 = vld [vmem:[%s4695 + $0xe0] sm:$0xff]
    %v4725 = vld [vmem:[%s4695 + $0xe8] sm:$0xff]
    %v4726 = vld [vmem:[%s4695 + $0xf0] sm:$0xff]
    %v4727 = vld [vmem:[%s4695 + $0xf8] sm:$0xff]
    %v4728 = vld [vmem:[%s4695 + $0x100] sm:$0xff]
    %v4729 = vld [vmem:[%s4695 + $0x108] sm:$0xff]
    %v4730 = vld [vmem:[%s4695 + $0x110] sm:$0xff]
    %v4731 = vld [vmem:[%s4695 + $0x118] sm:$0xff]
    %v4732 = vld [vmem:[%s4695 + $0x120] sm:$0xff]
    %v4733 = vld [vmem:[%s4695 + $0x128] sm:$0xff]
    %v4734 = vld [vmem:[%s4695 + $0x130] sm:$0xff]
    %v4735 = vld [vmem:[%s4695 + $0x138] sm:$0xff]
    %v4736 = vld [vmem:[%s4695 + $0x140] sm:$0xff]
    %v4737 = vld [vmem:[%s4695 + $0x148] sm:$0xff]
    %v4738 = vld [vmem:[%s4695 + $0x150] sm:$0xff]
    %v4739 = vld [vmem:[%s4695 + $0x158] sm:$0xff]
    %v4740 = vld [vmem:[%s4695 + $0x160] sm:$0xff]
    %v4741 = vld [vmem:[%s4695 + $0x168] sm:$0xff]
    %v4742 = vld [vmem:[%s4695 + $0x170] sm:$0xff]
    %v4743 = vld [vmem:[%s4695 + $0x178] sm:$0xff]
    %v4744 = vld [vmem:[%s4695 + $0x180] sm:$0xff]
    %v4745 = vld [vmem:[%s4695 + $0x188] sm:$0xff]
    %v4746 = vld [vmem:[%s4695 + $0x190] sm:$0xff]
    %v4747 = vld [vmem:[%s4695 + $0x198] sm:$0xff]
    %v4748 = vld [vmem:[%s4695 + $0x1a0] sm:$0xff]
    %v4749 = vld [vmem:[%s4695 + $0x1a8] sm:$0xff]
    %v4750 = vld [vmem:[%s4695 + $0x1b0] sm:$0xff]
    %v4751 = vld [vmem:[%s4695 + $0x1b8] sm:$0xff]
    %v4752 = vld [vmem:[%s4695 + $0x1c0] sm:$0xff]
    %v4753 = vld [vmem:[%s4695 + $0x1c8] sm:$0xff]
    %v4754 = vld [vmem:[%s4695 + $0x1d0] sm:$0xff]
    %v4755 = vld [vmem:[%s4695 + $0x1d8] sm:$0xff]
    %v4756 = vld [vmem:[%s4695 + $0x1e0] sm:$0xff]
    %v4757 = vld [vmem:[%s4695 + $0x1e8] sm:$0xff]
    %v4758 = vld [vmem:[%s4695 + $0x1f0] sm:$0xff]
    %v4759 = vld [vmem:[%s4695 + $0x1f8] sm:$0xff]
    %v4760 = vld [vmem:[%s4695 + $0x200] sm:$0xff]
    %v4761 = vld [vmem:[%s4695 + $0x208] sm:$0xff]
    %v4762 = vld [vmem:[%s4695 + $0x210] sm:$0xff]
    %v4763 = vld [vmem:[%s4695 + $0x218] sm:$0xff]
    %v4764 = vld [vmem:[%s4695 + $0x220] sm:$0xff]
    %v4765 = vld [vmem:[%s4695 + $0x228] sm:$0xff]
    %v4766 = vld [vmem:[%s4695 + $0x230] sm:$0xff]
    %v4767 = vld [vmem:[%s4695 + $0x238] sm:$0xff]
    %v4769 = vrot.slane %v895, 2
    %v4770 = vrot.slane %v896, 2
    %v4772 = vsel %vm1051, %v4770, 0
    %4774 = vmatprep.subr.mxu0 %v4697
    %4775 = vmatpush1.msra.mxu0 %v4696
    %4776 = vmatprep.subr.mxu0 %v4701
    %4777 = vmatpush1.msra.mxu0 %v4700
    %4778 = vmatprep.subr.mxu0 %v4705
    %4779 = vmatpush1.msra.mxu0 %v4704
    %4780 = vmatprep.subr.mxu0 %v4709
    %4781 = vmatpush1.msra.mxu0 %v4708
    %4782 = vmatprep.subr.mxu0 %v4713
    %4783 = vmatpush1.msra.mxu0 %v4712
    %4784 = vmatprep.subr.mxu0 %v4717
    %4785 = vmatpush1.msra.mxu0 %v4716
    %4786 = vmatprep.subr.mxu0 %v4721
    %4787 = vmatpush1.msra.mxu0 %v4720
    %4788 = vmatprep.subr.mxu0 %v4725
    %4789 = vmatpush1.msra.mxu0 %v4724
    %4790 = vmatprep.subr.mxu0 %v4729
    %4791 = vmatpush1.msra.mxu0 %v4728
    %4792 = vmatprep.subr.mxu0 %v4733
    %4793 = vmatpush1.msra.mxu0 %v4732
    %4794 = vmatprep.subr.mxu0 %v4737
    %4795 = vmatpush1.msra.mxu0 %v4736
    %4796 = vmatprep.subr.mxu0 %v4741
    %4797 = vmatpush1.msra.mxu0 %v4740
    %4798 = vmatprep.subr.mxu0 %v4745
    %4799 = vmatpush1.msra.mxu0 %v4744
    %4800 = vmatprep.subr.mxu0 %v4749
    %4801 = vmatpush1.msra.mxu0 %v4748
    %4802 = vmatprep.subr.mxu0 %v4753
    %4803 = vmatpush1.msra.mxu0 %v4752
    %4804 = vmatprep.subr.mxu0 %v4757
    %4805 = vmatpush1.msra.mxu0 %v4756
    %4806 = vmatprep.subr.mxu0 %v4761
    %4807 = vmatpush1.msra.mxu0 %v4760
    %4808 = vmatprep.subr.mxu0 %v4765
    %4809 = vmatpush1.msra.mxu0 %v4764
    %4810 = vmatprep.subr.mxu0 0.0
    %4811 = vmatpush1.msra.mxu0 0.0
    %4812 = vmatprep.subr.mxu0 0.0
    %4813 = vmatpush1.msra.mxu0 0.0
    %4814 = vmatprep.subr.mxu0 0.0
    %4815 = vmatpush1.msra.mxu0 0.0
    %4816 = vmatprep.subr.mxu0 0.0
    %4817 = vmatpush1.msra.mxu0 0.0
    %4818 = vmatprep.subr.mxu0 0.0
    %4819 = vmatpush1.msra.mxu0 0.0
    %4820 = vmatprep.subr.mxu0 0.0
    %4821 = vmatpush1.msra.mxu0 0.0
    %4822 = vmatprep.subr.mxu0 0.0
    %4823 = vmatpush1.msra.mxu0 0.0
    %4824 = vmatprep.subr.mxu0 0.0
    %4825 = vmatpush1.msra.mxu0 0.0
    %4826 = vmatprep.subr.mxu0 0.0
    %4827 = vmatpush1.msra.mxu0 0.0
    %4828 = vmatprep.subr.mxu0 0.0
    %4829 = vmatpush1.msra.mxu0 0.0
    %4830 = vmatprep.subr.mxu0 0.0
    %4831 = vmatpush1.msra.mxu0 0.0
    %4832 = vmatprep.subr.mxu0 0.0
    %4833 = vmatpush1.msra.mxu0 0.0
    %4834 = vmatprep.subr.mxu0 0.0
    %4835 = vmatpush1.msra.mxu0 0.0
    %4836 = vmatprep.subr.mxu0 0.0
    %4837 = vmatpush1.msra.mxu0 0.0
    %4838 = vmatprep.mubr.f32.mxu0 %v4772
    %4839 = vmatmul.mubr.f32.gmra.mrb[0].mxu0 %v4769
    %v4840 = vpop.f32.mrb[0].mxu0
    %v4841 = vadd.f32 0.0, %v4840
    %v4842 = vpop.f32.mrb[0].mxu0
    %v4843 = vadd.f32 0.0, %v4842
    %4844 = vdwg.mxu0
    %4845 = vmatprep.subr.mxu0 %v4699
    %4846 = vmatpush1.msra.mxu0 %v4698
    %4847 = vmatprep.subr.mxu0 %v4703
    %4848 = vmatpush1.msra.mxu0 %v4702
    %4849 = vmatprep.subr.mxu0 %v4707
    %4850 = vmatpush1.msra.mxu0 %v4706
    %4851 = vmatprep.subr.mxu0 %v4711
    %4852 = vmatpush1.msra.mxu0 %v4710
    %4853 = vmatprep.subr.mxu0 %v4715
    %4854 = vmatpush1.msra.mxu0 %v4714
    %4855 = vmatprep.subr.mxu0 %v4719
    %4856 = vmatpush1.msra.mxu0 %v4718
    %4857 = vmatprep.subr.mxu0 %v4723
    %4858 = vmatpush1.msra.mxu0 %v4722
    %4859 = vmatprep.subr.mxu0 %v4727
    %4860 = vmatpush1.msra.mxu0 %v4726
    %4861 = vmatprep.subr.mxu0 %v4731
    %4862 = vmatpush1.msra.mxu0 %v4730
    %4863 = vmatprep.subr.mxu0 %v4735
    %4864 = vmatpush1.msra.mxu0 %v4734
    %4865 = vmatprep.subr.mxu0 %v4739
    %4866 = vmatpush1.msra.mxu0 %v4738
    %4867 = vmatprep.subr.mxu0 %v4743
    %4868 = vmatpush1.msra.mxu0 %v4742
    %4869 = vmatprep.subr.mxu0 %v4747
    %4870 = vmatpush1.msra.mxu0 %v4746
    %4871 = vmatprep.subr.mxu0 %v4751
    %4872 = vmatpush1.msra.mxu0 %v4750
    %4873 = vmatprep.subr.mxu0 %v4755
    %4874 = vmatpush1.msra.mxu0 %v4754
    %4875 = vmatprep.subr.mxu0 %v4759
    %4876 = vmatpush1.msra.mxu0 %v4758
    %4877 = vmatprep.subr.mxu0 %v4763
    %4878 = vmatpush1.msra.mxu0 %v4762
    %4879 = vmatprep.subr.mxu0 %v4767
    %4880 = vmatpush1.msra.mxu0 %v4766
    %4881 = vmatprep.subr.mxu0 0.0
    %4882 = vmatpush1.msra.mxu0 0.0
    %4883 = vmatprep.subr.mxu0 0.0
    %4884 = vmatpush1.msra.mxu0 0.0
    %4885 = vmatprep.subr.mxu0 0.0
    %4886 = vmatpush1.msra.mxu0 0.0
    %4887 = vmatprep.subr.mxu0 0.0
    %4888 = vmatpush1.msra.mxu0 0.0
    %4889 = vmatprep.subr.mxu0 0.0
    %4890 = vmatpush1.msra.mxu0 0.0
    %4891 = vmatprep.subr.mxu0 0.0
    %4892 = vmatpush1.msra.mxu0 0.0
    %4893 = vmatprep.subr.mxu0 0.0
    %4894 = vmatpush1.msra.mxu0 0.0
    %4895 = vmatprep.subr.mxu0 0.0
    %4896 = vmatpush1.msra.mxu0 0.0
    %4897 = vmatprep.subr.mxu0 0.0
    %4898 = vmatpush1.msra.mxu0 0.0
    %4899 = vmatprep.subr.mxu0 0.0
    %4900 = vmatpush1.msra.mxu0 0.0
    %4901 = vmatprep.subr.mxu0 0.0
    %4902 = vmatpush1.msra.mxu0 0.0
    %4903 = vmatprep.subr.mxu0 0.0
    %4904 = vmatpush1.msra.mxu0 0.0
    %4905 = vmatprep.subr.mxu0 0.0
    %4906 = vmatpush1.msra.mxu0 0.0
    %4907 = vmatprep.subr.mxu0 0.0
    %4908 = vmatpush1.msra.mxu0 0.0
    %4909 = vmatprep.mubr.f32.mxu0 %v4772
    %4910 = vmatmul.mubr.f32.gmra.mrb[0].mxu0 %v4769
    %v4911 = vpop.f32.mrb[0].mxu0
    %v4912 = vadd.f32 0.0, %v4911
    %v4913 = vpop.f32.mrb[0].mxu0
    %v4914 = vadd.f32 0.0, %v4913
    %4915 = vdwg.mxu0
    %v4916 = vadd.f32 %v4691, %v4841
    %v4917 = vadd.f32 %v4692, %v4843
    %v4918 = vadd.f32 %v4693, %v4912
    %v4919 = vadd.f32 %v4694, %v4914
    %s4920 = scalar_lea.vmem [#allocation6], 10368
    %v4921 = vld [vmem:[%s4920] sm:$0xff]
    %v4922 = vld [vmem:[%s4920 + $0x8] sm:$0xff]
    %v4923 = vld [vmem:[%s4920 + $0x10] sm:$0xff]
    %v4924 = vld [vmem:[%s4920 + $0x18] sm:$0xff]
    %v4925 = vld [vmem:[%s4920 + $0x20] sm:$0xff]
    %v4926 = vld [vmem:[%s4920 + $0x28] sm:$0xff]
    %v4927 = vld [vmem:[%s4920 + $0x30] sm:$0xff]
    %v4928 = vld [vmem:[%s4920 + $0x38] sm:$0xff]
    %v4929 = vld [vmem:[%s4920 + $0x40] sm:$0xff]
    %v4930 = vld [vmem:[%s4920 + $0x48] sm:$0xff]
    %v4931 = vld [vmem:[%s4920 + $0x50] sm:$0xff]
    %v4932 = vld [vmem:[%s4920 + $0x58] sm:$0xff]
    %v4933 = vld [vmem:[%s4920 + $0x60] sm:$0xff]
    %v4934 = vld [vmem:[%s4920 + $0x68] sm:$0xff]
    %v4935 = vld [vmem:[%s4920 + $0x70] sm:$0xff]
    %v4936 = vld [vmem:[%s4920 + $0x78] sm:$0xff]
    %v4937 = vld [vmem:[%s4920 + $0x80] sm:$0xff]
    %v4938 = vld [vmem:[%s4920 + $0x88] sm:$0xff]
    %v4939 = vld [vmem:[%s4920 + $0x90] sm:$0xff]
    %v4940 = vld [vmem:[%s4920 + $0x98] sm:$0xff]
    %v4941 = vld [vmem:[%s4920 + $0xa0] sm:$0xff]
    %v4942 = vld [vmem:[%s4920 + $0xa8] sm:$0xff]
    %v4943 = vld [vmem:[%s4920 + $0xb0] sm:$0xff]
    %v4944 = vld [vmem:[%s4920 + $0xb8] sm:$0xff]
    %v4945 = vld [vmem:[%s4920 + $0xc0] sm:$0xff]
    %v4946 = vld [vmem:[%s4920 + $0xc8] sm:$0xff]
    %v4947 = vld [vmem:[%s4920 + $0xd0] sm:$0xff]
    %v4948 = vld [vmem:[%s4920 + $0xd8] sm:$0xff]
    %v4949 = vld [vmem:[%s4920 + $0xe0] sm:$0xff]
    %v4950 = vld [vmem:[%s4920 + $0xe8] sm:$0xff]
    %v4951 = vld [vmem:[%s4920 + $0xf0] sm:$0xff]
    %v4952 = vld [vmem:[%s4920 + $0xf8] sm:$0xff]
    %v4953 = vld [vmem:[%s4920 + $0x100] sm:$0xff]
    %v4954 = vld [vmem:[%s4920 + $0x108] sm:$0xff]
    %v4955 = vld [vmem:[%s4920 + $0x110] sm:$0xff]
    %v4956 = vld [vmem:[%s4920 + $0x118] sm:$0xff]
    %v4957 = vld [vmem:[%s4920 + $0x120] sm:$0xff]
    %v4958 = vld [vmem:[%s4920 + $0x128] sm:$0xff]
    %v4959 = vld [vmem:[%s4920 + $0x130] sm:$0xff]
    %v4960 = vld [vmem:[%s4920 + $0x138] sm:$0xff]
    %v4961 = vld [vmem:[%s4920 + $0x140] sm:$0xff]
    %v4962 = vld [vmem:[%s4920 + $0x148] sm:$0xff]
    %v4963 = vld [vmem:[%s4920 + $0x150] sm:$0xff]
    %v4964 = vld [vmem:[%s4920 + $0x158] sm:$0xff]
    %v4965 = vld [vmem:[%s4920 + $0x160] sm:$0xff]
    %v4966 = vld [vmem:[%s4920 + $0x168] sm:$0xff]
    %v4967 = vld [vmem:[%s4920 + $0x170] sm:$0xff]
    %v4968 = vld [vmem:[%s4920 + $0x178] sm:$0xff]
    %v4969 = vld [vmem:[%s4920 + $0x180] sm:$0xff]
    %v4970 = vld [vmem:[%s4920 + $0x188] sm:$0xff]
    %v4971 = vld [vmem:[%s4920 + $0x190] sm:$0xff]
    %v4972 = vld [vmem:[%s4920 + $0x198] sm:$0xff]
    %v4973 = vld [vmem:[%s4920 + $0x1a0] sm:$0xff]
    %v4974 = vld [vmem:[%s4920 + $0x1a8] sm:$0xff]
    %v4975 = vld [vmem:[%s4920 + $0x1b0] sm:$0xff]
    %v4976 = vld [vmem:[%s4920 + $0x1b8] sm:$0xff]
    %v4977 = vld [vmem:[%s4920 + $0x1c0] sm:$0xff]
    %v4978 = vld [vmem:[%s4920 + $0x1c8] sm:$0xff]
    %v4979 = vld [vmem:[%s4920 + $0x1d0] sm:$0xff]
    %v4980 = vld [vmem:[%s4920 + $0x1d8] sm:$0xff]
    %v4981 = vld [vmem:[%s4920 + $0x1e0] sm:$0xff]
    %v4982 = vld [vmem:[%s4920 + $0x1e8] sm:$0xff]
    %v4983 = vld [vmem:[%s4920 + $0x1f0] sm:$0xff]
    %v4984 = vld [vmem:[%s4920 + $0x1f8] sm:$0xff]
    %v4985 = vld [vmem:[%s4920 + $0x200] sm:$0xff]
    %v4986 = vld [vmem:[%s4920 + $0x208] sm:$0xff]
    %v4987 = vld [vmem:[%s4920 + $0x210] sm:$0xff]
    %v4988 = vld [vmem:[%s4920 + $0x218] sm:$0xff]
    %v4989 = vld [vmem:[%s4920 + $0x220] sm:$0xff]
    %v4990 = vld [vmem:[%s4920 + $0x228] sm:$0xff]
    %v4991 = vld [vmem:[%s4920 + $0x230] sm:$0xff]
    %v4992 = vld [vmem:[%s4920 + $0x238] sm:$0xff]
    %v4993 = vrot.slane %v895, 4
    %v4994 = vrot.slane %v896, 4
    %v4996 = vsel %vm1051, %v4994, 0
    %4998 = vmatprep.subr.mxu0 %v4922
    %4999 = vmatpush1.msra.mxu0 %v4921
    %5000 = vmatprep.subr.mxu0 %v4926
    %5001 = vmatpush1.msra.mxu0 %v4925
    %5002 = vmatprep.subr.mxu0 %v4930
    %5003 = vmatpush1.msra.mxu0 %v4929
    %5004 = vmatprep.subr.mxu0 %v4934
    %5005 = vmatpush1.msra.mxu0 %v4933
    %5006 = vmatprep.subr.mxu0 %v4938
    %5007 = vmatpush1.msra.mxu0 %v4937
    %5008 = vmatprep.subr.mxu0 %v4942
    %5009 = vmatpush1.msra.mxu0 %v4941
    %5010 = vmatprep.subr.mxu0 %v4946
    %5011 = vmatpush1.msra.mxu0 %v4945
    %5012 = vmatprep.subr.mxu0 %v4950
    %5013 = vmatpush1.msra.mxu0 %v4949
    %5014 = vmatprep.subr.mxu0 %v4954
    %5015 = vmatpush1.msra.mxu0 %v4953
    %5016 = vmatprep.subr.mxu0 %v4958
    %5017 = vmatpush1.msra.mxu0 %v4957
    %5018 = vmatprep.subr.mxu0 %v4962
    %5019 = vmatpush1.msra.mxu0 %v4961
    %5020 = vmatprep.subr.mxu0 %v4966
    %5021 = vmatpush1.msra.mxu0 %v4965
    %5022 = vmatprep.subr.mxu0 %v4970
    %5023 = vmatpush1.msra.mxu0 %v4969
    %5024 = vmatprep.subr.mxu0 %v4974
    %5025 = vmatpush1.msra.mxu0 %v4973
    %5026 = vmatprep.subr.mxu0 %v4978
    %5027 = vmatpush1.msra.mxu0 %v4977
    %5028 = vmatprep.subr.mxu0 %v4982
    %5029 = vmatpush1.msra.mxu0 %v4981
    %5030 = vmatprep.subr.mxu0 %v4986
    %5031 = vmatpush1.msra.mxu0 %v4985
    %5032 = vmatprep.subr.mxu0 %v4990
    %5033 = vmatpush1.msra.mxu0 %v4989
    %5034 = vmatprep.subr.mxu0 0.0
    %5035 = vmatpush1.msra.mxu0 0.0
    %5036 = vmatprep.subr.mxu0 0.0
    %5037 = vmatpush1.msra.mxu0 0.0
    %5038 = vmatprep.subr.mxu0 0.0
    %5039 = vmatpush1.msra.mxu0 0.0
    %5040 = vmatprep.subr.mxu0 0.0
    %5041 = vmatpush1.msra.mxu0 0.0
    %5042 = vmatprep.subr.mxu0 0.0
    %5043 = vmatpush1.msra.mxu0 0.0
    %5044 = vmatprep.subr.mxu0 0.0
    %5045 = vmatpush1.msra.mxu0 0.0
    %5046 = vmatprep.subr.mxu0 0.0
    %5047 = vmatpush1.msra.mxu0 0.0
    %5048 = vmatprep.subr.mxu0 0.0
    %5049 = vmatpush1.msra.mxu0 0.0
    %5050 = vmatprep.subr.mxu0 0.0
    %5051 = vmatpush1.msra.mxu0 0.0
    %5052 = vmatprep.subr.mxu0 0.0
    %5053 = vmatpush1.msra.mxu0 0.0
    %5054 = vmatprep.subr.mxu0 0.0
    %5055 = vmatpush1.msra.mxu0 0.0
    %5056 = vmatprep.subr.mxu0 0.0
    %5057 = vmatpush1.msra.mxu0 0.0
    %5058 = vmatprep.subr.mxu0 0.0
    %5059 = vmatpush1.msra.mxu0 0.0
    %5060 = vmatprep.subr.mxu0 0.0
    %5061 = vmatpush1.msra.mxu0 0.0
    %5062 = vmatprep.mubr.f32.mxu0 %v4996
    %5063 = vmatmul.mubr.f32.gmra.mrb[0].mxu0 %v4993
    %v5064 = vpop.f32.mrb[0].mxu0
    %v5065 = vadd.f32 0.0, %v5064
    %v5066 = vpop.f32.mrb[0].mxu0
    %v5067 = vadd.f32 0.0, %v5066
    %5068 = vdwg.mxu0
    %5069 = vmatprep.subr.mxu0 %v4924
    %5070 = vmatpush1.msra.mxu0 %v4923
    %5071 = vmatprep.subr.mxu0 %v4928
    %5072 = vmatpush1.msra.mxu0 %v4927
    %5073 = vmatprep.subr.mxu0 %v4932
    %5074 = vmatpush1.msra.mxu0 %v4931
    %5075 = vmatprep.subr.mxu0 %v4936
    %5076 = vmatpush1.msra.mxu0 %v4935
    %5077 = vmatprep.subr.mxu0 %v4940
    %5078 = vmatpush1.msra.mxu0 %v4939
    %5079 = vmatprep.subr.mxu0 %v4944
    %5080 = vmatpush1.msra.mxu0 %v4943
    %5081 = vmatprep.subr.mxu0 %v4948
    %5082 = vmatpush1.msra.mxu0 %v4947
    %5083 = vmatprep.subr.mxu0 %v4952
    %5084 = vmatpush1.msra.mxu0 %v4951
    %5085 = vmatprep.subr.mxu0 %v4956
    %5086 = vmatpush1.msra.mxu0 %v4955
    %5087 = vmatprep.subr.mxu0 %v4960
    %5088 = vmatpush1.msra.mxu0 %v4959
    %5089 = vmatprep.subr.mxu0 %v4964
    %5090 = vmatpush1.msra.mxu0 %v4963
    %5091 = vmatprep.subr.mxu0 %v4968
    %5092 = vmatpush1.msra.mxu0 %v4967
    %5093 = vmatprep.subr.mxu0 %v4972
    %5094 = vmatpush1.msra.mxu0 %v4971
    %5095 = vmatprep.subr.mxu0 %v4976
    %5096 = vmatpush1.msra.mxu0 %v4975
    %5097 = vmatprep.subr.mxu0 %v4980
    %5098 = vmatpush1.msra.mxu0 %v4979
    %5099 = vmatprep.subr.mxu0 %v4984
    %5100 = vmatpush1.msra.mxu0 %v4983
    %5101 = vmatprep.subr.mxu0 %v4988
    %5102 = vmatpush1.msra.mxu0 %v4987
    %5103 = vmatprep.subr.mxu0 %v4992
    %5104 = vmatpush1.msra.mxu0 %v4991
    %5105 = vmatprep.subr.mxu0 0.0
    %5106 = vmatpush1.msra.mxu0 0.0
    %5107 = vmatprep.subr.mxu0 0.0
    %5108 = vmatpush1.msra.mxu0 0.0
    %5109 = vmatprep.subr.mxu0 0.0
    %5110 = vmatpush1.msra.mxu0 0.0
    %5111 = vmatprep.subr.mxu0 0.0
    %5112 = vmatpush1.msra.mxu0 0.0
    %5113 = vmatprep.subr.mxu0 0.0
    %5114 = vmatpush1.msra.mxu0 0.0
    %5115 = vmatprep.subr.mxu0 0.0
    %5116 = vmatpush1.msra.mxu0 0.0
    %5117 = vmatprep.subr.mxu0 0.0
    %5118 = vmatpush1.msra.mxu0 0.0
    %5119 = vmatprep.subr.mxu0 0.0
    %5120 = vmatpush1.msra.mxu0 0.0
    %5121 = vmatprep.subr.mxu0 0.0
    %5122 = vmatpush1.msra.mxu0 0.0
    %5123 = vmatprep.subr.mxu0 0.0
    %5124 = vmatpush1.msra.mxu0 0.0
    %5125 = vmatprep.subr.mxu0 0.0
    %5126 = vmatpush1.msra.mxu0 0.0
    %5127 = vmatprep.subr.mxu0 0.0
    %5128 = vmatpush1.msra.mxu0 0.0
    %5129 = vmatprep.subr.mxu0 0.0
    %5130 = vmatpush1.msra.mxu0 0.0
    %5131 = vmatprep.subr.mxu0 0.0
    %5132 = vmatpush1.msra.mxu0 0.0
    %5133 = vmatprep.mubr.f32.mxu0 %v4996
    %5134 = vmatmul.mubr.f32.gmra.mrb[0].mxu0 %v4993
    %v5135 = vpop.f32.mrb[0].mxu0
    %v5136 = vadd.f32 0.0, %v5135
    %v5137 = vpop.f32.mrb[0].mxu0
    %v5138 = vadd.f32 0.0, %v5137
    %5139 = vdwg.mxu0
    %v5140 = vadd.f32 %v4916, %v5065
    %v5141 = vadd.f32 %v4917, %v5067
    %v5142 = vadd.f32 %v4918, %v5136
    %v5143 = vadd.f32 %v4919, %v5138
    %s5144 = scalar_lea.vmem [#allocation6], 10944
    %v5145 = vld [vmem:[%s5144] sm:$0xff]
    %v5146 = vld [vmem:[%s5144 + $0x8] sm:$0xff]
    %v5147 = vld [vmem:[%s5144 + $0x10] sm:$0xff]
    %v5148 = vld [vmem:[%s5144 + $0x18] sm:$0xff]
    %v5149 = vld [vmem:[%s5144 + $0x20] sm:$0xff]
    %v5150 = vld [vmem:[%s5144 + $0x28] sm:$0xff]
    %v5151 = vld [vmem:[%s5144 + $0x30] sm:$0xff]
    %v5152 = vld [vmem:[%s5144 + $0x38] sm:$0xff]
    %v5153 = vld [vmem:[%s5144 + $0x40] sm:$0xff]
    %v5154 = vld [vmem:[%s5144 + $0x48] sm:$0xff]
    %v5155 = vld [vmem:[%s5144 + $0x50] sm:$0xff]
    %v5156 = vld [vmem:[%s5144 + $0x58] sm:$0xff]
    %v5157 = vld [vmem:[%s5144 + $0x60] sm:$0xff]
    %v5158 = vld [vmem:[%s5144 + $0x68] sm:$0xff]
    %v5159 = vld [vmem:[%s5144 + $0x70] sm:$0xff]
    %v5160 = vld [vmem:[%s5144 + $0x78] sm:$0xff]
    %v5161 = vld [vmem:[%s5144 + $0x80] sm:$0xff]
    %v5162 = vld [vmem:[%s5144 + $0x88] sm:$0xff]
    %v5163 = vld [vmem:[%s5144 + $0x90] sm:$0xff]
    %v5164 = vld [vmem:[%s5144 + $0x98] sm:$0xff]
    %v5165 = vld [vmem:[%s5144 + $0xa0] sm:$0xff]
    %v5166 = vld [vmem:[%s5144 + $0xa8] sm:$0xff]
    %v5167 = vld [vmem:[%s5144 + $0xb0] sm:$0xff]
    %v5168 = vld [vmem:[%s5144 + $0xb8] sm:$0xff]
    %v5169 = vld [vmem:[%s5144 + $0xc0] sm:$0xff]
    %v5170 = vld [vmem:[%s5144 + $0xc8] sm:$0xff]
    %v5171 = vld [vmem:[%s5144 + $0xd0] sm:$0xff]
    %v5172 = vld [vmem:[%s5144 + $0xd8] sm:$0xff]
    %v5173 = vld [vmem:[%s5144 + $0xe0] sm:$0xff]
    %v5174 = vld [vmem:[%s5144 + $0xe8] sm:$0xff]
    %v5175 = vld [vmem:[%s5144 + $0xf0] sm:$0xff]
    %v5176 = vld [vmem:[%s5144 + $0xf8] sm:$0xff]
    %v5177 = vld [vmem:[%s5144 + $0x100] sm:$0xff]
    %v5178 = vld [vmem:[%s5144 + $0x108] sm:$0xff]
    %v5179 = vld [vmem:[%s5144 + $0x110] sm:$0xff]
    %v5180 = vld [vmem:[%s5144 + $0x118] sm:$0xff]
    %v5181 = vld [vmem:[%s5144 + $0x120] sm:$0xff]
    %v5182 = vld [vmem:[%s5144 + $0x128] sm:$0xff]
    %v5183 = vld [vmem:[%s5144 + $0x130] sm:$0xff]
    %v5184 = vld [vmem:[%s5144 + $0x138] sm:$0xff]
    %v5185 = vld [vmem:[%s5144 + $0x140] sm:$0xff]
    %v5186 = vld [vmem:[%s5144 + $0x148] sm:$0xff]
    %v5187 = vld [vmem:[%s5144 + $0x150] sm:$0xff]
    %v5188 = vld [vmem:[%s5144 + $0x158] sm:$0xff]
    %v5189 = vld [vmem:[%s5144 + $0x160] sm:$0xff]
    %v5190 = vld [vmem:[%s5144 + $0x168] sm:$0xff]
    %v5191 = vld [vmem:[%s5144 + $0x170] sm:$0xff]
    %v5192 = vld [vmem:[%s5144 + $0x178] sm:$0xff]
    %v5193 = vld [vmem:[%s5144 + $0x180] sm:$0xff]
    %v5194 = vld [vmem:[%s5144 + $0x188] sm:$0xff]
    %v5195 = vld [vmem:[%s5144 + $0x190] sm:$0xff]
    %v5196 = vld [vmem:[%s5144 + $0x198] sm:$0xff]
    %v5197 = vld [vmem:[%s5144 + $0x1a0] sm:$0xff]
    %v5198 = vld [vmem:[%s5144 + $0x1a8] sm:$0xff]
    %v5199 = vld [vmem:[%s5144 + $0x1b0] sm:$0xff]
    %v5200 = vld [vmem:[%s5144 + $0x1b8] sm:$0xff]
    %v5201 = vld [vmem:[%s5144 + $0x1c0] sm:$0xff]
    %v5202 = vld [vmem:[%s5144 + $0x1c8] sm:$0xff]
    %v5203 = vld [vmem:[%s5144 + $0x1d0] sm:$0xff]
    %v5204 = vld [vmem:[%s5144 + $0x1d8] sm:$0xff]
    %v5205 = vld [vmem:[%s5144 + $0x1e0] sm:$0xff]
    %v5206 = vld [vmem:[%s5144 + $0x1e8] sm:$0xff]
    %v5207 = vld [vmem:[%s5144 + $0x1f0] sm:$0xff]
    %v5208 = vld [vmem:[%s5144 + $0x1f8] sm:$0xff]
    %v5209 = vld [vmem:[%s5144 + $0x200] sm:$0xff]
    %v5210 = vld [vmem:[%s5144 + $0x208] sm:$0xff]
    %v5211 = vld [vmem:[%s5144 + $0x210] sm:$0xff]
    %v5212 = vld [vmem:[%s5144 + $0x218] sm:$0xff]
    %v5213 = vld [vmem:[%s5144 + $0x220] sm:$0xff]
    %v5214 = vld [vmem:[%s5144 + $0x228] sm:$0xff]
    %v5215 = vld [vmem:[%s5144 + $0x230] sm:$0xff]
    %v5216 = vld [vmem:[%s5144 + $0x238] sm:$0xff]
    %v5217 = vrot.slane %v895, 6
    %v5218 = vrot.slane %v896, 6
    %v5220 = vsel %vm1051, %v5218, 0
    %5222 = vmatprep.subr.mxu0 %v5146
    %5223 = vmatpush1.msra.mxu0 %v5145
    %5224 = vmatprep.subr.mxu0 %v5150
    %5225 = vmatpush1.msra.mxu0 %v5149
    %5226 = vmatprep.subr.mxu0 %v5154
    %5227 = vmatpush1.msra.mxu0 %v5153
    %5228 = vmatprep.subr.mxu0 %v5158
    %5229 = vmatpush1.msra.mxu0 %v5157
    %5230 = vmatprep.subr.mxu0 %v5162
    %5231 = vmatpush1.msra.mxu0 %v5161
    %5232 = vmatprep.subr.mxu0 %v5166
    %5233 = vmatpush1.msra.mxu0 %v5165
    %5234 = vmatprep.subr.mxu0 %v5170
    %5235 = vmatpush1.msra.mxu0 %v5169
    %5236 = vmatprep.subr.mxu0 %v5174
    %5237 = vmatpush1.msra.mxu0 %v5173
    %5238 = vmatprep.subr.mxu0 %v5178
    %5239 = vmatpush1.msra.mxu0 %v5177
    %5240 = vmatprep.subr.mxu0 %v5182
    %5241 = vmatpush1.msra.mxu0 %v5181
    %5242 = vmatprep.subr.mxu0 %v5186
    %5243 = vmatpush1.msra.mxu0 %v5185
    %5244 = vmatprep.subr.mxu0 %v5190
    %5245 = vmatpush1.msra.mxu0 %v5189
    %5246 = vmatprep.subr.mxu0 %v5194
    %5247 = vmatpush1.msra.mxu0 %v5193
    %5248 = vmatprep.subr.mxu0 %v5198
    %5249 = vmatpush1.msra.mxu0 %v5197
    %5250 = vmatprep.subr.mxu0 %v5202
    %5251 = vmatpush1.msra.mxu0 %v5201
    %5252 = vmatprep.subr.mxu0 %v5206
    %5253 = vmatpush1.msra.mxu0 %v5205
    %5254 = vmatprep.subr.mxu0 %v5210
    %5255 = vmatpush1.msra.mxu0 %v5209
    %5256 = vmatprep.subr.mxu0 %v5214
    %5257 = vmatpush1.msra.mxu0 %v5213
    %5258 = vmatprep.subr.mxu0 0.0
    %5259 = vmatpush1.msra.mxu0 0.0
    %5260 = vmatprep.subr.mxu0 0.0
    %5261 = vmatpush1.msra.mxu0 0.0
    %5262 = vmatprep.subr.mxu0 0.0
    %5263 = vmatpush1.msra.mxu0 0.0
    %5264 = vmatprep.subr.mxu0 0.0
    %5265 = vmatpush1.msra.mxu0 0.0
    %5266 = vmatprep.subr.mxu0 0.0
    %5267 = vmatpush1.msra.mxu0 0.0
    %5268 = vmatprep.subr.mxu0 0.0
    %5269 = vmatpush1.msra.mxu0 0.0
    %5270 = vmatprep.subr.mxu0 0.0
    %5271 = vmatpush1.msra.mxu0 0.0
    %5272 = vmatprep.subr.mxu0 0.0
    %5273 = vmatpush1.msra.mxu0 0.0
    %5274 = vmatprep.subr.mxu0 0.0
    %5275 = vmatpush1.msra.mxu0 0.0
    %5276 = vmatprep.subr.mxu0 0.0
    %5277 = vmatpush1.msra.mxu0 0.0
    %5278 = vmatprep.subr.mxu0 0.0
    %5279 = vmatpush1.msra.mxu0 0.0
    %5280 = vmatprep.subr.mxu0 0.0
    %5281 = vmatpush1.msra.mxu0 0.0
    %5282 = vmatprep.subr.mxu0 0.0
    %5283 = vmatpush1.msra.mxu0 0.0
    %5284 = vmatprep.subr.mxu0 0.0
    %5285 = vmatpush1.msra.mxu0 0.0
    %5286 = vmatprep.mubr.f32.mxu0 %v5220
    %5287 = vmatmul.mubr.f32.gmra.mrb[0].mxu0 %v5217
    %v5288 = vpop.f32.mrb[0].mxu0
    %v5289 = vadd.f32 0.0, %v5288
    %v5290 = vpop.f32.mrb[0].mxu0
    %v5291 = vadd.f32 0.0, %v5290
    %5292 = vdwg.mxu0
    %5293 = vmatprep.subr.mxu0 %v5148
    %5294 = vmatpush1.msra.mxu0 %v5147
    %5295 = vmatprep.subr.mxu0 %v5152
    %5296 = vmatpush1.msra.mxu0 %v5151
    %5297 = vmatprep.subr.mxu0 %v5156
    %5298 = vmatpush1.msra.mxu0 %v5155
    %5299 = vmatprep.subr.mxu0 %v5160
    %5300 = vmatpush1.msra.mxu0 %v5159
    %5301 = vmatprep.subr.mxu0 %v5164
    %5302 = vmatpush1.msra.mxu0 %v5163
    %5303 = vmatprep.subr.mxu0 %v5168
    %5304 = vmatpush1.msra.mxu0 %v5167
    %5305 = vmatprep.subr.mxu0 %v5172
    %5306 = vmatpush1.msra.mxu0 %v5171
    %5307 = vmatprep.subr.mxu0 %v5176
    %5308 = vmatpush1.msra.mxu0 %v5175
    %5309 = vmatprep.subr.mxu0 %v5180
    %5310 = vmatpush1.msra.mxu0 %v5179
    %5311 = vmatprep.subr.mxu0 %v5184
    %5312 = vmatpush1.msra.mxu0 %v5183
    %5313 = vmatprep.subr.mxu0 %v5188
    %5314 = vmatpush1.msra.mxu0 %v5187
    %5315 = vmatprep.subr.mxu0 %v5192
    %5316 = vmatpush1.msra.mxu0 %v5191
    %5317 = vmatprep.subr.mxu0 %v5196
    %5318 = vmatpush1.msra.mxu0 %v5195
    %5319 = vmatprep.subr.mxu0 %v5200
    %5320 = vmatpush1.msra.mxu0 %v5199
    %5321 = vmatprep.subr.mxu0 %v5204
    %5322 = vmatpush1.msra.mxu0 %v5203
    %5323 = vmatprep.subr.mxu0 %v5208
    %5324 = vmatpush1.msra.mxu0 %v5207
    %5325 = vmatprep.subr.mxu0 %v5212
    %5326 = vmatpush1.msra.mxu0 %v5211
    %5327 = vmatprep.subr.mxu0 %v5216
    %5328 = vmatpush1.msra.mxu0 %v5215
    %5329 = vmatprep.subr.mxu0 0.0
    %5330 = vmatpush1.msra.mxu0 0.0
    %5331 = vmatprep.subr.mxu0 0.0
    %5332 = vmatpush1.msra.mxu0 0.0
    %5333 = vmatprep.subr.mxu0 0.0
    %5334 = vmatpush1.msra.mxu0 0.0
    %5335 = vmatprep.subr.mxu0 0.0
    %5336 = vmatpush1.msra.mxu0 0.0
    %5337 = vmatprep.subr.mxu0 0.0
    %5338 = vmatpush1.msra.mxu0 0.0
    %5339 = vmatprep.subr.mxu0 0.0
    %5340 = vmatpush1.msra.mxu0 0.0
    %5341 = vmatprep.subr.mxu0 0.0
    %5342 = vmatpush1.msra.mxu0 0.0
    %5343 = vmatprep.subr.mxu0 0.0
    %5344 = vmatpush1.msra.mxu0 0.0
    %5345 = vmatprep.subr.mxu0 0.0
    %5346 = vmatpush1.msra.mxu0 0.0
    %5347 = vmatprep.subr.mxu0 0.0
    %5348 = vmatpush1.msra.mxu0 0.0
    %5349 = vmatprep.subr.mxu0 0.0
    %5350 = vmatpush1.msra.mxu0 0.0
    %5351 = vmatprep.subr.mxu0 0.0
    %5352 = vmatpush1.msra.mxu0 0.0
    %5353 = vmatprep.subr.mxu0 0.0
    %5354 = vmatpush1.msra.mxu0 0.0
    %5355 = vmatprep.subr.mxu0 0.0
    %5356 = vmatpush1.msra.mxu0 0.0
    %5357 = vmatprep.mubr.f32.mxu0 %v5220
    %5358 = vmatmul.mubr.f32.gmra.mrb[0].mxu0 %v5217
    %v5359 = vpop.f32.mrb[0].mxu0
    %v5360 = vadd.f32 0.0, %v5359
    %v5361 = vpop.f32.mrb[0].mxu0
    %v5362 = vadd.f32 0.0, %v5361
    %5363 = vdwg.mxu0
    %v5364 = vadd.f32 %v5140, %v5289
    %v5365 = vadd.f32 %v5141, %v5291
    %v5366 = vadd.f32 %v5142, %v5360
    %v5367 = vadd.f32 %v5143, %v5362
    %s5368 = scalar_lea.vmem [#allocation6], 11520
    %v5369 = vld [vmem:[%s5368] sm:$0xff]
    %v5370 = vld [vmem:[%s5368 + $0x8] sm:$0xff]
    %v5371 = vld [vmem:[%s5368 + $0x10] sm:$0xff]
    %v5372 = vld [vmem:[%s5368 + $0x18] sm:$0xff]
    %v5373 = vld [vmem:[%s5368 + $0x20] sm:$0xff]
    %v5374 = vld [vmem:[%s5368 + $0x28] sm:$0xff]
    %v5375 = vld [vmem:[%s5368 + $0x30] sm:$0xff]
    %v5376 = vld [vmem:[%s5368 + $0x38] sm:$0xff]
    %v5377 = vld [vmem:[%s5368 + $0x40] sm:$0xff]
    %v5378 = vld [vmem:[%s5368 + $0x48] sm:$0xff]
    %v5379 = vld [vmem:[%s5368 + $0x50] sm:$0xff]
    %v5380 = vld [vmem:[%s5368 + $0x58] sm:$0xff]
    %v5381 = vld [vmem:[%s5368 + $0x60] sm:$0xff]
    %v5382 = vld [vmem:[%s5368 + $0x68] sm:$0xff]
    %v5383 = vld [vmem:[%s5368 + $0x70] sm:$0xff]
    %v5384 = vld [vmem:[%s5368 + $0x78] sm:$0xff]
    %v5385 = vld [vmem:[%s5368 + $0x80] sm:$0xff]
    %v5386 = vld [vmem:[%s5368 + $0x88] sm:$0xff]
    %v5387 = vld [vmem:[%s5368 + $0x90] sm:$0xff]
    %v5388 = vld [vmem:[%s5368 + $0x98] sm:$0xff]
    %v5389 = vld [vmem:[%s5368 + $0xa0] sm:$0xff]
    %v5390 = vld [vmem:[%s5368 + $0xa8] sm:$0xff]
    %v5391 = vld [vmem:[%s5368 + $0xb0] sm:$0xff]
    %v5392 = vld [vmem:[%s5368 + $0xb8] sm:$0xff]
    %v5393 = vld [vmem:[%s5368 + $0xc0] sm:$0xff]
    %v5394 = vld [vmem:[%s5368 + $0xc8] sm:$0xff]
    %v5395 = vld [vmem:[%s5368 + $0xd0] sm:$0xff]
    %v5396 = vld [vmem:[%s5368 + $0xd8] sm:$0xff]
    %v5397 = vld [vmem:[%s5368 + $0xe0] sm:$0xff]
    %v5398 = vld [vmem:[%s5368 + $0xe8] sm:$0xff]
    %v5399 = vld [vmem:[%s5368 + $0xf0] sm:$0xff]
    %v5400 = vld [vmem:[%s5368 + $0xf8] sm:$0xff]
    %v5401 = vld [vmem:[%s5368 + $0x100] sm:$0xff]
    %v5402 = vld [vmem:[%s5368 + $0x108] sm:$0xff]
    %v5403 = vld [vmem:[%s5368 + $0x110] sm:$0xff]
    %v5404 = vld [vmem:[%s5368 + $0x118] sm:$0xff]
    %v5405 = vld [vmem:[%s5368 + $0x120] sm:$0xff]
    %v5406 = vld [vmem:[%s5368 + $0x128] sm:$0xff]
    %v5407 = vld [vmem:[%s5368 + $0x130] sm:$0xff]
    %v5408 = vld [vmem:[%s5368 + $0x138] sm:$0xff]
    %v5409 = vld [vmem:[%s5368 + $0x140] sm:$0xff]
    %v5410 = vld [vmem:[%s5368 + $0x148] sm:$0xff]
    %v5411 = vld [vmem:[%s5368 + $0x150] sm:$0xff]
    %v5412 = vld [vmem:[%s5368 + $0x158] sm:$0xff]
    %v5413 = vld [vmem:[%s5368 + $0x160] sm:$0xff]
    %v5414 = vld [vmem:[%s5368 + $0x168] sm:$0xff]
    %v5415 = vld [vmem:[%s5368 + $0x170] sm:$0xff]
    %v5416 = vld [vmem:[%s5368 + $0x178] sm:$0xff]
    %v5417 = vld [vmem:[%s5368 + $0x180] sm:$0xff]
    %v5418 = vld [vmem:[%s5368 + $0x188] sm:$0xff]
    %v5419 = vld [vmem:[%s5368 + $0x190] sm:$0xff]
    %v5420 = vld [vmem:[%s5368 + $0x198] sm:$0xff]
    %v5421 = vld [vmem:[%s5368 + $0x1a0] sm:$0xff]
    %v5422 = vld [vmem:[%s5368 + $0x1a8] sm:$0xff]
    %v5423 = vld [vmem:[%s5368 + $0x1b0] sm:$0xff]
    %v5424 = vld [vmem:[%s5368 + $0x1b8] sm:$0xff]
    %v5425 = vld [vmem:[%s5368 + $0x1c0] sm:$0xff]
    %v5426 = vld [vmem:[%s5368 + $0x1c8] sm:$0xff]
    %v5427 = vld [vmem:[%s5368 + $0x1d0] sm:$0xff]
    %v5428 = vld [vmem:[%s5368 + $0x1d8] sm:$0xff]
    %v5429 = vld [vmem:[%s5368 + $0x1e0] sm:$0xff]
    %v5430 = vld [vmem:[%s5368 + $0x1e8] sm:$0xff]
    %v5431 = vld [vmem:[%s5368 + $0x1f0] sm:$0xff]
    %v5432 = vld [vmem:[%s5368 + $0x1f8] sm:$0xff]
    %v5433 = vld [vmem:[%s5368 + $0x200] sm:$0xff]
    %v5434 = vld [vmem:[%s5368 + $0x208] sm:$0xff]
    %v5435 = vld [vmem:[%s5368 + $0x210] sm:$0xff]
    %v5436 = vld [vmem:[%s5368 + $0x218] sm:$0xff]
    %v5437 = vld [vmem:[%s5368 + $0x220] sm:$0xff]
    %v5438 = vld [vmem:[%s5368 + $0x228] sm:$0xff]
    %v5439 = vld [vmem:[%s5368 + $0x230] sm:$0xff]
    %v5440 = vld [vmem:[%s5368 + $0x238] sm:$0xff]
    %v5442 = vsel %vm1051, %v898, 0
    %5444 = vmatprep.subr.mxu0 %v5370
    %5445 = vmatpush1.msra.mxu0 %v5369
    %5446 = vmatprep.subr.mxu0 %v5374
    %5447 = vmatpush1.msra.mxu0 %v5373
    %5448 = vmatprep.subr.mxu0 %v5378
    %5449 = vmatpush1.msra.mxu0 %v5377
    %5450 = vmatprep.subr.mxu0 %v5382
    %5451 = vmatpush1.msra.mxu0 %v5381
    %5452 = vmatprep.subr.mxu0 %v5386
    %5453 = vmatpush1.msra.mxu0 %v5385
    %5454 = vmatprep.subr.mxu0 %v5390
    %5455 = vmatpush1.msra.mxu0 %v5389
    %5456 = vmatprep.subr.mxu0 %v5394
    %5457 = vmatpush1.msra.mxu0 %v5393
    %5458 = vmatprep.subr.mxu0 %v5398
    %5459 = vmatpush1.msra.mxu0 %v5397
    %5460 = vmatprep.subr.mxu0 %v5402
    %5461 = vmatpush1.msra.mxu0 %v5401
    %5462 = vmatprep.subr.mxu0 %v5406
    %5463 = vmatpush1.msra.mxu0 %v5405
    %5464 = vmatprep.subr.mxu0 %v5410
    %5465 = vmatpush1.msra.mxu0 %v5409
    %5466 = vmatprep.subr.mxu0 %v5414
    %5467 = vmatpush1.msra.mxu0 %v5413
    %5468 = vmatprep.subr.mxu0 %v5418
    %5469 = vmatpush1.msra.mxu0 %v5417
    %5470 = vmatprep.subr.mxu0 %v5422
    %5471 = vmatpush1.msra.mxu0 %v5421
    %5472 = vmatprep.subr.mxu0 %v5426
    %5473 = vmatpush1.msra.mxu0 %v5425
    %5474 = vmatprep.subr.mxu0 %v5430
    %5475 = vmatpush1.msra.mxu0 %v5429
    %5476 = vmatprep.subr.mxu0 %v5434
    %5477 = vmatpush1.msra.mxu0 %v5433
    %5478 = vmatprep.subr.mxu0 %v5438
    %5479 = vmatpush1.msra.mxu0 %v5437
    %5480 = vmatprep.subr.mxu0 0.0
    %5481 = vmatpush1.msra.mxu0 0.0
    %5482 = vmatprep.subr.mxu0 0.0
    %5483 = vmatpush1.msra.mxu0 0.0
    %5484 = vmatprep.subr.mxu0 0.0
    %5485 = vmatpush1.msra.mxu0 0.0
    %5486 = vmatprep.subr.mxu0 0.0
    %5487 = vmatpush1.msra.mxu0 0.0
    %5488 = vmatprep.subr.mxu0 0.0
    %5489 = vmatpush1.msra.mxu0 0.0
    %5490 = vmatprep.subr.mxu0 0.0
    %5491 = vmatpush1.msra.mxu0 0.0
    %5492 = vmatprep.subr.mxu0 0.0
    %5493 = vmatpush1.msra.mxu0 0.0
    %5494 = vmatprep.subr.mxu0 0.0
    %5495 = vmatpush1.msra.mxu0 0.0
    %5496 = vmatprep.subr.mxu0 0.0
    %5497 = vmatpush1.msra.mxu0 0.0
    %5498 = vmatprep.subr.mxu0 0.0
    %5499 = vmatpush1.msra.mxu0 0.0
    %5500 = vmatprep.subr.mxu0 0.0
    %5501 = vmatpush1.msra.mxu0 0.0
    %5502 = vmatprep.subr.mxu0 0.0
    %5503 = vmatpush1.msra.mxu0 0.0
    %5504 = vmatprep.subr.mxu0 0.0
    %5505 = vmatpush1.msra.mxu0 0.0
    %5506 = vmatprep.subr.mxu0 0.0
    %5507 = vmatpush1.msra.mxu0 0.0
    %5508 = vmatprep.mubr.f32.mxu0 %v5442
    %5509 = vmatmul.mubr.f32.gmra.mrb[0].mxu0 %v897
    %v5510 = vpop.f32.mrb[0].mxu0
    %v5511 = vadd.f32 0.0, %v5510
    %v5512 = vpop.f32.mrb[0].mxu0
    %v5513 = vadd.f32 0.0, %v5512
    %5514 = vdwg.mxu0
    %5515 = vmatprep.subr.mxu0 %v5372
    %5516 = vmatpush1.msra.mxu0 %v5371
    %5517 = vmatprep.subr.mxu0 %v5376
    %5518 = vmatpush1.msra.mxu0 %v5375
    %5519 = vmatprep.subr.mxu0 %v5380
    %5520 = vmatpush1.msra.mxu0 %v5379
    %5521 = vmatprep.subr.mxu0 %v5384
    %5522 = vmatpush1.msra.mxu0 %v5383
    %5523 = vmatprep.subr.mxu0 %v5388
    %5524 = vmatpush1.msra.mxu0 %v5387
    %5525 = vmatprep.subr.mxu0 %v5392
    %5526 = vmatpush1.msra.mxu0 %v5391
    %5527 = vmatprep.subr.mxu0 %v5396
    %5528 = vmatpush1.msra.mxu0 %v5395
    %5529 = vmatprep.subr.mxu0 %v5400
    %5530 = vmatpush1.msra.mxu0 %v5399
    %5531 = vmatprep.subr.mxu0 %v5404
    %5532 = vmatpush1.msra.mxu0 %v5403
    %5533 = vmatprep.subr.mxu0 %v5408
    %5534 = vmatpush1.msra.mxu0 %v5407
    %5535 = vmatprep.subr.mxu0 %v5412
    %5536 = vmatpush1.msra.mxu0 %v5411
    %5537 = vmatprep.subr.mxu0 %v5416
    %5538 = vmatpush1.msra.mxu0 %v5415
    %5539 = vmatprep.subr.mxu0 %v5420
    %5540 = vmatpush1.msra.mxu0 %v5419
    %5541 = vmatprep.subr.mxu0 %v5424
    %5542 = vmatpush1.msra.mxu0 %v5423
    %5543 = vmatprep.subr.mxu0 %v5428
    %5544 = vmatpush1.msra.mxu0 %v5427
    %5545 = vmatprep.subr.mxu0 %v5432
    %5546 = vmatpush1.msra.mxu0 %v5431
    %5547 = vmatprep.subr.mxu0 %v5436
    %5548 = vmatpush1.msra.mxu0 %v5435
    %5549 = vmatprep.subr.mxu0 %v5440
    %5550 = vmatpush1.msra.mxu0 %v5439
    %5551 = vmatprep.subr.mxu0 0.0
    %5552 = vmatpush1.msra.mxu0 0.0
    %5553 = vmatprep.subr.mxu0 0.0
    %5554 = vmatpush1.msra.mxu0 0.0
    %5555 = vmatprep.subr.mxu0 0.0
    %5556 = vmatpush1.msra.mxu0 0.0
    %5557 = vmatprep.subr.mxu0 0.0
    %5558 = vmatpush1.msra.mxu0 0.0
    %5559 = vmatprep.subr.mxu0 0.0
    %5560 = vmatpush1.msra.mxu0 0.0
    %5561 = vmatprep.subr.mxu0 0.0
    %5562 = vmatpush1.msra.mxu0 0.0
    %5563 = vmatprep.subr.mxu0 0.0
    %5564 = vmatpush1.msra.mxu0 0.0
    %5565 = vmatprep.subr.mxu0 0.0
    %5566 = vmatpush1.msra.mxu0 0.0
    %5567 = vmatprep.subr.mxu0 0.0
    %5568 = vmatpush1.msra.mxu0 0.0
    %5569 = vmatprep.subr.mxu0 0.0
    %5570 = vmatpush1.msra.mxu0 0.0
    %5571 = vmatprep.subr.mxu0 0.0
    %5572 = vmatpush1.msra.mxu0 0.0
    %5573 = vmatprep.subr.mxu0 0.0
    %5574 = vmatpush1.msra.mxu0 0.0
    %5575 = vmatprep.subr.mxu0 0.0
    %5576 = vmatpush1.msra.mxu0 0.0
    %5577 = vmatprep.subr.mxu0 0.0
    %5578 = vmatpush1.msra.mxu0 0.0
    %5579 = vmatprep.mubr.f32.mxu0 %v5442
    %5580 = vmatmul.mubr.f32.gmra.mrb[0].mxu0 %v897
    %v5581 = vpop.f32.mrb[0].mxu0
    %v5582 = vadd.f32 0.0, %v5581
    %v5583 = vpop.f32.mrb[0].mxu0
    %v5584 = vadd.f32 0.0, %v5583
    %5585 = vdwg.mxu0
    %v5586 = vadd.f32 %v5364, %v5511
    %v5587 = vadd.f32 %v5365, %v5513
    %v5588 = vadd.f32 %v5366, %v5582
    %v5589 = vadd.f32 %v5367, %v5584
    %s5590 = scalar_lea.vmem [#allocation6], 12096
    %v5591 = vld [vmem:[%s5590] sm:$0xff]
    %v5592 = vld [vmem:[%s5590 + $0x8] sm:$0xff]
    %v5593 = vld [vmem:[%s5590 + $0x10] sm:$0xff]
    %v5594 = vld [vmem:[%s5590 + $0x18] sm:$0xff]
    %v5595 = vld [vmem:[%s5590 + $0x20] sm:$0xff]
    %v5596 = vld [vmem:[%s5590 + $0x28] sm:$0xff]
    %v5597 = vld [vmem:[%s5590 + $0x30] sm:$0xff]
    %v5598 = vld [vmem:[%s5590 + $0x38] sm:$0xff]
    %v5599 = vld [vmem:[%s5590 + $0x40] sm:$0xff]
    %v5600 = vld [vmem:[%s5590 + $0x48] sm:$0xff]
    %v5601 = vld [vmem:[%s5590 + $0x50] sm:$0xff]
    %v5602 = vld [vmem:[%s5590 + $0x58] sm:$0xff]
    %v5603 = vld [vmem:[%s5590 + $0x60] sm:$0xff]
    %v5604 = vld [vmem:[%s5590 + $0x68] sm:$0xff]
    %v5605 = vld [vmem:[%s5590 + $0x70] sm:$0xff]
    %v5606 = vld [vmem:[%s5590 + $0x78] sm:$0xff]
    %v5607 = vld [vmem:[%s5590 + $0x80] sm:$0xff]
    %v5608 = vld [vmem:[%s5590 + $0x88] sm:$0xff]
    %v5609 = vld [vmem:[%s5590 + $0x90] sm:$0xff]
    %v5610 = vld [vmem:[%s5590 + $0x98] sm:$0xff]
    %v5611 = vld [vmem:[%s5590 + $0xa0] sm:$0xff]
    %v5612 = vld [vmem:[%s5590 + $0xa8] sm:$0xff]
    %v5613 = vld [vmem:[%s5590 + $0xb0] sm:$0xff]
    %v5614 = vld [vmem:[%s5590 + $0xb8] sm:$0xff]
    %v5615 = vld [vmem:[%s5590 + $0xc0] sm:$0xff]
    %v5616 = vld [vmem:[%s5590 + $0xc8] sm:$0xff]
    %v5617 = vld [vmem:[%s5590 + $0xd0] sm:$0xff]
    %v5618 = vld [vmem:[%s5590 + $0xd8] sm:$0xff]
    %v5619 = vld [vmem:[%s5590 + $0xe0] sm:$0xff]
    %v5620 = vld [vmem:[%s5590 + $0xe8] sm:$0xff]
    %v5621 = vld [vmem:[%s5590 + $0xf0] sm:$0xff]
    %v5622 = vld [vmem:[%s5590 + $0xf8] sm:$0xff]
    %v5623 = vld [vmem:[%s5590 + $0x100] sm:$0xff]
    %v5624 = vld [vmem:[%s5590 + $0x108] sm:$0xff]
    %v5625 = vld [vmem:[%s5590 + $0x110] sm:$0xff]
    %v5626 = vld [vmem:[%s5590 + $0x118] sm:$0xff]
    %v5627 = vld [vmem:[%s5590 + $0x120] sm:$0xff]
    %v5628 = vld [vmem:[%s5590 + $0x128] sm:$0xff]
    %v5629 = vld [vmem:[%s5590 + $0x130] sm:$0xff]
    %v5630 = vld [vmem:[%s5590 + $0x138] sm:$0xff]
    %v5631 = vld [vmem:[%s5590 + $0x140] sm:$0xff]
    %v5632 = vld [vmem:[%s5590 + $0x148] sm:$0xff]
    %v5633 = vld [vmem:[%s5590 + $0x150] sm:$0xff]
    %v5634 = vld [vmem:[%s5590 + $0x158] sm:$0xff]
    %v5635 = vld [vmem:[%s5590 + $0x160] sm:$0xff]
    %v5636 = vld [vmem:[%s5590 + $0x168] sm:$0xff]
    %v5637 = vld [vmem:[%s5590 + $0x170] sm:$0xff]
    %v5638 = vld [vmem:[%s5590 + $0x178] sm:$0xff]
    %v5639 = vld [vmem:[%s5590 + $0x180] sm:$0xff]
    %v5640 = vld [vmem:[%s5590 + $0x188] sm:$0xff]
    %v5641 = vld [vmem:[%s5590 + $0x190] sm:$0xff]
    %v5642 = vld [vmem:[%s5590 + $0x198] sm:$0xff]
    %v5643 = vld [vmem:[%s5590 + $0x1a0] sm:$0xff]
    %v5644 = vld [vmem:[%s5590 + $0x1a8] sm:$0xff]
    %v5645 = vld [vmem:[%s5590 + $0x1b0] sm:$0xff]
    %v5646 = vld [vmem:[%s5590 + $0x1b8] sm:$0xff]
    %v5647 = vld [vmem:[%s5590 + $0x1c0] sm:$0xff]
    %v5648 = vld [vmem:[%s5590 + $0x1c8] sm:$0xff]
    %v5649 = vld [vmem:[%s5590 + $0x1d0] sm:$0xff]
    %v5650 = vld [vmem:[%s5590 + $0x1d8] sm:$0xff]
    %v5651 = vld [vmem:[%s5590 + $0x1e0] sm:$0xff]
    %v5652 = vld [vmem:[%s5590 + $0x1e8] sm:$0xff]
    %v5653 = vld [vmem:[%s5590 + $0x1f0] sm:$0xff]
    %v5654 = vld [vmem:[%s5590 + $0x1f8] sm:$0xff]
    %v5655 = vld [vmem:[%s5590 + $0x200] sm:$0xff]
    %v5656 = vld [vmem:[%s5590 + $0x208] sm:$0xff]
    %v5657 = vld [vmem:[%s5590 + $0x210] sm:$0xff]
    %v5658 = vld [vmem:[%s5590 + $0x218] sm:$0xff]
    %v5659 = vld [vmem:[%s5590 + $0x220] sm:$0xff]
    %v5660 = vld [vmem:[%s5590 + $0x228] sm:$0xff]
    %v5661 = vld [vmem:[%s5590 + $0x230] sm:$0xff]
    %v5662 = vld [vmem:[%s5590 + $0x238] sm:$0xff]
    %v5664 = vrot.slane %v897, 2
    %v5665 = vrot.slane %v898, 2
    %v5667 = vsel %vm1051, %v5665, 0
    %5669 = vmatprep.subr.mxu0 %v5592
    %5670 = vmatpush1.msra.mxu0 %v5591
    %5671 = vmatprep.subr.mxu0 %v5596
    %5672 = vmatpush1.msra.mxu0 %v5595
    %5673 = vmatprep.subr.mxu0 %v5600
    %5674 = vmatpush1.msra.mxu0 %v5599
    %5675 = vmatprep.subr.mxu0 %v5604
    %5676 = vmatpush1.msra.mxu0 %v5603
    %5677 = vmatprep.subr.mxu0 %v5608
    %5678 = vmatpush1.msra.mxu0 %v5607
    %5679 = vmatprep.subr.mxu0 %v5612
    %5680 = vmatpush1.msra.mxu0 %v5611
    %5681 = vmatprep.subr.mxu0 %v5616
    %5682 = vmatpush1.msra.mxu0 %v5615
    %5683 = vmatprep.subr.mxu0 %v5620
    %5684 = vmatpush1.msra.mxu0 %v5619
    %5685 = vmatprep.subr.mxu0 %v5624
    %5686 = vmatpush1.msra.mxu0 %v5623
    %5687 = vmatprep.subr.mxu0 %v5628
    %5688 = vmatpush1.msra.mxu0 %v5627
    %5689 = vmatprep.subr.mxu0 %v5632
    %5690 = vmatpush1.msra.mxu0 %v5631
    %5691 = vmatprep.subr.mxu0 %v5636
    %5692 = vmatpush1.msra.mxu0 %v5635
    %5693 = vmatprep.subr.mxu0 %v5640
    %5694 = vmatpush1.msra.mxu0 %v5639
    %5695 = vmatprep.subr.mxu0 %v5644
    %5696 = vmatpush1.msra.mxu0 %v5643
    %5697 = vmatprep.subr.mxu0 %v5648
    %5698 = vmatpush1.msra.mxu0 %v5647
    %5699 = vmatprep.subr.mxu0 %v5652
    %5700 = vmatpush1.msra.mxu0 %v5651
    %5701 = vmatprep.subr.mxu0 %v5656
    %5702 = vmatpush1.msra.mxu0 %v5655
    %5703 = vmatprep.subr.mxu0 %v5660
    %5704 = vmatpush1.msra.mxu0 %v5659
    %5705 = vmatprep.subr.mxu0 0.0
    %5706 = vmatpush1.msra.mxu0 0.0
    %5707 = vmatprep.subr.mxu0 0.0
    %5708 = vmatpush1.msra.mxu0 0.0
    %5709 = vmatprep.subr.mxu0 0.0
    %5710 = vmatpush1.msra.mxu0 0.0
    %5711 = vmatprep.subr.mxu0 0.0
    %5712 = vmatpush1.msra.mxu0 0.0
    %5713 = vmatprep.subr.mxu0 0.0
    %5714 = vmatpush1.msra.mxu0 0.0
    %5715 = vmatprep.subr.mxu0 0.0
    %5716 = vmatpush1.msra.mxu0 0.0
    %5717 = vmatprep.subr.mxu0 0.0
    %5718 = vmatpush1.msra.mxu0 0.0
    %5719 = vmatprep.subr.mxu0 0.0
    %5720 = vmatpush1.msra.mxu0 0.0
    %5721 = vmatprep.subr.mxu0 0.0
    %5722 = vmatpush1.msra.mxu0 0.0
    %5723 = vmatprep.subr.mxu0 0.0
    %5724 = vmatpush1.msra.mxu0 0.0
    %5725 = vmatprep.subr.mxu0 0.0
    %5726 = vmatpush1.msra.mxu0 0.0
    %5727 = vmatprep.subr.mxu0 0.0
    %5728 = vmatpush1.msra.mxu0 0.0
    %5729 = vmatprep.subr.mxu0 0.0
    %5730 = vmatpush1.msra.mxu0 0.0
    %5731 = vmatprep.subr.mxu0 0.0
    %5732 = vmatpush1.msra.mxu0 0.0
    %5733 = vmatprep.mubr.f32.mxu0 %v5667
    %5734 = vmatmul.mubr.f32.gmra.mrb[0].mxu0 %v5664
    %v5735 = vpop.f32.mrb[0].mxu0
    %v5736 = vadd.f32 0.0, %v5735
    %v5737 = vpop.f32.mrb[0].mxu0
    %v5738 = vadd.f32 0.0, %v5737
    %5739 = vdwg.mxu0
    %5740 = vmatprep.subr.mxu0 %v5594
    %5741 = vmatpush1.msra.mxu0 %v5593
    %5742 = vmatprep.subr.mxu0 %v5598
    %5743 = vmatpush1.msra.mxu0 %v5597
    %5744 = vmatprep.subr.mxu0 %v5602
    %5745 = vmatpush1.msra.mxu0 %v5601
    %5746 = vmatprep.subr.mxu0 %v5606
    %5747 = vmatpush1.msra.mxu0 %v5605
    %5748 = vmatprep.subr.mxu0 %v5610
    %5749 = vmatpush1.msra.mxu0 %v5609
    %5750 = vmatprep.subr.mxu0 %v5614
    %5751 = vmatpush1.msra.mxu0 %v5613
    %5752 = vmatprep.subr.mxu0 %v5618
    %5753 = vmatpush1.msra.mxu0 %v5617
    %5754 = vmatprep.subr.mxu0 %v5622
    %5755 = vmatpush1.msra.mxu0 %v5621
    %5756 = vmatprep.subr.mxu0 %v5626
    %5757 = vmatpush1.msra.mxu0 %v5625
    %5758 = vmatprep.subr.mxu0 %v5630
    %5759 = vmatpush1.msra.mxu0 %v5629
    %5760 = vmatprep.subr.mxu0 %v5634
    %5761 = vmatpush1.msra.mxu0 %v5633
    %5762 = vmatprep.subr.mxu0 %v5638
    %5763 = vmatpush1.msra.mxu0 %v5637
    %5764 = vmatprep.subr.mxu0 %v5642
    %5765 = vmatpush1.msra.mxu0 %v5641
    %5766 = vmatprep.subr.mxu0 %v5646
    %5767 = vmatpush1.msra.mxu0 %v5645
    %5768 = vmatprep.subr.mxu0 %v5650
    %5769 = vmatpush1.msra.mxu0 %v5649
    %5770 = vmatprep.subr.mxu0 %v5654
    %5771 = vmatpush1.msra.mxu0 %v5653
    %5772 = vmatprep.subr.mxu0 %v5658
    %5773 = vmatpush1.msra.mxu0 %v5657
    %5774 = vmatprep.subr.mxu0 %v5662
    %5775 = vmatpush1.msra.mxu0 %v5661
    %5776 = vmatprep.subr.mxu0 0.0
    %5777 = vmatpush1.msra.mxu0 0.0
    %5778 = vmatprep.subr.mxu0 0.0
    %5779 = vmatpush1.msra.mxu0 0.0
    %5780 = vmatprep.subr.mxu0 0.0
    %5781 = vmatpush1.msra.mxu0 0.0
    %5782 = vmatprep.subr.mxu0 0.0
    %5783 = vmatpush1.msra.mxu0 0.0
    %5784 = vmatprep.subr.mxu0 0.0
    %5785 = vmatpush1.msra.mxu0 0.0
    %5786 = vmatprep.subr.mxu0 0.0
    %5787 = vmatpush1.msra.mxu0 0.0
    %5788 = vmatprep.subr.mxu0 0.0
    %5789 = vmatpush1.msra.mxu0 0.0
    %5790 = vmatprep.subr.mxu0 0.0
    %5791 = vmatpush1.msra.mxu0 0.0
    %5792 = vmatprep.subr.mxu0 0.0
    %5793 = vmatpush1.msra.mxu0 0.0
    %5794 = vmatprep.subr.mxu0 0.0
    %5795 = vmatpush1.msra.mxu0 0.0
    %5796 = vmatprep.subr.mxu0 0.0
    %5797 = vmatpush1.msra.mxu0 0.0
    %5798 = vmatprep.subr.mxu0 0.0
    %5799 = vmatpush1.msra.mxu0 0.0
    %5800 = vmatprep.subr.mxu0 0.0
    %5801 = vmatpush1.msra.mxu0 0.0
    %5802 = vmatprep.subr.mxu0 0.0
    %5803 = vmatpush1.msra.mxu0 0.0
    %5804 = vmatprep.mubr.f32.mxu0 %v5667
    %5805 = vmatmul.mubr.f32.gmra.mrb[0].mxu0 %v5664
    %v5806 = vpop.f32.mrb[0].mxu0
    %v5807 = vadd.f32 0.0, %v5806
    %v5808 = vpop.f32.mrb[0].mxu0
    %v5809 = vadd.f32 0.0, %v5808
    %5810 = vdwg.mxu0
    %v5811 = vadd.f32 %v5586, %v5736
    %v5812 = vadd.f32 %v5587, %v5738
    %v5813 = vadd.f32 %v5588, %v5807
    %v5814 = vadd.f32 %v5589, %v5809
    %s5815 = scalar_lea.vmem [#allocation6], 12672
    %v5816 = vld [vmem:[%s5815] sm:$0xff]
    %v5817 = vld [vmem:[%s5815 + $0x8] sm:$0xff]
    %v5818 = vld [vmem:[%s5815 + $0x10] sm:$0xff]
    %v5819 = vld [vmem:[%s5815 + $0x18] sm:$0xff]
    %v5820 = vld [vmem:[%s5815 + $0x20] sm:$0xff]
    %v5821 = vld [vmem:[%s5815 + $0x28] sm:$0xff]
    %v5822 = vld [vmem:[%s5815 + $0x30] sm:$0xff]
    %v5823 = vld [vmem:[%s5815 + $0x38] sm:$0xff]
    %v5824 = vld [vmem:[%s5815 + $0x40] sm:$0xff]
    %v5825 = vld [vmem:[%s5815 + $0x48] sm:$0xff]
    %v5826 = vld [vmem:[%s5815 + $0x50] sm:$0xff]
    %v5827 = vld [vmem:[%s5815 + $0x58] sm:$0xff]
    %v5828 = vld [vmem:[%s5815 + $0x60] sm:$0xff]
    %v5829 = vld [vmem:[%s5815 + $0x68] sm:$0xff]
    %v5830 = vld [vmem:[%s5815 + $0x70] sm:$0xff]
    %v5831 = vld [vmem:[%s5815 + $0x78] sm:$0xff]
    %v5832 = vld [vmem:[%s5815 + $0x80] sm:$0xff]
    %v5833 = vld [vmem:[%s5815 + $0x88] sm:$0xff]
    %v5834 = vld [vmem:[%s5815 + $0x90] sm:$0xff]
    %v5835 = vld [vmem:[%s5815 + $0x98] sm:$0xff]
    %v5836 = vld [vmem:[%s5815 + $0xa0] sm:$0xff]
    %v5837 = vld [vmem:[%s5815 + $0xa8] sm:$0xff]
    %v5838 = vld [vmem:[%s5815 + $0xb0] sm:$0xff]
    %v5839 = vld [vmem:[%s5815 + $0xb8] sm:$0xff]
    %v5840 = vld [vmem:[%s5815 + $0xc0] sm:$0xff]
    %v5841 = vld [vmem:[%s5815 + $0xc8] sm:$0xff]
    %v5842 = vld [vmem:[%s5815 + $0xd0] sm:$0xff]
    %v5843 = vld [vmem:[%s5815 + $0xd8] sm:$0xff]
    %v5844 = vld [vmem:[%s5815 + $0xe0] sm:$0xff]
    %v5845 = vld [vmem:[%s5815 + $0xe8] sm:$0xff]
    %v5846 = vld [vmem:[%s5815 + $0xf0] sm:$0xff]
    %v5847 = vld [vmem:[%s5815 + $0xf8] sm:$0xff]
    %v5848 = vld [vmem:[%s5815 + $0x100] sm:$0xff]
    %v5849 = vld [vmem:[%s5815 + $0x108] sm:$0xff]
    %v5850 = vld [vmem:[%s5815 + $0x110] sm:$0xff]
    %v5851 = vld [vmem:[%s5815 + $0x118] sm:$0xff]
    %v5852 = vld [vmem:[%s5815 + $0x120] sm:$0xff]
    %v5853 = vld [vmem:[%s5815 + $0x128] sm:$0xff]
    %v5854 = vld [vmem:[%s5815 + $0x130] sm:$0xff]
    %v5855 = vld [vmem:[%s5815 + $0x138] sm:$0xff]
    %v5856 = vld [vmem:[%s5815 + $0x140] sm:$0xff]
    %v5857 = vld [vmem:[%s5815 + $0x148] sm:$0xff]
    %v5858 = vld [vmem:[%s5815 + $0x150] sm:$0xff]
    %v5859 = vld [vmem:[%s5815 + $0x158] sm:$0xff]
    %v5860 = vld [vmem:[%s5815 + $0x160] sm:$0xff]
    %v5861 = vld [vmem:[%s5815 + $0x168] sm:$0xff]
    %v5862 = vld [vmem:[%s5815 + $0x170] sm:$0xff]
    %v5863 = vld [vmem:[%s5815 + $0x178] sm:$0xff]
    %v5864 = vld [vmem:[%s5815 + $0x180] sm:$0xff]
    %v5865 = vld [vmem:[%s5815 + $0x188] sm:$0xff]
    %v5866 = vld [vmem:[%s5815 + $0x190] sm:$0xff]
    %v5867 = vld [vmem:[%s5815 + $0x198] sm:$0xff]
    %v5868 = vld [vmem:[%s5815 + $0x1a0] sm:$0xff]
    %v5869 = vld [vmem:[%s5815 + $0x1a8] sm:$0xff]
    %v5870 = vld [vmem:[%s5815 + $0x1b0] sm:$0xff]
    %v5871 = vld [vmem:[%s5815 + $0x1b8] sm:$0xff]
    %v5872 = vld [vmem:[%s5815 + $0x1c0] sm:$0xff]
    %v5873 = vld [vmem:[%s5815 + $0x1c8] sm:$0xff]
    %v5874 = vld [vmem:[%s5815 + $0x1d0] sm:$0xff]
    %v5875 = vld [vmem:[%s5815 + $0x1d8] sm:$0xff]
    %v5876 = vld [vmem:[%s5815 + $0x1e0] sm:$0xff]
    %v5877 = vld [vmem:[%s5815 + $0x1e8] sm:$0xff]
    %v5878 = vld [vmem:[%s5815 + $0x1f0] sm:$0xff]
    %v5879 = vld [vmem:[%s5815 + $0x1f8] sm:$0xff]
    %v5880 = vld [vmem:[%s5815 + $0x200] sm:$0xff]
    %v5881 = vld [vmem:[%s5815 + $0x208] sm:$0xff]
    %v5882 = vld [vmem:[%s5815 + $0x210] sm:$0xff]
    %v5883 = vld [vmem:[%s5815 + $0x218] sm:$0xff]
    %v5884 = vld [vmem:[%s5815 + $0x220] sm:$0xff]
    %v5885 = vld [vmem:[%s5815 + $0x228] sm:$0xff]
    %v5886 = vld [vmem:[%s5815 + $0x230] sm:$0xff]
    %v5887 = vld [vmem:[%s5815 + $0x238] sm:$0xff]
    %v5888 = vrot.slane %v897, 4
    %v5889 = vrot.slane %v898, 4
    %v5891 = vsel %vm1051, %v5889, 0
    %5893 = vmatprep.subr.mxu0 %v5817
    %5894 = vmatpush1.msra.mxu0 %v5816
    %5895 = vmatprep.subr.mxu0 %v5821
    %5896 = vmatpush1.msra.mxu0 %v5820
    %5897 = vmatprep.subr.mxu0 %v5825
    %5898 = vmatpush1.msra.mxu0 %v5824
    %5899 = vmatprep.subr.mxu0 %v5829
    %5900 = vmatpush1.msra.mxu0 %v5828
    %5901 = vmatprep.subr.mxu0 %v5833
    %5902 = vmatpush1.msra.mxu0 %v5832
    %5903 = vmatprep.subr.mxu0 %v5837
    %5904 = vmatpush1.msra.mxu0 %v5836
    %5905 = vmatprep.subr.mxu0 %v5841
    %5906 = vmatpush1.msra.mxu0 %v5840
    %5907 = vmatprep.subr.mxu0 %v5845
    %5908 = vmatpush1.msra.mxu0 %v5844
    %5909 = vmatprep.subr.mxu0 %v5849
    %5910 = vmatpush1.msra.mxu0 %v5848
    %5911 = vmatprep.subr.mxu0 %v5853
    %5912 = vmatpush1.msra.mxu0 %v5852
    %5913 = vmatprep.subr.mxu0 %v5857
    %5914 = vmatpush1.msra.mxu0 %v5856
    %5915 = vmatprep.subr.mxu0 %v5861
    %5916 = vmatpush1.msra.mxu0 %v5860
    %5917 = vmatprep.subr.mxu0 %v5865
    %5918 = vmatpush1.msra.mxu0 %v5864
    %5919 = vmatprep.subr.mxu0 %v5869
    %5920 = vmatpush1.msra.mxu0 %v5868
    %5921 = vmatprep.subr.mxu0 %v5873
    %5922 = vmatpush1.msra.mxu0 %v5872
    %5923 = vmatprep.subr.mxu0 %v5877
    %5924 = vmatpush1.msra.mxu0 %v5876
    %5925 = vmatprep.subr.mxu0 %v5881
    %5926 = vmatpush1.msra.mxu0 %v5880
    %5927 = vmatprep.subr.mxu0 %v5885
    %5928 = vmatpush1.msra.mxu0 %v5884
    %5929 = vmatprep.subr.mxu0 0.0
    %5930 = vmatpush1.msra.mxu0 0.0
    %5931 = vmatprep.subr.mxu0 0.0
    %5932 = vmatpush1.msra.mxu0 0.0
    %5933 = vmatprep.subr.mxu0 0.0
    %5934 = vmatpush1.msra.mxu0 0.0
    %5935 = vmatprep.subr.mxu0 0.0
    %5936 = vmatpush1.msra.mxu0 0.0
    %5937 = vmatprep.subr.mxu0 0.0
    %5938 = vmatpush1.msra.mxu0 0.0
    %5939 = vmatprep.subr.mxu0 0.0
    %5940 = vmatpush1.msra.mxu0 0.0
    %5941 = vmatprep.subr.mxu0 0.0
    %5942 = vmatpush1.msra.mxu0 0.0
    %5943 = vmatprep.subr.mxu0 0.0
    %5944 = vmatpush1.msra.mxu0 0.0
    %5945 = vmatprep.subr.mxu0 0.0
    %5946 = vmatpush1.msra.mxu0 0.0
    %5947 = vmatprep.subr.mxu0 0.0
    %5948 = vmatpush1.msra.mxu0 0.0
    %5949 = vmatprep.subr.mxu0 0.0
    %5950 = vmatpush1.msra.mxu0 0.0
    %5951 = vmatprep.subr.mxu0 0.0
    %5952 = vmatpush1.msra.mxu0 0.0
    %5953 = vmatprep.subr.mxu0 0.0
    %5954 = vmatpush1.msra.mxu0 0.0
    %5955 = vmatprep.subr.mxu0 0.0
    %5956 = vmatpush1.msra.mxu0 0.0
    %5957 = vmatprep.mubr.f32.mxu0 %v5891
    %5958 = vmatmul.mubr.f32.gmra.mrb[0].mxu0 %v5888
    %v5959 = vpop.f32.mrb[0].mxu0
    %v5960 = vadd.f32 0.0, %v5959
    %v5961 = vpop.f32.mrb[0].mxu0
    %v5962 = vadd.f32 0.0, %v5961
    %5963 = vdwg.mxu0
    %5964 = vmatprep.subr.mxu0 %v5819
    %5965 = vmatpush1.msra.mxu0 %v5818
    %5966 = vmatprep.subr.mxu0 %v5823
    %5967 = vmatpush1.msra.mxu0 %v5822
    %5968 = vmatprep.subr.mxu0 %v5827
    %5969 = vmatpush1.msra.mxu0 %v5826
    %5970 = vmatprep.subr.mxu0 %v5831
    %5971 = vmatpush1.msra.mxu0 %v5830
    %5972 = vmatprep.subr.mxu0 %v5835
    %5973 = vmatpush1.msra.mxu0 %v5834
    %5974 = vmatprep.subr.mxu0 %v5839
    %5975 = vmatpush1.msra.mxu0 %v5838
    %5976 = vmatprep.subr.mxu0 %v5843
    %5977 = vmatpush1.msra.mxu0 %v5842
    %5978 = vmatprep.subr.mxu0 %v5847
    %5979 = vmatpush1.msra.mxu0 %v5846
    %5980 = vmatprep.subr.mxu0 %v5851
    %5981 = vmatpush1.msra.mxu0 %v5850
    %5982 = vmatprep.subr.mxu0 %v5855
    %5983 = vmatpush1.msra.mxu0 %v5854
    %5984 = vmatprep.subr.mxu0 %v5859
    %5985 = vmatpush1.msra.mxu0 %v5858
    %5986 = vmatprep.subr.mxu0 %v5863
    %5987 = vmatpush1.msra.mxu0 %v5862
    %5988 = vmatprep.subr.mxu0 %v5867
    %5989 = vmatpush1.msra.mxu0 %v5866
    %5990 = vmatprep.subr.mxu0 %v5871
    %5991 = vmatpush1.msra.mxu0 %v5870
    %5992 = vmatprep.subr.mxu0 %v5875
    %5993 = vmatpush1.msra.mxu0 %v5874
    %5994 = vmatprep.subr.mxu0 %v5879
    %5995 = vmatpush1.msra.mxu0 %v5878
    %5996 = vmatprep.subr.mxu0 %v5883
    %5997 = vmatpush1.msra.mxu0 %v5882
    %5998 = vmatprep.subr.mxu0 %v5887
    %5999 = vmatpush1.msra.mxu0 %v5886
    %6000 = vmatprep.subr.mxu0 0.0
    %6001 = vmatpush1.msra.mxu0 0.0
    %6002 = vmatprep.subr.mxu0 0.0
    %6003 = vmatpush1.msra.mxu0 0.0
    %6004 = vmatprep.subr.mxu0 0.0
    %6005 = vmatpush1.msra.mxu0 0.0
    %6006 = vmatprep.subr.mxu0 0.0
    %6007 = vmatpush1.msra.mxu0 0.0
    %6008 = vmatprep.subr.mxu0 0.0
    %6009 = vmatpush1.msra.mxu0 0.0
    %6010 = vmatprep.subr.mxu0 0.0
    %6011 = vmatpush1.msra.mxu0 0.0
    %6012 = vmatprep.subr.mxu0 0.0
    %6013 = vmatpush1.msra.mxu0 0.0
    %6014 = vmatprep.subr.mxu0 0.0
    %6015 = vmatpush1.msra.mxu0 0.0
    %6016 = vmatprep.subr.mxu0 0.0
    %6017 = vmatpush1.msra.mxu0 0.0
    %6018 = vmatprep.subr.mxu0 0.0
    %6019 = vmatpush1.msra.mxu0 0.0
    %6020 = vmatprep.subr.mxu0 0.0
    %6021 = vmatpush1.msra.mxu0 0.0
    %6022 = vmatprep.subr.mxu0 0.0
    %6023 = vmatpush1.msra.mxu0 0.0
    %6024 = vmatprep.subr.mxu0 0.0
    %6025 = vmatpush1.msra.mxu0 0.0
    %6026 = vmatprep.subr.mxu0 0.0
    %6027 = vmatpush1.msra.mxu0 0.0
    %6028 = vmatprep.mubr.f32.mxu0 %v5891
    %6029 = vmatmul.mubr.f32.gmra.mrb[0].mxu0 %v5888
    %v6030 = vpop.f32.mrb[0].mxu0
    %v6031 = vadd.f32 0.0, %v6030
    %v6032 = vpop.f32.mrb[0].mxu0
    %v6033 = vadd.f32 0.0, %v6032
    %6034 = vdwg.mxu0
    %v6035 = vadd.f32 %v5811, %v5960
    %v6036 = vadd.f32 %v5812, %v5962
    %v6037 = vadd.f32 %v5813, %v6031
    %v6038 = vadd.f32 %v5814, %v6033
    %s6039 = scalar_lea.vmem [#allocation6], 13248
    %v6040 = vld [vmem:[%s6039] sm:$0xff]
    %v6041 = vld [vmem:[%s6039 + $0x8] sm:$0xff]
    %v6042 = vld [vmem:[%s6039 + $0x10] sm:$0xff]
    %v6043 = vld [vmem:[%s6039 + $0x18] sm:$0xff]
    %v6044 = vld [vmem:[%s6039 + $0x20] sm:$0xff]
    %v6045 = vld [vmem:[%s6039 + $0x28] sm:$0xff]
    %v6046 = vld [vmem:[%s6039 + $0x30] sm:$0xff]
    %v6047 = vld [vmem:[%s6039 + $0x38] sm:$0xff]
    %v6048 = vld [vmem:[%s6039 + $0x40] sm:$0xff]
    %v6049 = vld [vmem:[%s6039 + $0x48] sm:$0xff]
    %v6050 = vld [vmem:[%s6039 + $0x50] sm:$0xff]
    %v6051 = vld [vmem:[%s6039 + $0x58] sm:$0xff]
    %v6052 = vld [vmem:[%s6039 + $0x60] sm:$0xff]
    %v6053 = vld [vmem:[%s6039 + $0x68] sm:$0xff]
    %v6054 = vld [vmem:[%s6039 + $0x70] sm:$0xff]
    %v6055 = vld [vmem:[%s6039 + $0x78] sm:$0xff]
    %v6056 = vld [vmem:[%s6039 + $0x80] sm:$0xff]
    %v6057 = vld [vmem:[%s6039 + $0x88] sm:$0xff]
    %v6058 = vld [vmem:[%s6039 + $0x90] sm:$0xff]
    %v6059 = vld [vmem:[%s6039 + $0x98] sm:$0xff]
    %v6060 = vld [vmem:[%s6039 + $0xa0] sm:$0xff]
    %v6061 = vld [vmem:[%s6039 + $0xa8] sm:$0xff]
    %v6062 = vld [vmem:[%s6039 + $0xb0] sm:$0xff]
    %v6063 = vld [vmem:[%s6039 + $0xb8] sm:$0xff]
    %v6064 = vld [vmem:[%s6039 + $0xc0] sm:$0xff]
    %v6065 = vld [vmem:[%s6039 + $0xc8] sm:$0xff]
    %v6066 = vld [vmem:[%s6039 + $0xd0] sm:$0xff]
    %v6067 = vld [vmem:[%s6039 + $0xd8] sm:$0xff]
    %v6068 = vld [vmem:[%s6039 + $0xe0] sm:$0xff]
    %v6069 = vld [vmem:[%s6039 + $0xe8] sm:$0xff]
    %v6070 = vld [vmem:[%s6039 + $0xf0] sm:$0xff]
    %v6071 = vld [vmem:[%s6039 + $0xf8] sm:$0xff]
    %v6072 = vld [vmem:[%s6039 + $0x100] sm:$0xff]
    %v6073 = vld [vmem:[%s6039 + $0x108] sm:$0xff]
    %v6074 = vld [vmem:[%s6039 + $0x110] sm:$0xff]
    %v6075 = vld [vmem:[%s6039 + $0x118] sm:$0xff]
    %v6076 = vld [vmem:[%s6039 + $0x120] sm:$0xff]
    %v6077 = vld [vmem:[%s6039 + $0x128] sm:$0xff]
    %v6078 = vld [vmem:[%s6039 + $0x130] sm:$0xff]
    %v6079 = vld [vmem:[%s6039 + $0x138] sm:$0xff]
    %v6080 = vld [vmem:[%s6039 + $0x140] sm:$0xff]
    %v6081 = vld [vmem:[%s6039 + $0x148] sm:$0xff]
    %v6082 = vld [vmem:[%s6039 + $0x150] sm:$0xff]
    %v6083 = vld [vmem:[%s6039 + $0x158] sm:$0xff]
    %v6084 = vld [vmem:[%s6039 + $0x160] sm:$0xff]
    %v6085 = vld [vmem:[%s6039 + $0x168] sm:$0xff]
    %v6086 = vld [vmem:[%s6039 + $0x170] sm:$0xff]
    %v6087 = vld [vmem:[%s6039 + $0x178] sm:$0xff]
    %v6088 = vld [vmem:[%s6039 + $0x180] sm:$0xff]
    %v6089 = vld [vmem:[%s6039 + $0x188] sm:$0xff]
    %v6090 = vld [vmem:[%s6039 + $0x190] sm:$0xff]
    %v6091 = vld [vmem:[%s6039 + $0x198] sm:$0xff]
    %v6092 = vld [vmem:[%s6039 + $0x1a0] sm:$0xff]
    %v6093 = vld [vmem:[%s6039 + $0x1a8] sm:$0xff]
    %v6094 = vld [vmem:[%s6039 + $0x1b0] sm:$0xff]
    %v6095 = vld [vmem:[%s6039 + $0x1b8] sm:$0xff]
    %v6096 = vld [vmem:[%s6039 + $0x1c0] sm:$0xff]
    %v6097 = vld [vmem:[%s6039 + $0x1c8] sm:$0xff]
    %v6098 = vld [vmem:[%s6039 + $0x1d0] sm:$0xff]
    %v6099 = vld [vmem:[%s6039 + $0x1d8] sm:$0xff]
    %v6100 = vld [vmem:[%s6039 + $0x1e0] sm:$0xff]
    %v6101 = vld [vmem:[%s6039 + $0x1e8] sm:$0xff]
    %v6102 = vld [vmem:[%s6039 + $0x1f0] sm:$0xff]
    %v6103 = vld [vmem:[%s6039 + $0x1f8] sm:$0xff]
    %v6104 = vld [vmem:[%s6039 + $0x200] sm:$0xff]
    %v6105 = vld [vmem:[%s6039 + $0x208] sm:$0xff]
    %v6106 = vld [vmem:[%s6039 + $0x210] sm:$0xff]
    %v6107 = vld [vmem:[%s6039 + $0x218] sm:$0xff]
    %v6108 = vld [vmem:[%s6039 + $0x220] sm:$0xff]
    %v6109 = vld [vmem:[%s6039 + $0x228] sm:$0xff]
    %v6110 = vld [vmem:[%s6039 + $0x230] sm:$0xff]
    %v6111 = vld [vmem:[%s6039 + $0x238] sm:$0xff]
    %v6112 = vrot.slane %v897, 6
    %v6113 = vrot.slane %v898, 6
    %v6115 = vsel %vm1051, %v6113, 0
    %6117 = vmatprep.subr.mxu0 %v6041
    %6118 = vmatpush1.msra.mxu0 %v6040
    %6119 = vmatprep.subr.mxu0 %v6045
    %6120 = vmatpush1.msra.mxu0 %v6044
    %6121 = vmatprep.subr.mxu0 %v6049
    %6122 = vmatpush1.msra.mxu0 %v6048
    %6123 = vmatprep.subr.mxu0 %v6053
    %6124 = vmatpush1.msra.mxu0 %v6052
    %6125 = vmatprep.subr.mxu0 %v6057
    %6126 = vmatpush1.msra.mxu0 %v6056
    %6127 = vmatprep.subr.mxu0 %v6061
    %6128 = vmatpush1.msra.mxu0 %v6060
    %6129 = vmatprep.subr.mxu0 %v6065
    %6130 = vmatpush1.msra.mxu0 %v6064
    %6131 = vmatprep.subr.mxu0 %v6069
    %6132 = vmatpush1.msra.mxu0 %v6068
    %6133 = vmatprep.subr.mxu0 %v6073
    %6134 = vmatpush1.msra.mxu0 %v6072
    %6135 = vmatprep.subr.mxu0 %v6077
    %6136 = vmatpush1.msra.mxu0 %v6076
    %6137 = vmatprep.subr.mxu0 %v6081
    %6138 = vmatpush1.msra.mxu0 %v6080
    %6139 = vmatprep.subr.mxu0 %v6085
    %6140 = vmatpush1.msra.mxu0 %v6084
    %6141 = vmatprep.subr.mxu0 %v6089
    %6142 = vmatpush1.msra.mxu0 %v6088
    %6143 = vmatprep.subr.mxu0 %v6093
    %6144 = vmatpush1.msra.mxu0 %v6092
    %6145 = vmatprep.subr.mxu0 %v6097
    %6146 = vmatpush1.msra.mxu0 %v6096
    %6147 = vmatprep.subr.mxu0 %v6101
    %6148 = vmatpush1.msra.mxu0 %v6100
    %6149 = vmatprep.subr.mxu0 %v6105
    %6150 = vmatpush1.msra.mxu0 %v6104
    %6151 = vmatprep.subr.mxu0 %v6109
    %6152 = vmatpush1.msra.mxu0 %v6108
    %6153 = vmatprep.subr.mxu0 0.0
    %6154 = vmatpush1.msra.mxu0 0.0
    %6155 = vmatprep.subr.mxu0 0.0
    %6156 = vmatpush1.msra.mxu0 0.0
    %6157 = vmatprep.subr.mxu0 0.0
    %6158 = vmatpush1.msra.mxu0 0.0
    %6159 = vmatprep.subr.mxu0 0.0
    %6160 = vmatpush1.msra.mxu0 0.0
    %6161 = vmatprep.subr.mxu0 0.0
    %6162 = vmatpush1.msra.mxu0 0.0
    %6163 = vmatprep.subr.mxu0 0.0
    %6164 = vmatpush1.msra.mxu0 0.0
    %6165 = vmatprep.subr.mxu0 0.0
    %6166 = vmatpush1.msra.mxu0 0.0
    %6167 = vmatprep.subr.mxu0 0.0
    %6168 = vmatpush1.msra.mxu0 0.0
    %6169 = vmatprep.subr.mxu0 0.0
    %6170 = vmatpush1.msra.mxu0 0.0
    %6171 = vmatprep.subr.mxu0 0.0
    %6172 = vmatpush1.msra.mxu0 0.0
    %6173 = vmatprep.subr.mxu0 0.0
    %6174 = vmatpush1.msra.mxu0 0.0
    %6175 = vmatprep.subr.mxu0 0.0
    %6176 = vmatpush1.msra.mxu0 0.0
    %6177 = vmatprep.subr.mxu0 0.0
    %6178 = vmatpush1.msra.mxu0 0.0
    %6179 = vmatprep.subr.mxu0 0.0
    %6180 = vmatpush1.msra.mxu0 0.0
    %6181 = vmatprep.mubr.f32.mxu0 %v6115
    %6182 = vmatmul.mubr.f32.gmra.mrb[0].mxu0 %v6112
    %v6183 = vpop.f32.mrb[0].mxu0
    %v6184 = vadd.f32 0.0, %v6183
    %v6185 = vpop.f32.mrb[0].mxu0
    %v6186 = vadd.f32 0.0, %v6185
    %6187 = vdwg.mxu0
    %6188 = vmatprep.subr.mxu0 %v6043
    %6189 = vmatpush1.msra.mxu0 %v6042
    %6190 = vmatprep.subr.mxu0 %v6047
    %6191 = vmatpush1.msra.mxu0 %v6046
    %6192 = vmatprep.subr.mxu0 %v6051
    %6193 = vmatpush1.msra.mxu0 %v6050
    %6194 = vmatprep.subr.mxu0 %v6055
    %6195 = vmatpush1.msra.mxu0 %v6054
    %6196 = vmatprep.subr.mxu0 %v6059
    %6197 = vmatpush1.msra.mxu0 %v6058
    %6198 = vmatprep.subr.mxu0 %v6063
    %6199 = vmatpush1.msra.mxu0 %v6062
    %6200 = vmatprep.subr.mxu0 %v6067
    %6201 = vmatpush1.msra.mxu0 %v6066
    %6202 = vmatprep.subr.mxu0 %v6071
    %6203 = vmatpush1.msra.mxu0 %v6070
    %6204 = vmatprep.subr.mxu0 %v6075
    %6205 = vmatpush1.msra.mxu0 %v6074
    %6206 = vmatprep.subr.mxu0 %v6079
    %6207 = vmatpush1.msra.mxu0 %v6078
    %6208 = vmatprep.subr.mxu0 %v6083
    %6209 = vmatpush1.msra.mxu0 %v6082
    %6210 = vmatprep.subr.mxu0 %v6087
    %6211 = vmatpush1.msra.mxu0 %v6086
    %6212 = vmatprep.subr.mxu0 %v6091
    %6213 = vmatpush1.msra.mxu0 %v6090
    %6214 = vmatprep.subr.mxu0 %v6095
    %6215 = vmatpush1.msra.mxu0 %v6094
    %6216 = vmatprep.subr.mxu0 %v6099
    %6217 = vmatpush1.msra.mxu0 %v6098
    %6218 = vmatprep.subr.mxu0 %v6103
    %6219 = vmatpush1.msra.mxu0 %v6102
    %6220 = vmatprep.subr.mxu0 %v6107
    %6221 = vmatpush1.msra.mxu0 %v6106
    %6222 = vmatprep.subr.mxu0 %v6111
    %6223 = vmatpush1.msra.mxu0 %v6110
    %6224 = vmatprep.subr.mxu0 0.0
    %6225 = vmatpush1.msra.mxu0 0.0
    %6226 = vmatprep.subr.mxu0 0.0
    %6227 = vmatpush1.msra.mxu0 0.0
    %6228 = vmatprep.subr.mxu0 0.0
    %6229 = vmatpush1.msra.mxu0 0.0
    %6230 = vmatprep.subr.mxu0 0.0
    %6231 = vmatpush1.msra.mxu0 0.0
    %6232 = vmatprep.subr.mxu0 0.0
    %6233 = vmatpush1.msra.mxu0 0.0
    %6234 = vmatprep.subr.mxu0 0.0
    %6235 = vmatpush1.msra.mxu0 0.0
    %6236 = vmatprep.subr.mxu0 0.0
    %6237 = vmatpush1.msra.mxu0 0.0
    %6238 = vmatprep.subr.mxu0 0.0
    %6239 = vmatpush1.msra.mxu0 0.0
    %6240 = vmatprep.subr.mxu0 0.0
    %6241 = vmatpush1.msra.mxu0 0.0
    %6242 = vmatprep.subr.mxu0 0.0
    %6243 = vmatpush1.msra.mxu0 0.0
    %6244 = vmatprep.subr.mxu0 0.0
    %6245 = vmatpush1.msra.mxu0 0.0
    %6246 = vmatprep.subr.mxu0 0.0
    %6247 = vmatpush1.msra.mxu0 0.0
    %6248 = vmatprep.subr.mxu0 0.0
    %6249 = vmatpush1.msra.mxu0 0.0
    %6250 = vmatprep.subr.mxu0 0.0
    %6251 = vmatpush1.msra.mxu0 0.0
    %6252 = vmatprep.mubr.f32.mxu0 %v6115
    %6253 = vmatmul.mubr.f32.gmra.mrb[0].mxu0 %v6112
    %v6254 = vpop.f32.mrb[0].mxu0
    %v6255 = vadd.f32 0.0, %v6254
    %v6256 = vpop.f32.mrb[0].mxu0
    %v6257 = vadd.f32 0.0, %v6256
    %6258 = vdwg.mxu0
    %v6259 = vadd.f32 %v6035, %v6184
    %v6260 = vadd.f32 %v6036, %v6186
    %v6261 = vadd.f32 %v6037, %v6255
    %v6262 = vadd.f32 %v6038, %v6257
    %s6263 = scalar_lea.vmem [#allocation6], 13824
    %v6264 = vld [vmem:[%s6263] sm:$0xff]
    %v6265 = vld [vmem:[%s6263 + $0x8] sm:$0xff]
    %v6266 = vld [vmem:[%s6263 + $0x10] sm:$0xff]
    %v6267 = vld [vmem:[%s6263 + $0x18] sm:$0xff]
    %v6268 = vld [vmem:[%s6263 + $0x20] sm:$0xff]
    %v6269 = vld [vmem:[%s6263 + $0x28] sm:$0xff]
    %v6270 = vld [vmem:[%s6263 + $0x30] sm:$0xff]
    %v6271 = vld [vmem:[%s6263 + $0x38] sm:$0xff]
    %v6272 = vld [vmem:[%s6263 + $0x40] sm:$0xff]
    %v6273 = vld [vmem:[%s6263 + $0x48] sm:$0xff]
    %v6274 = vld [vmem:[%s6263 + $0x50] sm:$0xff]
    %v6275 = vld [vmem:[%s6263 + $0x58] sm:$0xff]
    %v6276 = vld [vmem:[%s6263 + $0x60] sm:$0xff]
    %v6277 = vld [vmem:[%s6263 + $0x68] sm:$0xff]
    %v6278 = vld [vmem:[%s6263 + $0x70] sm:$0xff]
    %v6279 = vld [vmem:[%s6263 + $0x78] sm:$0xff]
    %v6280 = vld [vmem:[%s6263 + $0x80] sm:$0xff]
    %v6281 = vld [vmem:[%s6263 + $0x88] sm:$0xff]
    %v6282 = vld [vmem:[%s6263 + $0x90] sm:$0xff]
    %v6283 = vld [vmem:[%s6263 + $0x98] sm:$0xff]
    %v6284 = vld [vmem:[%s6263 + $0xa0] sm:$0xff]
    %v6285 = vld [vmem:[%s6263 + $0xa8] sm:$0xff]
    %v6286 = vld [vmem:[%s6263 + $0xb0] sm:$0xff]
    %v6287 = vld [vmem:[%s6263 + $0xb8] sm:$0xff]
    %v6288 = vld [vmem:[%s6263 + $0xc0] sm:$0xff]
    %v6289 = vld [vmem:[%s6263 + $0xc8] sm:$0xff]
    %v6290 = vld [vmem:[%s6263 + $0xd0] sm:$0xff]
    %v6291 = vld [vmem:[%s6263 + $0xd8] sm:$0xff]
    %v6292 = vld [vmem:[%s6263 + $0xe0] sm:$0xff]
    %v6293 = vld [vmem:[%s6263 + $0xe8] sm:$0xff]
    %v6294 = vld [vmem:[%s6263 + $0xf0] sm:$0xff]
    %v6295 = vld [vmem:[%s6263 + $0xf8] sm:$0xff]
    %v6296 = vld [vmem:[%s6263 + $0x100] sm:$0xff]
    %v6297 = vld [vmem:[%s6263 + $0x108] sm:$0xff]
    %v6298 = vld [vmem:[%s6263 + $0x110] sm:$0xff]
    %v6299 = vld [vmem:[%s6263 + $0x118] sm:$0xff]
    %v6300 = vld [vmem:[%s6263 + $0x120] sm:$0xff]
    %v6301 = vld [vmem:[%s6263 + $0x128] sm:$0xff]
    %v6302 = vld [vmem:[%s6263 + $0x130] sm:$0xff]
    %v6303 = vld [vmem:[%s6263 + $0x138] sm:$0xff]
    %v6304 = vld [vmem:[%s6263 + $0x140] sm:$0xff]
    %v6305 = vld [vmem:[%s6263 + $0x148] sm:$0xff]
    %v6306 = vld [vmem:[%s6263 + $0x150] sm:$0xff]
    %v6307 = vld [vmem:[%s6263 + $0x158] sm:$0xff]
    %v6308 = vld [vmem:[%s6263 + $0x160] sm:$0xff]
    %v6309 = vld [vmem:[%s6263 + $0x168] sm:$0xff]
    %v6310 = vld [vmem:[%s6263 + $0x170] sm:$0xff]
    %v6311 = vld [vmem:[%s6263 + $0x178] sm:$0xff]
    %v6312 = vld [vmem:[%s6263 + $0x180] sm:$0xff]
    %v6313 = vld [vmem:[%s6263 + $0x188] sm:$0xff]
    %v6314 = vld [vmem:[%s6263 + $0x190] sm:$0xff]
    %v6315 = vld [vmem:[%s6263 + $0x198] sm:$0xff]
    %v6316 = vld [vmem:[%s6263 + $0x1a0] sm:$0xff]
    %v6317 = vld [vmem:[%s6263 + $0x1a8] sm:$0xff]
    %v6318 = vld [vmem:[%s6263 + $0x1b0] sm:$0xff]
    %v6319 = vld [vmem:[%s6263 + $0x1b8] sm:$0xff]
    %v6320 = vld [vmem:[%s6263 + $0x1c0] sm:$0xff]
    %v6321 = vld [vmem:[%s6263 + $0x1c8] sm:$0xff]
    %v6322 = vld [vmem:[%s6263 + $0x1d0] sm:$0xff]
    %v6323 = vld [vmem:[%s6263 + $0x1d8] sm:$0xff]
    %v6324 = vld [vmem:[%s6263 + $0x1e0] sm:$0xff]
    %v6325 = vld [vmem:[%s6263 + $0x1e8] sm:$0xff]
    %v6326 = vld [vmem:[%s6263 + $0x1f0] sm:$0xff]
    %v6327 = vld [vmem:[%s6263 + $0x1f8] sm:$0xff]
    %v6328 = vld [vmem:[%s6263 + $0x200] sm:$0xff]
    %v6329 = vld [vmem:[%s6263 + $0x208] sm:$0xff]
    %v6330 = vld [vmem:[%s6263 + $0x210] sm:$0xff]
    %v6331 = vld [vmem:[%s6263 + $0x218] sm:$0xff]
    %v6332 = vld [vmem:[%s6263 + $0x220] sm:$0xff]
    %v6333 = vld [vmem:[%s6263 + $0x228] sm:$0xff]
    %v6334 = vld [vmem:[%s6263 + $0x230] sm:$0xff]
    %v6335 = vld [vmem:[%s6263 + $0x238] sm:$0xff]
    %v6337 = vsel %vm1051, %v900, 0
    %6339 = vmatprep.subr.mxu0 %v6265
    %6340 = vmatpush1.msra.mxu0 %v6264
    %6341 = vmatprep.subr.mxu0 %v6269
    %6342 = vmatpush1.msra.mxu0 %v6268
    %6343 = vmatprep.subr.mxu0 %v6273
    %6344 = vmatpush1.msra.mxu0 %v6272
    %6345 = vmatprep.subr.mxu0 %v6277
    %6346 = vmatpush1.msra.mxu0 %v6276
    %6347 = vmatprep.subr.mxu0 %v6281
    %6348 = vmatpush1.msra.mxu0 %v6280
    %6349 = vmatprep.subr.mxu0 %v6285
    %6350 = vmatpush1.msra.mxu0 %v6284
    %6351 = vmatprep.subr.mxu0 %v6289
    %6352 = vmatpush1.msra.mxu0 %v6288
    %6353 = vmatprep.subr.mxu0 %v6293
    %6354 = vmatpush1.msra.mxu0 %v6292
    %6355 = vmatprep.subr.mxu0 %v6297
    %6356 = vmatpush1.msra.mxu0 %v6296
    %6357 = vmatprep.subr.mxu0 %v6301
    %6358 = vmatpush1.msra.mxu0 %v6300
    %6359 = vmatprep.subr.mxu0 %v6305
    %6360 = vmatpush1.msra.mxu0 %v6304
    %6361 = vmatprep.subr.mxu0 %v6309
    %6362 = vmatpush1.msra.mxu0 %v6308
    %6363 = vmatprep.subr.mxu0 %v6313
    %6364 = vmatpush1.msra.mxu0 %v6312
    %6365 = vmatprep.subr.mxu0 %v6317
    %6366 = vmatpush1.msra.mxu0 %v6316
    %6367 = vmatprep.subr.mxu0 %v6321
    %6368 = vmatpush1.msra.mxu0 %v6320
    %6369 = vmatprep.subr.mxu0 %v6325
    %6370 = vmatpush1.msra.mxu0 %v6324
    %6371 = vmatprep.subr.mxu0 %v6329
    %6372 = vmatpush1.msra.mxu0 %v6328
    %6373 = vmatprep.subr.mxu0 %v6333
    %6374 = vmatpush1.msra.mxu0 %v6332
    %6375 = vmatprep.subr.mxu0 0.0
    %6376 = vmatpush1.msra.mxu0 0.0
    %6377 = vmatprep.subr.mxu0 0.0
    %6378 = vmatpush1.msra.mxu0 0.0
    %6379 = vmatprep.subr.mxu0 0.0
    %6380 = vmatpush1.msra.mxu0 0.0
    %6381 = vmatprep.subr.mxu0 0.0
    %6382 = vmatpush1.msra.mxu0 0.0
    %6383 = vmatprep.subr.mxu0 0.0
    %6384 = vmatpush1.msra.mxu0 0.0
    %6385 = vmatprep.subr.mxu0 0.0
    %6386 = vmatpush1.msra.mxu0 0.0
    %6387 = vmatprep.subr.mxu0 0.0
    %6388 = vmatpush1.msra.mxu0 0.0
    %6389 = vmatprep.subr.mxu0 0.0
    %6390 = vmatpush1.msra.mxu0 0.0
    %6391 = vmatprep.subr.mxu0 0.0
    %6392 = vmatpush1.msra.mxu0 0.0
    %6393 = vmatprep.subr.mxu0 0.0
    %6394 = vmatpush1.msra.mxu0 0.0
    %6395 = vmatprep.subr.mxu0 0.0
    %6396 = vmatpush1.msra.mxu0 0.0
    %6397 = vmatprep.subr.mxu0 0.0
    %6398 = vmatpush1.msra.mxu0 0.0
    %6399 = vmatprep.subr.mxu0 0.0
    %6400 = vmatpush1.msra.mxu0 0.0
    %6401 = vmatprep.subr.mxu0 0.0
    %6402 = vmatpush1.msra.mxu0 0.0
    %6403 = vmatprep.mubr.f32.mxu0 %v6337
    %6404 = vmatmul.mubr.f32.gmra.mrb[0].mxu0 %v899
    %v6405 = vpop.f32.mrb[0].mxu0
    %v6406 = vadd.f32 0.0, %v6405
    %v6407 = vpop.f32.mrb[0].mxu0
    %v6408 = vadd.f32 0.0, %v6407
    %6409 = vdwg.mxu0
    %6410 = vmatprep.subr.mxu0 %v6267
    %6411 = vmatpush1.msra.mxu0 %v6266
    %6412 = vmatprep.subr.mxu0 %v6271
    %6413 = vmatpush1.msra.mxu0 %v6270
    %6414 = vmatprep.subr.mxu0 %v6275
    %6415 = vmatpush1.msra.mxu0 %v6274
    %6416 = vmatprep.subr.mxu0 %v6279
    %6417 = vmatpush1.msra.mxu0 %v6278
    %6418 = vmatprep.subr.mxu0 %v6283
    %6419 = vmatpush1.msra.mxu0 %v6282
    %6420 = vmatprep.subr.mxu0 %v6287
    %6421 = vmatpush1.msra.mxu0 %v6286
    %6422 = vmatprep.subr.mxu0 %v6291
    %6423 = vmatpush1.msra.mxu0 %v6290
    %6424 = vmatprep.subr.mxu0 %v6295
    %6425 = vmatpush1.msra.mxu0 %v6294
    %6426 = vmatprep.subr.mxu0 %v6299
    %6427 = vmatpush1.msra.mxu0 %v6298
    %6428 = vmatprep.subr.mxu0 %v6303
    %6429 = vmatpush1.msra.mxu0 %v6302
    %6430 = vmatprep.subr.mxu0 %v6307
    %6431 = vmatpush1.msra.mxu0 %v6306
    %6432 = vmatprep.subr.mxu0 %v6311
    %6433 = vmatpush1.msra.mxu0 %v6310
    %6434 = vmatprep.subr.mxu0 %v6315
    %6435 = vmatpush1.msra.mxu0 %v6314
    %6436 = vmatprep.subr.mxu0 %v6319
    %6437 = vmatpush1.msra.mxu0 %v6318
    %6438 = vmatprep.subr.mxu0 %v6323
    %6439 = vmatpush1.msra.mxu0 %v6322
    %6440 = vmatprep.subr.mxu0 %v6327
    %6441 = vmatpush1.msra.mxu0 %v6326
    %6442 = vmatprep.subr.mxu0 %v6331
    %6443 = vmatpush1.msra.mxu0 %v6330
    %6444 = vmatprep.subr.mxu0 %v6335
    %6445 = vmatpush1.msra.mxu0 %v6334
    %6446 = vmatprep.subr.mxu0 0.0
    %6447 = vmatpush1.msra.mxu0 0.0
    %6448 = vmatprep.subr.mxu0 0.0
    %6449 = vmatpush1.msra.mxu0 0.0
    %6450 = vmatprep.subr.mxu0 0.0
    %6451 = vmatpush1.msra.mxu0 0.0
    %6452 = vmatprep.subr.mxu0 0.0
    %6453 = vmatpush1.msra.mxu0 0.0
    %6454 = vmatprep.subr.mxu0 0.0
    %6455 = vmatpush1.msra.mxu0 0.0
    %6456 = vmatprep.subr.mxu0 0.0
    %6457 = vmatpush1.msra.mxu0 0.0
    %6458 = vmatprep.subr.mxu0 0.0
    %6459 = vmatpush1.msra.mxu0 0.0
    %6460 = vmatprep.subr.mxu0 0.0
    %6461 = vmatpush1.msra.mxu0 0.0
    %6462 = vmatprep.subr.mxu0 0.0
    %6463 = vmatpush1.msra.mxu0 0.0
    %6464 = vmatprep.subr.mxu0 0.0
    %6465 = vmatpush1.msra.mxu0 0.0
    %6466 = vmatprep.subr.mxu0 0.0
    %6467 = vmatpush1.msra.mxu0 0.0
    %6468 = vmatprep.subr.mxu0 0.0
    %6469 = vmatpush1.msra.mxu0 0.0
    %6470 = vmatprep.subr.mxu0 0.0
    %6471 = vmatpush1.msra.mxu0 0.0
    %6472 = vmatprep.subr.mxu0 0.0
    %6473 = vmatpush1.msra.mxu0 0.0
    %6474 = vmatprep.mubr.f32.mxu0 %v6337
    %6475 = vmatmul.mubr.f32.gmra.mrb[0].mxu0 %v899
    %v6476 = vpop.f32.mrb[0].mxu0
    %v6477 = vadd.f32 0.0, %v6476
    %v6478 = vpop.f32.mrb[0].mxu0
    %v6479 = vadd.f32 0.0, %v6478
    %6480 = vdwg.mxu0
    %v6481 = vadd.f32 %v6259, %v6406
    %v6482 = vadd.f32 %v6260, %v6408
    %v6483 = vadd.f32 %v6261, %v6477
    %v6484 = vadd.f32 %v6262, %v6479
    %v6485 = vld [vmem:[#allocation8] sm:$0xf]
    %v6487 = vlaneseq
    %v6488 = vshrl.u32 %v6487, 7
    %v6489 = vsub.s32 0, %v6488
    %v6490 = vrot.slane %v6485, %v6489
    %v6491 = vlaneseq
    %v6492 = vshrl.u32 %v6491, 7
    %v6493 = vsub.s32 1, %v6492
    %v6494 = vrot.slane %v6485, %v6493
    %v6495 = vlaneseq
    %v6496 = vshrl.u32 %v6495, 7
    %v6497 = vsub.s32 2, %v6496
    %v6498 = vrot.slane %v6485, %v6497
    %v6499 = vlaneseq
    %v6500 = vshrl.u32 %v6499, 7
    %v6501 = vsub.s32 3, %v6500
    %v6502 = vrot.slane %v6485, %v6501
    %v6507 = vadd.f32 %v6481, %v6490
    %v6508 = vadd.f32 %v6482, %v6494
    %v6509 = vadd.f32 %v6483, %v6498
    %v6510 = vadd.f32 %v6484, %v6502
    %v6511 = vmax.f32 %v6507, 0.0
    %v6512 = vmax.f32 %v6508, 0.0
    %v6513 = vmax.f32 %v6509, 0.0
    %v6514 = vmax.f32 %v6510, 0.0
    %v6515 = vld [vmem:[#allocation9] sm:$0xff]
    %v6516 = vld [vmem:[#allocation9 + $0x8] sm:$0xff]
    %v6517 = vld [vmem:[#allocation9 + $0x10] sm:$0xff]
    %v6518 = vld [vmem:[#allocation9 + $0x18] sm:$0xff]
    %v6519 = vld [vmem:[#allocation9 + $0x20] sm:$0xff]
    %v6520 = vld [vmem:[#allocation9 + $0x28] sm:$0xff]
    %v6521 = vld [vmem:[#allocation9 + $0x30] sm:$0xff]
    %v6522 = vld [vmem:[#allocation9 + $0x38] sm:$0xff]
    %v6523 = vld [vmem:[#allocation9 + $0x40] sm:$0xff]
    %v6524 = vld [vmem:[#allocation9 + $0x48] sm:$0xff]
    %v6525 = vld [vmem:[#allocation9 + $0x50] sm:$0xff]
    %v6526 = vld [vmem:[#allocation9 + $0x58] sm:$0xff]
    %v6527 = vld [vmem:[#allocation9 + $0x60] sm:$0xff]
    %v6528 = vld [vmem:[#allocation9 + $0x68] sm:$0xff]
    %v6529 = vld [vmem:[#allocation9 + $0x70] sm:$0xff]
    %v6530 = vld [vmem:[#allocation9 + $0x78] sm:$0xff]
    %v6531 = vld [vmem:[#allocation9 + $0x80] sm:$0xff]
    %v6532 = vld [vmem:[#allocation9 + $0x88] sm:$0xff]
    %v6533 = vld [vmem:[#allocation9 + $0x90] sm:$0xff]
    %v6534 = vld [vmem:[#allocation9 + $0x98] sm:$0xff]
    %v6535 = vld [vmem:[#allocation9 + $0xa0] sm:$0xff]
    %v6536 = vld [vmem:[#allocation9 + $0xa8] sm:$0xff]
    %v6537 = vld [vmem:[#allocation9 + $0xb0] sm:$0xff]
    %v6538 = vld [vmem:[#allocation9 + $0xb8] sm:$0xff]
    %v6539 = vld [vmem:[#allocation9 + $0xc0] sm:$0xff]
    %v6540 = vld [vmem:[#allocation9 + $0xc8] sm:$0xff]
    %v6541 = vld [vmem:[#allocation9 + $0xd0] sm:$0xff]
    %v6542 = vld [vmem:[#allocation9 + $0xd8] sm:$0xff]
    %v6543 = vld [vmem:[#allocation9 + $0xe0] sm:$0xff]
    %v6544 = vld [vmem:[#allocation9 + $0xe8] sm:$0xff]
    %v6545 = vld [vmem:[#allocation9 + $0xf0] sm:$0xff]
    %v6546 = vld [vmem:[#allocation9 + $0xf8] sm:$0xff]
    %v6547 = vld [vmem:[#allocation9 + $0x100] sm:$0xff]
    %v6548 = vld [vmem:[#allocation9 + $0x108] sm:$0xff]
    %v6549 = vld [vmem:[#allocation9 + $0x110] sm:$0xff]
    %v6550 = vld [vmem:[#allocation9 + $0x118] sm:$0xff]
    %v6551 = vld [vmem:[#allocation9 + $0x120] sm:$0xff]
    %v6552 = vld [vmem:[#allocation9 + $0x128] sm:$0xff]
    %v6553 = vld [vmem:[#allocation9 + $0x130] sm:$0xff]
    %v6554 = vld [vmem:[#allocation9 + $0x138] sm:$0xff]
    %v6555 = vld [vmem:[#allocation9 + $0x140] sm:$0xff]
    %v6556 = vld [vmem:[#allocation9 + $0x148] sm:$0xff]
    %v6557 = vld [vmem:[#allocation9 + $0x150] sm:$0xff]
    %v6558 = vld [vmem:[#allocation9 + $0x158] sm:$0xff]
    %v6559 = vld [vmem:[#allocation9 + $0x160] sm:$0xff]
    %v6560 = vld [vmem:[#allocation9 + $0x168] sm:$0xff]
    %v6561 = vld [vmem:[#allocation9 + $0x170] sm:$0xff]
    %v6562 = vld [vmem:[#allocation9 + $0x178] sm:$0xff]
    %v6563 = vld [vmem:[#allocation9 + $0x180] sm:$0xff]
    %v6564 = vld [vmem:[#allocation9 + $0x188] sm:$0xff]
    %v6565 = vld [vmem:[#allocation9 + $0x190] sm:$0xff]
    %v6566 = vld [vmem:[#allocation9 + $0x198] sm:$0xff]
    %v6567 = vld [vmem:[#allocation9 + $0x1a0] sm:$0xff]
    %v6568 = vld [vmem:[#allocation9 + $0x1a8] sm:$0xff]
    %v6569 = vld [vmem:[#allocation9 + $0x1b0] sm:$0xff]
    %v6570 = vld [vmem:[#allocation9 + $0x1b8] sm:$0xff]
    %v6571 = vld [vmem:[#allocation9 + $0x1c0] sm:$0xff]
    %v6572 = vld [vmem:[#allocation9 + $0x1c8] sm:$0xff]
    %v6573 = vld [vmem:[#allocation9 + $0x1d0] sm:$0xff]
    %v6574 = vld [vmem:[#allocation9 + $0x1d8] sm:$0xff]
    %v6575 = vld [vmem:[#allocation9 + $0x1e0] sm:$0xff]
    %v6576 = vld [vmem:[#allocation9 + $0x1e8] sm:$0xff]
    %v6577 = vld [vmem:[#allocation9 + $0x1f0] sm:$0xff]
    %v6578 = vld [vmem:[#allocation9 + $0x1f8] sm:$0xff]
    %v6579 = vld [vmem:[#allocation11] sm:$0x1]
    %v6581 = vlaneseq
    %v6582 = vshrl.u32 %v6581, 7
    %v6583 = vsub.s32 0, %v6582
    %v6584 = vrot.slane %v6579, %v6583
    %6586 = vmatprep.subr.mxu0 0.0
    %6587 = vmatpush1.msra.mxu0 %v6515
    %6588 = vmatprep.subr.mxu0 0.0
    %6589 = vmatpush1.msra.mxu0 %v6516
    %6590 = vmatprep.subr.mxu0 0.0
    %6591 = vmatpush1.msra.mxu0 %v6517
    %6592 = vmatprep.subr.mxu0 0.0
    %6593 = vmatpush1.msra.mxu0 %v6518
    %6594 = vmatprep.subr.mxu0 0.0
    %6595 = vmatpush1.msra.mxu0 %v6519
    %6596 = vmatprep.subr.mxu0 0.0
    %6597 = vmatpush1.msra.mxu0 %v6520
    %6598 = vmatprep.subr.mxu0 0.0
    %6599 = vmatpush1.msra.mxu0 %v6521
    %6600 = vmatprep.subr.mxu0 0.0
    %6601 = vmatpush1.msra.mxu0 %v6522
    %6602 = vmatprep.subr.mxu0 0.0
    %6603 = vmatpush1.msra.mxu0 %v6523
    %6604 = vmatprep.subr.mxu0 0.0
    %6605 = vmatpush1.msra.mxu0 %v6524
    %6606 = vmatprep.subr.mxu0 0.0
    %6607 = vmatpush1.msra.mxu0 %v6525
    %6608 = vmatprep.subr.mxu0 0.0
    %6609 = vmatpush1.msra.mxu0 %v6526
    %6610 = vmatprep.subr.mxu0 0.0
    %6611 = vmatpush1.msra.mxu0 %v6527
    %6612 = vmatprep.subr.mxu0 0.0
    %6613 = vmatpush1.msra.mxu0 %v6528
    %6614 = vmatprep.subr.mxu0 0.0
    %6615 = vmatpush1.msra.mxu0 %v6529
    %6616 = vmatprep.subr.mxu0 0.0
    %6617 = vmatpush1.msra.mxu0 %v6530
    %6618 = vmatprep.subr.mxu0 0.0
    %6619 = vmatpush1.msra.mxu0 %v6531
    %6620 = vmatprep.subr.mxu0 0.0
    %6621 = vmatpush1.msra.mxu0 %v6532
    %6622 = vmatprep.subr.mxu0 0.0
    %6623 = vmatpush1.msra.mxu0 %v6533
    %6624 = vmatprep.subr.mxu0 0.0
    %6625 = vmatpush1.msra.mxu0 %v6534
    %6626 = vmatprep.subr.mxu0 0.0
    %6627 = vmatpush1.msra.mxu0 %v6535
    %6628 = vmatprep.subr.mxu0 0.0
    %6629 = vmatpush1.msra.mxu0 %v6536
    %6630 = vmatprep.subr.mxu0 0.0
    %6631 = vmatpush1.msra.mxu0 %v6537
    %6632 = vmatprep.subr.mxu0 0.0
    %6633 = vmatpush1.msra.mxu0 %v6538
    %6634 = vmatprep.subr.mxu0 0.0
    %6635 = vmatpush1.msra.mxu0 %v6539
    %6636 = vmatprep.subr.mxu0 0.0
    %6637 = vmatpush1.msra.mxu0 %v6540
    %6638 = vmatprep.subr.mxu0 0.0
    %6639 = vmatpush1.msra.mxu0 %v6541
    %6640 = vmatprep.subr.mxu0 0.0
    %6641 = vmatpush1.msra.mxu0 %v6542
    %6642 = vmatprep.subr.mxu0 0.0
    %6643 = vmatpush1.msra.mxu0 %v6543
    %6644 = vmatprep.subr.mxu0 0.0
    %6645 = vmatpush1.msra.mxu0 %v6544
    %6646 = vmatprep.subr.mxu0 0.0
    %6647 = vmatpush1.msra.mxu0 %v6545
    %6648 = vmatprep.subr.mxu0 0.0
    %6649 = vmatpush1.msra.mxu0 %v6546
    %6650 = vmatprep.mubr.f32.mxu0 %v6512
    %6651 = vmatmul.mubr.f32.gmra.mrb[0].mxu0 %v6511
    %v6652 = vpop.f32.mrb[0].mxu0
    %v6653 = vadd.f32 %v6584, %v6652
    %v6654 = vpop.f32.mrb[0].mxu0
    %6655 = vdwg.mxu0
    %6656 = vmatprep.subr.mxu0 0.0
    %6657 = vmatpush1.msra.mxu0 %v6547
    %6658 = vmatprep.subr.mxu0 0.0
    %6659 = vmatpush1.msra.mxu0 %v6548
    %6660 = vmatprep.subr.mxu0 0.0
    %6661 = vmatpush1.msra.mxu0 %v6549
    %6662 = vmatprep.subr.mxu0 0.0
    %6663 = vmatpush1.msra.mxu0 %v6550
    %6664 = vmatprep.subr.mxu0 0.0
    %6665 = vmatpush1.msra.mxu0 %v6551
    %6666 = vmatprep.subr.mxu0 0.0
    %6667 = vmatpush1.msra.mxu0 %v6552
    %6668 = vmatprep.subr.mxu0 0.0
    %6669 = vmatpush1.msra.mxu0 %v6553
    %6670 = vmatprep.subr.mxu0 0.0
    %6671 = vmatpush1.msra.mxu0 %v6554
    %6672 = vmatprep.subr.mxu0 0.0
    %6673 = vmatpush1.msra.mxu0 %v6555
    %6674 = vmatprep.subr.mxu0 0.0
    %6675 = vmatpush1.msra.mxu0 %v6556
    %6676 = vmatprep.subr.mxu0 0.0
    %6677 = vmatpush1.msra.mxu0 %v6557
    %6678 = vmatprep.subr.mxu0 0.0
    %6679 = vmatpush1.msra.mxu0 %v6558
    %6680 = vmatprep.subr.mxu0 0.0
    %6681 = vmatpush1.msra.mxu0 %v6559
    %6682 = vmatprep.subr.mxu0 0.0
    %6683 = vmatpush1.msra.mxu0 %v6560
    %6684 = vmatprep.subr.mxu0 0.0
    %6685 = vmatpush1.msra.mxu0 %v6561
    %6686 = vmatprep.subr.mxu0 0.0
    %6687 = vmatpush1.msra.mxu0 %v6562
    %6688 = vmatprep.subr.mxu0 0.0
    %6689 = vmatpush1.msra.mxu0 %v6563
    %6690 = vmatprep.subr.mxu0 0.0
    %6691 = vmatpush1.msra.mxu0 %v6564
    %6692 = vmatprep.subr.mxu0 0.0
    %6693 = vmatpush1.msra.mxu0 %v6565
    %6694 = vmatprep.subr.mxu0 0.0
    %6695 = vmatpush1.msra.mxu0 %v6566
    %6696 = vmatprep.subr.mxu0 0.0
    %6697 = vmatpush1.msra.mxu0 %v6567
    %6698 = vmatprep.subr.mxu0 0.0
    %6699 = vmatpush1.msra.mxu0 %v6568
    %6700 = vmatprep.subr.mxu0 0.0
    %6701 = vmatpush1.msra.mxu0 %v6569
    %6702 = vmatprep.subr.mxu0 0.0
    %6703 = vmatpush1.msra.mxu0 %v6570
    %6704 = vmatprep.subr.mxu0 0.0
    %6705 = vmatpush1.msra.mxu0 %v6571
    %6706 = vmatprep.subr.mxu0 0.0
    %6707 = vmatpush1.msra.mxu0 %v6572
    %6708 = vmatprep.subr.mxu0 0.0
    %6709 = vmatpush1.msra.mxu0 %v6573
    %6710 = vmatprep.subr.mxu0 0.0
    %6711 = vmatpush1.msra.mxu0 %v6574
    %6712 = vmatprep.subr.mxu0 0.0
    %6713 = vmatpush1.msra.mxu0 %v6575
    %6714 = vmatprep.subr.mxu0 0.0
    %6715 = vmatpush1.msra.mxu0 %v6576
    %6716 = vmatprep.subr.mxu0 0.0
    %6717 = vmatpush1.msra.mxu0 %v6577
    %6718 = vmatprep.subr.mxu0 0.0
    %6719 = vmatpush1.msra.mxu0 %v6578
    %6720 = vmatprep.mubr.f32.mxu0 %v6514
    %6721 = vmatmul.mubr.f32.gmra.mrb[0].mxu0 %v6513
    %v6722 = vpop.f32.mrb[0].mxu0
    %v6723 = vadd.f32 %v6653, %v6722
    %v6724 = vpop.f32.mrb[0].mxu0
    %6725 = vdwg.mxu0
    %v6726 = vmax.f32 %v6723, 0.0
    %6727 = vst [vmem:[#allocation12] sm:$0x3] %v6726
    %v6728 = vld [vmem:[%s7] sm:$0xff]
    %v6729 = vld [vmem:[%s7 + $0x8] sm:$0xff]
    %v6730 = vld [vmem:[%s7 + $0x10] sm:$0xff]
    %v6731 = vld [vmem:[%s7 + $0x18] sm:$0xff]
    %v6732 = vld [vmem:[%s7 + $0x20] sm:$0xff]
    %v6733 = vld [vmem:[%s7 + $0x28] sm:$0xff]
    %v6734 = vld [vmem:[%s7 + $0x30] sm:$0xff]
    %v6735 = vld [vmem:[%s7 + $0x38] sm:$0xff]
    %v6736 = vld [vmem:[%s7 + $0x40] sm:$0xff]
    %v6737 = vld [vmem:[%s7 + $0x48] sm:$0xff]
    %v6738 = vld [vmem:[%s7 + $0x50] sm:$0xff]
    %v6739 = vld [vmem:[%s7 + $0x58] sm:$0xff]
    %v6740 = vld [vmem:[%s7 + $0x60] sm:$0xff]
    %v6741 = vld [vmem:[%s7 + $0x68] sm:$0xff]
    %v6742 = vld [vmem:[%s7 + $0x70] sm:$0xff]
    %v6743 = vld [vmem:[%s7 + $0x78] sm:$0xff]
    %v6744 = vld [vmem:[#allocation2] sm:$0x1]
    %v6746 = vlaneseq
    %v6747 = vshrl.u32 %v6746, 7
    %v6748 = vsub.s32 0, %v6747
    %v6749 = vrot.slane %v6744, %v6748
    %6751 = vmatprep.subr.mxu0 0.0
    %6752 = vmatpush1.msra.mxu0 %v6728
    %6753 = vmatprep.subr.mxu0 0.0
    %6754 = vmatpush1.msra.mxu0 %v6729
    %6755 = vmatprep.subr.mxu0 0.0
    %6756 = vmatpush1.msra.mxu0 %v6730
    %6757 = vmatprep.subr.mxu0 0.0
    %6758 = vmatpush1.msra.mxu0 %v6731
    %6759 = vmatprep.subr.mxu0 0.0
    %6760 = vmatpush1.msra.mxu0 %v6732
    %6761 = vmatprep.subr.mxu0 0.0
    %6762 = vmatpush1.msra.mxu0 %v6733
    %6763 = vmatprep.subr.mxu0 0.0
    %6764 = vmatpush1.msra.mxu0 %v6734
    %6765 = vmatprep.subr.mxu0 0.0
    %6766 = vmatpush1.msra.mxu0 %v6735
    %6767 = vmatprep.subr.mxu0 0.0
    %6768 = vmatpush1.msra.mxu0 %v6736
    %6769 = vmatprep.subr.mxu0 0.0
    %6770 = vmatpush1.msra.mxu0 %v6737
    %6771 = vmatprep.subr.mxu0 0.0
    %6772 = vmatpush1.msra.mxu0 %v6738
    %6773 = vmatprep.subr.mxu0 0.0
    %6774 = vmatpush1.msra.mxu0 %v6739
    %6775 = vmatprep.subr.mxu0 0.0
    %6776 = vmatpush1.msra.mxu0 %v6740
    %6777 = vmatprep.subr.mxu0 0.0
    %6778 = vmatpush1.msra.mxu0 %v6741
    %6779 = vmatprep.subr.mxu0 0.0
    %6780 = vmatpush1.msra.mxu0 %v6742
    %6781 = vmatprep.subr.mxu0 0.0
    %6782 = vmatpush1.msra.mxu0 %v6743
    %6783 = vmatprep.subr.mxu0 0.0
    %6784 = vmatpush1.msra.mxu0 0.0
    %6785 = vmatprep.subr.mxu0 0.0
    %6786 = vmatpush1.msra.mxu0 0.0
    %6787 = vmatprep.subr.mxu0 0.0
    %6788 = vmatpush1.msra.mxu0 0.0
    %6789 = vmatprep.subr.mxu0 0.0
    %6790 = vmatpush1.msra.mxu0 0.0
    %6791 = vmatprep.subr.mxu0 0.0
    %6792 = vmatpush1.msra.mxu0 0.0
    %6793 = vmatprep.subr.mxu0 0.0
    %6794 = vmatpush1.msra.mxu0 0.0
    %6795 = vmatprep.subr.mxu0 0.0
    %6796 = vmatpush1.msra.mxu0 0.0
    %6797 = vmatprep.subr.mxu0 0.0
    %6798 = vmatpush1.msra.mxu0 0.0
    %6799 = vmatprep.subr.mxu0 0.0
    %6800 = vmatpush1.msra.mxu0 0.0
    %6801 = vmatprep.subr.mxu0 0.0
    %6802 = vmatpush1.msra.mxu0 0.0
    %6803 = vmatprep.subr.mxu0 0.0
    %6804 = vmatpush1.msra.mxu0 0.0
    %6805 = vmatprep.subr.mxu0 0.0
    %6806 = vmatpush1.msra.mxu0 0.0
    %6807 = vmatprep.subr.mxu0 0.0
    %6808 = vmatpush1.msra.mxu0 0.0
    %6809 = vmatprep.subr.mxu0 0.0
    %6810 = vmatpush1.msra.mxu0 0.0
    %6811 = vmatprep.subr.mxu0 0.0
    %6812 = vmatpush1.msra.mxu0 0.0
    %6813 = vmatprep.subr.mxu0 0.0
    %6814 = vmatpush1.msra.mxu0 0.0
    %6815 = vmatprep.mubr.f32.mxu0 0.0
    %6816 = vmatmul.mubr.f32.gmra.mrb[0].mxu0 %v6726
    %v6817 = vpop.f32.mrb[0].mxu0
    %v6818 = vadd.f32 %v6749, %v6817
    %v6819 = vpop.f32.mrb[0].mxu0
    %6820 = vdwg.mxu0
    %v6821 = vxor.u32 %v6818, 2147483648
    %v6822 = vmul.f32 %v6821, 1.442695
    %v6823 = vpow.pop %v6822
    %v6824 = vadd.f32 %v6823, 1.0
    %v6825 = vrcp.pop %v6824
    %v6826 = vmul.f32 1.0, %v6825
    %vm6827 = vcmask 1024
    %6828 = vst.msk [vmem:[%s10] sm:$0x3] %vm6827, %v6826
    // Predicated region
    $region58: #{discriminator_forward.1} parent=1 // pred_check
      _
    $region59: #{discriminator_forward.1} parent=1 // pred_check_branch
      %6830 = sbr.rel (0) target = $region61
    $region60: #{discriminator_forward.1} parent=1 // pred_region
      %s6832 = ssub.s32 32, 32
      %6833 = vsyncadd [#allocation5], %s6832
      %s6835 = sshll.u32 [#allocation12], 4
      %s6836 = int_to_ptr.vmem [resolvable:$true] %s6835
      %6838 = dma.vmem_to_hbm [thread:$0]  %s6836, 32, %s9, [#allocation5]
    $region61: #{discriminator_forward.1} parent=1 // pred_fallthru
      _
    // Predicated region
    $region62: #{discriminator_forward.1} parent=1 // pred_check
      _
    $region63: #{discriminator_forward.1} parent=1 // pred_check_branch
      %6840 = sbr.rel (0) target = $region65
    $region64: #{discriminator_forward.1} parent=1 // pred_region
      _
    $region65: #{discriminator_forward.1} parent=1 // pred_fallthru
      _
    // Predicated region
    $region66: #{discriminator_forward.1} parent=1 // pred_check
      _
    $region67: #{discriminator_forward.1} parent=1 // pred_check_branch
      %6842 = sbr.rel (0) target = $region69
    $region68: #{discriminator_forward.1} parent=1 // pred_region
      %6843 = dma.done [#allocation5], 32
    $region69: #{discriminator_forward.1} parent=1 // pred_fallthru
      _
    // Predicated region
    $region70: #{discriminator_forward.1} parent=1 // pred_check
      _
    $region71: #{discriminator_forward.1} parent=1 // pred_check_branch
      %6845 = sbr.rel (0) target = $region73
    $region72: #{discriminator_forward.1} parent=1 // pred_region
      _
    $region73: #{discriminator_forward.1} parent=1 // pred_fallthru
      _
    %6846 = vsyncpa [#allocation4], 1
    %6847 = vsyncpa [#allocation7], 1
    %6848 = vsyncpa [#allocation10], 1
    %6849 = vsyncpa [#allocation5], 1

</llo_original>
